<compile_context>
chip_gen: v6e
topology: v6e:2x2x1
jax: 0.10.0
libtpu: 0.0.40
codegen_flags: <defaults>
</compile_context>

<pallas_src>
import jax
import jax.numpy as jnp
from jax import lax
from jax.experimental import pallas as pl
from jax.experimental.pallas import tpu as pltpu

CONTEXT_SIZE = 14
IN_DIM = 40 * (1 + 2 * CONTEXT_SIZE)          # 1160
IN_DIM_PAD = 1168                              # next multiple of 16 (bf16 sublane tile)
N_CLASSES = 138
N_CLASSES_PAD = 256                            # lane-dense classifier width

IN_DIMS = [IN_DIM_PAD, 1024, 1024, 512, 512, 256]
OUT_REAL = [1024, 1024, 512, 512, 256, N_CLASSES]
OUT_PAD = [1024, 1024, 512, 512, 256, N_CLASSES_PAD]
OFFS = [0, 1024, 2048, 2560, 3072, 3328]       # lane offsets into packed vecs
TOTAL_BIAS = sum(OUT_PAD)                      # 3584
TOTAL_BN = sum(OUT_PAD[:5])                    # 3328
BN_EPS = 1e-5
NEG_MASK = -1e30                               # f32 bias on padded logits


def pred_model_kernel(x_ref,
                      w1_hbm, w2_hbm, w3_hbm, w4_hbm, w5_hbm, w6_hbm,
                      bias_ref, gamma_ref, beta_ref,
                      o_ref,
                      w1_v, w2_v, w3_v, w4_v, w5_v, w6_v,
                      sems):
    w_hbm = [w1_hbm, w2_hbm, w3_hbm, w4_hbm, w5_hbm, w6_hbm]
    w_vmem = [w1_v, w2_v, w3_v, w4_v, w5_v, w6_v]

    # Stream weights HBM->VMEM exactly once, on grid step 0.  The VMEM
    # scratch buffers persist across grid iterations, so every subsequent
    # micro-batch reuses the resident copy with zero weight traffic.
    @pl.when(pl.program_id(0) == 0)
    def _load_weights():
        copies = [pltpu.make_async_copy(w_hbm[i], w_vmem[i], sems.at[i])
                  for i in range(6)]
        for cp in copies:          # all six in flight together (max HBM BW)
            cp.start()
        for cp in copies:
            cp.wait()

    h = x_ref[...].astype(jnp.float32)

    for i in range(6):
        n, off = OUT_PAD[i], OFFS[i]
        b = bias_ref[:, off:off + n]
        z = jnp.dot(h.astype(jnp.bfloat16), w_vmem[i][...],
                    preferred_element_type=jnp.float32) + b
        if i < 2:
            h = jnp.maximum(z, 0.0)        # relu (fc1, fc2)
        elif i < 5:
            h = jax.nn.sigmoid(z)          # sigmoid (fc3..fc5)
        else:
            h = z                          # fc6: raw logits
        if i < 5:
            # training-mode BatchNorm1d over this micro-batch, two-pass var
            g = gamma_ref[:, off:off + n]
            bt = beta_ref[:, off:off + n]
            mean = jnp.mean(h, axis=0, keepdims=True)
            ctr = h - mean
            var = jnp.mean(ctr * ctr, axis=0, keepdims=True)
            h = ctr * lax.rsqrt(var + BN_EPS) * g + bt

    # log_softmax over the padded 256 lanes; pad lanes carry bias -1e30 so
    # exp() underflows to exactly 0 and they don't contribute to the lse.
    m = jnp.max(h, axis=-1, keepdims=True)
    shifted = h - m
    lse = jnp.log(jnp.sum(jnp.exp(shifted), axis=-1, keepdims=True))
    o_ref[...] = shifted - lse


def pred_model_forward_batched(x, params):
    """x: (G, B, IN_DIM).  Each of the G micro-batches is an independent
    forward() call (BatchNorm stats over its own B rows).  Weights are DMA'd
    to VMEM once (grid step 0) and reused for all G grid steps."""
    ws, bias_all, gamma_all, beta_all = params
    G, B, D = x.shape
    assert D == IN_DIM and B > 1
    x = jnp.pad(x, ((0, 0), (0, 0), (0, IN_DIM_PAD - IN_DIM)))

    hbm_spec = pl.BlockSpec(memory_space=pl.ANY)
    x_spec = pl.BlockSpec((pl.Squeezed(), B, IN_DIM_PAD), lambda g: (g, 0, 0))
    out_spec = pl.BlockSpec((pl.Squeezed(), B, N_CLASSES_PAD),
                            lambda g: (g, 0, 0))
    bias_spec = pl.BlockSpec((1, TOTAL_BIAS), lambda g: (0, 0))
    bn_spec = pl.BlockSpec((1, TOTAL_BN), lambda g: (0, 0))

    out = pl.pallas_call(
        pred_model_kernel,
        out_shape=jax.ShapeDtypeStruct((G, B, N_CLASSES_PAD), jnp.float32),
        grid_spec=pltpu.PrefetchScalarGridSpec(
            num_scalar_prefetch=0,
            grid=(G,),
            in_specs=[x_spec] + [hbm_spec] * 6 + [bias_spec, bn_spec, bn_spec],
            out_specs=out_spec,
            scratch_shapes=[pltpu.VMEM((IN_DIMS[i], OUT_PAD[i]), jnp.bfloat16)
                            for i in range(6)]
                           + [pltpu.SemaphoreType.DMA((6,))]),
        compiler_params=pltpu.CompilerParams(
            # "arbitrary": grid steps run sequentially on one core, so the
            # weights loaded at step 0 are valid for every later step.
            dimension_semantics=("arbitrary",),
            vmem_limit_bytes=32 << 20),
    )(x, *ws, bias_all, gamma_all, beta_all)
    return out[:, :, :N_CLASSES]


def pred_model_forward(x, params):
    """Single-batch convenience wrapper: x is (B, IN_DIM)."""
    return pred_model_forward_batched(x[None], params)[0]


def init_params(key):
    """PyTorch nn.Linear-style init.

    Weights are [in, out] bf16.  fc1 is zero-padded to 1168 input rows
    (matching the zero-padded x columns); fc6 is zero-padded to 256 output
    cols with -1e30 pad biases (f32) so padded logits vanish in log-softmax.
    Biases / BN gammas / betas are packed into single [1, N] f32 vectors.
    """
    ws, bias_chunks, gamma_chunks, beta_chunks = [], [], [], []
    keys = jax.random.split(key, 12)
    for i in range(6):
        fan_in_real = IN_DIM if i == 0 else IN_DIMS[i]
        fan_in_pad = IN_DIMS[i]
        n_real, n_pad = OUT_REAL[i], OUT_PAD[i]
        bound = 1.0 / (fan_in_real ** 0.5)
        w = jax.random.uniform(keys[2 * i], (fan_in_real, n_real), jnp.float32,
                               -bound, bound)
        b = jax.random.uniform(keys[2 * i + 1], (1, n_real), jnp.float32,
                               -bound, bound)
        if fan_in_pad != fan_in_real:      # fc1: zero rows for padded x cols
            w = jnp.pad(w, ((0, fan_in_pad - fan_in_real), (0, 0)))
        if n_pad != n_real:                # fc6: zero cols + -1e30 pad bias
            w = jnp.pad(w, ((0, 0), (0, n_pad - n_real)))
            b = jnp.pad(b, ((0, 0), (0, n_pad - n_real)),
                        constant_values=NEG_MASK)
        ws.append(w.astype(jnp.bfloat16))
        bias_chunks.append(b)
        if i < 5:
            gamma_chunks.append(jnp.ones((1, n_pad), jnp.float32))
            beta_chunks.append(jnp.zeros((1, n_pad), jnp.float32))
    bias_all = jnp.concatenate(bias_chunks, axis=1)
    gamma_all = jnp.concatenate(gamma_chunks, axis=1)
    beta_all = jnp.concatenate(beta_chunks, axis=1)
    return ws, bias_all, gamma_all, beta_all


def reference_forward(x, params):
    """Pure-JAX reference for one micro-batch (B, IN_DIM) with the same mixed
    precision as the kernel (bf16 weights/activations, f32 accumulation)."""
    ws, bias_all, gamma_all, beta_all = params
    h = jnp.pad(x, ((0, 0), (0, IN_DIM_PAD - IN_DIM))).astype(jnp.float32)
    for i in range(6):
        n, off = OUT_PAD[i], OFFS[i]
        b = bias_all[:, off:off + n]
        z = jnp.dot(h.astype(jnp.bfloat16), ws[i],
                    preferred_element_type=jnp.float32) + b
        if i < 2:
            h = jax.nn.relu(z)
        elif i < 5:
            h = jax.nn.sigmoid(z)
        else:
            h = z
        if i < 5:
            g = gamma_all[:, off:off + n]
            bt = beta_all[:, off:off + n]
            mu = jnp.mean(h, axis=0, keepdims=True)
            var = jnp.mean((h - mu) ** 2, axis=0, keepdims=True)
            h = (h - mu) / jnp.sqrt(var + BN_EPS) * g + bt
    return jax.nn.log_softmax(h[:, :N_CLASSES], axis=-1)


if __name__ == "__main__":
    key = jax.random.PRNGKey(0)
    pkey, xkey = jax.random.split(key)
    params = init_params(pkey)

    # 3 independent micro-batches on the grid; B=8 > 1 so the BatchNorm
    # branches (`if len(x) > 1`) are taken, matching the PyTorch module.
    G, B = 3, 8
    x = jax.random.normal(xkey, (G, B, IN_DIM), jnp.float32)

    out = jax.block_until_ready(pred_model_forward_batched(x, params))
    ref = jax.block_until_ready(
        jnp.stack([reference_forward(x[g], params) for g in range(G)]))

    max_err = float(jnp.max(jnp.abs(out - ref)))
    if not (out.shape == (G, B, N_CLASSES) and max_err < 5e-3):
        raise AssertionError(f"mismatch: shape={out.shape}, max_err={max_err}")

    print("KERNEL_OK")
</pallas_src>

<mosaic_0001>
module attributes {stable_mosaic.version = 11 : i64} {
  func.func @pred_model_kernel(%arg0: i32, %arg1: memref<1x8x1168xf32, #tpu.memory_space<vmem>>, %arg2: memref<1168x1024xbf16, #tpu.memory_space<any>>, %arg3: memref<1024x1024xbf16, #tpu.memory_space<any>>, %arg4: memref<1024x512xbf16, #tpu.memory_space<any>>, %arg5: memref<512x512xbf16, #tpu.memory_space<any>>, %arg6: memref<512x256xbf16, #tpu.memory_space<any>>, %arg7: memref<256x256xbf16, #tpu.memory_space<any>>, %arg8: memref<1x3584xf32, #tpu.memory_space<vmem>>, %arg9: memref<1x3328xf32, #tpu.memory_space<vmem>>, %arg10: memref<1x3328xf32, #tpu.memory_space<vmem>>, %arg11: memref<1x8x256xf32, #tpu.memory_space<vmem>>, %arg12: memref<1168x1024xbf16, #tpu.memory_space<vmem>>, %arg13: memref<1024x1024xbf16, #tpu.memory_space<vmem>>, %arg14: memref<1024x512xbf16, #tpu.memory_space<vmem>>, %arg15: memref<512x512xbf16, #tpu.memory_space<vmem>>, %arg16: memref<512x256xbf16, #tpu.memory_space<vmem>>, %arg17: memref<256x256xbf16, #tpu.memory_space<vmem>>, %arg18: memref<6x!tpu.dma_semaphore, #tpu.memory_space<semaphore_mem>>) attributes {dimension_semantics = [#tpu.dimension_semantics<arbitrary>], iteration_bounds = array<i64: 3>, scalar_prefetch = 0 : i64, scratch_operands = 7 : i64, tpu.core_type = #tpu.core_type<tc>, window_params = [{transform_indices = @transform_0, window_bounds = array<i64: 1, 8, 1168>}, {}, {}, {}, {}, {}, {}, {pipeline_mode = #tpu.pipeline_mode<synchronous>, transform_indices = @transform_7, window_bounds = array<i64: 1, 3584>}, {pipeline_mode = #tpu.pipeline_mode<synchronous>, transform_indices = @transform_8, window_bounds = array<i64: 1, 3328>}, {pipeline_mode = #tpu.pipeline_mode<synchronous>, transform_indices = @transform_9, window_bounds = array<i64: 1, 3328>}, {transform_indices = @transform_10, window_bounds = array<i64: 1, 8, 256>}]} {
    %c0_i32 = arith.constant 0 : i32
    %0 = arith.cmpi eq, %arg0, %c0_i32 : i32
    %1 = arith.extui %0 : i1 to i32
    %c0_i32_0 = arith.constant 0 : i32
    %2 = arith.cmpi ne, %1, %c0_i32_0 : i32
    scf.if %2 {
      %c0_i32_82 = arith.constant 0 : i32
      %183 = tpu.memref_slice %arg18[%c0_i32_82] : memref<6x!tpu.dma_semaphore, #tpu.memory_space<semaphore_mem>> -> memref<1x!tpu.dma_semaphore, #tpu.memory_space<semaphore_mem>>
      %184 = tpu.memref_squeeze %183 : memref<1x!tpu.dma_semaphore, #tpu.memory_space<semaphore_mem>> -> memref<!tpu.dma_semaphore, #tpu.memory_space<semaphore_mem>>
      tpu.enqueue_dma source(%arg2 : memref<1168x1024xbf16, #tpu.memory_space<any>>) target(%arg12 : memref<1168x1024xbf16, #tpu.memory_space<vmem>>) target_semaphore(%184 : memref<!tpu.dma_semaphore, #tpu.memory_space<semaphore_mem>>)
      %c1_i32 = arith.constant 1 : i32
      %185 = tpu.memref_slice %arg18[%c1_i32] : memref<6x!tpu.dma_semaphore, #tpu.memory_space<semaphore_mem>> -> memref<1x!tpu.dma_semaphore, #tpu.memory_space<semaphore_mem>>
      %186 = tpu.memref_squeeze %185 : memref<1x!tpu.dma_semaphore, #tpu.memory_space<semaphore_mem>> -> memref<!tpu.dma_semaphore, #tpu.memory_space<semaphore_mem>>
      tpu.enqueue_dma source(%arg3 : memref<1024x1024xbf16, #tpu.memory_space<any>>) target(%arg13 : memref<1024x1024xbf16, #tpu.memory_space<vmem>>) target_semaphore(%186 : memref<!tpu.dma_semaphore, #tpu.memory_space<semaphore_mem>>)
      %c2_i32 = arith.constant 2 : i32
      %187 = tpu.memref_slice %arg18[%c2_i32] : memref<6x!tpu.dma_semaphore, #tpu.memory_space<semaphore_mem>> -> memref<1x!tpu.dma_semaphore, #tpu.memory_space<semaphore_mem>>
      %188 = tpu.memref_squeeze %187 : memref<1x!tpu.dma_semaphore, #tpu.memory_space<semaphore_mem>> -> memref<!tpu.dma_semaphore, #tpu.memory_space<semaphore_mem>>
      tpu.enqueue_dma source(%arg4 : memref<1024x512xbf16, #tpu.memory_space<any>>) target(%arg14 : memref<1024x512xbf16, #tpu.memory_space<vmem>>) target_semaphore(%188 : memref<!tpu.dma_semaphore, #tpu.memory_space<semaphore_mem>>)
      %c3_i32 = arith.constant 3 : i32
      %189 = tpu.memref_slice %arg18[%c3_i32] : memref<6x!tpu.dma_semaphore, #tpu.memory_space<semaphore_mem>> -> memref<1x!tpu.dma_semaphore, #tpu.memory_space<semaphore_mem>>
      %190 = tpu.memref_squeeze %189 : memref<1x!tpu.dma_semaphore, #tpu.memory_space<semaphore_mem>> -> memref<!tpu.dma_semaphore, #tpu.memory_space<semaphore_mem>>
      tpu.enqueue_dma source(%arg5 : memref<512x512xbf16, #tpu.memory_space<any>>) target(%arg15 : memref<512x512xbf16, #tpu.memory_space<vmem>>) target_semaphore(%190 : memref<!tpu.dma_semaphore, #tpu.memory_space<semaphore_mem>>)
      %c4_i32 = arith.constant 4 : i32
      %191 = tpu.memref_slice %arg18[%c4_i32] : memref<6x!tpu.dma_semaphore, #tpu.memory_space<semaphore_mem>> -> memref<1x!tpu.dma_semaphore, #tpu.memory_space<semaphore_mem>>
      %192 = tpu.memref_squeeze %191 : memref<1x!tpu.dma_semaphore, #tpu.memory_space<semaphore_mem>> -> memref<!tpu.dma_semaphore, #tpu.memory_space<semaphore_mem>>
      tpu.enqueue_dma source(%arg6 : memref<512x256xbf16, #tpu.memory_space<any>>) target(%arg16 : memref<512x256xbf16, #tpu.memory_space<vmem>>) target_semaphore(%192 : memref<!tpu.dma_semaphore, #tpu.memory_space<semaphore_mem>>)
      %c5_i32 = arith.constant 5 : i32
      %193 = tpu.memref_slice %arg18[%c5_i32] : memref<6x!tpu.dma_semaphore, #tpu.memory_space<semaphore_mem>> -> memref<1x!tpu.dma_semaphore, #tpu.memory_space<semaphore_mem>>
      %194 = tpu.memref_squeeze %193 : memref<1x!tpu.dma_semaphore, #tpu.memory_space<semaphore_mem>> -> memref<!tpu.dma_semaphore, #tpu.memory_space<semaphore_mem>>
      tpu.enqueue_dma source(%arg7 : memref<256x256xbf16, #tpu.memory_space<any>>) target(%arg17 : memref<256x256xbf16, #tpu.memory_space<vmem>>) target_semaphore(%194 : memref<!tpu.dma_semaphore, #tpu.memory_space<semaphore_mem>>)
      %c0_i32_83 = arith.constant 0 : i32
      %195 = tpu.memref_slice %arg18[%c0_i32_83] : memref<6x!tpu.dma_semaphore, #tpu.memory_space<semaphore_mem>> -> memref<1x!tpu.dma_semaphore, #tpu.memory_space<semaphore_mem>>
      %196 = tpu.memref_squeeze %195 : memref<1x!tpu.dma_semaphore, #tpu.memory_space<semaphore_mem>> -> memref<!tpu.dma_semaphore, #tpu.memory_space<semaphore_mem>>
      tpu.wait_dma2 semaphore(%196 : memref<!tpu.dma_semaphore, #tpu.memory_space<semaphore_mem>>) src(%arg2 : memref<1168x1024xbf16, #tpu.memory_space<any>>) dst(%arg12 : memref<1168x1024xbf16, #tpu.memory_space<vmem>>)
      %c1_i32_84 = arith.constant 1 : i32
      %197 = tpu.memref_slice %arg18[%c1_i32_84] : memref<6x!tpu.dma_semaphore, #tpu.memory_space<semaphore_mem>> -> memref<1x!tpu.dma_semaphore, #tpu.memory_space<semaphore_mem>>
      %198 = tpu.memref_squeeze %197 : memref<1x!tpu.dma_semaphore, #tpu.memory_space<semaphore_mem>> -> memref<!tpu.dma_semaphore, #tpu.memory_space<semaphore_mem>>
      tpu.wait_dma2 semaphore(%198 : memref<!tpu.dma_semaphore, #tpu.memory_space<semaphore_mem>>) src(%arg3 : memref<1024x1024xbf16, #tpu.memory_space<any>>) dst(%arg13 : memref<1024x1024xbf16, #tpu.memory_space<vmem>>)
      %c2_i32_85 = arith.constant 2 : i32
      %199 = tpu.memref_slice %arg18[%c2_i32_85] : memref<6x!tpu.dma_semaphore, #tpu.memory_space<semaphore_mem>> -> memref<1x!tpu.dma_semaphore, #tpu.memory_space<semaphore_mem>>
      %200 = tpu.memref_squeeze %199 : memref<1x!tpu.dma_semaphore, #tpu.memory_space<semaphore_mem>> -> memref<!tpu.dma_semaphore, #tpu.memory_space<semaphore_mem>>
      tpu.wait_dma2 semaphore(%200 : memref<!tpu.dma_semaphore, #tpu.memory_space<semaphore_mem>>) src(%arg4 : memref<1024x512xbf16, #tpu.memory_space<any>>) dst(%arg14 : memref<1024x512xbf16, #tpu.memory_space<vmem>>)
      %c3_i32_86 = arith.constant 3 : i32
      %201 = tpu.memref_slice %arg18[%c3_i32_86] : memref<6x!tpu.dma_semaphore, #tpu.memory_space<semaphore_mem>> -> memref<1x!tpu.dma_semaphore, #tpu.memory_space<semaphore_mem>>
      %202 = tpu.memref_squeeze %201 : memref<1x!tpu.dma_semaphore, #tpu.memory_space<semaphore_mem>> -> memref<!tpu.dma_semaphore, #tpu.memory_space<semaphore_mem>>
      tpu.wait_dma2 semaphore(%202 : memref<!tpu.dma_semaphore, #tpu.memory_space<semaphore_mem>>) src(%arg5 : memref<512x512xbf16, #tpu.memory_space<any>>) dst(%arg15 : memref<512x512xbf16, #tpu.memory_space<vmem>>)
      %c4_i32_87 = arith.constant 4 : i32
      %203 = tpu.memref_slice %arg18[%c4_i32_87] : memref<6x!tpu.dma_semaphore, #tpu.memory_space<semaphore_mem>> -> memref<1x!tpu.dma_semaphore, #tpu.memory_space<semaphore_mem>>
      %204 = tpu.memref_squeeze %203 : memref<1x!tpu.dma_semaphore, #tpu.memory_space<semaphore_mem>> -> memref<!tpu.dma_semaphore, #tpu.memory_space<semaphore_mem>>
      tpu.wait_dma2 semaphore(%204 : memref<!tpu.dma_semaphore, #tpu.memory_space<semaphore_mem>>) src(%arg6 : memref<512x256xbf16, #tpu.memory_space<any>>) dst(%arg16 : memref<512x256xbf16, #tpu.memory_space<vmem>>)
      %c5_i32_88 = arith.constant 5 : i32
      %205 = tpu.memref_slice %arg18[%c5_i32_88] : memref<6x!tpu.dma_semaphore, #tpu.memory_space<semaphore_mem>> -> memref<1x!tpu.dma_semaphore, #tpu.memory_space<semaphore_mem>>
      %206 = tpu.memref_squeeze %205 : memref<1x!tpu.dma_semaphore, #tpu.memory_space<semaphore_mem>> -> memref<!tpu.dma_semaphore, #tpu.memory_space<semaphore_mem>>
      tpu.wait_dma2 semaphore(%206 : memref<!tpu.dma_semaphore, #tpu.memory_space<semaphore_mem>>) src(%arg7 : memref<256x256xbf16, #tpu.memory_space<any>>) dst(%arg17 : memref<256x256xbf16, #tpu.memory_space<vmem>>)
    } else {
    }
    %c0 = arith.constant 0 : index
    %c0_1 = arith.constant 0 : index
    %c0_2 = arith.constant 0 : index
    %3 = vector.load %arg1[%c0, %c0_1, %c0_2] : memref<1x8x1168xf32, #tpu.memory_space<vmem>>, vector<1x8x1168xf32>
    %4 = vector.shape_cast %3 : vector<1x8x1168xf32> to vector<8x1168xf32>
    %c0_3 = arith.constant 0 : index
    %c0_4 = arith.constant 0 : index
    %5 = vector.load %arg8[%c0_3, %c0_4] : memref<1x3584xf32, #tpu.memory_space<vmem>>, vector<1x1024xf32>
    %6 = arith.truncf %4 : vector<8x1168xf32> to vector<8x1168xbf16>
    %c0_5 = arith.constant 0 : index
    %c0_6 = arith.constant 0 : index
    %7 = vector.load %arg12[%c0_5, %c0_6] : memref<1168x1024xbf16, #tpu.memory_space<vmem>>, vector<1168x1024xbf16>
    %cst = arith.constant dense<0.000000e+00> : vector<8x1024xf32>
    %8 = tpu.matmul %6, %7, %cst {dimension_numbers = #tpu.dot_dimension_numbers<[1], [0], [0], [1], [0, 0, 1, 1], [], []>} : vector<8x1168xbf16>, vector<1168x1024xbf16>, vector<8x1024xf32> -> vector<8x1024xf32>
    %9 = vector.broadcast %5 : vector<1x1024xf32> to vector<8x1024xf32>
    %10 = arith.addf %8, %9 : vector<8x1024xf32>
    %cst_7 = arith.constant 0.000000e+00 : f32
    %11 = vector.broadcast %cst_7 : f32 to vector<8x1024xf32>
    %12 = arith.maximumf %10, %11 : vector<8x1024xf32>
    %c0_8 = arith.constant 0 : index
    %c0_9 = arith.constant 0 : index
    %13 = vector.load %arg9[%c0_8, %c0_9] : memref<1x3328xf32, #tpu.memory_space<vmem>>, vector<1x1024xf32>
    %c0_10 = arith.constant 0 : index
    %c0_11 = arith.constant 0 : index
    %14 = vector.load %arg10[%c0_10, %c0_11] : memref<1x3328xf32, #tpu.memory_space<vmem>>, vector<1x1024xf32>
    %cst_12 = arith.constant dense<0.000000e+00> : vector<1024xf32>
    %15 = vector.multi_reduction <add>, %12, %cst_12 [0] : vector<8x1024xf32> to vector<1024xf32>
    %16 = vector.shape_cast %15 : vector<1024xf32> to vector<1x1024xf32>
    %cst_13 = arith.constant 8.000000e+00 : f32
    %17 = vector.broadcast %cst_13 : f32 to vector<1x1024xf32>
    %18 = arith.divf %16, %17 : vector<1x1024xf32>
    %19 = vector.broadcast %18 : vector<1x1024xf32> to vector<8x1024xf32>
    %20 = arith.subf %12, %19 : vector<8x1024xf32>
    %21 = arith.mulf %20, %20 : vector<8x1024xf32>
    %cst_14 = arith.constant dense<0.000000e+00> : vector<1024xf32>
    %22 = vector.multi_reduction <add>, %21, %cst_14 [0] : vector<8x1024xf32> to vector<1024xf32>
    %23 = vector.shape_cast %22 : vector<1024xf32> to vector<1x1024xf32>
    %cst_15 = arith.constant 8.000000e+00 : f32
    %24 = vector.broadcast %cst_15 : f32 to vector<1x1024xf32>
    %25 = arith.divf %23, %24 : vector<1x1024xf32>
    %cst_16 = arith.constant 9.99999974E-6 : f32
    %26 = vector.broadcast %cst_16 : f32 to vector<1x1024xf32>
    %27 = arith.addf %25, %26 : vector<1x1024xf32>
    %28 = math.rsqrt %27 : vector<1x1024xf32>
    %29 = vector.broadcast %28 : vector<1x1024xf32> to vector<8x1024xf32>
    %30 = arith.mulf %20, %29 : vector<8x1024xf32>
    %31 = vector.broadcast %13 : vector<1x1024xf32> to vector<8x1024xf32>
    %32 = arith.mulf %30, %31 : vector<8x1024xf32>
    %33 = vector.broadcast %14 : vector<1x1024xf32> to vector<8x1024xf32>
    %34 = arith.addf %32, %33 : vector<8x1024xf32>
    %c0_17 = arith.constant 0 : index
    %c1024 = arith.constant 1024 : index
    %35 = vector.load %arg8[%c0_17, %c1024] : memref<1x3584xf32, #tpu.memory_space<vmem>>, vector<1x1024xf32>
    %36 = arith.truncf %34 : vector<8x1024xf32> to vector<8x1024xbf16>
    %c0_18 = arith.constant 0 : index
    %c0_19 = arith.constant 0 : index
    %37 = vector.load %arg13[%c0_18, %c0_19] : memref<1024x1024xbf16, #tpu.memory_space<vmem>>, vector<1024x1024xbf16>
    %cst_20 = arith.constant dense<0.000000e+00> : vector<8x1024xf32>
    %38 = tpu.matmul %36, %37, %cst_20 {dimension_numbers = #tpu.dot_dimension_numbers<[1], [0], [0], [1], [0, 0, 1, 1], [], []>} : vector<8x1024xbf16>, vector<1024x1024xbf16>, vector<8x1024xf32> -> vector<8x1024xf32>
    %39 = vector.broadcast %35 : vector<1x1024xf32> to vector<8x1024xf32>
    %40 = arith.addf %38, %39 : vector<8x1024xf32>
    %cst_21 = arith.constant 0.000000e+00 : f32
    %41 = vector.broadcast %cst_21 : f32 to vector<8x1024xf32>
    %42 = arith.maximumf %40, %41 : vector<8x1024xf32>
    %c0_22 = arith.constant 0 : index
    %c1024_23 = arith.constant 1024 : index
    %43 = vector.load %arg9[%c0_22, %c1024_23] : memref<1x3328xf32, #tpu.memory_space<vmem>>, vector<1x1024xf32>
    %c0_24 = arith.constant 0 : index
    %c1024_25 = arith.constant 1024 : index
    %44 = vector.load %arg10[%c0_24, %c1024_25] : memref<1x3328xf32, #tpu.memory_space<vmem>>, vector<1x1024xf32>
    %cst_26 = arith.constant dense<0.000000e+00> : vector<1024xf32>
    %45 = vector.multi_reduction <add>, %42, %cst_26 [0] : vector<8x1024xf32> to vector<1024xf32>
    %46 = vector.shape_cast %45 : vector<1024xf32> to vector<1x1024xf32>
    %cst_27 = arith.constant 8.000000e+00 : f32
    %47 = vector.broadcast %cst_27 : f32 to vector<1x1024xf32>
    %48 = arith.divf %46, %47 : vector<1x1024xf32>
    %49 = vector.broadcast %48 : vector<1x1024xf32> to vector<8x1024xf32>
    %50 = arith.subf %42, %49 : vector<8x1024xf32>
    %51 = arith.mulf %50, %50 : vector<8x1024xf32>
    %cst_28 = arith.constant dense<0.000000e+00> : vector<1024xf32>
    %52 = vector.multi_reduction <add>, %51, %cst_28 [0] : vector<8x1024xf32> to vector<1024xf32>
    %53 = vector.shape_cast %52 : vector<1024xf32> to vector<1x1024xf32>
    %cst_29 = arith.constant 8.000000e+00 : f32
    %54 = vector.broadcast %cst_29 : f32 to vector<1x1024xf32>
    %55 = arith.divf %53, %54 : vector<1x1024xf32>
    %cst_30 = arith.constant 9.99999974E-6 : f32
    %56 = vector.broadcast %cst_30 : f32 to vector<1x1024xf32>
    %57 = arith.addf %55, %56 : vector<1x1024xf32>
    %58 = math.rsqrt %57 : vector<1x1024xf32>
    %59 = vector.broadcast %58 : vector<1x1024xf32> to vector<8x1024xf32>
    %60 = arith.mulf %50, %59 : vector<8x1024xf32>
    %61 = vector.broadcast %43 : vector<1x1024xf32> to vector<8x1024xf32>
    %62 = arith.mulf %60, %61 : vector<8x1024xf32>
    %63 = vector.broadcast %44 : vector<1x1024xf32> to vector<8x1024xf32>
    %64 = arith.addf %62, %63 : vector<8x1024xf32>
    %c0_31 = arith.constant 0 : index
    %c2048 = arith.constant 2048 : index
    %65 = vector.load %arg8[%c0_31, %c2048] : memref<1x3584xf32, #tpu.memory_space<vmem>>, vector<1x512xf32>
    %66 = arith.truncf %64 : vector<8x1024xf32> to vector<8x1024xbf16>
    %c0_32 = arith.constant 0 : index
    %c0_33 = arith.constant 0 : index
    %67 = vector.load %arg14[%c0_32, %c0_33] : memref<1024x512xbf16, #tpu.memory_space<vmem>>, vector<1024x512xbf16>
    %cst_34 = arith.constant dense<0.000000e+00> : vector<8x512xf32>
    %68 = tpu.matmul %66, %67, %cst_34 {dimension_numbers = #tpu.dot_dimension_numbers<[1], [0], [0], [1], [0, 0, 1, 1], [], []>} : vector<8x1024xbf16>, vector<1024x512xbf16>, vector<8x512xf32> -> vector<8x512xf32>
    %69 = vector.broadcast %65 : vector<1x512xf32> to vector<8x512xf32>
    %70 = arith.addf %68, %69 : vector<8x512xf32>
    %71 = arith.negf %70 : vector<8x512xf32>
    %72 = math.exp %71 : vector<8x512xf32>
    %cst_35 = arith.constant 1.000000e+00 : f32
    %73 = vector.broadcast %cst_35 : f32 to vector<8x512xf32>
    %74 = arith.addf %73, %72 : vector<8x512xf32>
    %75 = arith.divf %73, %74 : vector<8x512xf32>
    %c0_36 = arith.constant 0 : index
    %c2048_37 = arith.constant 2048 : index
    %76 = vector.load %arg9[%c0_36, %c2048_37] : memref<1x3328xf32, #tpu.memory_space<vmem>>, vector<1x512xf32>
    %c0_38 = arith.constant 0 : index
    %c2048_39 = arith.constant 2048 : index
    %77 = vector.load %arg10[%c0_38, %c2048_39] : memref<1x3328xf32, #tpu.memory_space<vmem>>, vector<1x512xf32>
    %cst_40 = arith.constant dense<0.000000e+00> : vector<512xf32>
    %78 = vector.multi_reduction <add>, %75, %cst_40 [0] : vector<8x512xf32> to vector<512xf32>
    %79 = vector.shape_cast %78 : vector<512xf32> to vector<1x512xf32>
    %cst_41 = arith.constant 8.000000e+00 : f32
    %80 = vector.broadcast %cst_41 : f32 to vector<1x512xf32>
    %81 = arith.divf %79, %80 : vector<1x512xf32>
    %82 = vector.broadcast %81 : vector<1x512xf32> to vector<8x512xf32>
    %83 = arith.subf %75, %82 : vector<8x512xf32>
    %84 = arith.mulf %83, %83 : vector<8x512xf32>
    %cst_42 = arith.constant dense<0.000000e+00> : vector<512xf32>
    %85 = vector.multi_reduction <add>, %84, %cst_42 [0] : vector<8x512xf32> to vector<512xf32>
    %86 = vector.shape_cast %85 : vector<512xf32> to vector<1x512xf32>
    %cst_43 = arith.constant 8.000000e+00 : f32
    %87 = vector.broadcast %cst_43 : f32 to vector<1x512xf32>
    %88 = arith.divf %86, %87 : vector<1x512xf32>
    %cst_44 = arith.constant 9.99999974E-6 : f32
    %89 = vector.broadcast %cst_44 : f32 to vector<1x512xf32>
    %90 = arith.addf %88, %89 : vector<1x512xf32>
    %91 = math.rsqrt %90 : vector<1x512xf32>
    %92 = vector.broadcast %91 : vector<1x512xf32> to vector<8x512xf32>
    %93 = arith.mulf %83, %92 : vector<8x512xf32>
    %94 = vector.broadcast %76 : vector<1x512xf32> to vector<8x512xf32>
    %95 = arith.mulf %93, %94 : vector<8x512xf32>
    %96 = vector.broadcast %77 : vector<1x512xf32> to vector<8x512xf32>
    %97 = arith.addf %95, %96 : vector<8x512xf32>
    %c0_45 = arith.constant 0 : index
    %c2560 = arith.constant 2560 : index
    %98 = vector.load %arg8[%c0_45, %c2560] : memref<1x3584xf32, #tpu.memory_space<vmem>>, vector<1x512xf32>
    %99 = arith.truncf %97 : vector<8x512xf32> to vector<8x512xbf16>
    %c0_46 = arith.constant 0 : index
    %c0_47 = arith.constant 0 : index
    %100 = vector.load %arg15[%c0_46, %c0_47] : memref<512x512xbf16, #tpu.memory_space<vmem>>, vector<512x512xbf16>
    %cst_48 = arith.constant dense<0.000000e+00> : vector<8x512xf32>
    %101 = tpu.matmul %99, %100, %cst_48 {dimension_numbers = #tpu.dot_dimension_numbers<[1], [0], [0], [1], [0, 0, 1, 1], [], []>} : vector<8x512xbf16>, vector<512x512xbf16>, vector<8x512xf32> -> vector<8x512xf32>
    %102 = vector.broadcast %98 : vector<1x512xf32> to vector<8x512xf32>
    %103 = arith.addf %101, %102 : vector<8x512xf32>
    %104 = arith.negf %103 : vector<8x512xf32>
    %105 = math.exp %104 : vector<8x512xf32>
    %cst_49 = arith.constant 1.000000e+00 : f32
    %106 = vector.broadcast %cst_49 : f32 to vector<8x512xf32>
    %107 = arith.addf %106, %105 : vector<8x512xf32>
    %108 = arith.divf %106, %107 : vector<8x512xf32>
    %c0_50 = arith.constant 0 : index
    %c2560_51 = arith.constant 2560 : index
    %109 = vector.load %arg9[%c0_50, %c2560_51] : memref<1x3328xf32, #tpu.memory_space<vmem>>, vector<1x512xf32>
    %c0_52 = arith.constant 0 : index
    %c2560_53 = arith.constant 2560 : index
    %110 = vector.load %arg10[%c0_52, %c2560_53] : memref<1x3328xf32, #tpu.memory_space<vmem>>, vector<1x512xf32>
    %cst_54 = arith.constant dense<0.000000e+00> : vector<512xf32>
    %111 = vector.multi_reduction <add>, %108, %cst_54 [0] : vector<8x512xf32> to vector<512xf32>
    %112 = vector.shape_cast %111 : vector<512xf32> to vector<1x512xf32>
    %cst_55 = arith.constant 8.000000e+00 : f32
    %113 = vector.broadcast %cst_55 : f32 to vector<1x512xf32>
    %114 = arith.divf %112, %113 : vector<1x512xf32>
    %115 = vector.broadcast %114 : vector<1x512xf32> to vector<8x512xf32>
    %116 = arith.subf %108, %115 : vector<8x512xf32>
    %117 = arith.mulf %116, %116 : vector<8x512xf32>
    %cst_56 = arith.constant dense<0.000000e+00> : vector<512xf32>
    %118 = vector.multi_reduction <add>, %117, %cst_56 [0] : vector<8x512xf32> to vector<512xf32>
    %119 = vector.shape_cast %118 : vector<512xf32> to vector<1x512xf32>
    %cst_57 = arith.constant 8.000000e+00 : f32
    %120 = vector.broadcast %cst_57 : f32 to vector<1x512xf32>
    %121 = arith.divf %119, %120 : vector<1x512xf32>
    %cst_58 = arith.constant 9.99999974E-6 : f32
    %122 = vector.broadcast %cst_58 : f32 to vector<1x512xf32>
    %123 = arith.addf %121, %122 : vector<1x512xf32>
    %124 = math.rsqrt %123 : vector<1x512xf32>
    %125 = vector.broadcast %124 : vector<1x512xf32> to vector<8x512xf32>
    %126 = arith.mulf %116, %125 : vector<8x512xf32>
    %127 = vector.broadcast %109 : vector<1x512xf32> to vector<8x512xf32>
    %128 = arith.mulf %126, %127 : vector<8x512xf32>
    %129 = vector.broadcast %110 : vector<1x512xf32> to vector<8x512xf32>
    %130 = arith.addf %128, %129 : vector<8x512xf32>
    %c0_59 = arith.constant 0 : index
    %c3072 = arith.constant 3072 : index
    %131 = vector.load %arg8[%c0_59, %c3072] : memref<1x3584xf32, #tpu.memory_space<vmem>>, vector<1x256xf32>
    %132 = arith.truncf %130 : vector<8x512xf32> to vector<8x512xbf16>
    %c0_60 = arith.constant 0 : index
    %c0_61 = arith.constant 0 : index
    %133 = vector.load %arg16[%c0_60, %c0_61] : memref<512x256xbf16, #tpu.memory_space<vmem>>, vector<512x256xbf16>
    %cst_62 = arith.constant dense<0.000000e+00> : vector<8x256xf32>
    %134 = tpu.matmul %132, %133, %cst_62 {dimension_numbers = #tpu.dot_dimension_numbers<[1], [0], [0], [1], [0, 0, 1, 1], [], []>} : vector<8x512xbf16>, vector<512x256xbf16>, vector<8x256xf32> -> vector<8x256xf32>
    %135 = vector.broadcast %131 : vector<1x256xf32> to vector<8x256xf32>
    %136 = arith.addf %134, %135 : vector<8x256xf32>
    %137 = arith.negf %136 : vector<8x256xf32>
    %138 = math.exp %137 : vector<8x256xf32>
    %cst_63 = arith.constant 1.000000e+00 : f32
    %139 = vector.broadcast %cst_63 : f32 to vector<8x256xf32>
    %140 = arith.addf %139, %138 : vector<8x256xf32>
    %141 = arith.divf %139, %140 : vector<8x256xf32>
    %c0_64 = arith.constant 0 : index
    %c3072_65 = arith.constant 3072 : index
    %142 = vector.load %arg9[%c0_64, %c3072_65] : memref<1x3328xf32, #tpu.memory_space<vmem>>, vector<1x256xf32>
    %c0_66 = arith.constant 0 : index
    %c3072_67 = arith.constant 3072 : index
    %143 = vector.load %arg10[%c0_66, %c3072_67] : memref<1x3328xf32, #tpu.memory_space<vmem>>, vector<1x256xf32>
    %cst_68 = arith.constant dense<0.000000e+00> : vector<256xf32>
    %144 = vector.multi_reduction <add>, %141, %cst_68 [0] : vector<8x256xf32> to vector<256xf32>
    %145 = vector.shape_cast %144 : vector<256xf32> to vector<1x256xf32>
    %cst_69 = arith.constant 8.000000e+00 : f32
    %146 = vector.broadcast %cst_69 : f32 to vector<1x256xf32>
    %147 = arith.divf %145, %146 : vector<1x256xf32>
    %148 = vector.broadcast %147 : vector<1x256xf32> to vector<8x256xf32>
    %149 = arith.subf %141, %148 : vector<8x256xf32>
    %150 = arith.mulf %149, %149 : vector<8x256xf32>
    %cst_70 = arith.constant dense<0.000000e+00> : vector<256xf32>
    %151 = vector.multi_reduction <add>, %150, %cst_70 [0] : vector<8x256xf32> to vector<256xf32>
    %152 = vector.shape_cast %151 : vector<256xf32> to vector<1x256xf32>
    %cst_71 = arith.constant 8.000000e+00 : f32
    %153 = vector.broadcast %cst_71 : f32 to vector<1x256xf32>
    %154 = arith.divf %152, %153 : vector<1x256xf32>
    %cst_72 = arith.constant 9.99999974E-6 : f32
    %155 = vector.broadcast %cst_72 : f32 to vector<1x256xf32>
    %156 = arith.addf %154, %155 : vector<1x256xf32>
    %157 = math.rsqrt %156 : vector<1x256xf32>
    %158 = vector.broadcast %157 : vector<1x256xf32> to vector<8x256xf32>
    %159 = arith.mulf %149, %158 : vector<8x256xf32>
    %160 = vector.broadcast %142 : vector<1x256xf32> to vector<8x256xf32>
    %161 = arith.mulf %159, %160 : vector<8x256xf32>
    %162 = vector.broadcast %143 : vector<1x256xf32> to vector<8x256xf32>
    %163 = arith.addf %161, %162 : vector<8x256xf32>
    %c0_73 = arith.constant 0 : index
    %c3328 = arith.constant 3328 : index
    %164 = vector.load %arg8[%c0_73, %c3328] : memref<1x3584xf32, #tpu.memory_space<vmem>>, vector<1x256xf32>
    %165 = arith.truncf %163 : vector<8x256xf32> to vector<8x256xbf16>
    %c0_74 = arith.constant 0 : index
    %c0_75 = arith.constant 0 : index
    %166 = vector.load %arg17[%c0_74, %c0_75] : memref<256x256xbf16, #tpu.memory_space<vmem>>, vector<256x256xbf16>
    %cst_76 = arith.constant dense<0.000000e+00> : vector<8x256xf32>
    %167 = tpu.matmul %165, %166, %cst_76 {dimension_numbers = #tpu.dot_dimension_numbers<[1], [0], [0], [1], [0, 0, 1, 1], [], []>} : vector<8x256xbf16>, vector<256x256xbf16>, vector<8x256xf32> -> vector<8x256xf32>
    %168 = vector.broadcast %164 : vector<1x256xf32> to vector<8x256xf32>
    %169 = arith.addf %167, %168 : vector<8x256xf32>
    %cst_77 = arith.constant dense<0xFF800000> : vector<8xf32>
    %170 = vector.multi_reduction <maximumf>, %169, %cst_77 [1] : vector<8x256xf32> to vector<8xf32>
    %171 = vector.shape_cast %170 : vector<8xf32> to vector<8x1xf32>
    %172 = vector.broadcast %171 : vector<8x1xf32> to vector<8x256xf32>
    %173 = arith.subf %169, %172 : vector<8x256xf32>
    %174 = math.exp %173 : vector<8x256xf32>
    %cst_78 = arith.constant dense<0.000000e+00> : vector<8xf32>
    %175 = vector.multi_reduction <add>, %174, %cst_78 [1] : vector<8x256xf32> to vector<8xf32>
    %176 = vector.shape_cast %175 : vector<8xf32> to vector<8x1xf32>
    %177 = math.log %176 : vector<8x1xf32>
    %178 = vector.broadcast %177 : vector<8x1xf32> to vector<8x256xf32>
    %179 = arith.subf %173, %178 : vector<8x256xf32>
    %c0_79 = arith.constant 0 : index
    %c0_80 = arith.constant 0 : index
    %c0_81 = arith.constant 0 : index
    %180 = vector.load %arg11[%c0_79, %c0_80, %c0_81] : memref<1x8x256xf32, #tpu.memory_space<vmem>>, vector<1x8x256xf32>
    %181 = vector.shape_cast %180 : vector<1x8x256xf32> to vector<8x256xf32>
    %182 = vector.shape_cast %179 : vector<8x256xf32> to vector<1x8x256xf32>
    tpu.vector_store %arg11[%c0_79, %c0_80, %c0_81], %182 {strides = array<i32>} : memref<1x8x256xf32, #tpu.memory_space<vmem>>, vector<1x8x256xf32>,
    return
  }
  func.func @transform_0(%arg0: i32) -> (i32, i32, i32) {
    %c0_i32 = arith.constant 0 : i32
    %c0_i32_0 = arith.constant 0 : i32
    %c0_i32_1 = arith.constant 0 : i32
    return %arg0, %c0_i32, %c0_i32_0 : i32, i32, i32
  }
  func.func @transform_7(%arg0: i32) -> (i32, i32) {
    %c0_i32 = arith.constant 0 : i32
    %c0_i32_0 = arith.constant 0 : i32
    %c0_i32_1 = arith.constant 0 : i32
    return %c0_i32, %c0_i32_0 : i32, i32
  }
  func.func @transform_8(%arg0: i32) -> (i32, i32) {
    %c0_i32 = arith.constant 0 : i32
    %c0_i32_0 = arith.constant 0 : i32
    %c0_i32_1 = arith.constant 0 : i32
    return %c0_i32, %c0_i32_0 : i32, i32
  }
  func.func @transform_9(%arg0: i32) -> (i32, i32) {
    %c0_i32 = arith.constant 0 : i32
    %c0_i32_0 = arith.constant 0 : i32
    %c0_i32_1 = arith.constant 0 : i32
    return %c0_i32, %c0_i32_0 : i32, i32
  }
  func.func @transform_10(%arg0: i32) -> (i32, i32, i32) {
    %c0_i32 = arith.constant 0 : i32
    %c0_i32_0 = arith.constant 0 : i32
    %c0_i32_1 = arith.constant 0 : i32
    return %arg0, %c0_i32, %c0_i32_0 : i32, i32, i32
  }
}

</mosaic_0001>

<llo_original>
// kernel: tpu_custom_call.1
$region0: #{tpu_custom_call.1}
  #allocation0 [shape = 'u32[]', space=smem, size = 0x4, offset = 0x4, fixed_abs, tag = 'smem constant byte address 0x4 - core index']
  #allocation1 [shape = 'u32[144,128]{1,0:T(1,128)}', space=vmem, size = 0x12000, scoped, tag = 'internal scratch']
  #allocation2 [shape = 'bf16[1168,1024]{1,0:T(8,128)(2,1)}', space=vmem, size = 0x248000, scoped, tag = 'scratch operand']
  #allocation3 [shape = 'bf16[1024,1024]{1,0:T(8,128)(2,1)}', space=vmem, size = 0x200000, scoped, tag = 'scratch operand']
  #allocation4 [shape = 'bf16[1024,512]{1,0:T(8,128)(2,1)}', space=vmem, size = 0x100000, scoped, tag = 'scratch operand']
  #allocation5 [shape = 'bf16[512,512]{1,0:T(8,128)(2,1)}', space=vmem, size = 0x80000, scoped, tag = 'scratch operand']
  #allocation6 [shape = 'bf16[512,256]{1,0:T(8,128)(2,1)}', space=vmem, size = 0x40000, scoped, tag = 'scratch operand']
  #allocation7 [shape = 'bf16[256,256]{1,0:T(8,128)(2,1)}', space=vmem, size = 0x20000, scoped, tag = 'scratch operand']
  #allocation8 [shape = 's32[6]{0}', space=sflag, size = 0x18, scoped, tag = 'scratch operand']
  #allocation18 [shape = 's32[]', space=sflag, size = 0x4, offset = 0, fixed_abs, tag = 'sflag constant byte address 0x0 - dummy sync flag']
  #allocation19 [shape = 's32[]', space=sflag, size = 0x4, offset = 0, fixed_abs, tag = 'sflag constant byte address 0x0 - dummy sync flag']
  #allocation20 [shape = 'u32[]', space=smem, size = 0x4, offset = 0x44, fixed_abs, tag = 'smem constant byte address 0x44 - assertion arg 0']
  #allocation21 [shape = 'u32[]', space=smem, size = 0x4, offset = 0x48, fixed_abs, tag = 'smem constant byte address 0x48 - assertion arg 1']
  #allocation22 [shape = 's32[]', space=sflag, size = 0x4, offset = 0, fixed_abs, tag = 'sflag constant byte address 0x0 - dummy sync flag']
  #allocation23 [shape = 's32[]', space=sflag, size = 0x4, offset = 0, fixed_abs, tag = 'sflag constant byte address 0x0 - dummy sync flag']
  #allocation24 [shape = 's32[]', space=sflag, size = 0x4, offset = 0, fixed_abs, tag = 'sflag constant byte address 0x0 - dummy sync flag']
  #allocation25 [shape = 's32[]', space=sflag, size = 0x4, offset = 0, fixed_abs, tag = 'sflag constant byte address 0x0 - dummy sync flag']
  #allocation26 [shape = 's32[]', space=sflag, size = 0x4, offset = 0, fixed_abs, tag = 'sflag constant byte address 0x0 - dummy sync flag']
  #allocation27 [shape = 's32[]', space=sflag, size = 0x4, offset = 0, fixed_abs, tag = 'sflag constant byte address 0x0 - dummy sync flag']
  #allocation28 [shape = 's32[]', space=sflag, size = 0x4, offset = 0, fixed_abs, tag = 'sflag constant byte address 0x0 - dummy sync flag']
  #allocation29 [shape = 's32[]', space=sflag, size = 0x4, offset = 0, fixed_abs, tag = 'sflag constant byte address 0x0 - dummy sync flag']
  #allocation30 [shape = 's32[]', space=sflag, size = 0x4, offset = 0, fixed_abs, tag = 'sflag constant byte address 0x0 - dummy sync flag']
  #allocation31 [shape = 's32[]', space=sflag, size = 0x4, offset = 0, fixed_abs, tag = 'sflag constant byte address 0x0 - dummy sync flag']
  %s0 = inlined_call_operand.hbm [shape: f32[3,8,1168], index: 0, kind: input, shape index: {}]
  %s1 = inlined_call_operand.hbm [shape: bf16[1168,1024], index: 1, kind: input, shape index: {}]
  %s2 = inlined_call_operand.hbm [shape: bf16[1024,1024], index: 2, kind: input, shape index: {}]
  %s3 = inlined_call_operand.hbm [shape: bf16[1024,512], index: 3, kind: input, shape index: {}]
  %s4 = inlined_call_operand.hbm [shape: bf16[512,512], index: 4, kind: input, shape index: {}]
  %s5 = inlined_call_operand.hbm [shape: bf16[512,256], index: 5, kind: input, shape index: {}]
  %s6 = inlined_call_operand.hbm [shape: bf16[256,256], index: 6, kind: input, shape index: {}]
  %s7 = inlined_call_operand.hbm [shape: f32[1,3584], index: 7, kind: input, shape index: {}]
  %s8 = inlined_call_operand.hbm [shape: f32[1,3328], index: 8, kind: input, shape index: {}]
  %s9 = inlined_call_operand.hbm [shape: f32[1,3328], index: 9, kind: input, shape index: {}]
  %s10 = inlined_call_operand.hbm [shape: f32[3,8,256], index: 10, kind: output, shape index: {}]
  %s11 = sld [smem:[#allocation0]]
  $region93: #{tpu_custom_call.1} parent=0
    _
  %s13 = ssub.s32 1, %s11
  %s14 = scalar_select 0, %s13, %s11
  $region1: #{tpu_custom_call.1} parent=0
    #allocation9 [shape = 'u8[81920]{0}', space=vmem, size = 0x14000, scoped, tag = 'input window, operand 0']
    #allocation10 [shape = 's32[2]{0}', space=sflag, size = 0x8, scoped, tag = 'scoped memory for tpu_custom_call.1']
    #allocation11 [shape = 's32[2]{0}', space=sflag, size = 0x8, scoped, tag = 'scoped memory for tpu_custom_call.1']
    #allocation12 [shape = 'u8[14336]{0}', space=vmem, size = 0x3800, scoped, tag = 'input window, operand 7, single buffered']
    #allocation13 [shape = 's32[1]{0}', space=sflag, size = 0x4, scoped, tag = 'scoped memory for tpu_custom_call.1']
    #allocation14 [shape = 'u8[13312]{0}', space=vmem, size = 0x3400, scoped, tag = 'input window, operand 8, single buffered']
    #allocation15 [shape = 'u8[13312]{0}', space=vmem, size = 0x3400, scoped, tag = 'input window, operand 9, single buffered']
    #allocation16 [shape = 's32[1]{0}', space=sflag, size = 0x4, scoped, tag = 'scoped memory for tpu_custom_call.1']
    #allocation17 [shape = 'u8[16384]{0}', space=vmem, size = 0x4000, scoped, tag = 'output window, operand 0']
    %15 = vsyncpa [#allocation10], 0
    %s16 = scalar_lea.sflag [#allocation10], 1
    %17 = vsyncpa %s16, 0
    %18 = vsyncpa [#allocation13], 0
    %19 = vsyncpa [#allocation16], 0
    %20 = vsyncpa [#allocation11], 0
    %s21 = scalar_lea.sflag [#allocation11], 1
    %22 = vsyncpa %s21, 0
    loop: start=0, step=1, limit=5
    $region2: #{tpu_custom_call.1} parent=1 // loop_pre_header
      _
    $region3: #{tpu_custom_call.1} parent=1 // loop_header
      %s24 = sphi 0, %s28
      %p25 = scmp.ge.s32.totalorder %s24, 5
      %s34 = sphi 0, %s36
      %s37 = sphi 0, %s34
      %s38 = sphi 0, %s37
      %s54 = sphi 0, %s38
      %s58 = sphi 0, %s58
      %s60 = sphi 0, %s58
      %s61 = sphi 0, %s60
      %s75 = sphi 0, %s61
      %s79 = sphi 0, %s79
      %s81 = sphi 0, %s79
      %s82 = sphi 0, %s81
      %s96 = sphi 0, %s82
      %s100 = sphi 0, %s100
      %s102 = sphi 0, %s100
      %s103 = sphi 0, %s102
      %s117 = sphi 0, %s103
      %s123 = sphi 0, %s125
      %s126 = sphi 0, %s123
      %s127 = sphi 0, %s126
      %s143 = sphi 0, %s127
    $region4: #{tpu_custom_call.1} parent=1 // loop_header_branch
      %27 = sbr.rel (%p25) target = $region8
    $region5: #{tpu_custom_call.1} parent=1 // loop_body
      %s29 = ssub.s32 %s24, 1
      %s30 = ssub.s32 %s24, 2
      %s31 = sadd.s32 %s24, 1
      %s32 = ssub.s32 %s24, %s31
      %p33 = scmp.eq.s32.totalorder %s32, 0
      %s35 = sadd.s32 %s34, 1
      %s36 = scalar_select %p33, %s34, %s35
      %p39 = pneg %p33
      %p40 = scmp.eq.s32.totalorder %s24, 2
      %p41 = por %p39, %p40
      %p42 = scmp.ne.s32.totalorder %s34, %s37
      %p43 = scmp.eq.s32.totalorder %s24, 0
      %p44 = por %p42, %p43
      %p45 = scmp.ne.s32.totalorder %s34, %s37
      %p46 = scmp.eq.s32.totalorder %s29, 2
      %p47 = por %p45, %p46
      %p48 = scmp.ne.s32.totalorder %s37, %s38
      %p49 = scmp.eq.s32.totalorder %s29, 0
      %p50 = por %p48, %p49
      %p51 = scmp.ne.s32.totalorder %s37, %s38
      %p52 = scmp.eq.s32.totalorder %s30, 2
      %p53 = por %p51, %p52
      %p55 = scmp.ne.s32.totalorder %s38, %s54
      %p56 = scmp.eq.s32.totalorder %s30, 0
      %p57 = por %p55, %p56
      %s59 = sadd.s32 %s58, 1
      %p62 = scmp.eq.s32.totalorder %s24, 2
      %p63 = scmp.ne.s32.totalorder %s58, %s60
      %p64 = scmp.eq.s32.totalorder %s24, 0
      %p65 = por %p63, %p64
      %p66 = scmp.ne.s32.totalorder %s58, %s60
      %p67 = scmp.eq.s32.totalorder %s29, 2
      %p68 = por %p66, %p67
      %p69 = scmp.ne.s32.totalorder %s60, %s61
      %p70 = scmp.eq.s32.totalorder %s29, 0
      %p71 = por %p69, %p70
      %p72 = scmp.ne.s32.totalorder %s60, %s61
      %p73 = scmp.eq.s32.totalorder %s30, 2
      %p74 = por %p72, %p73
      %p76 = scmp.ne.s32.totalorder %s61, %s75
      %p77 = scmp.eq.s32.totalorder %s30, 0
      %p78 = por %p76, %p77
      %s80 = sadd.s32 %s79, 1
      %p83 = scmp.eq.s32.totalorder %s24, 2
      %p84 = scmp.ne.s32.totalorder %s79, %s81
      %p85 = scmp.eq.s32.totalorder %s24, 0
      %p86 = por %p84, %p85
      %p87 = scmp.ne.s32.totalorder %s79, %s81
      %p88 = scmp.eq.s32.totalorder %s29, 2
      %p89 = por %p87, %p88
      %p90 = scmp.ne.s32.totalorder %s81, %s82
      %p91 = scmp.eq.s32.totalorder %s29, 0
      %p92 = por %p90, %p91
      %p93 = scmp.ne.s32.totalorder %s81, %s82
      %p94 = scmp.eq.s32.totalorder %s30, 2
      %p95 = por %p93, %p94
      %p97 = scmp.ne.s32.totalorder %s82, %s96
      %p98 = scmp.eq.s32.totalorder %s30, 0
      %p99 = por %p97, %p98
      %s101 = sadd.s32 %s100, 1
      %p104 = scmp.eq.s32.totalorder %s24, 2
      %p105 = scmp.ne.s32.totalorder %s100, %s102
      %p106 = scmp.eq.s32.totalorder %s24, 0
      %p107 = por %p105, %p106
      %p108 = scmp.ne.s32.totalorder %s100, %s102
      %p109 = scmp.eq.s32.totalorder %s29, 2
      %p110 = por %p108, %p109
      %p111 = scmp.ne.s32.totalorder %s102, %s103
      %p112 = scmp.eq.s32.totalorder %s29, 0
      %p113 = por %p111, %p112
      %p114 = scmp.ne.s32.totalorder %s102, %s103
      %p115 = scmp.eq.s32.totalorder %s30, 2
      %p116 = por %p114, %p115
      %p118 = scmp.ne.s32.totalorder %s103, %s117
      %p119 = scmp.eq.s32.totalorder %s30, 0
      %p120 = por %p118, %p119
      %s121 = ssub.s32 %s24, %s31
      %p122 = scmp.eq.s32.totalorder %s121, 0
      %s124 = sadd.s32 %s123, 1
      %s125 = scalar_select %p122, %s123, %s124
      %p128 = pneg %p122
      %p129 = scmp.eq.s32.totalorder %s24, 2
      %p130 = por %p128, %p129
      %p131 = scmp.ne.s32.totalorder %s123, %s126
      %p132 = scmp.eq.s32.totalorder %s24, 0
      %p133 = por %p131, %p132
      %p134 = scmp.ne.s32.totalorder %s123, %s126
      %p135 = scmp.eq.s32.totalorder %s29, 2
      %p136 = por %p134, %p135
      %p137 = scmp.ne.s32.totalorder %s126, %s127
      %p138 = scmp.eq.s32.totalorder %s29, 0
      %p139 = por %p137, %p138
      %p140 = scmp.ne.s32.totalorder %s126, %s127
      %p141 = scmp.eq.s32.totalorder %s30, 2
      %p142 = por %p140, %p141
      %p144 = scmp.ne.s32.totalorder %s127, %s143
      %p145 = scmp.eq.s32.totalorder %s30, 0
      %p146 = por %p144, %p145
      %p147 = scmp.le.s32.totalorder 1, %s24
      %p148 = scmp.lt.s32.totalorder %s24, 4
      %p149 = pnand %p147, %p148
      %p150 = pneg %p149
      // Predicated region
      $region9: #{tpu_custom_call.1} parent=5 // pred_check
        _
      $region10: #{tpu_custom_call.1} parent=5 // pred_check_branch
        %152 = sbr.rel (%p149) target = $region12
      $region11: #{tpu_custom_call.1} parent=5 // pred_region
        %s153 = ssub.s32 %s24, 1
        // Predicated region
        $region13: #{tpu_custom_call.1} parent=11 // pred_check
          %p154 = pneg %p71
        $region14: #{tpu_custom_call.1} parent=11 // pred_check_branch
          %156 = sbr.rel (%p154) target = $region16
        $region15: #{tpu_custom_call.1} parent=11 // pred_region
          %s158 = ssub.s32 448, 448
          %159 = vsyncadd [#allocation13], %s158
          %s161 = sshll.u32 [#allocation12], 4
          %s162 = int_to_ptr.vmem [resolvable:$true] %s161
          %164 = dma.hbm_to_vmem [thread:$0]  %s7, 448, %s162, [#allocation13]
        $region16: #{tpu_custom_call.1} parent=11 // pred_fallthru
          _
        // Predicated region
        $region17: #{tpu_custom_call.1} parent=11 // pred_check
          %p165 = pneg %p92
        $region18: #{tpu_custom_call.1} parent=11 // pred_check_branch
          %167 = sbr.rel (%p165) target = $region20
        $region19: #{tpu_custom_call.1} parent=11 // pred_region
          %s169 = ssub.s32 416, 416
          %170 = vsyncadd [#allocation13], %s169
          %s172 = sshll.u32 [#allocation14], 4
          %s173 = int_to_ptr.vmem [resolvable:$true] %s172
          %175 = dma.hbm_to_vmem [thread:$0]  %s8, 416, %s173, [#allocation13]
        $region20: #{tpu_custom_call.1} parent=11 // pred_fallthru
          _
        // Predicated region
        $region21: #{tpu_custom_call.1} parent=11 // pred_check
          %p176 = pneg %p113
        $region22: #{tpu_custom_call.1} parent=11 // pred_check_branch
          %178 = sbr.rel (%p176) target = $region24
        $region23: #{tpu_custom_call.1} parent=11 // pred_region
          %s180 = ssub.s32 416, 416
          %181 = vsyncadd [#allocation16], %s180
          %s183 = sshll.u32 [#allocation15], 4
          %s184 = int_to_ptr.vmem [resolvable:$true] %s183
          %186 = dma.hbm_to_vmem [thread:$0]  %s9, 416, %s184, [#allocation16]
        $region24: #{tpu_custom_call.1} parent=11 // pred_fallthru
          _
      $region12: #{tpu_custom_call.1} parent=5 // pred_fallthru
        _
      %p187 = scmp.lt.s32.totalorder %s24, 3
      // Predicated region
      $region25: #{tpu_custom_call.1} parent=5 // pred_check
        %p188 = pneg %p187
      $region26: #{tpu_custom_call.1} parent=5 // pred_check_branch
        %190 = sbr.rel (%p188) target = $region28
      $region27: #{tpu_custom_call.1} parent=5 // pred_region
        // Predicated region
        $region29: #{tpu_custom_call.1} parent=27 // pred_check
          %p191 = pneg %p44
        $region30: #{tpu_custom_call.1} parent=27 // pred_check_branch
          %193 = sbr.rel (%p191) target = $region32
        $region31: #{tpu_custom_call.1} parent=27 // pred_region
          %s194 = sand.u32 %s34, 1
          %s195 = scalar_lea.sflag [#allocation10], %s194
          %s196 = sand.u32 %s34, 1
          %s197 = smul.addr %s196, 80
          %s198 = scalar_lea.vmem [#allocation9], %s197
          %s200 = ssub.s32 1280, 1280
          %201 = vsyncadd %s195, %s200
          %s202 = smul.addr %s24, 10
          %s203 = smul.addr %s202, 128
          %s204 = scalar_lea.hbm %s0, %s203
          %s206 = sshll.u32 %s198, 4
          %s207 = int_to_ptr.vmem [resolvable:$true] %s206
          %209 = dma.hbm_to_vmem [thread:$0]  %s204, 1280, %s207, %s195
        $region32: #{tpu_custom_call.1} parent=27 // pred_fallthru
          _
      $region28: #{tpu_custom_call.1} parent=5 // pred_fallthru
        _
      %p210 = scmp.le.s32.totalorder 1, %s24
      %p211 = scmp.lt.s32.totalorder %s24, 4
      %p212 = pnand %p210, %p211
      %p213 = pneg %p212
      // Predicated region
      $region33: #{tpu_custom_call.1} parent=5 // pred_check
        _
      $region34: #{tpu_custom_call.1} parent=5 // pred_check_branch
        %215 = sbr.rel (%p212) target = $region36
      $region35: #{tpu_custom_call.1} parent=5 // pred_region
        %s216 = ssub.s32 %s24, 1
        %s217 = sand.u32 %s37, 1
        %s218 = scalar_lea.sflag [#allocation10], %s217
        %s219 = sand.u32 %s37, 1
        %s220 = smul.addr %s219, 80
        %s221 = scalar_lea.vmem [#allocation9], %s220
        // Predicated region
        $region37: #{tpu_custom_call.1} parent=35 // pred_check
          %p222 = pneg %p50
        $region38: #{tpu_custom_call.1} parent=35 // pred_check_branch
          %224 = sbr.rel (%p222) target = $region40
        $region39: #{tpu_custom_call.1} parent=35 // pred_region
          %225 = dma.done %s218, 1280
        $region40: #{tpu_custom_call.1} parent=35 // pred_fallthru
          _
        // Predicated region
        $region41: #{tpu_custom_call.1} parent=35 // pred_check
          %p226 = pneg %p71
        $region42: #{tpu_custom_call.1} parent=35 // pred_check_branch
          %228 = sbr.rel (%p226) target = $region44
        $region43: #{tpu_custom_call.1} parent=35 // pred_region
          %229 = dma.done [#allocation13], 448
        $region44: #{tpu_custom_call.1} parent=35 // pred_fallthru
          _
        // Predicated region
        $region45: #{tpu_custom_call.1} parent=35 // pred_check
          %p230 = pneg %p92
        $region46: #{tpu_custom_call.1} parent=35 // pred_check_branch
          %232 = sbr.rel (%p230) target = $region48
        $region47: #{tpu_custom_call.1} parent=35 // pred_region
          %233 = dma.done [#allocation13], 416
        $region48: #{tpu_custom_call.1} parent=35 // pred_fallthru
          _
        // Predicated region
        $region49: #{tpu_custom_call.1} parent=35 // pred_check
          %p234 = pneg %p113
        $region50: #{tpu_custom_call.1} parent=35 // pred_check_branch
          %236 = sbr.rel (%p234) target = $region52
        $region51: #{tpu_custom_call.1} parent=35 // pred_region
          %237 = dma.done [#allocation16], 416
        $region52: #{tpu_custom_call.1} parent=35 // pred_fallthru
          _
        %s238 = sand.u32 %s37, 1
        %s239 = scalar_lea.sflag [#allocation10], %s238
        %s240 = sand.u32 %s37, 1
        %s241 = smul.addr %s240, 80
        %s242 = scalar_lea.vmem [#allocation9], %s241
        %p243 = pneg %p50
        %p244 = pneg %p47
        %p245 = pneg %p71
        %p246 = pneg %p68
        %p247 = pneg %p92
        %p248 = pneg %p89
        %p249 = pneg %p113
        %p250 = pneg %p110
        %p251 = pneg %p139
        %p252 = pneg %p136
        %s253 = sand.u32 %s126, 1
        %s254 = scalar_lea.sflag [#allocation11], %s253
        %s255 = sand.u32 %s126, 1
        %s256 = smul.addr %s255, 16
        %s257 = scalar_lea.vmem [#allocation17], %s256
        %p259 = scmp.eq.s32.totalorder %s29, 0
        // Predicated region
        $region53: #{tpu_custom_call.1} parent=35 // pred_check
          %p260 = pneg %p259
        $region54: #{tpu_custom_call.1} parent=35 // pred_check_branch
          %262 = sbr.rel (%p260) target = $region56
        $region55: #{tpu_custom_call.1} parent=35 // pred_region
          // Predicated region
          $region57: #{tpu_custom_call.1} parent=55 // pred_check
            _
          $region58: #{tpu_custom_call.1} parent=55 // pred_check_branch
            %264 = sbr.rel target = $region60
          $region59: #{tpu_custom_call.1} parent=55 // pred_region
            %265 = sst [smem:[#allocation20]] [#allocation19]
            %266 = sst [smem:[#allocation21]] [#allocation18]
          $region60: #{tpu_custom_call.1} parent=55 // pred_fallthru
            _
          %268 = shalt.err (0)
          %s270 = sshll.u32 [#allocation2], 4
          %s271 = int_to_ptr.vmem [resolvable:$true] %s270
          %273 = dma.hbm_to_vmem [thread:$0]  %s1, 74752, %s271, [#allocation8]
          %s274 = scalar_lea.sflag [#allocation8], 1
          // Predicated region
          $region61: #{tpu_custom_call.1} parent=55 // pred_check
            _
          $region62: #{tpu_custom_call.1} parent=55 // pred_check_branch
            %276 = sbr.rel target = $region64
          $region63: #{tpu_custom_call.1} parent=55 // pred_region
            %277 = sst [smem:[#allocation20]] [#allocation23]
            %278 = sst [smem:[#allocation21]] [#allocation22]
          $region64: #{tpu_custom_call.1} parent=55 // pred_fallthru
            _
          %280 = shalt.err (0)
          %s282 = sshll.u32 [#allocation3], 4
          %s283 = int_to_ptr.vmem [resolvable:$true] %s282
          %285 = dma.hbm_to_vmem [thread:$0]  %s2, 65536, %s283, %s274
          %s286 = scalar_lea.sflag [#allocation8], 2
          // Predicated region
          $region65: #{tpu_custom_call.1} parent=55 // pred_check
            _
          $region66: #{tpu_custom_call.1} parent=55 // pred_check_branch
            %288 = sbr.rel target = $region68
          $region67: #{tpu_custom_call.1} parent=55 // pred_region
            %289 = sst [smem:[#allocation20]] [#allocation25]
            %290 = sst [smem:[#allocation21]] [#allocation24]
          $region68: #{tpu_custom_call.1} parent=55 // pred_fallthru
            _
          %292 = shalt.err (0)
          %s294 = sshll.u32 [#allocation4], 4
          %s295 = int_to_ptr.vmem [resolvable:$true] %s294
          %297 = dma.hbm_to_vmem [thread:$0]  %s3, 32768, %s295, %s286
          %s298 = scalar_lea.sflag [#allocation8], 3
          // Predicated region
          $region69: #{tpu_custom_call.1} parent=55 // pred_check
            _
          $region70: #{tpu_custom_call.1} parent=55 // pred_check_branch
            %300 = sbr.rel target = $region72
          $region71: #{tpu_custom_call.1} parent=55 // pred_region
            %301 = sst [smem:[#allocation20]] [#allocation27]
            %302 = sst [smem:[#allocation21]] [#allocation26]
          $region72: #{tpu_custom_call.1} parent=55 // pred_fallthru
            _
          %304 = shalt.err (0)
          %s306 = sshll.u32 [#allocation5], 4
          %s307 = int_to_ptr.vmem [resolvable:$true] %s306
          %309 = dma.hbm_to_vmem [thread:$0]  %s4, 16384, %s307, %s298
          %s310 = scalar_lea.sflag [#allocation8], 4
          // Predicated region
          $region73: #{tpu_custom_call.1} parent=55 // pred_check
            _
          $region74: #{tpu_custom_call.1} parent=55 // pred_check_branch
            %312 = sbr.rel target = $region76
          $region75: #{tpu_custom_call.1} parent=55 // pred_region
            %313 = sst [smem:[#allocation20]] [#allocation29]
            %314 = sst [smem:[#allocation21]] [#allocation28]
          $region76: #{tpu_custom_call.1} parent=55 // pred_fallthru
            _
          %316 = shalt.err (0)
          %s318 = sshll.u32 [#allocation6], 4
          %s319 = int_to_ptr.vmem [resolvable:$true] %s318
          %321 = dma.hbm_to_vmem [thread:$0]  %s5, 8192, %s319, %s310
          %s322 = scalar_lea.sflag [#allocation8], 5
          // Predicated region
          $region77: #{tpu_custom_call.1} parent=55 // pred_check
            _
          $region78: #{tpu_custom_call.1} parent=55 // pred_check_branch
            %324 = sbr.rel target = $region80
          $region79: #{tpu_custom_call.1} parent=55 // pred_region
            %325 = sst [smem:[#allocation20]] [#allocation31]
            %326 = sst [smem:[#allocation21]] [#allocation30]
          $region80: #{tpu_custom_call.1} parent=55 // pred_fallthru
            _
          %328 = shalt.err (0)
          %s330 = sshll.u32 [#allocation7], 4
          %s331 = int_to_ptr.vmem [resolvable:$true] %s330
          %333 = dma.hbm_to_vmem [thread:$0]  %s6, 4096, %s331, %s322
          %s334 = smul.u32 4, 146
          %s335 = smul.u32 %s334, 8
          %s336 = sshll.u32 %s335, 4
          %337 = dma.done [#allocation8], %s336
          %s338 = smul.u32 4, 128
          %s339 = smul.u32 %s338, 8
          %s340 = sshll.u32 %s339, 4
          %341 = dma.done %s274, %s340
          %s342 = smul.u32 %s338, 4
          %s343 = sshll.u32 %s342, 4
          %344 = dma.done %s286, %s343
          %s345 = smul.u32 4, 64
          %s346 = smul.u32 %s345, 4
          %s347 = sshll.u32 %s346, 4
          %348 = dma.done %s298, %s347
          %s349 = smul.u32 %s345, 2
          %s350 = sshll.u32 %s349, 4
          %351 = dma.done %s310, %s350
          %s352 = smul.u32 4, 32
          %s353 = smul.u32 %s352, 2
          %s354 = sshll.u32 %s353, 4
          %355 = dma.done %s322, %s354
        $region56: #{tpu_custom_call.1} parent=35 // pred_fallthru
          _
        %v356 = vld [vmem:[%s221] sm:$0xff]
        %v357 = vld [vmem:[%s221 + $0x8] sm:$0xff]
        %v358 = vld [vmem:[%s221 + $0x10] sm:$0xff]
        %v359 = vld [vmem:[%s221 + $0x18] sm:$0xff]
        %v360 = vld [vmem:[%s221 + $0x20] sm:$0xff]
        %v361 = vld [vmem:[%s221 + $0x28] sm:$0xff]
        %v362 = vld [vmem:[%s221 + $0x30] sm:$0xff]
        %v363 = vld [vmem:[%s221 + $0x38] sm:$0xff]
        %v364 = vld [vmem:[%s221 + $0x40] sm:$0xff]
        %v365 = vld [vmem:[%s221 + $0x48] sm:$0xff]
        %v366 = vld [vmem:[#allocation12] sm:$0xff]
        %v367 = vpack.c.bf16 %v356, %v356
        %v368 = vpack.c.bf16 %v357, %v357
        %v369 = vpack.c.bf16 %v358, %v358
        %v370 = vpack.c.bf16 %v359, %v359
        %v371 = vpack.c.bf16 %v360, %v360
        %v372 = vpack.c.bf16 %v361, %v361
        %v373 = vpack.c.bf16 %v362, %v362
        %v374 = vpack.c.bf16 %v363, %v363
        %v375 = vpack.c.bf16 %v364, %v364
        %v376 = vpack.c.bf16 %v365, %v365
        %v377 = vld [vmem:[#allocation2] sm:$0xff]
        %v378 = vld [vmem:[#allocation2 + $0x8] sm:$0xff]
        %v379 = vld [vmem:[#allocation2 + $0x10] sm:$0xff]
        %v380 = vld [vmem:[#allocation2 + $0x18] sm:$0xff]
        %v381 = vld [vmem:[#allocation2 + $0x20] sm:$0xff]
        %v382 = vld [vmem:[#allocation2 + $0x28] sm:$0xff]
        %v383 = vld [vmem:[#allocation2 + $0x30] sm:$0xff]
        %v384 = vld [vmem:[#allocation2 + $0x38] sm:$0xff]
        %v385 = vld [vmem:[#allocation2 + $0x40] sm:$0xff]
        %v386 = vld [vmem:[#allocation2 + $0x48] sm:$0xff]
        %v387 = vld [vmem:[#allocation2 + $0x50] sm:$0xff]
        %v388 = vld [vmem:[#allocation2 + $0x58] sm:$0xff]
        %v389 = vld [vmem:[#allocation2 + $0x60] sm:$0xff]
        %v390 = vld [vmem:[#allocation2 + $0x68] sm:$0xff]
        %v391 = vld [vmem:[#allocation2 + $0x70] sm:$0xff]
        %v392 = vld [vmem:[#allocation2 + $0x78] sm:$0xff]
        %v393 = vld [vmem:[#allocation2 + $0x80] sm:$0xff]
        %v394 = vld [vmem:[#allocation2 + $0x88] sm:$0xff]
        %v395 = vld [vmem:[#allocation2 + $0x90] sm:$0xff]
        %v396 = vld [vmem:[#allocation2 + $0x98] sm:$0xff]
        %v397 = vld [vmem:[#allocation2 + $0xa0] sm:$0xff]
        %v398 = vld [vmem:[#allocation2 + $0xa8] sm:$0xff]
        %v399 = vld [vmem:[#allocation2 + $0xb0] sm:$0xff]
        %v400 = vld [vmem:[#allocation2 + $0xb8] sm:$0xff]
        %v401 = vld [vmem:[#allocation2 + $0xc0] sm:$0xff]
        %v402 = vld [vmem:[#allocation2 + $0xc8] sm:$0xff]
        %v403 = vld [vmem:[#allocation2 + $0xd0] sm:$0xff]
        %v404 = vld [vmem:[#allocation2 + $0xd8] sm:$0xff]
        %v405 = vld [vmem:[#allocation2 + $0xe0] sm:$0xff]
        %v406 = vld [vmem:[#allocation2 + $0xe8] sm:$0xff]
        %v407 = vld [vmem:[#allocation2 + $0xf0] sm:$0xff]
        %v408 = vld [vmem:[#allocation2 + $0xf8] sm:$0xff]
        %v409 = vld [vmem:[#allocation2 + $0x100] sm:$0xff]
        %v410 = vld [vmem:[#allocation2 + $0x108] sm:$0xff]
        %v411 = vld [vmem:[#allocation2 + $0x110] sm:$0xff]
        %v412 = vld [vmem:[#allocation2 + $0x118] sm:$0xff]
        %v413 = vld [vmem:[#allocation2 + $0x120] sm:$0xff]
        %v414 = vld [vmem:[#allocation2 + $0x128] sm:$0xff]
        %v415 = vld [vmem:[#allocation2 + $0x130] sm:$0xff]
        %v416 = vld [vmem:[#allocation2 + $0x138] sm:$0xff]
        %v417 = vld [vmem:[#allocation2 + $0x140] sm:$0xff]
        %v418 = vld [vmem:[#allocation2 + $0x148] sm:$0xff]
        %v419 = vld [vmem:[#allocation2 + $0x150] sm:$0xff]
        %v420 = vld [vmem:[#allocation2 + $0x158] sm:$0xff]
        %v421 = vld [vmem:[#allocation2 + $0x160] sm:$0xff]
        %v422 = vld [vmem:[#allocation2 + $0x168] sm:$0xff]
        %v423 = vld [vmem:[#allocation2 + $0x170] sm:$0xff]
        %v424 = vld [vmem:[#allocation2 + $0x178] sm:$0xff]
        %v425 = vld [vmem:[#allocation2 + $0x180] sm:$0xff]
        %v426 = vld [vmem:[#allocation2 + $0x188] sm:$0xff]
        %v427 = vld [vmem:[#allocation2 + $0x190] sm:$0xff]
        %v428 = vld [vmem:[#allocation2 + $0x198] sm:$0xff]
        %v429 = vld [vmem:[#allocation2 + $0x1a0] sm:$0xff]
        %v430 = vld [vmem:[#allocation2 + $0x1a8] sm:$0xff]
        %v431 = vld [vmem:[#allocation2 + $0x1b0] sm:$0xff]
        %v432 = vld [vmem:[#allocation2 + $0x1b8] sm:$0xff]
        %v433 = vld [vmem:[#allocation2 + $0x1c0] sm:$0xff]
        %v434 = vld [vmem:[#allocation2 + $0x1c8] sm:$0xff]
        %v435 = vld [vmem:[#allocation2 + $0x1d0] sm:$0xff]
        %v436 = vld [vmem:[#allocation2 + $0x1d8] sm:$0xff]
        %v437 = vld [vmem:[#allocation2 + $0x1e0] sm:$0xff]
        %v438 = vld [vmem:[#allocation2 + $0x1e8] sm:$0xff]
        %v439 = vld [vmem:[#allocation2 + $0x1f0] sm:$0xff]
        %v440 = vld [vmem:[#allocation2 + $0x1f8] sm:$0xff]
        %v441 = vld [vmem:[#allocation2 + $0x200] sm:$0xff]
        %v442 = vld [vmem:[#allocation2 + $0x208] sm:$0xff]
        %v443 = vld [vmem:[#allocation2 + $0x210] sm:$0xff]
        %v444 = vld [vmem:[#allocation2 + $0x218] sm:$0xff]
        %v445 = vld [vmem:[#allocation2 + $0x220] sm:$0xff]
        %v446 = vld [vmem:[#allocation2 + $0x228] sm:$0xff]
        %v447 = vld [vmem:[#allocation2 + $0x230] sm:$0xff]
        %v448 = vld [vmem:[#allocation2 + $0x238] sm:$0xff]
        %v449 = vld [vmem:[#allocation2 + $0x240] sm:$0xff]
        %v450 = vld [vmem:[#allocation2 + $0x248] sm:$0xff]
        %v451 = vld [vmem:[#allocation2 + $0x250] sm:$0xff]
        %v452 = vld [vmem:[#allocation2 + $0x258] sm:$0xff]
        %v453 = vld [vmem:[#allocation2 + $0x260] sm:$0xff]
        %v454 = vld [vmem:[#allocation2 + $0x268] sm:$0xff]
        %v455 = vld [vmem:[#allocation2 + $0x270] sm:$0xff]
        %v456 = vld [vmem:[#allocation2 + $0x278] sm:$0xff]
        %v457 = vld [vmem:[#allocation2 + $0x280] sm:$0xff]
        %v458 = vld [vmem:[#allocation2 + $0x288] sm:$0xff]
        %v459 = vld [vmem:[#allocation2 + $0x290] sm:$0xff]
        %v460 = vld [vmem:[#allocation2 + $0x298] sm:$0xff]
        %v461 = vld [vmem:[#allocation2 + $0x2a0] sm:$0xff]
        %v462 = vld [vmem:[#allocation2 + $0x2a8] sm:$0xff]
        %v463 = vld [vmem:[#allocation2 + $0x2b0] sm:$0xff]
        %v464 = vld [vmem:[#allocation2 + $0x2b8] sm:$0xff]
        %v465 = vld [vmem:[#allocation2 + $0x2c0] sm:$0xff]
        %v466 = vld [vmem:[#allocation2 + $0x2c8] sm:$0xff]
        %v467 = vld [vmem:[#allocation2 + $0x2d0] sm:$0xff]
        %v468 = vld [vmem:[#allocation2 + $0x2d8] sm:$0xff]
        %v469 = vld [vmem:[#allocation2 + $0x2e0] sm:$0xff]
        %v470 = vld [vmem:[#allocation2 + $0x2e8] sm:$0xff]
        %v471 = vld [vmem:[#allocation2 + $0x2f0] sm:$0xff]
        %v472 = vld [vmem:[#allocation2 + $0x2f8] sm:$0xff]
        %v473 = vld [vmem:[#allocation2 + $0x300] sm:$0xff]
        %v474 = vld [vmem:[#allocation2 + $0x308] sm:$0xff]
        %v475 = vld [vmem:[#allocation2 + $0x310] sm:$0xff]
        %v476 = vld [vmem:[#allocation2 + $0x318] sm:$0xff]
        %v477 = vld [vmem:[#allocation2 + $0x320] sm:$0xff]
        %v478 = vld [vmem:[#allocation2 + $0x328] sm:$0xff]
        %v479 = vld [vmem:[#allocation2 + $0x330] sm:$0xff]
        %v480 = vld [vmem:[#allocation2 + $0x338] sm:$0xff]
        %v481 = vld [vmem:[#allocation2 + $0x340] sm:$0xff]
        %v482 = vld [vmem:[#allocation2 + $0x348] sm:$0xff]
        %v483 = vld [vmem:[#allocation2 + $0x350] sm:$0xff]
        %v484 = vld [vmem:[#allocation2 + $0x358] sm:$0xff]
        %v485 = vld [vmem:[#allocation2 + $0x360] sm:$0xff]
        %v486 = vld [vmem:[#allocation2 + $0x368] sm:$0xff]
        %v487 = vld [vmem:[#allocation2 + $0x370] sm:$0xff]
        %v488 = vld [vmem:[#allocation2 + $0x378] sm:$0xff]
        %v489 = vld [vmem:[#allocation2 + $0x380] sm:$0xff]
        %v490 = vld [vmem:[#allocation2 + $0x388] sm:$0xff]
        %v491 = vld [vmem:[#allocation2 + $0x390] sm:$0xff]
        %v492 = vld [vmem:[#allocation2 + $0x398] sm:$0xff]
        %v493 = vld [vmem:[#allocation2 + $0x3a0] sm:$0xff]
        %v494 = vld [vmem:[#allocation2 + $0x3a8] sm:$0xff]
        %v495 = vld [vmem:[#allocation2 + $0x3b0] sm:$0xff]
        %v496 = vld [vmem:[#allocation2 + $0x3b8] sm:$0xff]
        %v497 = vld [vmem:[#allocation2 + $0x3c0] sm:$0xff]
        %v498 = vld [vmem:[#allocation2 + $0x3c8] sm:$0xff]
        %v499 = vld [vmem:[#allocation2 + $0x3d0] sm:$0xff]
        %v500 = vld [vmem:[#allocation2 + $0x3d8] sm:$0xff]
        %v501 = vld [vmem:[#allocation2 + $0x3e0] sm:$0xff]
        %v502 = vld [vmem:[#allocation2 + $0x3e8] sm:$0xff]
        %v503 = vld [vmem:[#allocation2 + $0x3f0] sm:$0xff]
        %v504 = vld [vmem:[#allocation2 + $0x3f8] sm:$0xff]
        %v505 = vld [vmem:[#allocation2 + $0x400] sm:$0xff]
        %v506 = vld [vmem:[#allocation2 + $0x408] sm:$0xff]
        %v507 = vld [vmem:[#allocation2 + $0x410] sm:$0xff]
        %v508 = vld [vmem:[#allocation2 + $0x418] sm:$0xff]
        %v509 = vld [vmem:[#allocation2 + $0x420] sm:$0xff]
        %v510 = vld [vmem:[#allocation2 + $0x428] sm:$0xff]
        %v511 = vld [vmem:[#allocation2 + $0x430] sm:$0xff]
        %v512 = vld [vmem:[#allocation2 + $0x438] sm:$0xff]
        %v513 = vld [vmem:[#allocation2 + $0x440] sm:$0xff]
        %v514 = vld [vmem:[#allocation2 + $0x448] sm:$0xff]
        %v515 = vld [vmem:[#allocation2 + $0x450] sm:$0xff]
        %v516 = vld [vmem:[#allocation2 + $0x458] sm:$0xff]
        %v517 = vld [vmem:[#allocation2 + $0x460] sm:$0xff]
        %v518 = vld [vmem:[#allocation2 + $0x468] sm:$0xff]
        %v519 = vld [vmem:[#allocation2 + $0x470] sm:$0xff]
        %v520 = vld [vmem:[#allocation2 + $0x478] sm:$0xff]
        %v521 = vld [vmem:[#allocation2 + $0x480] sm:$0xff]
        %v522 = vld [vmem:[#allocation2 + $0x488] sm:$0xff]
        %v523 = vld [vmem:[#allocation2 + $0x490] sm:$0xff]
        %v524 = vld [vmem:[#allocation2 + $0x498] sm:$0xff]
        %v525 = vld [vmem:[#allocation2 + $0x4a0] sm:$0xff]
        %v526 = vld [vmem:[#allocation2 + $0x4a8] sm:$0xff]
        %v527 = vld [vmem:[#allocation2 + $0x4b0] sm:$0xff]
        %v528 = vld [vmem:[#allocation2 + $0x4b8] sm:$0xff]
        %v529 = vld [vmem:[#allocation2 + $0x4c0] sm:$0xff]
        %v530 = vld [vmem:[#allocation2 + $0x4c8] sm:$0xff]
        %v531 = vld [vmem:[#allocation2 + $0x4d0] sm:$0xff]
        %v532 = vld [vmem:[#allocation2 + $0x4d8] sm:$0xff]
        %v533 = vld [vmem:[#allocation2 + $0x4e0] sm:$0xff]
        %v534 = vld [vmem:[#allocation2 + $0x4e8] sm:$0xff]
        %v535 = vld [vmem:[#allocation2 + $0x4f0] sm:$0xff]
        %v536 = vld [vmem:[#allocation2 + $0x4f8] sm:$0xff]
        %v537 = vld [vmem:[#allocation2 + $0x500] sm:$0xff]
        %v538 = vld [vmem:[#allocation2 + $0x508] sm:$0xff]
        %v539 = vld [vmem:[#allocation2 + $0x510] sm:$0xff]
        %v540 = vld [vmem:[#allocation2 + $0x518] sm:$0xff]
        %v541 = vld [vmem:[#allocation2 + $0x520] sm:$0xff]
        %v542 = vld [vmem:[#allocation2 + $0x528] sm:$0xff]
        %v543 = vld [vmem:[#allocation2 + $0x530] sm:$0xff]
        %v544 = vld [vmem:[#allocation2 + $0x538] sm:$0xff]
        %v545 = vld [vmem:[#allocation2 + $0x540] sm:$0xff]
        %v546 = vld [vmem:[#allocation2 + $0x548] sm:$0xff]
        %v547 = vld [vmem:[#allocation2 + $0x550] sm:$0xff]
        %v548 = vld [vmem:[#allocation2 + $0x558] sm:$0xff]
        %v549 = vld [vmem:[#allocation2 + $0x560] sm:$0xff]
        %v550 = vld [vmem:[#allocation2 + $0x568] sm:$0xff]
        %v551 = vld [vmem:[#allocation2 + $0x570] sm:$0xff]
        %v552 = vld [vmem:[#allocation2 + $0x578] sm:$0xff]
        %v553 = vld [vmem:[#allocation2 + $0x580] sm:$0xff]
        %v554 = vld [vmem:[#allocation2 + $0x588] sm:$0xff]
        %v555 = vld [vmem:[#allocation2 + $0x590] sm:$0xff]
        %v556 = vld [vmem:[#allocation2 + $0x598] sm:$0xff]
        %v557 = vld [vmem:[#allocation2 + $0x5a0] sm:$0xff]
        %v558 = vld [vmem:[#allocation2 + $0x5a8] sm:$0xff]
        %v559 = vld [vmem:[#allocation2 + $0x5b0] sm:$0xff]
        %v560 = vld [vmem:[#allocation2 + $0x5b8] sm:$0xff]
        %v561 = vld [vmem:[#allocation2 + $0x5c0] sm:$0xff]
        %v562 = vld [vmem:[#allocation2 + $0x5c8] sm:$0xff]
        %v563 = vld [vmem:[#allocation2 + $0x5d0] sm:$0xff]
        %v564 = vld [vmem:[#allocation2 + $0x5d8] sm:$0xff]
        %v565 = vld [vmem:[#allocation2 + $0x5e0] sm:$0xff]
        %v566 = vld [vmem:[#allocation2 + $0x5e8] sm:$0xff]
        %v567 = vld [vmem:[#allocation2 + $0x5f0] sm:$0xff]
        %v568 = vld [vmem:[#allocation2 + $0x5f8] sm:$0xff]
        %v569 = vld [vmem:[#allocation2 + $0x600] sm:$0xff]
        %v570 = vld [vmem:[#allocation2 + $0x608] sm:$0xff]
        %v571 = vld [vmem:[#allocation2 + $0x610] sm:$0xff]
        %v572 = vld [vmem:[#allocation2 + $0x618] sm:$0xff]
        %v573 = vld [vmem:[#allocation2 + $0x620] sm:$0xff]
        %v574 = vld [vmem:[#allocation2 + $0x628] sm:$0xff]
        %v575 = vld [vmem:[#allocation2 + $0x630] sm:$0xff]
        %v576 = vld [vmem:[#allocation2 + $0x638] sm:$0xff]
        %v577 = vld [vmem:[#allocation2 + $0x640] sm:$0xff]
        %v578 = vld [vmem:[#allocation2 + $0x648] sm:$0xff]
        %v579 = vld [vmem:[#allocation2 + $0x650] sm:$0xff]
        %v580 = vld [vmem:[#allocation2 + $0x658] sm:$0xff]
        %v581 = vld [vmem:[#allocation2 + $0x660] sm:$0xff]
        %v582 = vld [vmem:[#allocation2 + $0x668] sm:$0xff]
        %v583 = vld [vmem:[#allocation2 + $0x670] sm:$0xff]
        %v584 = vld [vmem:[#allocation2 + $0x678] sm:$0xff]
        %v585 = vld [vmem:[#allocation2 + $0x680] sm:$0xff]
        %v586 = vld [vmem:[#allocation2 + $0x688] sm:$0xff]
        %v587 = vld [vmem:[#allocation2 + $0x690] sm:$0xff]
        %v588 = vld [vmem:[#allocation2 + $0x698] sm:$0xff]
        %v589 = vld [vmem:[#allocation2 + $0x6a0] sm:$0xff]
        %v590 = vld [vmem:[#allocation2 + $0x6a8] sm:$0xff]
        %v591 = vld [vmem:[#allocation2 + $0x6b0] sm:$0xff]
        %v592 = vld [vmem:[#allocation2 + $0x6b8] sm:$0xff]
        %v593 = vld [vmem:[#allocation2 + $0x6c0] sm:$0xff]
        %v594 = vld [vmem:[#allocation2 + $0x6c8] sm:$0xff]
        %v595 = vld [vmem:[#allocation2 + $0x6d0] sm:$0xff]
        %v596 = vld [vmem:[#allocation2 + $0x6d8] sm:$0xff]
        %v597 = vld [vmem:[#allocation2 + $0x6e0] sm:$0xff]
        %v598 = vld [vmem:[#allocation2 + $0x6e8] sm:$0xff]
        %v599 = vld [vmem:[#allocation2 + $0x6f0] sm:$0xff]
        %v600 = vld [vmem:[#allocation2 + $0x6f8] sm:$0xff]
        %v601 = vld [vmem:[#allocation2 + $0x700] sm:$0xff]
        %v602 = vld [vmem:[#allocation2 + $0x708] sm:$0xff]
        %v603 = vld [vmem:[#allocation2 + $0x710] sm:$0xff]
        %v604 = vld [vmem:[#allocation2 + $0x718] sm:$0xff]
        %v605 = vld [vmem:[#allocation2 + $0x720] sm:$0xff]
        %v606 = vld [vmem:[#allocation2 + $0x728] sm:$0xff]
        %v607 = vld [vmem:[#allocation2 + $0x730] sm:$0xff]
        %v608 = vld [vmem:[#allocation2 + $0x738] sm:$0xff]
        %v609 = vld [vmem:[#allocation2 + $0x740] sm:$0xff]
        %v610 = vld [vmem:[#allocation2 + $0x748] sm:$0xff]
        %v611 = vld [vmem:[#allocation2 + $0x750] sm:$0xff]
        %v612 = vld [vmem:[#allocation2 + $0x758] sm:$0xff]
        %v613 = vld [vmem:[#allocation2 + $0x760] sm:$0xff]
        %v614 = vld [vmem:[#allocation2 + $0x768] sm:$0xff]
        %v615 = vld [vmem:[#allocation2 + $0x770] sm:$0xff]
        %v616 = vld [vmem:[#allocation2 + $0x778] sm:$0xff]
        %v617 = vld [vmem:[#allocation2 + $0x780] sm:$0xff]
        %v618 = vld [vmem:[#allocation2 + $0x788] sm:$0xff]
        %v619 = vld [vmem:[#allocation2 + $0x790] sm:$0xff]
        %v620 = vld [vmem:[#allocation2 + $0x798] sm:$0xff]
        %v621 = vld [vmem:[#allocation2 + $0x7a0] sm:$0xff]
        %v622 = vld [vmem:[#allocation2 + $0x7a8] sm:$0xff]
        %v623 = vld [vmem:[#allocation2 + $0x7b0] sm:$0xff]
        %v624 = vld [vmem:[#allocation2 + $0x7b8] sm:$0xff]
        %v625 = vld [vmem:[#allocation2 + $0x7c0] sm:$0xff]
        %v626 = vld [vmem:[#allocation2 + $0x7c8] sm:$0xff]
        %v627 = vld [vmem:[#allocation2 + $0x7d0] sm:$0xff]
        %v628 = vld [vmem:[#allocation2 + $0x7d8] sm:$0xff]
        %v629 = vld [vmem:[#allocation2 + $0x7e0] sm:$0xff]
        %v630 = vld [vmem:[#allocation2 + $0x7e8] sm:$0xff]
        %v631 = vld [vmem:[#allocation2 + $0x7f0] sm:$0xff]
        %v632 = vld [vmem:[#allocation2 + $0x7f8] sm:$0xff]
        %v633 = vld [vmem:[#allocation2 + $0x800] sm:$0xff]
        %v634 = vld [vmem:[#allocation2 + $0x808] sm:$0xff]
        %v635 = vld [vmem:[#allocation2 + $0x810] sm:$0xff]
        %v636 = vld [vmem:[#allocation2 + $0x818] sm:$0xff]
        %v637 = vld [vmem:[#allocation2 + $0x820] sm:$0xff]
        %v638 = vld [vmem:[#allocation2 + $0x828] sm:$0xff]
        %v639 = vld [vmem:[#allocation2 + $0x830] sm:$0xff]
        %v640 = vld [vmem:[#allocation2 + $0x838] sm:$0xff]
        %v641 = vld [vmem:[#allocation2 + $0x840] sm:$0xff]
        %v642 = vld [vmem:[#allocation2 + $0x848] sm:$0xff]
        %v643 = vld [vmem:[#allocation2 + $0x850] sm:$0xff]
        %v644 = vld [vmem:[#allocation2 + $0x858] sm:$0xff]
        %v645 = vld [vmem:[#allocation2 + $0x860] sm:$0xff]
        %v646 = vld [vmem:[#allocation2 + $0x868] sm:$0xff]
        %v647 = vld [vmem:[#allocation2 + $0x870] sm:$0xff]
        %v648 = vld [vmem:[#allocation2 + $0x878] sm:$0xff]
        %v649 = vld [vmem:[#allocation2 + $0x880] sm:$0xff]
        %v650 = vld [vmem:[#allocation2 + $0x888] sm:$0xff]
        %v651 = vld [vmem:[#allocation2 + $0x890] sm:$0xff]
        %v652 = vld [vmem:[#allocation2 + $0x898] sm:$0xff]
        %v653 = vld [vmem:[#allocation2 + $0x8a0] sm:$0xff]
        %v654 = vld [vmem:[#allocation2 + $0x8a8] sm:$0xff]
        %v655 = vld [vmem:[#allocation2 + $0x8b0] sm:$0xff]
        %v656 = vld [vmem:[#allocation2 + $0x8b8] sm:$0xff]
        %v657 = vld [vmem:[#allocation2 + $0x8c0] sm:$0xff]
        %v658 = vld [vmem:[#allocation2 + $0x8c8] sm:$0xff]
        %v659 = vld [vmem:[#allocation2 + $0x8d0] sm:$0xff]
        %v660 = vld [vmem:[#allocation2 + $0x8d8] sm:$0xff]
        %v661 = vld [vmem:[#allocation2 + $0x8e0] sm:$0xff]
        %v662 = vld [vmem:[#allocation2 + $0x8e8] sm:$0xff]
        %v663 = vld [vmem:[#allocation2 + $0x8f0] sm:$0xff]
        %v664 = vld [vmem:[#allocation2 + $0x8f8] sm:$0xff]
        %v665 = vld [vmem:[#allocation2 + $0x900] sm:$0xff]
        %v666 = vld [vmem:[#allocation2 + $0x908] sm:$0xff]
        %v667 = vld [vmem:[#allocation2 + $0x910] sm:$0xff]
        %v668 = vld [vmem:[#allocation2 + $0x918] sm:$0xff]
        %v669 = vld [vmem:[#allocation2 + $0x920] sm:$0xff]
        %v670 = vld [vmem:[#allocation2 + $0x928] sm:$0xff]
        %v671 = vld [vmem:[#allocation2 + $0x930] sm:$0xff]
        %v672 = vld [vmem:[#allocation2 + $0x938] sm:$0xff]
        %v673 = vld [vmem:[#allocation2 + $0x940] sm:$0xff]
        %v674 = vld [vmem:[#allocation2 + $0x948] sm:$0xff]
        %v675 = vld [vmem:[#allocation2 + $0x950] sm:$0xff]
        %v676 = vld [vmem:[#allocation2 + $0x958] sm:$0xff]
        %v677 = vld [vmem:[#allocation2 + $0x960] sm:$0xff]
        %v678 = vld [vmem:[#allocation2 + $0x968] sm:$0xff]
        %v679 = vld [vmem:[#allocation2 + $0x970] sm:$0xff]
        %v680 = vld [vmem:[#allocation2 + $0x978] sm:$0xff]
        %v681 = vld [vmem:[#allocation2 + $0x980] sm:$0xff]
        %v682 = vld [vmem:[#allocation2 + $0x988] sm:$0xff]
        %v683 = vld [vmem:[#allocation2 + $0x990] sm:$0xff]
        %v684 = vld [vmem:[#allocation2 + $0x998] sm:$0xff]
        %v685 = vld [vmem:[#allocation2 + $0x9a0] sm:$0xff]
        %v686 = vld [vmem:[#allocation2 + $0x9a8] sm:$0xff]
        %v687 = vld [vmem:[#allocation2 + $0x9b0] sm:$0xff]
        %v688 = vld [vmem:[#allocation2 + $0x9b8] sm:$0xff]
        %v689 = vld [vmem:[#allocation2 + $0x9c0] sm:$0xff]
        %v690 = vld [vmem:[#allocation2 + $0x9c8] sm:$0xff]
        %v691 = vld [vmem:[#allocation2 + $0x9d0] sm:$0xff]
        %v692 = vld [vmem:[#allocation2 + $0x9d8] sm:$0xff]
        %v693 = vld [vmem:[#allocation2 + $0x9e0] sm:$0xff]
        %v694 = vld [vmem:[#allocation2 + $0x9e8] sm:$0xff]
        %v695 = vld [vmem:[#allocation2 + $0x9f0] sm:$0xff]
        %v696 = vld [vmem:[#allocation2 + $0x9f8] sm:$0xff]
        %v697 = vld [vmem:[#allocation2 + $0xa00] sm:$0xff]
        %v698 = vld [vmem:[#allocation2 + $0xa08] sm:$0xff]
        %v699 = vld [vmem:[#allocation2 + $0xa10] sm:$0xff]
        %v700 = vld [vmem:[#allocation2 + $0xa18] sm:$0xff]
        %v701 = vld [vmem:[#allocation2 + $0xa20] sm:$0xff]
        %v702 = vld [vmem:[#allocation2 + $0xa28] sm:$0xff]
        %v703 = vld [vmem:[#allocation2 + $0xa30] sm:$0xff]
        %v704 = vld [vmem:[#allocation2 + $0xa38] sm:$0xff]
        %v705 = vld [vmem:[#allocation2 + $0xa40] sm:$0xff]
        %v706 = vld [vmem:[#allocation2 + $0xa48] sm:$0xff]
        %v707 = vld [vmem:[#allocation2 + $0xa50] sm:$0xff]
        %v708 = vld [vmem:[#allocation2 + $0xa58] sm:$0xff]
        %v709 = vld [vmem:[#allocation2 + $0xa60] sm:$0xff]
        %v710 = vld [vmem:[#allocation2 + $0xa68] sm:$0xff]
        %v711 = vld [vmem:[#allocation2 + $0xa70] sm:$0xff]
        %v712 = vld [vmem:[#allocation2 + $0xa78] sm:$0xff]
        %v713 = vld [vmem:[#allocation2 + $0xa80] sm:$0xff]
        %v714 = vld [vmem:[#allocation2 + $0xa88] sm:$0xff]
        %v715 = vld [vmem:[#allocation2 + $0xa90] sm:$0xff]
        %v716 = vld [vmem:[#allocation2 + $0xa98] sm:$0xff]
        %v717 = vld [vmem:[#allocation2 + $0xaa0] sm:$0xff]
        %v718 = vld [vmem:[#allocation2 + $0xaa8] sm:$0xff]
        %v719 = vld [vmem:[#allocation2 + $0xab0] sm:$0xff]
        %v720 = vld [vmem:[#allocation2 + $0xab8] sm:$0xff]
        %v721 = vld [vmem:[#allocation2 + $0xac0] sm:$0xff]
        %v722 = vld [vmem:[#allocation2 + $0xac8] sm:$0xff]
        %v723 = vld [vmem:[#allocation2 + $0xad0] sm:$0xff]
        %v724 = vld [vmem:[#allocation2 + $0xad8] sm:$0xff]
        %v725 = vld [vmem:[#allocation2 + $0xae0] sm:$0xff]
        %v726 = vld [vmem:[#allocation2 + $0xae8] sm:$0xff]
        %v727 = vld [vmem:[#allocation2 + $0xaf0] sm:$0xff]
        %v728 = vld [vmem:[#allocation2 + $0xaf8] sm:$0xff]
        %v729 = vld [vmem:[#allocation2 + $0xb00] sm:$0xff]
        %v730 = vld [vmem:[#allocation2 + $0xb08] sm:$0xff]
        %v731 = vld [vmem:[#allocation2 + $0xb10] sm:$0xff]
        %v732 = vld [vmem:[#allocation2 + $0xb18] sm:$0xff]
        %v733 = vld [vmem:[#allocation2 + $0xb20] sm:$0xff]
        %v734 = vld [vmem:[#allocation2 + $0xb28] sm:$0xff]
        %v735 = vld [vmem:[#allocation2 + $0xb30] sm:$0xff]
        %v736 = vld [vmem:[#allocation2 + $0xb38] sm:$0xff]
        %v737 = vld [vmem:[#allocation2 + $0xb40] sm:$0xff]
        %v738 = vld [vmem:[#allocation2 + $0xb48] sm:$0xff]
        %v739 = vld [vmem:[#allocation2 + $0xb50] sm:$0xff]
        %v740 = vld [vmem:[#allocation2 + $0xb58] sm:$0xff]
        %v741 = vld [vmem:[#allocation2 + $0xb60] sm:$0xff]
        %v742 = vld [vmem:[#allocation2 + $0xb68] sm:$0xff]
        %v743 = vld [vmem:[#allocation2 + $0xb70] sm:$0xff]
        %v744 = vld [vmem:[#allocation2 + $0xb78] sm:$0xff]
        %v745 = vld [vmem:[#allocation2 + $0xb80] sm:$0xff]
        %v746 = vld [vmem:[#allocation2 + $0xb88] sm:$0xff]
        %v747 = vld [vmem:[#allocation2 + $0xb90] sm:$0xff]
        %v748 = vld [vmem:[#allocation2 + $0xb98] sm:$0xff]
        %v749 = vld [vmem:[#allocation2 + $0xba0] sm:$0xff]
        %v750 = vld [vmem:[#allocation2 + $0xba8] sm:$0xff]
        %v751 = vld [vmem:[#allocation2 + $0xbb0] sm:$0xff]
        %v752 = vld [vmem:[#allocation2 + $0xbb8] sm:$0xff]
        %v753 = vld [vmem:[#allocation2 + $0xbc0] sm:$0xff]
        %v754 = vld [vmem:[#allocation2 + $0xbc8] sm:$0xff]
        %v755 = vld [vmem:[#allocation2 + $0xbd0] sm:$0xff]
        %v756 = vld [vmem:[#allocation2 + $0xbd8] sm:$0xff]
        %v757 = vld [vmem:[#allocation2 + $0xbe0] sm:$0xff]
        %v758 = vld [vmem:[#allocation2 + $0xbe8] sm:$0xff]
        %v759 = vld [vmem:[#allocation2 + $0xbf0] sm:$0xff]
        %v760 = vld [vmem:[#allocation2 + $0xbf8] sm:$0xff]
        %v761 = vld [vmem:[#allocation2 + $0xc00] sm:$0xff]
        %v762 = vld [vmem:[#allocation2 + $0xc08] sm:$0xff]
        %v763 = vld [vmem:[#allocation2 + $0xc10] sm:$0xff]
        %v764 = vld [vmem:[#allocation2 + $0xc18] sm:$0xff]
        %v765 = vld [vmem:[#allocation2 + $0xc20] sm:$0xff]
        %v766 = vld [vmem:[#allocation2 + $0xc28] sm:$0xff]
        %v767 = vld [vmem:[#allocation2 + $0xc30] sm:$0xff]
        %v768 = vld [vmem:[#allocation2 + $0xc38] sm:$0xff]
        %v769 = vld [vmem:[#allocation2 + $0xc40] sm:$0xff]
        %v770 = vld [vmem:[#allocation2 + $0xc48] sm:$0xff]
        %v771 = vld [vmem:[#allocation2 + $0xc50] sm:$0xff]
        %v772 = vld [vmem:[#allocation2 + $0xc58] sm:$0xff]
        %v773 = vld [vmem:[#allocation2 + $0xc60] sm:$0xff]
        %v774 = vld [vmem:[#allocation2 + $0xc68] sm:$0xff]
        %v775 = vld [vmem:[#allocation2 + $0xc70] sm:$0xff]
        %v776 = vld [vmem:[#allocation2 + $0xc78] sm:$0xff]
        %v777 = vld [vmem:[#allocation2 + $0xc80] sm:$0xff]
        %v778 = vld [vmem:[#allocation2 + $0xc88] sm:$0xff]
        %v779 = vld [vmem:[#allocation2 + $0xc90] sm:$0xff]
        %v780 = vld [vmem:[#allocation2 + $0xc98] sm:$0xff]
        %v781 = vld [vmem:[#allocation2 + $0xca0] sm:$0xff]
        %v782 = vld [vmem:[#allocation2 + $0xca8] sm:$0xff]
        %v783 = vld [vmem:[#allocation2 + $0xcb0] sm:$0xff]
        %v784 = vld [vmem:[#allocation2 + $0xcb8] sm:$0xff]
        %v785 = vld [vmem:[#allocation2 + $0xcc0] sm:$0xff]
        %v786 = vld [vmem:[#allocation2 + $0xcc8] sm:$0xff]
        %v787 = vld [vmem:[#allocation2 + $0xcd0] sm:$0xff]
        %v788 = vld [vmem:[#allocation2 + $0xcd8] sm:$0xff]
        %v789 = vld [vmem:[#allocation2 + $0xce0] sm:$0xff]
        %v790 = vld [vmem:[#allocation2 + $0xce8] sm:$0xff]
        %v791 = vld [vmem:[#allocation2 + $0xcf0] sm:$0xff]
        %v792 = vld [vmem:[#allocation2 + $0xcf8] sm:$0xff]
        %v793 = vld [vmem:[#allocation2 + $0xd00] sm:$0xff]
        %v794 = vld [vmem:[#allocation2 + $0xd08] sm:$0xff]
        %v795 = vld [vmem:[#allocation2 + $0xd10] sm:$0xff]
        %v796 = vld [vmem:[#allocation2 + $0xd18] sm:$0xff]
        %v797 = vld [vmem:[#allocation2 + $0xd20] sm:$0xff]
        %v798 = vld [vmem:[#allocation2 + $0xd28] sm:$0xff]
        %v799 = vld [vmem:[#allocation2 + $0xd30] sm:$0xff]
        %v800 = vld [vmem:[#allocation2 + $0xd38] sm:$0xff]
        %v801 = vld [vmem:[#allocation2 + $0xd40] sm:$0xff]
        %v802 = vld [vmem:[#allocation2 + $0xd48] sm:$0xff]
        %v803 = vld [vmem:[#allocation2 + $0xd50] sm:$0xff]
        %v804 = vld [vmem:[#allocation2 + $0xd58] sm:$0xff]
        %v805 = vld [vmem:[#allocation2 + $0xd60] sm:$0xff]
        %v806 = vld [vmem:[#allocation2 + $0xd68] sm:$0xff]
        %v807 = vld [vmem:[#allocation2 + $0xd70] sm:$0xff]
        %v808 = vld [vmem:[#allocation2 + $0xd78] sm:$0xff]
        %v809 = vld [vmem:[#allocation2 + $0xd80] sm:$0xff]
        %v810 = vld [vmem:[#allocation2 + $0xd88] sm:$0xff]
        %v811 = vld [vmem:[#allocation2 + $0xd90] sm:$0xff]
        %v812 = vld [vmem:[#allocation2 + $0xd98] sm:$0xff]
        %v813 = vld [vmem:[#allocation2 + $0xda0] sm:$0xff]
        %v814 = vld [vmem:[#allocation2 + $0xda8] sm:$0xff]
        %v815 = vld [vmem:[#allocation2 + $0xdb0] sm:$0xff]
        %v816 = vld [vmem:[#allocation2 + $0xdb8] sm:$0xff]
        %v817 = vld [vmem:[#allocation2 + $0xdc0] sm:$0xff]
        %v818 = vld [vmem:[#allocation2 + $0xdc8] sm:$0xff]
        %v819 = vld [vmem:[#allocation2 + $0xdd0] sm:$0xff]
        %v820 = vld [vmem:[#allocation2 + $0xdd8] sm:$0xff]
        %v821 = vld [vmem:[#allocation2 + $0xde0] sm:$0xff]
        %v822 = vld [vmem:[#allocation2 + $0xde8] sm:$0xff]
        %v823 = vld [vmem:[#allocation2 + $0xdf0] sm:$0xff]
        %v824 = vld [vmem:[#allocation2 + $0xdf8] sm:$0xff]
        %v825 = vld [vmem:[#allocation2 + $0xe00] sm:$0xff]
        %v826 = vld [vmem:[#allocation2 + $0xe08] sm:$0xff]
        %v827 = vld [vmem:[#allocation2 + $0xe10] sm:$0xff]
        %v828 = vld [vmem:[#allocation2 + $0xe18] sm:$0xff]
        %v829 = vld [vmem:[#allocation2 + $0xe20] sm:$0xff]
        %v830 = vld [vmem:[#allocation2 + $0xe28] sm:$0xff]
        %v831 = vld [vmem:[#allocation2 + $0xe30] sm:$0xff]
        %v832 = vld [vmem:[#allocation2 + $0xe38] sm:$0xff]
        %v833 = vld [vmem:[#allocation2 + $0xe40] sm:$0xff]
        %v834 = vld [vmem:[#allocation2 + $0xe48] sm:$0xff]
        %v835 = vld [vmem:[#allocation2 + $0xe50] sm:$0xff]
        %v836 = vld [vmem:[#allocation2 + $0xe58] sm:$0xff]
        %v837 = vld [vmem:[#allocation2 + $0xe60] sm:$0xff]
        %v838 = vld [vmem:[#allocation2 + $0xe68] sm:$0xff]
        %v839 = vld [vmem:[#allocation2 + $0xe70] sm:$0xff]
        %v840 = vld [vmem:[#allocation2 + $0xe78] sm:$0xff]
        %v841 = vld [vmem:[#allocation2 + $0xe80] sm:$0xff]
        %v842 = vld [vmem:[#allocation2 + $0xe88] sm:$0xff]
        %v843 = vld [vmem:[#allocation2 + $0xe90] sm:$0xff]
        %v844 = vld [vmem:[#allocation2 + $0xe98] sm:$0xff]
        %v845 = vld [vmem:[#allocation2 + $0xea0] sm:$0xff]
        %v846 = vld [vmem:[#allocation2 + $0xea8] sm:$0xff]
        %v847 = vld [vmem:[#allocation2 + $0xeb0] sm:$0xff]
        %v848 = vld [vmem:[#allocation2 + $0xeb8] sm:$0xff]
        %v849 = vld [vmem:[#allocation2 + $0xec0] sm:$0xff]
        %v850 = vld [vmem:[#allocation2 + $0xec8] sm:$0xff]
        %v851 = vld [vmem:[#allocation2 + $0xed0] sm:$0xff]
        %v852 = vld [vmem:[#allocation2 + $0xed8] sm:$0xff]
        %v853 = vld [vmem:[#allocation2 + $0xee0] sm:$0xff]
        %v854 = vld [vmem:[#allocation2 + $0xee8] sm:$0xff]
        %v855 = vld [vmem:[#allocation2 + $0xef0] sm:$0xff]
        %v856 = vld [vmem:[#allocation2 + $0xef8] sm:$0xff]
        %v857 = vld [vmem:[#allocation2 + $0xf00] sm:$0xff]
        %v858 = vld [vmem:[#allocation2 + $0xf08] sm:$0xff]
        %v859 = vld [vmem:[#allocation2 + $0xf10] sm:$0xff]
        %v860 = vld [vmem:[#allocation2 + $0xf18] sm:$0xff]
        %v861 = vld [vmem:[#allocation2 + $0xf20] sm:$0xff]
        %v862 = vld [vmem:[#allocation2 + $0xf28] sm:$0xff]
        %v863 = vld [vmem:[#allocation2 + $0xf30] sm:$0xff]
        %v864 = vld [vmem:[#allocation2 + $0xf38] sm:$0xff]
        %v865 = vld [vmem:[#allocation2 + $0xf40] sm:$0xff]
        %v866 = vld [vmem:[#allocation2 + $0xf48] sm:$0xff]
        %v867 = vld [vmem:[#allocation2 + $0xf50] sm:$0xff]
        %v868 = vld [vmem:[#allocation2 + $0xf58] sm:$0xff]
        %v869 = vld [vmem:[#allocation2 + $0xf60] sm:$0xff]
        %v870 = vld [vmem:[#allocation2 + $0xf68] sm:$0xff]
        %v871 = vld [vmem:[#allocation2 + $0xf70] sm:$0xff]
        %v872 = vld [vmem:[#allocation2 + $0xf78] sm:$0xff]
        %v873 = vld [vmem:[#allocation2 + $0xf80] sm:$0xff]
        %v874 = vld [vmem:[#allocation2 + $0xf88] sm:$0xff]
        %v875 = vld [vmem:[#allocation2 + $0xf90] sm:$0xff]
        %v876 = vld [vmem:[#allocation2 + $0xf98] sm:$0xff]
        %v877 = vld [vmem:[#allocation2 + $0xfa0] sm:$0xff]
        %v878 = vld [vmem:[#allocation2 + $0xfa8] sm:$0xff]
        %v879 = vld [vmem:[#allocation2 + $0xfb0] sm:$0xff]
        %v880 = vld [vmem:[#allocation2 + $0xfb8] sm:$0xff]
        %v881 = vld [vmem:[#allocation2 + $0xfc0] sm:$0xff]
        %v882 = vld [vmem:[#allocation2 + $0xfc8] sm:$0xff]
        %v883 = vld [vmem:[#allocation2 + $0xfd0] sm:$0xff]
        %v884 = vld [vmem:[#allocation2 + $0xfd8] sm:$0xff]
        %v885 = vld [vmem:[#allocation2 + $0xfe0] sm:$0xff]
        %v886 = vld [vmem:[#allocation2 + $0xfe8] sm:$0xff]
        %v887 = vld [vmem:[#allocation2 + $0xff0] sm:$0xff]
        %v888 = vld [vmem:[#allocation2 + $0xff8] sm:$0xff]
        %v889 = vld [vmem:[#allocation2 + $0x1000] sm:$0xff]
        %v890 = vld [vmem:[#allocation2 + $0x1008] sm:$0xff]
        %v891 = vld [vmem:[#allocation2 + $0x1010] sm:$0xff]
        %v892 = vld [vmem:[#allocation2 + $0x1018] sm:$0xff]
        %v893 = vld [vmem:[#allocation2 + $0x1020] sm:$0xff]
        %v894 = vld [vmem:[#allocation2 + $0x1028] sm:$0xff]
        %v895 = vld [vmem:[#allocation2 + $0x1030] sm:$0xff]
        %v896 = vld [vmem:[#allocation2 + $0x1038] sm:$0xff]
        %v897 = vld [vmem:[#allocation2 + $0x1040] sm:$0xff]
        %v898 = vld [vmem:[#allocation2 + $0x1048] sm:$0xff]
        %v899 = vld [vmem:[#allocation2 + $0x1050] sm:$0xff]
        %v900 = vld [vmem:[#allocation2 + $0x1058] sm:$0xff]
        %v901 = vld [vmem:[#allocation2 + $0x1060] sm:$0xff]
        %v902 = vld [vmem:[#allocation2 + $0x1068] sm:$0xff]
        %v903 = vld [vmem:[#allocation2 + $0x1070] sm:$0xff]
        %v904 = vld [vmem:[#allocation2 + $0x1078] sm:$0xff]
        %v905 = vld [vmem:[#allocation2 + $0x1080] sm:$0xff]
        %v906 = vld [vmem:[#allocation2 + $0x1088] sm:$0xff]
        %v907 = vld [vmem:[#allocation2 + $0x1090] sm:$0xff]
        %v908 = vld [vmem:[#allocation2 + $0x1098] sm:$0xff]
        %v909 = vld [vmem:[#allocation2 + $0x10a0] sm:$0xff]
        %v910 = vld [vmem:[#allocation2 + $0x10a8] sm:$0xff]
        %v911 = vld [vmem:[#allocation2 + $0x10b0] sm:$0xff]
        %v912 = vld [vmem:[#allocation2 + $0x10b8] sm:$0xff]
        %v913 = vld [vmem:[#allocation2 + $0x10c0] sm:$0xff]
        %v914 = vld [vmem:[#allocation2 + $0x10c8] sm:$0xff]
        %v915 = vld [vmem:[#allocation2 + $0x10d0] sm:$0xff]
        %v916 = vld [vmem:[#allocation2 + $0x10d8] sm:$0xff]
        %v917 = vld [vmem:[#allocation2 + $0x10e0] sm:$0xff]
        %v918 = vld [vmem:[#allocation2 + $0x10e8] sm:$0xff]
        %v919 = vld [vmem:[#allocation2 + $0x10f0] sm:$0xff]
        %v920 = vld [vmem:[#allocation2 + $0x10f8] sm:$0xff]
        %v921 = vld [vmem:[#allocation2 + $0x1100] sm:$0xff]
        %v922 = vld [vmem:[#allocation2 + $0x1108] sm:$0xff]
        %v923 = vld [vmem:[#allocation2 + $0x1110] sm:$0xff]
        %v924 = vld [vmem:[#allocation2 + $0x1118] sm:$0xff]
        %v925 = vld [vmem:[#allocation2 + $0x1120] sm:$0xff]
        %v926 = vld [vmem:[#allocation2 + $0x1128] sm:$0xff]
        %v927 = vld [vmem:[#allocation2 + $0x1130] sm:$0xff]
        %v928 = vld [vmem:[#allocation2 + $0x1138] sm:$0xff]
        %v929 = vld [vmem:[#allocation2 + $0x1140] sm:$0xff]
        %v930 = vld [vmem:[#allocation2 + $0x1148] sm:$0xff]
        %v931 = vld [vmem:[#allocation2 + $0x1150] sm:$0xff]
        %v932 = vld [vmem:[#allocation2 + $0x1158] sm:$0xff]
        %v933 = vld [vmem:[#allocation2 + $0x1160] sm:$0xff]
        %v934 = vld [vmem:[#allocation2 + $0x1168] sm:$0xff]
        %v935 = vld [vmem:[#allocation2 + $0x1170] sm:$0xff]
        %v936 = vld [vmem:[#allocation2 + $0x1178] sm:$0xff]
        %v937 = vld [vmem:[#allocation2 + $0x1180] sm:$0xff]
        %v938 = vld [vmem:[#allocation2 + $0x1188] sm:$0xff]
        %v939 = vld [vmem:[#allocation2 + $0x1190] sm:$0xff]
        %v940 = vld [vmem:[#allocation2 + $0x1198] sm:$0xff]
        %v941 = vld [vmem:[#allocation2 + $0x11a0] sm:$0xff]
        %v942 = vld [vmem:[#allocation2 + $0x11a8] sm:$0xff]
        %v943 = vld [vmem:[#allocation2 + $0x11b0] sm:$0xff]
        %v944 = vld [vmem:[#allocation2 + $0x11b8] sm:$0xff]
        %v945 = vld [vmem:[#allocation2 + $0x11c0] sm:$0xff]
        %v946 = vld [vmem:[#allocation2 + $0x11c8] sm:$0xff]
        %v947 = vld [vmem:[#allocation2 + $0x11d0] sm:$0xff]
        %v948 = vld [vmem:[#allocation2 + $0x11d8] sm:$0xff]
        %v949 = vld [vmem:[#allocation2 + $0x11e0] sm:$0xff]
        %v950 = vld [vmem:[#allocation2 + $0x11e8] sm:$0xff]
        %v951 = vld [vmem:[#allocation2 + $0x11f0] sm:$0xff]
        %v952 = vld [vmem:[#allocation2 + $0x11f8] sm:$0xff]
        %v953 = vld [vmem:[#allocation2 + $0x1200] sm:$0xff]
        %v954 = vld [vmem:[#allocation2 + $0x1208] sm:$0xff]
        %v955 = vld [vmem:[#allocation2 + $0x1210] sm:$0xff]
        %v956 = vld [vmem:[#allocation2 + $0x1218] sm:$0xff]
        %v957 = vld [vmem:[#allocation2 + $0x1220] sm:$0xff]
        %v958 = vld [vmem:[#allocation2 + $0x1228] sm:$0xff]
        %v959 = vld [vmem:[#allocation2 + $0x1230] sm:$0xff]
        %v960 = vld [vmem:[#allocation2 + $0x1238] sm:$0xff]
        %v962 = vlaneseq
        %v963 = vshrl.u32 %v962, 7
        %v964 = vsub.s32 0, %v963
        %v965 = vrot.slane %v366, %v964
        %v966 = vlaneseq
        %v967 = vshrl.u32 %v966, 7
        %v968 = vsub.s32 1, %v967
        %v969 = vrot.slane %v366, %v968
        %v970 = vlaneseq
        %v971 = vshrl.u32 %v970, 7
        %v972 = vsub.s32 2, %v971
        %v973 = vrot.slane %v366, %v972
        %v974 = vlaneseq
        %v975 = vshrl.u32 %v974, 7
        %v976 = vsub.s32 3, %v975
        %v977 = vrot.slane %v366, %v976
        %v978 = vlaneseq
        %v979 = vshrl.u32 %v978, 7
        %v980 = vsub.s32 4, %v979
        %v981 = vrot.slane %v366, %v980
        %v982 = vlaneseq
        %v983 = vshrl.u32 %v982, 7
        %v984 = vsub.s32 5, %v983
        %v985 = vrot.slane %v366, %v984
        %v986 = vlaneseq
        %v987 = vshrl.u32 %v986, 7
        %v988 = vsub.s32 6, %v987
        %v989 = vrot.slane %v366, %v988
        %v990 = vlaneseq
        %v991 = vshrl.u32 %v990, 7
        %v992 = vsub.s32 7, %v991
        %v993 = vrot.slane %v366, %v992
        %v1586 = vunpack.c.l.b16 %v377
        %v1587 = vunpack.c.h.b16 %v377
        %v1588 = vunpack.c.l.b16 %v378
        %v1589 = vunpack.c.h.b16 %v378
        %v1590 = vunpack.c.l.b16 %v379
        %v1591 = vunpack.c.h.b16 %v379
        %v1592 = vunpack.c.l.b16 %v380
        %v1593 = vunpack.c.h.b16 %v380
        %v1594 = vunpack.c.l.b16 %v381
        %v1595 = vunpack.c.h.b16 %v381
        %v1596 = vunpack.c.l.b16 %v382
        %v1597 = vunpack.c.h.b16 %v382
        %v1598 = vunpack.c.l.b16 %v383
        %v1599 = vunpack.c.h.b16 %v383
        %v1600 = vunpack.c.l.b16 %v384
        %v1601 = vunpack.c.h.b16 %v384
        %v1602 = vunpack.c.l.b16 %v385
        %v1603 = vunpack.c.h.b16 %v385
        %v1604 = vunpack.c.l.b16 %v386
        %v1605 = vunpack.c.h.b16 %v386
        %v1606 = vunpack.c.l.b16 %v387
        %v1607 = vunpack.c.h.b16 %v387
        %v1608 = vunpack.c.l.b16 %v388
        %v1609 = vunpack.c.h.b16 %v388
        %v1610 = vunpack.c.l.b16 %v389
        %v1611 = vunpack.c.h.b16 %v389
        %v1612 = vunpack.c.l.b16 %v390
        %v1613 = vunpack.c.h.b16 %v390
        %v1614 = vunpack.c.l.b16 %v391
        %v1615 = vunpack.c.h.b16 %v391
        %v1616 = vunpack.c.l.b16 %v392
        %v1617 = vunpack.c.h.b16 %v392
        %v1618 = vunpack.c.l.b16 %v393
        %v1619 = vunpack.c.h.b16 %v393
        %v1620 = vunpack.c.l.b16 %v394
        %v1621 = vunpack.c.h.b16 %v394
        %v1622 = vunpack.c.l.b16 %v395
        %v1623 = vunpack.c.h.b16 %v395
        %v1624 = vunpack.c.l.b16 %v396
        %v1625 = vunpack.c.h.b16 %v396
        %v1626 = vunpack.c.l.b16 %v397
        %v1627 = vunpack.c.h.b16 %v397
        %v1628 = vunpack.c.l.b16 %v398
        %v1629 = vunpack.c.h.b16 %v398
        %v1630 = vunpack.c.l.b16 %v399
        %v1631 = vunpack.c.h.b16 %v399
        %v1632 = vunpack.c.l.b16 %v400
        %v1633 = vunpack.c.h.b16 %v400
        %v1634 = vunpack.c.l.b16 %v401
        %v1635 = vunpack.c.h.b16 %v401
        %v1636 = vunpack.c.l.b16 %v402
        %v1637 = vunpack.c.h.b16 %v402
        %v1638 = vunpack.c.l.b16 %v403
        %v1639 = vunpack.c.h.b16 %v403
        %v1640 = vunpack.c.l.b16 %v404
        %v1641 = vunpack.c.h.b16 %v404
        %v1642 = vunpack.c.l.b16 %v405
        %v1643 = vunpack.c.h.b16 %v405
        %v1644 = vunpack.c.l.b16 %v406
        %v1645 = vunpack.c.h.b16 %v406
        %v1646 = vunpack.c.l.b16 %v407
        %v1647 = vunpack.c.h.b16 %v407
        %v1648 = vunpack.c.l.b16 %v408
        %v1649 = vunpack.c.h.b16 %v408
        %v1650 = vunpack.c.l.b16 %v409
        %v1651 = vunpack.c.h.b16 %v409
        %v1652 = vunpack.c.l.b16 %v410
        %v1653 = vunpack.c.h.b16 %v410
        %v1654 = vunpack.c.l.b16 %v411
        %v1655 = vunpack.c.h.b16 %v411
        %v1656 = vunpack.c.l.b16 %v412
        %v1657 = vunpack.c.h.b16 %v412
        %v1658 = vunpack.c.l.b16 %v413
        %v1659 = vunpack.c.h.b16 %v413
        %v1660 = vunpack.c.l.b16 %v414
        %v1661 = vunpack.c.h.b16 %v414
        %v1662 = vunpack.c.l.b16 %v415
        %v1663 = vunpack.c.h.b16 %v415
        %v1664 = vunpack.c.l.b16 %v416
        %v1665 = vunpack.c.h.b16 %v416
        %v1666 = vunpack.c.l.b16 %v417
        %v1667 = vunpack.c.h.b16 %v417
        %v1668 = vunpack.c.l.b16 %v418
        %v1669 = vunpack.c.h.b16 %v418
        %v1670 = vunpack.c.l.b16 %v419
        %v1671 = vunpack.c.h.b16 %v419
        %v1672 = vunpack.c.l.b16 %v420
        %v1673 = vunpack.c.h.b16 %v420
        %v1674 = vunpack.c.l.b16 %v421
        %v1675 = vunpack.c.h.b16 %v421
        %v1676 = vunpack.c.l.b16 %v422
        %v1677 = vunpack.c.h.b16 %v422
        %v1678 = vunpack.c.l.b16 %v423
        %v1679 = vunpack.c.h.b16 %v423
        %v1680 = vunpack.c.l.b16 %v424
        %v1681 = vunpack.c.h.b16 %v424
        %v1682 = vunpack.c.l.b16 %v425
        %v1683 = vunpack.c.h.b16 %v425
        %v1684 = vunpack.c.l.b16 %v426
        %v1685 = vunpack.c.h.b16 %v426
        %v1686 = vunpack.c.l.b16 %v427
        %v1687 = vunpack.c.h.b16 %v427
        %v1688 = vunpack.c.l.b16 %v428
        %v1689 = vunpack.c.h.b16 %v428
        %v1690 = vunpack.c.l.b16 %v429
        %v1691 = vunpack.c.h.b16 %v429
        %v1692 = vunpack.c.l.b16 %v430
        %v1693 = vunpack.c.h.b16 %v430
        %v1694 = vunpack.c.l.b16 %v431
        %v1695 = vunpack.c.h.b16 %v431
        %v1696 = vunpack.c.l.b16 %v432
        %v1697 = vunpack.c.h.b16 %v432
        %v1698 = vunpack.c.l.b16 %v433
        %v1699 = vunpack.c.h.b16 %v433
        %v1700 = vunpack.c.l.b16 %v434
        %v1701 = vunpack.c.h.b16 %v434
        %v1702 = vunpack.c.l.b16 %v435
        %v1703 = vunpack.c.h.b16 %v435
        %v1704 = vunpack.c.l.b16 %v436
        %v1705 = vunpack.c.h.b16 %v436
        %v1706 = vunpack.c.l.b16 %v437
        %v1707 = vunpack.c.h.b16 %v437
        %v1708 = vunpack.c.l.b16 %v438
        %v1709 = vunpack.c.h.b16 %v438
        %v1710 = vunpack.c.l.b16 %v439
        %v1711 = vunpack.c.h.b16 %v439
        %v1712 = vunpack.c.l.b16 %v440
        %v1713 = vunpack.c.h.b16 %v440
        %v1714 = vunpack.c.l.b16 %v441
        %v1715 = vunpack.c.h.b16 %v441
        %v1716 = vunpack.c.l.b16 %v442
        %v1717 = vunpack.c.h.b16 %v442
        %v1718 = vunpack.c.l.b16 %v443
        %v1719 = vunpack.c.h.b16 %v443
        %v1720 = vunpack.c.l.b16 %v444
        %v1721 = vunpack.c.h.b16 %v444
        %v1722 = vunpack.c.l.b16 %v445
        %v1723 = vunpack.c.h.b16 %v445
        %v1724 = vunpack.c.l.b16 %v446
        %v1725 = vunpack.c.h.b16 %v446
        %v1726 = vunpack.c.l.b16 %v447
        %v1727 = vunpack.c.h.b16 %v447
        %v1728 = vunpack.c.l.b16 %v448
        %v1729 = vunpack.c.h.b16 %v448
        %v1730 = vunpack.c.l.b16 %v449
        %v1731 = vunpack.c.h.b16 %v449
        %v1732 = vunpack.c.l.b16 %v450
        %v1733 = vunpack.c.h.b16 %v450
        %v1734 = vunpack.c.l.b16 %v451
        %v1735 = vunpack.c.h.b16 %v451
        %v1736 = vunpack.c.l.b16 %v452
        %v1737 = vunpack.c.h.b16 %v452
        %v1738 = vunpack.c.l.b16 %v453
        %v1739 = vunpack.c.h.b16 %v453
        %v1740 = vunpack.c.l.b16 %v454
        %v1741 = vunpack.c.h.b16 %v454
        %v1742 = vunpack.c.l.b16 %v455
        %v1743 = vunpack.c.h.b16 %v455
        %v1744 = vunpack.c.l.b16 %v456
        %v1745 = vunpack.c.h.b16 %v456
        %v1746 = vunpack.c.l.b16 %v457
        %v1747 = vunpack.c.h.b16 %v457
        %v1748 = vunpack.c.l.b16 %v458
        %v1749 = vunpack.c.h.b16 %v458
        %v1750 = vunpack.c.l.b16 %v459
        %v1751 = vunpack.c.h.b16 %v459
        %v1752 = vunpack.c.l.b16 %v460
        %v1753 = vunpack.c.h.b16 %v460
        %v1754 = vunpack.c.l.b16 %v461
        %v1755 = vunpack.c.h.b16 %v461
        %v1756 = vunpack.c.l.b16 %v462
        %v1757 = vunpack.c.h.b16 %v462
        %v1758 = vunpack.c.l.b16 %v463
        %v1759 = vunpack.c.h.b16 %v463
        %v1760 = vunpack.c.l.b16 %v464
        %v1761 = vunpack.c.h.b16 %v464
        %v1762 = vunpack.c.l.b16 %v465
        %v1763 = vunpack.c.h.b16 %v465
        %v1764 = vunpack.c.l.b16 %v466
        %v1765 = vunpack.c.h.b16 %v466
        %v1766 = vunpack.c.l.b16 %v467
        %v1767 = vunpack.c.h.b16 %v467
        %v1768 = vunpack.c.l.b16 %v468
        %v1769 = vunpack.c.h.b16 %v468
        %v1770 = vunpack.c.l.b16 %v469
        %v1771 = vunpack.c.h.b16 %v469
        %v1772 = vunpack.c.l.b16 %v470
        %v1773 = vunpack.c.h.b16 %v470
        %v1774 = vunpack.c.l.b16 %v471
        %v1775 = vunpack.c.h.b16 %v471
        %v1776 = vunpack.c.l.b16 %v472
        %v1777 = vunpack.c.h.b16 %v472
        %v1778 = vunpack.c.l.b16 %v473
        %v1779 = vunpack.c.h.b16 %v473
        %v1780 = vunpack.c.l.b16 %v474
        %v1781 = vunpack.c.h.b16 %v474
        %v1782 = vunpack.c.l.b16 %v475
        %v1783 = vunpack.c.h.b16 %v475
        %v1784 = vunpack.c.l.b16 %v476
        %v1785 = vunpack.c.h.b16 %v476
        %v1786 = vunpack.c.l.b16 %v477
        %v1787 = vunpack.c.h.b16 %v477
        %v1788 = vunpack.c.l.b16 %v478
        %v1789 = vunpack.c.h.b16 %v478
        %v1790 = vunpack.c.l.b16 %v479
        %v1791 = vunpack.c.h.b16 %v479
        %v1792 = vunpack.c.l.b16 %v480
        %v1793 = vunpack.c.h.b16 %v480
        %v1794 = vunpack.c.l.b16 %v481
        %v1795 = vunpack.c.h.b16 %v481
        %v1796 = vunpack.c.l.b16 %v482
        %v1797 = vunpack.c.h.b16 %v482
        %v1798 = vunpack.c.l.b16 %v483
        %v1799 = vunpack.c.h.b16 %v483
        %v1800 = vunpack.c.l.b16 %v484
        %v1801 = vunpack.c.h.b16 %v484
        %v1802 = vunpack.c.l.b16 %v485
        %v1803 = vunpack.c.h.b16 %v485
        %v1804 = vunpack.c.l.b16 %v486
        %v1805 = vunpack.c.h.b16 %v486
        %v1806 = vunpack.c.l.b16 %v487
        %v1807 = vunpack.c.h.b16 %v487
        %v1808 = vunpack.c.l.b16 %v488
        %v1809 = vunpack.c.h.b16 %v488
        %v1810 = vunpack.c.l.b16 %v489
        %v1811 = vunpack.c.h.b16 %v489
        %v1812 = vunpack.c.l.b16 %v490
        %v1813 = vunpack.c.h.b16 %v490
        %v1814 = vunpack.c.l.b16 %v491
        %v1815 = vunpack.c.h.b16 %v491
        %v1816 = vunpack.c.l.b16 %v492
        %v1817 = vunpack.c.h.b16 %v492
        %v1818 = vunpack.c.l.b16 %v493
        %v1819 = vunpack.c.h.b16 %v493
        %v1820 = vunpack.c.l.b16 %v494
        %v1821 = vunpack.c.h.b16 %v494
        %v1822 = vunpack.c.l.b16 %v495
        %v1823 = vunpack.c.h.b16 %v495
        %v1824 = vunpack.c.l.b16 %v496
        %v1825 = vunpack.c.h.b16 %v496
        %v1826 = vunpack.c.l.b16 %v497
        %v1827 = vunpack.c.h.b16 %v497
        %v1828 = vunpack.c.l.b16 %v498
        %v1829 = vunpack.c.h.b16 %v498
        %v1830 = vunpack.c.l.b16 %v499
        %v1831 = vunpack.c.h.b16 %v499
        %v1832 = vunpack.c.l.b16 %v500
        %v1833 = vunpack.c.h.b16 %v500
        %v1834 = vunpack.c.l.b16 %v501
        %v1835 = vunpack.c.h.b16 %v501
        %v1836 = vunpack.c.l.b16 %v502
        %v1837 = vunpack.c.h.b16 %v502
        %v1838 = vunpack.c.l.b16 %v503
        %v1839 = vunpack.c.h.b16 %v503
        %v1840 = vunpack.c.l.b16 %v504
        %v1841 = vunpack.c.h.b16 %v504
        %v1842 = vunpack.c.l.b16 %v505
        %v1843 = vunpack.c.h.b16 %v505
        %v1844 = vunpack.c.l.b16 %v506
        %v1845 = vunpack.c.h.b16 %v506
        %v1846 = vunpack.c.l.b16 %v507
        %v1847 = vunpack.c.h.b16 %v507
        %v1848 = vunpack.c.l.b16 %v508
        %v1849 = vunpack.c.h.b16 %v508
        %v1850 = vunpack.c.l.b16 %v509
        %v1851 = vunpack.c.h.b16 %v509
        %v1852 = vunpack.c.l.b16 %v510
        %v1853 = vunpack.c.h.b16 %v510
        %v1854 = vunpack.c.l.b16 %v511
        %v1855 = vunpack.c.h.b16 %v511
        %v1856 = vunpack.c.l.b16 %v512
        %v1857 = vunpack.c.h.b16 %v512
        %v1858 = vunpack.c.l.b16 %v513
        %v1859 = vunpack.c.h.b16 %v513
        %v1860 = vunpack.c.l.b16 %v514
        %v1861 = vunpack.c.h.b16 %v514
        %v1862 = vunpack.c.l.b16 %v515
        %v1863 = vunpack.c.h.b16 %v515
        %v1864 = vunpack.c.l.b16 %v516
        %v1865 = vunpack.c.h.b16 %v516
        %v1866 = vunpack.c.l.b16 %v517
        %v1867 = vunpack.c.h.b16 %v517
        %v1868 = vunpack.c.l.b16 %v518
        %v1869 = vunpack.c.h.b16 %v518
        %v1870 = vunpack.c.l.b16 %v519
        %v1871 = vunpack.c.h.b16 %v519
        %v1872 = vunpack.c.l.b16 %v520
        %v1873 = vunpack.c.h.b16 %v520
        %v1874 = vunpack.c.l.b16 %v521
        %v1875 = vunpack.c.h.b16 %v521
        %v1876 = vunpack.c.l.b16 %v522
        %v1877 = vunpack.c.h.b16 %v522
        %v1878 = vunpack.c.l.b16 %v523
        %v1879 = vunpack.c.h.b16 %v523
        %v1880 = vunpack.c.l.b16 %v524
        %v1881 = vunpack.c.h.b16 %v524
        %v1882 = vunpack.c.l.b16 %v525
        %v1883 = vunpack.c.h.b16 %v525
        %v1884 = vunpack.c.l.b16 %v526
        %v1885 = vunpack.c.h.b16 %v526
        %v1886 = vunpack.c.l.b16 %v527
        %v1887 = vunpack.c.h.b16 %v527
        %v1888 = vunpack.c.l.b16 %v528
        %v1889 = vunpack.c.h.b16 %v528
        %v1890 = vunpack.c.l.b16 %v529
        %v1891 = vunpack.c.h.b16 %v529
        %v1892 = vunpack.c.l.b16 %v530
        %v1893 = vunpack.c.h.b16 %v530
        %v1894 = vunpack.c.l.b16 %v531
        %v1895 = vunpack.c.h.b16 %v531
        %v1896 = vunpack.c.l.b16 %v532
        %v1897 = vunpack.c.h.b16 %v532
        %v1898 = vunpack.c.l.b16 %v533
        %v1899 = vunpack.c.h.b16 %v533
        %v1900 = vunpack.c.l.b16 %v534
        %v1901 = vunpack.c.h.b16 %v534
        %v1902 = vunpack.c.l.b16 %v535
        %v1903 = vunpack.c.h.b16 %v535
        %v1904 = vunpack.c.l.b16 %v536
        %v1905 = vunpack.c.h.b16 %v536
        %v1906 = vunpack.c.l.b16 %v537
        %v1907 = vunpack.c.h.b16 %v537
        %v1908 = vunpack.c.l.b16 %v538
        %v1909 = vunpack.c.h.b16 %v538
        %v1910 = vunpack.c.l.b16 %v539
        %v1911 = vunpack.c.h.b16 %v539
        %v1912 = vunpack.c.l.b16 %v540
        %v1913 = vunpack.c.h.b16 %v540
        %v1914 = vunpack.c.l.b16 %v541
        %v1915 = vunpack.c.h.b16 %v541
        %v1916 = vunpack.c.l.b16 %v542
        %v1917 = vunpack.c.h.b16 %v542
        %v1918 = vunpack.c.l.b16 %v543
        %v1919 = vunpack.c.h.b16 %v543
        %v1920 = vunpack.c.l.b16 %v544
        %v1921 = vunpack.c.h.b16 %v544
        %v1922 = vunpack.c.l.b16 %v545
        %v1923 = vunpack.c.h.b16 %v545
        %v1924 = vunpack.c.l.b16 %v546
        %v1925 = vunpack.c.h.b16 %v546
        %v1926 = vunpack.c.l.b16 %v547
        %v1927 = vunpack.c.h.b16 %v547
        %v1928 = vunpack.c.l.b16 %v548
        %v1929 = vunpack.c.h.b16 %v548
        %v1930 = vunpack.c.l.b16 %v549
        %v1931 = vunpack.c.h.b16 %v549
        %v1932 = vunpack.c.l.b16 %v550
        %v1933 = vunpack.c.h.b16 %v550
        %v1934 = vunpack.c.l.b16 %v551
        %v1935 = vunpack.c.h.b16 %v551
        %v1936 = vunpack.c.l.b16 %v552
        %v1937 = vunpack.c.h.b16 %v552
        %v1938 = vunpack.c.l.b16 %v553
        %v1939 = vunpack.c.h.b16 %v553
        %v1940 = vunpack.c.l.b16 %v554
        %v1941 = vunpack.c.h.b16 %v554
        %v1942 = vunpack.c.l.b16 %v555
        %v1943 = vunpack.c.h.b16 %v555
        %v1944 = vunpack.c.l.b16 %v556
        %v1945 = vunpack.c.h.b16 %v556
        %v1946 = vunpack.c.l.b16 %v557
        %v1947 = vunpack.c.h.b16 %v557
        %v1948 = vunpack.c.l.b16 %v558
        %v1949 = vunpack.c.h.b16 %v558
        %v1950 = vunpack.c.l.b16 %v559
        %v1951 = vunpack.c.h.b16 %v559
        %v1952 = vunpack.c.l.b16 %v560
        %v1953 = vunpack.c.h.b16 %v560
        %v1954 = vunpack.c.l.b16 %v561
        %v1955 = vunpack.c.h.b16 %v561
        %v1956 = vunpack.c.l.b16 %v562
        %v1957 = vunpack.c.h.b16 %v562
        %v1958 = vunpack.c.l.b16 %v563
        %v1959 = vunpack.c.h.b16 %v563
        %v1960 = vunpack.c.l.b16 %v564
        %v1961 = vunpack.c.h.b16 %v564
        %v1962 = vunpack.c.l.b16 %v565
        %v1963 = vunpack.c.h.b16 %v565
        %v1964 = vunpack.c.l.b16 %v566
        %v1965 = vunpack.c.h.b16 %v566
        %v1966 = vunpack.c.l.b16 %v567
        %v1967 = vunpack.c.h.b16 %v567
        %v1968 = vunpack.c.l.b16 %v568
        %v1969 = vunpack.c.h.b16 %v568
        %v1970 = vunpack.c.l.b16 %v569
        %v1971 = vunpack.c.h.b16 %v569
        %v1972 = vunpack.c.l.b16 %v570
        %v1973 = vunpack.c.h.b16 %v570
        %v1974 = vunpack.c.l.b16 %v571
        %v1975 = vunpack.c.h.b16 %v571
        %v1976 = vunpack.c.l.b16 %v572
        %v1977 = vunpack.c.h.b16 %v572
        %v1978 = vunpack.c.l.b16 %v573
        %v1979 = vunpack.c.h.b16 %v573
        %v1980 = vunpack.c.l.b16 %v574
        %v1981 = vunpack.c.h.b16 %v574
        %v1982 = vunpack.c.l.b16 %v575
        %v1983 = vunpack.c.h.b16 %v575
        %v1984 = vunpack.c.l.b16 %v576
        %v1985 = vunpack.c.h.b16 %v576
        %v1986 = vunpack.c.l.b16 %v577
        %v1987 = vunpack.c.h.b16 %v577
        %v1988 = vunpack.c.l.b16 %v578
        %v1989 = vunpack.c.h.b16 %v578
        %v1990 = vunpack.c.l.b16 %v579
        %v1991 = vunpack.c.h.b16 %v579
        %v1992 = vunpack.c.l.b16 %v580
        %v1993 = vunpack.c.h.b16 %v580
        %v1994 = vunpack.c.l.b16 %v581
        %v1995 = vunpack.c.h.b16 %v581
        %v1996 = vunpack.c.l.b16 %v582
        %v1997 = vunpack.c.h.b16 %v582
        %v1998 = vunpack.c.l.b16 %v583
        %v1999 = vunpack.c.h.b16 %v583
        %v2000 = vunpack.c.l.b16 %v584
        %v2001 = vunpack.c.h.b16 %v584
        %v2002 = vunpack.c.l.b16 %v585
        %v2003 = vunpack.c.h.b16 %v585
        %v2004 = vunpack.c.l.b16 %v586
        %v2005 = vunpack.c.h.b16 %v586
        %v2006 = vunpack.c.l.b16 %v587
        %v2007 = vunpack.c.h.b16 %v587
        %v2008 = vunpack.c.l.b16 %v588
        %v2009 = vunpack.c.h.b16 %v588
        %v2010 = vunpack.c.l.b16 %v589
        %v2011 = vunpack.c.h.b16 %v589
        %v2012 = vunpack.c.l.b16 %v590
        %v2013 = vunpack.c.h.b16 %v590
        %v2014 = vunpack.c.l.b16 %v591
        %v2015 = vunpack.c.h.b16 %v591
        %v2016 = vunpack.c.l.b16 %v592
        %v2017 = vunpack.c.h.b16 %v592
        %v2018 = vunpack.c.l.b16 %v593
        %v2019 = vunpack.c.h.b16 %v593
        %v2020 = vunpack.c.l.b16 %v594
        %v2021 = vunpack.c.h.b16 %v594
        %v2022 = vunpack.c.l.b16 %v595
        %v2023 = vunpack.c.h.b16 %v595
        %v2024 = vunpack.c.l.b16 %v596
        %v2025 = vunpack.c.h.b16 %v596
        %v2026 = vunpack.c.l.b16 %v597
        %v2027 = vunpack.c.h.b16 %v597
        %v2028 = vunpack.c.l.b16 %v598
        %v2029 = vunpack.c.h.b16 %v598
        %v2030 = vunpack.c.l.b16 %v599
        %v2031 = vunpack.c.h.b16 %v599
        %v2032 = vunpack.c.l.b16 %v600
        %v2033 = vunpack.c.h.b16 %v600
        %v2034 = vunpack.c.l.b16 %v601
        %v2035 = vunpack.c.h.b16 %v601
        %v2036 = vunpack.c.l.b16 %v602
        %v2037 = vunpack.c.h.b16 %v602
        %v2038 = vunpack.c.l.b16 %v603
        %v2039 = vunpack.c.h.b16 %v603
        %v2040 = vunpack.c.l.b16 %v604
        %v2041 = vunpack.c.h.b16 %v604
        %v2042 = vunpack.c.l.b16 %v605
        %v2043 = vunpack.c.h.b16 %v605
        %v2044 = vunpack.c.l.b16 %v606
        %v2045 = vunpack.c.h.b16 %v606
        %v2046 = vunpack.c.l.b16 %v607
        %v2047 = vunpack.c.h.b16 %v607
        %v2048 = vunpack.c.l.b16 %v608
        %v2049 = vunpack.c.h.b16 %v608
        %v2050 = vunpack.c.l.b16 %v609
        %v2051 = vunpack.c.h.b16 %v609
        %v2052 = vunpack.c.l.b16 %v610
        %v2053 = vunpack.c.h.b16 %v610
        %v2054 = vunpack.c.l.b16 %v611
        %v2055 = vunpack.c.h.b16 %v611
        %v2056 = vunpack.c.l.b16 %v612
        %v2057 = vunpack.c.h.b16 %v612
        %v2058 = vunpack.c.l.b16 %v613
        %v2059 = vunpack.c.h.b16 %v613
        %v2060 = vunpack.c.l.b16 %v614
        %v2061 = vunpack.c.h.b16 %v614
        %v2062 = vunpack.c.l.b16 %v615
        %v2063 = vunpack.c.h.b16 %v615
        %v2064 = vunpack.c.l.b16 %v616
        %v2065 = vunpack.c.h.b16 %v616
        %v2066 = vunpack.c.l.b16 %v617
        %v2067 = vunpack.c.h.b16 %v617
        %v2068 = vunpack.c.l.b16 %v618
        %v2069 = vunpack.c.h.b16 %v618
        %v2070 = vunpack.c.l.b16 %v619
        %v2071 = vunpack.c.h.b16 %v619
        %v2072 = vunpack.c.l.b16 %v620
        %v2073 = vunpack.c.h.b16 %v620
        %v2074 = vunpack.c.l.b16 %v621
        %v2075 = vunpack.c.h.b16 %v621
        %v2076 = vunpack.c.l.b16 %v622
        %v2077 = vunpack.c.h.b16 %v622
        %v2078 = vunpack.c.l.b16 %v623
        %v2079 = vunpack.c.h.b16 %v623
        %v2080 = vunpack.c.l.b16 %v624
        %v2081 = vunpack.c.h.b16 %v624
        %v2082 = vunpack.c.l.b16 %v625
        %v2083 = vunpack.c.h.b16 %v625
        %v2084 = vunpack.c.l.b16 %v626
        %v2085 = vunpack.c.h.b16 %v626
        %v2086 = vunpack.c.l.b16 %v627
        %v2087 = vunpack.c.h.b16 %v627
        %v2088 = vunpack.c.l.b16 %v628
        %v2089 = vunpack.c.h.b16 %v628
        %v2090 = vunpack.c.l.b16 %v629
        %v2091 = vunpack.c.h.b16 %v629
        %v2092 = vunpack.c.l.b16 %v630
        %v2093 = vunpack.c.h.b16 %v630
        %v2094 = vunpack.c.l.b16 %v631
        %v2095 = vunpack.c.h.b16 %v631
        %v2096 = vunpack.c.l.b16 %v632
        %v2097 = vunpack.c.h.b16 %v632
        %v2098 = vunpack.c.l.b16 %v633
        %v2099 = vunpack.c.h.b16 %v633
        %v2100 = vunpack.c.l.b16 %v634
        %v2101 = vunpack.c.h.b16 %v634
        %v2102 = vunpack.c.l.b16 %v635
        %v2103 = vunpack.c.h.b16 %v635
        %v2104 = vunpack.c.l.b16 %v636
        %v2105 = vunpack.c.h.b16 %v636
        %v2106 = vunpack.c.l.b16 %v637
        %v2107 = vunpack.c.h.b16 %v637
        %v2108 = vunpack.c.l.b16 %v638
        %v2109 = vunpack.c.h.b16 %v638
        %v2110 = vunpack.c.l.b16 %v639
        %v2111 = vunpack.c.h.b16 %v639
        %v2112 = vunpack.c.l.b16 %v640
        %v2113 = vunpack.c.h.b16 %v640
        %v2114 = vunpack.c.l.b16 %v641
        %v2115 = vunpack.c.h.b16 %v641
        %v2116 = vunpack.c.l.b16 %v642
        %v2117 = vunpack.c.h.b16 %v642
        %v2118 = vunpack.c.l.b16 %v643
        %v2119 = vunpack.c.h.b16 %v643
        %v2120 = vunpack.c.l.b16 %v644
        %v2121 = vunpack.c.h.b16 %v644
        %v2122 = vunpack.c.l.b16 %v645
        %v2123 = vunpack.c.h.b16 %v645
        %v2124 = vunpack.c.l.b16 %v646
        %v2125 = vunpack.c.h.b16 %v646
        %v2126 = vunpack.c.l.b16 %v647
        %v2127 = vunpack.c.h.b16 %v647
        %v2128 = vunpack.c.l.b16 %v648
        %v2129 = vunpack.c.h.b16 %v648
        %v2130 = vunpack.c.l.b16 %v649
        %v2131 = vunpack.c.h.b16 %v649
        %v2132 = vunpack.c.l.b16 %v650
        %v2133 = vunpack.c.h.b16 %v650
        %v2134 = vunpack.c.l.b16 %v651
        %v2135 = vunpack.c.h.b16 %v651
        %v2136 = vunpack.c.l.b16 %v652
        %v2137 = vunpack.c.h.b16 %v652
        %v2138 = vunpack.c.l.b16 %v653
        %v2139 = vunpack.c.h.b16 %v653
        %v2140 = vunpack.c.l.b16 %v654
        %v2141 = vunpack.c.h.b16 %v654
        %v2142 = vunpack.c.l.b16 %v655
        %v2143 = vunpack.c.h.b16 %v655
        %v2144 = vunpack.c.l.b16 %v656
        %v2145 = vunpack.c.h.b16 %v656
        %v2146 = vunpack.c.l.b16 %v657
        %v2147 = vunpack.c.h.b16 %v657
        %v2148 = vunpack.c.l.b16 %v658
        %v2149 = vunpack.c.h.b16 %v658
        %v2150 = vunpack.c.l.b16 %v659
        %v2151 = vunpack.c.h.b16 %v659
        %v2152 = vunpack.c.l.b16 %v660
        %v2153 = vunpack.c.h.b16 %v660
        %v2154 = vunpack.c.l.b16 %v661
        %v2155 = vunpack.c.h.b16 %v661
        %v2156 = vunpack.c.l.b16 %v662
        %v2157 = vunpack.c.h.b16 %v662
        %v2158 = vunpack.c.l.b16 %v663
        %v2159 = vunpack.c.h.b16 %v663
        %v2160 = vunpack.c.l.b16 %v664
        %v2161 = vunpack.c.h.b16 %v664
        %v2162 = vunpack.c.l.b16 %v665
        %v2163 = vunpack.c.h.b16 %v665
        %v2164 = vunpack.c.l.b16 %v666
        %v2165 = vunpack.c.h.b16 %v666
        %v2166 = vunpack.c.l.b16 %v667
        %v2167 = vunpack.c.h.b16 %v667
        %v2168 = vunpack.c.l.b16 %v668
        %v2169 = vunpack.c.h.b16 %v668
        %v2170 = vunpack.c.l.b16 %v669
        %v2171 = vunpack.c.h.b16 %v669
        %v2172 = vunpack.c.l.b16 %v670
        %v2173 = vunpack.c.h.b16 %v670
        %v2174 = vunpack.c.l.b16 %v671
        %v2175 = vunpack.c.h.b16 %v671
        %v2176 = vunpack.c.l.b16 %v672
        %v2177 = vunpack.c.h.b16 %v672
        %v2178 = vunpack.c.l.b16 %v673
        %v2179 = vunpack.c.h.b16 %v673
        %v2180 = vunpack.c.l.b16 %v674
        %v2181 = vunpack.c.h.b16 %v674
        %v2182 = vunpack.c.l.b16 %v675
        %v2183 = vunpack.c.h.b16 %v675
        %v2184 = vunpack.c.l.b16 %v676
        %v2185 = vunpack.c.h.b16 %v676
        %v2186 = vunpack.c.l.b16 %v677
        %v2187 = vunpack.c.h.b16 %v677
        %v2188 = vunpack.c.l.b16 %v678
        %v2189 = vunpack.c.h.b16 %v678
        %v2190 = vunpack.c.l.b16 %v679
        %v2191 = vunpack.c.h.b16 %v679
        %v2192 = vunpack.c.l.b16 %v680
        %v2193 = vunpack.c.h.b16 %v680
        %v2194 = vunpack.c.l.b16 %v681
        %v2195 = vunpack.c.h.b16 %v681
        %v2196 = vunpack.c.l.b16 %v682
        %v2197 = vunpack.c.h.b16 %v682
        %v2198 = vunpack.c.l.b16 %v683
        %v2199 = vunpack.c.h.b16 %v683
        %v2200 = vunpack.c.l.b16 %v684
        %v2201 = vunpack.c.h.b16 %v684
        %v2202 = vunpack.c.l.b16 %v685
        %v2203 = vunpack.c.h.b16 %v685
        %v2204 = vunpack.c.l.b16 %v686
        %v2205 = vunpack.c.h.b16 %v686
        %v2206 = vunpack.c.l.b16 %v687
        %v2207 = vunpack.c.h.b16 %v687
        %v2208 = vunpack.c.l.b16 %v688
        %v2209 = vunpack.c.h.b16 %v688
        %v2210 = vunpack.c.l.b16 %v689
        %v2211 = vunpack.c.h.b16 %v689
        %v2212 = vunpack.c.l.b16 %v690
        %v2213 = vunpack.c.h.b16 %v690
        %v2214 = vunpack.c.l.b16 %v691
        %v2215 = vunpack.c.h.b16 %v691
        %v2216 = vunpack.c.l.b16 %v692
        %v2217 = vunpack.c.h.b16 %v692
        %v2218 = vunpack.c.l.b16 %v693
        %v2219 = vunpack.c.h.b16 %v693
        %v2220 = vunpack.c.l.b16 %v694
        %v2221 = vunpack.c.h.b16 %v694
        %v2222 = vunpack.c.l.b16 %v695
        %v2223 = vunpack.c.h.b16 %v695
        %v2224 = vunpack.c.l.b16 %v696
        %v2225 = vunpack.c.h.b16 %v696
        %v2226 = vunpack.c.l.b16 %v697
        %v2227 = vunpack.c.h.b16 %v697
        %v2228 = vunpack.c.l.b16 %v698
        %v2229 = vunpack.c.h.b16 %v698
        %v2230 = vunpack.c.l.b16 %v699
        %v2231 = vunpack.c.h.b16 %v699
        %v2232 = vunpack.c.l.b16 %v700
        %v2233 = vunpack.c.h.b16 %v700
        %v2234 = vunpack.c.l.b16 %v701
        %v2235 = vunpack.c.h.b16 %v701
        %v2236 = vunpack.c.l.b16 %v702
        %v2237 = vunpack.c.h.b16 %v702
        %v2238 = vunpack.c.l.b16 %v703
        %v2239 = vunpack.c.h.b16 %v703
        %v2240 = vunpack.c.l.b16 %v704
        %v2241 = vunpack.c.h.b16 %v704
        %v2242 = vunpack.c.l.b16 %v705
        %v2243 = vunpack.c.h.b16 %v705
        %v2244 = vunpack.c.l.b16 %v706
        %v2245 = vunpack.c.h.b16 %v706
        %v2246 = vunpack.c.l.b16 %v707
        %v2247 = vunpack.c.h.b16 %v707
        %v2248 = vunpack.c.l.b16 %v708
        %v2249 = vunpack.c.h.b16 %v708
        %v2250 = vunpack.c.l.b16 %v709
        %v2251 = vunpack.c.h.b16 %v709
        %v2252 = vunpack.c.l.b16 %v710
        %v2253 = vunpack.c.h.b16 %v710
        %v2254 = vunpack.c.l.b16 %v711
        %v2255 = vunpack.c.h.b16 %v711
        %v2256 = vunpack.c.l.b16 %v712
        %v2257 = vunpack.c.h.b16 %v712
        %v2258 = vunpack.c.l.b16 %v713
        %v2259 = vunpack.c.h.b16 %v713
        %v2260 = vunpack.c.l.b16 %v714
        %v2261 = vunpack.c.h.b16 %v714
        %v2262 = vunpack.c.l.b16 %v715
        %v2263 = vunpack.c.h.b16 %v715
        %v2264 = vunpack.c.l.b16 %v716
        %v2265 = vunpack.c.h.b16 %v716
        %v2266 = vunpack.c.l.b16 %v717
        %v2267 = vunpack.c.h.b16 %v717
        %v2268 = vunpack.c.l.b16 %v718
        %v2269 = vunpack.c.h.b16 %v718
        %v2270 = vunpack.c.l.b16 %v719
        %v2271 = vunpack.c.h.b16 %v719
        %v2272 = vunpack.c.l.b16 %v720
        %v2273 = vunpack.c.h.b16 %v720
        %v2274 = vunpack.c.l.b16 %v721
        %v2275 = vunpack.c.h.b16 %v721
        %v2276 = vunpack.c.l.b16 %v722
        %v2277 = vunpack.c.h.b16 %v722
        %v2278 = vunpack.c.l.b16 %v723
        %v2279 = vunpack.c.h.b16 %v723
        %v2280 = vunpack.c.l.b16 %v724
        %v2281 = vunpack.c.h.b16 %v724
        %v2282 = vunpack.c.l.b16 %v725
        %v2283 = vunpack.c.h.b16 %v725
        %v2284 = vunpack.c.l.b16 %v726
        %v2285 = vunpack.c.h.b16 %v726
        %v2286 = vunpack.c.l.b16 %v727
        %v2287 = vunpack.c.h.b16 %v727
        %v2288 = vunpack.c.l.b16 %v728
        %v2289 = vunpack.c.h.b16 %v728
        %v2290 = vunpack.c.l.b16 %v729
        %v2291 = vunpack.c.h.b16 %v729
        %v2292 = vunpack.c.l.b16 %v730
        %v2293 = vunpack.c.h.b16 %v730
        %v2294 = vunpack.c.l.b16 %v731
        %v2295 = vunpack.c.h.b16 %v731
        %v2296 = vunpack.c.l.b16 %v732
        %v2297 = vunpack.c.h.b16 %v732
        %v2298 = vunpack.c.l.b16 %v733
        %v2299 = vunpack.c.h.b16 %v733
        %v2300 = vunpack.c.l.b16 %v734
        %v2301 = vunpack.c.h.b16 %v734
        %v2302 = vunpack.c.l.b16 %v735
        %v2303 = vunpack.c.h.b16 %v735
        %v2304 = vunpack.c.l.b16 %v736
        %v2305 = vunpack.c.h.b16 %v736
        %v2306 = vunpack.c.l.b16 %v737
        %v2307 = vunpack.c.h.b16 %v737
        %v2308 = vunpack.c.l.b16 %v738
        %v2309 = vunpack.c.h.b16 %v738
        %v2310 = vunpack.c.l.b16 %v739
        %v2311 = vunpack.c.h.b16 %v739
        %v2312 = vunpack.c.l.b16 %v740
        %v2313 = vunpack.c.h.b16 %v740
        %v2314 = vunpack.c.l.b16 %v741
        %v2315 = vunpack.c.h.b16 %v741
        %v2316 = vunpack.c.l.b16 %v742
        %v2317 = vunpack.c.h.b16 %v742
        %v2318 = vunpack.c.l.b16 %v743
        %v2319 = vunpack.c.h.b16 %v743
        %v2320 = vunpack.c.l.b16 %v744
        %v2321 = vunpack.c.h.b16 %v744
        %v2322 = vunpack.c.l.b16 %v745
        %v2323 = vunpack.c.h.b16 %v745
        %v2324 = vunpack.c.l.b16 %v746
        %v2325 = vunpack.c.h.b16 %v746
        %v2326 = vunpack.c.l.b16 %v747
        %v2327 = vunpack.c.h.b16 %v747
        %v2328 = vunpack.c.l.b16 %v748
        %v2329 = vunpack.c.h.b16 %v748
        %v2330 = vunpack.c.l.b16 %v749
        %v2331 = vunpack.c.h.b16 %v749
        %v2332 = vunpack.c.l.b16 %v750
        %v2333 = vunpack.c.h.b16 %v750
        %v2334 = vunpack.c.l.b16 %v751
        %v2335 = vunpack.c.h.b16 %v751
        %v2336 = vunpack.c.l.b16 %v752
        %v2337 = vunpack.c.h.b16 %v752
        %v2338 = vunpack.c.l.b16 %v753
        %v2339 = vunpack.c.h.b16 %v753
        %v2340 = vunpack.c.l.b16 %v754
        %v2341 = vunpack.c.h.b16 %v754
        %v2342 = vunpack.c.l.b16 %v755
        %v2343 = vunpack.c.h.b16 %v755
        %v2344 = vunpack.c.l.b16 %v756
        %v2345 = vunpack.c.h.b16 %v756
        %v2346 = vunpack.c.l.b16 %v757
        %v2347 = vunpack.c.h.b16 %v757
        %v2348 = vunpack.c.l.b16 %v758
        %v2349 = vunpack.c.h.b16 %v758
        %v2350 = vunpack.c.l.b16 %v759
        %v2351 = vunpack.c.h.b16 %v759
        %v2352 = vunpack.c.l.b16 %v760
        %v2353 = vunpack.c.h.b16 %v760
        %v2354 = vunpack.c.l.b16 %v761
        %v2355 = vunpack.c.h.b16 %v761
        %v2356 = vunpack.c.l.b16 %v762
        %v2357 = vunpack.c.h.b16 %v762
        %v2358 = vunpack.c.l.b16 %v763
        %v2359 = vunpack.c.h.b16 %v763
        %v2360 = vunpack.c.l.b16 %v764
        %v2361 = vunpack.c.h.b16 %v764
        %v2362 = vunpack.c.l.b16 %v765
        %v2363 = vunpack.c.h.b16 %v765
        %v2364 = vunpack.c.l.b16 %v766
        %v2365 = vunpack.c.h.b16 %v766
        %v2366 = vunpack.c.l.b16 %v767
        %v2367 = vunpack.c.h.b16 %v767
        %v2368 = vunpack.c.l.b16 %v768
        %v2369 = vunpack.c.h.b16 %v768
        %v2370 = vunpack.c.l.b16 %v769
        %v2371 = vunpack.c.h.b16 %v769
        %v2372 = vunpack.c.l.b16 %v770
        %v2373 = vunpack.c.h.b16 %v770
        %v2374 = vunpack.c.l.b16 %v771
        %v2375 = vunpack.c.h.b16 %v771
        %v2376 = vunpack.c.l.b16 %v772
        %v2377 = vunpack.c.h.b16 %v772
        %v2378 = vunpack.c.l.b16 %v773
        %v2379 = vunpack.c.h.b16 %v773
        %v2380 = vunpack.c.l.b16 %v774
        %v2381 = vunpack.c.h.b16 %v774
        %v2382 = vunpack.c.l.b16 %v775
        %v2383 = vunpack.c.h.b16 %v775
        %v2384 = vunpack.c.l.b16 %v776
        %v2385 = vunpack.c.h.b16 %v776
        %v2386 = vunpack.c.l.b16 %v777
        %v2387 = vunpack.c.h.b16 %v777
        %v2388 = vunpack.c.l.b16 %v778
        %v2389 = vunpack.c.h.b16 %v778
        %v2390 = vunpack.c.l.b16 %v779
        %v2391 = vunpack.c.h.b16 %v779
        %v2392 = vunpack.c.l.b16 %v780
        %v2393 = vunpack.c.h.b16 %v780
        %v2394 = vunpack.c.l.b16 %v781
        %v2395 = vunpack.c.h.b16 %v781
        %v2396 = vunpack.c.l.b16 %v782
        %v2397 = vunpack.c.h.b16 %v782
        %v2398 = vunpack.c.l.b16 %v783
        %v2399 = vunpack.c.h.b16 %v783
        %v2400 = vunpack.c.l.b16 %v784
        %v2401 = vunpack.c.h.b16 %v784
        %v2402 = vunpack.c.l.b16 %v785
        %v2403 = vunpack.c.h.b16 %v785
        %v2404 = vunpack.c.l.b16 %v786
        %v2405 = vunpack.c.h.b16 %v786
        %v2406 = vunpack.c.l.b16 %v787
        %v2407 = vunpack.c.h.b16 %v787
        %v2408 = vunpack.c.l.b16 %v788
        %v2409 = vunpack.c.h.b16 %v788
        %v2410 = vunpack.c.l.b16 %v789
        %v2411 = vunpack.c.h.b16 %v789
        %v2412 = vunpack.c.l.b16 %v790
        %v2413 = vunpack.c.h.b16 %v790
        %v2414 = vunpack.c.l.b16 %v791
        %v2415 = vunpack.c.h.b16 %v791
        %v2416 = vunpack.c.l.b16 %v792
        %v2417 = vunpack.c.h.b16 %v792
        %v2418 = vunpack.c.l.b16 %v793
        %v2419 = vunpack.c.h.b16 %v793
        %v2420 = vunpack.c.l.b16 %v794
        %v2421 = vunpack.c.h.b16 %v794
        %v2422 = vunpack.c.l.b16 %v795
        %v2423 = vunpack.c.h.b16 %v795
        %v2424 = vunpack.c.l.b16 %v796
        %v2425 = vunpack.c.h.b16 %v796
        %v2426 = vunpack.c.l.b16 %v797
        %v2427 = vunpack.c.h.b16 %v797
        %v2428 = vunpack.c.l.b16 %v798
        %v2429 = vunpack.c.h.b16 %v798
        %v2430 = vunpack.c.l.b16 %v799
        %v2431 = vunpack.c.h.b16 %v799
        %v2432 = vunpack.c.l.b16 %v800
        %v2433 = vunpack.c.h.b16 %v800
        %v2434 = vunpack.c.l.b16 %v801
        %v2435 = vunpack.c.h.b16 %v801
        %v2436 = vunpack.c.l.b16 %v802
        %v2437 = vunpack.c.h.b16 %v802
        %v2438 = vunpack.c.l.b16 %v803
        %v2439 = vunpack.c.h.b16 %v803
        %v2440 = vunpack.c.l.b16 %v804
        %v2441 = vunpack.c.h.b16 %v804
        %v2442 = vunpack.c.l.b16 %v805
        %v2443 = vunpack.c.h.b16 %v805
        %v2444 = vunpack.c.l.b16 %v806
        %v2445 = vunpack.c.h.b16 %v806
        %v2446 = vunpack.c.l.b16 %v807
        %v2447 = vunpack.c.h.b16 %v807
        %v2448 = vunpack.c.l.b16 %v808
        %v2449 = vunpack.c.h.b16 %v808
        %v2450 = vunpack.c.l.b16 %v809
        %v2451 = vunpack.c.h.b16 %v809
        %v2452 = vunpack.c.l.b16 %v810
        %v2453 = vunpack.c.h.b16 %v810
        %v2454 = vunpack.c.l.b16 %v811
        %v2455 = vunpack.c.h.b16 %v811
        %v2456 = vunpack.c.l.b16 %v812
        %v2457 = vunpack.c.h.b16 %v812
        %v2458 = vunpack.c.l.b16 %v813
        %v2459 = vunpack.c.h.b16 %v813
        %v2460 = vunpack.c.l.b16 %v814
        %v2461 = vunpack.c.h.b16 %v814
        %v2462 = vunpack.c.l.b16 %v815
        %v2463 = vunpack.c.h.b16 %v815
        %v2464 = vunpack.c.l.b16 %v816
        %v2465 = vunpack.c.h.b16 %v816
        %v2466 = vunpack.c.l.b16 %v817
        %v2467 = vunpack.c.h.b16 %v817
        %v2468 = vunpack.c.l.b16 %v818
        %v2469 = vunpack.c.h.b16 %v818
        %v2470 = vunpack.c.l.b16 %v819
        %v2471 = vunpack.c.h.b16 %v819
        %v2472 = vunpack.c.l.b16 %v820
        %v2473 = vunpack.c.h.b16 %v820
        %v2474 = vunpack.c.l.b16 %v821
        %v2475 = vunpack.c.h.b16 %v821
        %v2476 = vunpack.c.l.b16 %v822
        %v2477 = vunpack.c.h.b16 %v822
        %v2478 = vunpack.c.l.b16 %v823
        %v2479 = vunpack.c.h.b16 %v823
        %v2480 = vunpack.c.l.b16 %v824
        %v2481 = vunpack.c.h.b16 %v824
        %v2482 = vunpack.c.l.b16 %v825
        %v2483 = vunpack.c.h.b16 %v825
        %v2484 = vunpack.c.l.b16 %v826
        %v2485 = vunpack.c.h.b16 %v826
        %v2486 = vunpack.c.l.b16 %v827
        %v2487 = vunpack.c.h.b16 %v827
        %v2488 = vunpack.c.l.b16 %v828
        %v2489 = vunpack.c.h.b16 %v828
        %v2490 = vunpack.c.l.b16 %v829
        %v2491 = vunpack.c.h.b16 %v829
        %v2492 = vunpack.c.l.b16 %v830
        %v2493 = vunpack.c.h.b16 %v830
        %v2494 = vunpack.c.l.b16 %v831
        %v2495 = vunpack.c.h.b16 %v831
        %v2496 = vunpack.c.l.b16 %v832
        %v2497 = vunpack.c.h.b16 %v832
        %v2498 = vunpack.c.l.b16 %v833
        %v2499 = vunpack.c.h.b16 %v833
        %v2500 = vunpack.c.l.b16 %v834
        %v2501 = vunpack.c.h.b16 %v834
        %v2502 = vunpack.c.l.b16 %v835
        %v2503 = vunpack.c.h.b16 %v835
        %v2504 = vunpack.c.l.b16 %v836
        %v2505 = vunpack.c.h.b16 %v836
        %v2506 = vunpack.c.l.b16 %v837
        %v2507 = vunpack.c.h.b16 %v837
        %v2508 = vunpack.c.l.b16 %v838
        %v2509 = vunpack.c.h.b16 %v838
        %v2510 = vunpack.c.l.b16 %v839
        %v2511 = vunpack.c.h.b16 %v839
        %v2512 = vunpack.c.l.b16 %v840
        %v2513 = vunpack.c.h.b16 %v840
        %v2514 = vunpack.c.l.b16 %v841
        %v2515 = vunpack.c.h.b16 %v841
        %v2516 = vunpack.c.l.b16 %v842
        %v2517 = vunpack.c.h.b16 %v842
        %v2518 = vunpack.c.l.b16 %v843
        %v2519 = vunpack.c.h.b16 %v843
        %v2520 = vunpack.c.l.b16 %v844
        %v2521 = vunpack.c.h.b16 %v844
        %v2522 = vunpack.c.l.b16 %v845
        %v2523 = vunpack.c.h.b16 %v845
        %v2524 = vunpack.c.l.b16 %v846
        %v2525 = vunpack.c.h.b16 %v846
        %v2526 = vunpack.c.l.b16 %v847
        %v2527 = vunpack.c.h.b16 %v847
        %v2528 = vunpack.c.l.b16 %v848
        %v2529 = vunpack.c.h.b16 %v848
        %v2530 = vunpack.c.l.b16 %v849
        %v2531 = vunpack.c.h.b16 %v849
        %v2532 = vunpack.c.l.b16 %v850
        %v2533 = vunpack.c.h.b16 %v850
        %v2534 = vunpack.c.l.b16 %v851
        %v2535 = vunpack.c.h.b16 %v851
        %v2536 = vunpack.c.l.b16 %v852
        %v2537 = vunpack.c.h.b16 %v852
        %v2538 = vunpack.c.l.b16 %v853
        %v2539 = vunpack.c.h.b16 %v853
        %v2540 = vunpack.c.l.b16 %v854
        %v2541 = vunpack.c.h.b16 %v854
        %v2542 = vunpack.c.l.b16 %v855
        %v2543 = vunpack.c.h.b16 %v855
        %v2544 = vunpack.c.l.b16 %v856
        %v2545 = vunpack.c.h.b16 %v856
        %v2546 = vunpack.c.l.b16 %v857
        %v2547 = vunpack.c.h.b16 %v857
        %v2548 = vunpack.c.l.b16 %v858
        %v2549 = vunpack.c.h.b16 %v858
        %v2550 = vunpack.c.l.b16 %v859
        %v2551 = vunpack.c.h.b16 %v859
        %v2552 = vunpack.c.l.b16 %v860
        %v2553 = vunpack.c.h.b16 %v860
        %v2554 = vunpack.c.l.b16 %v861
        %v2555 = vunpack.c.h.b16 %v861
        %v2556 = vunpack.c.l.b16 %v862
        %v2557 = vunpack.c.h.b16 %v862
        %v2558 = vunpack.c.l.b16 %v863
        %v2559 = vunpack.c.h.b16 %v863
        %v2560 = vunpack.c.l.b16 %v864
        %v2561 = vunpack.c.h.b16 %v864
        %v2562 = vunpack.c.l.b16 %v865
        %v2563 = vunpack.c.h.b16 %v865
        %v2564 = vunpack.c.l.b16 %v866
        %v2565 = vunpack.c.h.b16 %v866
        %v2566 = vunpack.c.l.b16 %v867
        %v2567 = vunpack.c.h.b16 %v867
        %v2568 = vunpack.c.l.b16 %v868
        %v2569 = vunpack.c.h.b16 %v868
        %v2570 = vunpack.c.l.b16 %v869
        %v2571 = vunpack.c.h.b16 %v869
        %v2572 = vunpack.c.l.b16 %v870
        %v2573 = vunpack.c.h.b16 %v870
        %v2574 = vunpack.c.l.b16 %v871
        %v2575 = vunpack.c.h.b16 %v871
        %v2576 = vunpack.c.l.b16 %v872
        %v2577 = vunpack.c.h.b16 %v872
        %v2578 = vunpack.c.l.b16 %v873
        %v2579 = vunpack.c.h.b16 %v873
        %v2580 = vunpack.c.l.b16 %v874
        %v2581 = vunpack.c.h.b16 %v874
        %v2582 = vunpack.c.l.b16 %v875
        %v2583 = vunpack.c.h.b16 %v875
        %v2584 = vunpack.c.l.b16 %v876
        %v2585 = vunpack.c.h.b16 %v876
        %v2586 = vunpack.c.l.b16 %v877
        %v2587 = vunpack.c.h.b16 %v877
        %v2588 = vunpack.c.l.b16 %v878
        %v2589 = vunpack.c.h.b16 %v878
        %v2590 = vunpack.c.l.b16 %v879
        %v2591 = vunpack.c.h.b16 %v879
        %v2592 = vunpack.c.l.b16 %v880
        %v2593 = vunpack.c.h.b16 %v880
        %v2594 = vunpack.c.l.b16 %v881
        %v2595 = vunpack.c.h.b16 %v881
        %v2596 = vunpack.c.l.b16 %v882
        %v2597 = vunpack.c.h.b16 %v882
        %v2598 = vunpack.c.l.b16 %v883
        %v2599 = vunpack.c.h.b16 %v883
        %v2600 = vunpack.c.l.b16 %v884
        %v2601 = vunpack.c.h.b16 %v884
        %v2602 = vunpack.c.l.b16 %v885
        %v2603 = vunpack.c.h.b16 %v885
        %v2604 = vunpack.c.l.b16 %v886
        %v2605 = vunpack.c.h.b16 %v886
        %v2606 = vunpack.c.l.b16 %v887
        %v2607 = vunpack.c.h.b16 %v887
        %v2608 = vunpack.c.l.b16 %v888
        %v2609 = vunpack.c.h.b16 %v888
        %v2610 = vunpack.c.l.b16 %v889
        %v2611 = vunpack.c.h.b16 %v889
        %v2612 = vunpack.c.l.b16 %v890
        %v2613 = vunpack.c.h.b16 %v890
        %v2614 = vunpack.c.l.b16 %v891
        %v2615 = vunpack.c.h.b16 %v891
        %v2616 = vunpack.c.l.b16 %v892
        %v2617 = vunpack.c.h.b16 %v892
        %v2618 = vunpack.c.l.b16 %v893
        %v2619 = vunpack.c.h.b16 %v893
        %v2620 = vunpack.c.l.b16 %v894
        %v2621 = vunpack.c.h.b16 %v894
        %v2622 = vunpack.c.l.b16 %v895
        %v2623 = vunpack.c.h.b16 %v895
        %v2624 = vunpack.c.l.b16 %v896
        %v2625 = vunpack.c.h.b16 %v896
        %v2626 = vunpack.c.l.b16 %v897
        %v2627 = vunpack.c.h.b16 %v897
        %v2628 = vunpack.c.l.b16 %v898
        %v2629 = vunpack.c.h.b16 %v898
        %v2630 = vunpack.c.l.b16 %v899
        %v2631 = vunpack.c.h.b16 %v899
        %v2632 = vunpack.c.l.b16 %v900
        %v2633 = vunpack.c.h.b16 %v900
        %v2634 = vunpack.c.l.b16 %v901
        %v2635 = vunpack.c.h.b16 %v901
        %v2636 = vunpack.c.l.b16 %v902
        %v2637 = vunpack.c.h.b16 %v902
        %v2638 = vunpack.c.l.b16 %v903
        %v2639 = vunpack.c.h.b16 %v903
        %v2640 = vunpack.c.l.b16 %v904
        %v2641 = vunpack.c.h.b16 %v904
        %v2642 = vunpack.c.l.b16 %v905
        %v2643 = vunpack.c.h.b16 %v905
        %v2644 = vunpack.c.l.b16 %v906
        %v2645 = vunpack.c.h.b16 %v906
        %v2646 = vunpack.c.l.b16 %v907
        %v2647 = vunpack.c.h.b16 %v907
        %v2648 = vunpack.c.l.b16 %v908
        %v2649 = vunpack.c.h.b16 %v908
        %v2650 = vunpack.c.l.b16 %v909
        %v2651 = vunpack.c.h.b16 %v909
        %v2652 = vunpack.c.l.b16 %v910
        %v2653 = vunpack.c.h.b16 %v910
        %v2654 = vunpack.c.l.b16 %v911
        %v2655 = vunpack.c.h.b16 %v911
        %v2656 = vunpack.c.l.b16 %v912
        %v2657 = vunpack.c.h.b16 %v912
        %v2658 = vunpack.c.l.b16 %v913
        %v2659 = vunpack.c.h.b16 %v913
        %v2660 = vunpack.c.l.b16 %v914
        %v2661 = vunpack.c.h.b16 %v914
        %v2662 = vunpack.c.l.b16 %v915
        %v2663 = vunpack.c.h.b16 %v915
        %v2664 = vunpack.c.l.b16 %v916
        %v2665 = vunpack.c.h.b16 %v916
        %v2666 = vunpack.c.l.b16 %v917
        %v2667 = vunpack.c.h.b16 %v917
        %v2668 = vunpack.c.l.b16 %v918
        %v2669 = vunpack.c.h.b16 %v918
        %v2670 = vunpack.c.l.b16 %v919
        %v2671 = vunpack.c.h.b16 %v919
        %v2672 = vunpack.c.l.b16 %v920
        %v2673 = vunpack.c.h.b16 %v920
        %v2674 = vunpack.c.l.b16 %v921
        %v2675 = vunpack.c.h.b16 %v921
        %v2676 = vunpack.c.l.b16 %v922
        %v2677 = vunpack.c.h.b16 %v922
        %v2678 = vunpack.c.l.b16 %v923
        %v2679 = vunpack.c.h.b16 %v923
        %v2680 = vunpack.c.l.b16 %v924
        %v2681 = vunpack.c.h.b16 %v924
        %v2682 = vunpack.c.l.b16 %v925
        %v2683 = vunpack.c.h.b16 %v925
        %v2684 = vunpack.c.l.b16 %v926
        %v2685 = vunpack.c.h.b16 %v926
        %v2686 = vunpack.c.l.b16 %v927
        %v2687 = vunpack.c.h.b16 %v927
        %v2688 = vunpack.c.l.b16 %v928
        %v2689 = vunpack.c.h.b16 %v928
        %v2690 = vunpack.c.l.b16 %v929
        %v2691 = vunpack.c.h.b16 %v929
        %v2692 = vunpack.c.l.b16 %v930
        %v2693 = vunpack.c.h.b16 %v930
        %v2694 = vunpack.c.l.b16 %v931
        %v2695 = vunpack.c.h.b16 %v931
        %v2696 = vunpack.c.l.b16 %v932
        %v2697 = vunpack.c.h.b16 %v932
        %v2698 = vunpack.c.l.b16 %v933
        %v2699 = vunpack.c.h.b16 %v933
        %v2700 = vunpack.c.l.b16 %v934
        %v2701 = vunpack.c.h.b16 %v934
        %v2702 = vunpack.c.l.b16 %v935
        %v2703 = vunpack.c.h.b16 %v935
        %v2704 = vunpack.c.l.b16 %v936
        %v2705 = vunpack.c.h.b16 %v936
        %v2706 = vunpack.c.l.b16 %v937
        %v2707 = vunpack.c.h.b16 %v937
        %v2708 = vunpack.c.l.b16 %v938
        %v2709 = vunpack.c.h.b16 %v938
        %v2710 = vunpack.c.l.b16 %v939
        %v2711 = vunpack.c.h.b16 %v939
        %v2712 = vunpack.c.l.b16 %v940
        %v2713 = vunpack.c.h.b16 %v940
        %v2714 = vunpack.c.l.b16 %v941
        %v2715 = vunpack.c.h.b16 %v941
        %v2716 = vunpack.c.l.b16 %v942
        %v2717 = vunpack.c.h.b16 %v942
        %v2718 = vunpack.c.l.b16 %v943
        %v2719 = vunpack.c.h.b16 %v943
        %v2720 = vunpack.c.l.b16 %v944
        %v2721 = vunpack.c.h.b16 %v944
        %v2722 = vunpack.c.l.b16 %v945
        %v2723 = vunpack.c.h.b16 %v945
        %v2724 = vunpack.c.l.b16 %v946
        %v2725 = vunpack.c.h.b16 %v946
        %v2726 = vunpack.c.l.b16 %v947
        %v2727 = vunpack.c.h.b16 %v947
        %v2728 = vunpack.c.l.b16 %v948
        %v2729 = vunpack.c.h.b16 %v948
        %v2730 = vunpack.c.l.b16 %v949
        %v2731 = vunpack.c.h.b16 %v949
        %v2732 = vunpack.c.l.b16 %v950
        %v2733 = vunpack.c.h.b16 %v950
        %v2734 = vunpack.c.l.b16 %v951
        %v2735 = vunpack.c.h.b16 %v951
        %v2736 = vunpack.c.l.b16 %v952
        %v2737 = vunpack.c.h.b16 %v952
        %v2738 = vunpack.c.l.b16 %v953
        %v2739 = vunpack.c.h.b16 %v953
        %v2740 = vunpack.c.l.b16 %v954
        %v2741 = vunpack.c.h.b16 %v954
        %v2742 = vunpack.c.l.b16 %v955
        %v2743 = vunpack.c.h.b16 %v955
        %v2744 = vunpack.c.l.b16 %v956
        %v2745 = vunpack.c.h.b16 %v956
        %v2746 = vunpack.c.l.b16 %v957
        %v2747 = vunpack.c.h.b16 %v957
        %v2748 = vunpack.c.l.b16 %v958
        %v2749 = vunpack.c.h.b16 %v958
        %v2750 = vunpack.c.l.b16 %v959
        %v2751 = vunpack.c.h.b16 %v959
        %v2752 = vunpack.c.l.b16 %v960
        %v2753 = vunpack.c.h.b16 %v960
        %v2754 = vpack.c.b16 %v1594, %v1586
        %v2755 = vpack.c.b16 %v1595, %v1587
        %v2756 = vpack.c.b16 %v1596, %v1588
        %v2757 = vpack.c.b16 %v1597, %v1589
        %v2758 = vpack.c.b16 %v1598, %v1590
        %v2759 = vpack.c.b16 %v1599, %v1591
        %v2760 = vpack.c.b16 %v1600, %v1592
        %v2761 = vpack.c.b16 %v1601, %v1593
        %v2762 = vpack.c.b16 %v1610, %v1602
        %v2763 = vpack.c.b16 %v1611, %v1603
        %v2764 = vpack.c.b16 %v1612, %v1604
        %v2765 = vpack.c.b16 %v1613, %v1605
        %v2766 = vpack.c.b16 %v1614, %v1606
        %v2767 = vpack.c.b16 %v1615, %v1607
        %v2768 = vpack.c.b16 %v1616, %v1608
        %v2769 = vpack.c.b16 %v1617, %v1609
        %v2770 = vpack.c.b16 %v1626, %v1618
        %v2771 = vpack.c.b16 %v1627, %v1619
        %v2772 = vpack.c.b16 %v1628, %v1620
        %v2773 = vpack.c.b16 %v1629, %v1621
        %v2774 = vpack.c.b16 %v1630, %v1622
        %v2775 = vpack.c.b16 %v1631, %v1623
        %v2776 = vpack.c.b16 %v1632, %v1624
        %v2777 = vpack.c.b16 %v1633, %v1625
        %v2778 = vpack.c.b16 %v1642, %v1634
        %v2779 = vpack.c.b16 %v1643, %v1635
        %v2780 = vpack.c.b16 %v1644, %v1636
        %v2781 = vpack.c.b16 %v1645, %v1637
        %v2782 = vpack.c.b16 %v1646, %v1638
        %v2783 = vpack.c.b16 %v1647, %v1639
        %v2784 = vpack.c.b16 %v1648, %v1640
        %v2785 = vpack.c.b16 %v1649, %v1641
        %v2786 = vpack.c.b16 %v1658, %v1650
        %v2787 = vpack.c.b16 %v1659, %v1651
        %v2788 = vpack.c.b16 %v1660, %v1652
        %v2789 = vpack.c.b16 %v1661, %v1653
        %v2790 = vpack.c.b16 %v1662, %v1654
        %v2791 = vpack.c.b16 %v1663, %v1655
        %v2792 = vpack.c.b16 %v1664, %v1656
        %v2793 = vpack.c.b16 %v1665, %v1657
        %v2794 = vpack.c.b16 %v1674, %v1666
        %v2795 = vpack.c.b16 %v1675, %v1667
        %v2796 = vpack.c.b16 %v1676, %v1668
        %v2797 = vpack.c.b16 %v1677, %v1669
        %v2798 = vpack.c.b16 %v1678, %v1670
        %v2799 = vpack.c.b16 %v1679, %v1671
        %v2800 = vpack.c.b16 %v1680, %v1672
        %v2801 = vpack.c.b16 %v1681, %v1673
        %v2802 = vpack.c.b16 %v1690, %v1682
        %v2803 = vpack.c.b16 %v1691, %v1683
        %v2804 = vpack.c.b16 %v1692, %v1684
        %v2805 = vpack.c.b16 %v1693, %v1685
        %v2806 = vpack.c.b16 %v1694, %v1686
        %v2807 = vpack.c.b16 %v1695, %v1687
        %v2808 = vpack.c.b16 %v1696, %v1688
        %v2809 = vpack.c.b16 %v1697, %v1689
        %v2810 = vpack.c.b16 %v1706, %v1698
        %v2811 = vpack.c.b16 %v1707, %v1699
        %v2812 = vpack.c.b16 %v1708, %v1700
        %v2813 = vpack.c.b16 %v1709, %v1701
        %v2814 = vpack.c.b16 %v1710, %v1702
        %v2815 = vpack.c.b16 %v1711, %v1703
        %v2816 = vpack.c.b16 %v1712, %v1704
        %v2817 = vpack.c.b16 %v1713, %v1705
        %v2818 = vpack.c.b16 %v1722, %v1714
        %v2819 = vpack.c.b16 %v1723, %v1715
        %v2820 = vpack.c.b16 %v1724, %v1716
        %v2821 = vpack.c.b16 %v1725, %v1717
        %v2822 = vpack.c.b16 %v1726, %v1718
        %v2823 = vpack.c.b16 %v1727, %v1719
        %v2824 = vpack.c.b16 %v1728, %v1720
        %v2825 = vpack.c.b16 %v1729, %v1721
        %v2826 = vpack.c.b16 %v1738, %v1730
        %v2827 = vpack.c.b16 %v1739, %v1731
        %v2828 = vpack.c.b16 %v1740, %v1732
        %v2829 = vpack.c.b16 %v1741, %v1733
        %v2830 = vpack.c.b16 %v1742, %v1734
        %v2831 = vpack.c.b16 %v1743, %v1735
        %v2832 = vpack.c.b16 %v1744, %v1736
        %v2833 = vpack.c.b16 %v1745, %v1737
        %v2834 = vpack.c.b16 %v1754, %v1746
        %v2835 = vpack.c.b16 %v1755, %v1747
        %v2836 = vpack.c.b16 %v1756, %v1748
        %v2837 = vpack.c.b16 %v1757, %v1749
        %v2838 = vpack.c.b16 %v1758, %v1750
        %v2839 = vpack.c.b16 %v1759, %v1751
        %v2840 = vpack.c.b16 %v1760, %v1752
        %v2841 = vpack.c.b16 %v1761, %v1753
        %v2842 = vpack.c.b16 %v1770, %v1762
        %v2843 = vpack.c.b16 %v1771, %v1763
        %v2844 = vpack.c.b16 %v1772, %v1764
        %v2845 = vpack.c.b16 %v1773, %v1765
        %v2846 = vpack.c.b16 %v1774, %v1766
        %v2847 = vpack.c.b16 %v1775, %v1767
        %v2848 = vpack.c.b16 %v1776, %v1768
        %v2849 = vpack.c.b16 %v1777, %v1769
        %v2850 = vpack.c.b16 %v1786, %v1778
        %v2851 = vpack.c.b16 %v1787, %v1779
        %v2852 = vpack.c.b16 %v1788, %v1780
        %v2853 = vpack.c.b16 %v1789, %v1781
        %v2854 = vpack.c.b16 %v1790, %v1782
        %v2855 = vpack.c.b16 %v1791, %v1783
        %v2856 = vpack.c.b16 %v1792, %v1784
        %v2857 = vpack.c.b16 %v1793, %v1785
        %v2858 = vpack.c.b16 %v1802, %v1794
        %v2859 = vpack.c.b16 %v1803, %v1795
        %v2860 = vpack.c.b16 %v1804, %v1796
        %v2861 = vpack.c.b16 %v1805, %v1797
        %v2862 = vpack.c.b16 %v1806, %v1798
        %v2863 = vpack.c.b16 %v1807, %v1799
        %v2864 = vpack.c.b16 %v1808, %v1800
        %v2865 = vpack.c.b16 %v1809, %v1801
        %v2866 = vpack.c.b16 %v1818, %v1810
        %v2867 = vpack.c.b16 %v1819, %v1811
        %v2868 = vpack.c.b16 %v1820, %v1812
        %v2869 = vpack.c.b16 %v1821, %v1813
        %v2870 = vpack.c.b16 %v1822, %v1814
        %v2871 = vpack.c.b16 %v1823, %v1815
        %v2872 = vpack.c.b16 %v1824, %v1816
        %v2873 = vpack.c.b16 %v1825, %v1817
        %v2874 = vpack.c.b16 %v1834, %v1826
        %v2875 = vpack.c.b16 %v1835, %v1827
        %v2876 = vpack.c.b16 %v1836, %v1828
        %v2877 = vpack.c.b16 %v1837, %v1829
        %v2878 = vpack.c.b16 %v1838, %v1830
        %v2879 = vpack.c.b16 %v1839, %v1831
        %v2880 = vpack.c.b16 %v1840, %v1832
        %v2881 = vpack.c.b16 %v1841, %v1833
        %v2882 = vpack.c.b16 %v1850, %v1842
        %v2883 = vpack.c.b16 %v1851, %v1843
        %v2884 = vpack.c.b16 %v1852, %v1844
        %v2885 = vpack.c.b16 %v1853, %v1845
        %v2886 = vpack.c.b16 %v1854, %v1846
        %v2887 = vpack.c.b16 %v1855, %v1847
        %v2888 = vpack.c.b16 %v1856, %v1848
        %v2889 = vpack.c.b16 %v1857, %v1849
        %v2890 = vpack.c.b16 %v1866, %v1858
        %v2891 = vpack.c.b16 %v1867, %v1859
        %v2892 = vpack.c.b16 %v1868, %v1860
        %v2893 = vpack.c.b16 %v1869, %v1861
        %v2894 = vpack.c.b16 %v1870, %v1862
        %v2895 = vpack.c.b16 %v1871, %v1863
        %v2896 = vpack.c.b16 %v1872, %v1864
        %v2897 = vpack.c.b16 %v1873, %v1865
        %v2898 = vpack.c.b16 %v1882, %v1874
        %v2899 = vpack.c.b16 %v1883, %v1875
        %v2900 = vpack.c.b16 %v1884, %v1876
        %v2901 = vpack.c.b16 %v1885, %v1877
        %v2902 = vpack.c.b16 %v1886, %v1878
        %v2903 = vpack.c.b16 %v1887, %v1879
        %v2904 = vpack.c.b16 %v1888, %v1880
        %v2905 = vpack.c.b16 %v1889, %v1881
        %v2906 = vpack.c.b16 %v1898, %v1890
        %v2907 = vpack.c.b16 %v1899, %v1891
        %v2908 = vpack.c.b16 %v1900, %v1892
        %v2909 = vpack.c.b16 %v1901, %v1893
        %v2910 = vpack.c.b16 %v1902, %v1894
        %v2911 = vpack.c.b16 %v1903, %v1895
        %v2912 = vpack.c.b16 %v1904, %v1896
        %v2913 = vpack.c.b16 %v1905, %v1897
        %v2914 = vpack.c.b16 %v1914, %v1906
        %v2915 = vpack.c.b16 %v1915, %v1907
        %v2916 = vpack.c.b16 %v1916, %v1908
        %v2917 = vpack.c.b16 %v1917, %v1909
        %v2918 = vpack.c.b16 %v1918, %v1910
        %v2919 = vpack.c.b16 %v1919, %v1911
        %v2920 = vpack.c.b16 %v1920, %v1912
        %v2921 = vpack.c.b16 %v1921, %v1913
        %v2922 = vpack.c.b16 %v1930, %v1922
        %v2923 = vpack.c.b16 %v1931, %v1923
        %v2924 = vpack.c.b16 %v1932, %v1924
        %v2925 = vpack.c.b16 %v1933, %v1925
        %v2926 = vpack.c.b16 %v1934, %v1926
        %v2927 = vpack.c.b16 %v1935, %v1927
        %v2928 = vpack.c.b16 %v1936, %v1928
        %v2929 = vpack.c.b16 %v1937, %v1929
        %v2930 = vpack.c.b16 %v1946, %v1938
        %v2931 = vpack.c.b16 %v1947, %v1939
        %v2932 = vpack.c.b16 %v1948, %v1940
        %v2933 = vpack.c.b16 %v1949, %v1941
        %v2934 = vpack.c.b16 %v1950, %v1942
        %v2935 = vpack.c.b16 %v1951, %v1943
        %v2936 = vpack.c.b16 %v1952, %v1944
        %v2937 = vpack.c.b16 %v1953, %v1945
        %v2938 = vpack.c.b16 %v1962, %v1954
        %v2939 = vpack.c.b16 %v1963, %v1955
        %v2940 = vpack.c.b16 %v1964, %v1956
        %v2941 = vpack.c.b16 %v1965, %v1957
        %v2942 = vpack.c.b16 %v1966, %v1958
        %v2943 = vpack.c.b16 %v1967, %v1959
        %v2944 = vpack.c.b16 %v1968, %v1960
        %v2945 = vpack.c.b16 %v1969, %v1961
        %v2946 = vpack.c.b16 %v1978, %v1970
        %v2947 = vpack.c.b16 %v1979, %v1971
        %v2948 = vpack.c.b16 %v1980, %v1972
        %v2949 = vpack.c.b16 %v1981, %v1973
        %v2950 = vpack.c.b16 %v1982, %v1974
        %v2951 = vpack.c.b16 %v1983, %v1975
        %v2952 = vpack.c.b16 %v1984, %v1976
        %v2953 = vpack.c.b16 %v1985, %v1977
        %v2954 = vpack.c.b16 %v1994, %v1986
        %v2955 = vpack.c.b16 %v1995, %v1987
        %v2956 = vpack.c.b16 %v1996, %v1988
        %v2957 = vpack.c.b16 %v1997, %v1989
        %v2958 = vpack.c.b16 %v1998, %v1990
        %v2959 = vpack.c.b16 %v1999, %v1991
        %v2960 = vpack.c.b16 %v2000, %v1992
        %v2961 = vpack.c.b16 %v2001, %v1993
        %v2962 = vpack.c.b16 %v2010, %v2002
        %v2963 = vpack.c.b16 %v2011, %v2003
        %v2964 = vpack.c.b16 %v2012, %v2004
        %v2965 = vpack.c.b16 %v2013, %v2005
        %v2966 = vpack.c.b16 %v2014, %v2006
        %v2967 = vpack.c.b16 %v2015, %v2007
        %v2968 = vpack.c.b16 %v2016, %v2008
        %v2969 = vpack.c.b16 %v2017, %v2009
        %v2970 = vpack.c.b16 %v2026, %v2018
        %v2971 = vpack.c.b16 %v2027, %v2019
        %v2972 = vpack.c.b16 %v2028, %v2020
        %v2973 = vpack.c.b16 %v2029, %v2021
        %v2974 = vpack.c.b16 %v2030, %v2022
        %v2975 = vpack.c.b16 %v2031, %v2023
        %v2976 = vpack.c.b16 %v2032, %v2024
        %v2977 = vpack.c.b16 %v2033, %v2025
        %v2978 = vpack.c.b16 %v2042, %v2034
        %v2979 = vpack.c.b16 %v2043, %v2035
        %v2980 = vpack.c.b16 %v2044, %v2036
        %v2981 = vpack.c.b16 %v2045, %v2037
        %v2982 = vpack.c.b16 %v2046, %v2038
        %v2983 = vpack.c.b16 %v2047, %v2039
        %v2984 = vpack.c.b16 %v2048, %v2040
        %v2985 = vpack.c.b16 %v2049, %v2041
        %v2986 = vpack.c.b16 %v2058, %v2050
        %v2987 = vpack.c.b16 %v2059, %v2051
        %v2988 = vpack.c.b16 %v2060, %v2052
        %v2989 = vpack.c.b16 %v2061, %v2053
        %v2990 = vpack.c.b16 %v2062, %v2054
        %v2991 = vpack.c.b16 %v2063, %v2055
        %v2992 = vpack.c.b16 %v2064, %v2056
        %v2993 = vpack.c.b16 %v2065, %v2057
        %v2994 = vpack.c.b16 %v2074, %v2066
        %v2995 = vpack.c.b16 %v2075, %v2067
        %v2996 = vpack.c.b16 %v2076, %v2068
        %v2997 = vpack.c.b16 %v2077, %v2069
        %v2998 = vpack.c.b16 %v2078, %v2070
        %v2999 = vpack.c.b16 %v2079, %v2071
        %v3000 = vpack.c.b16 %v2080, %v2072
        %v3001 = vpack.c.b16 %v2081, %v2073
        %v3002 = vpack.c.b16 %v2090, %v2082
        %v3003 = vpack.c.b16 %v2091, %v2083
        %v3004 = vpack.c.b16 %v2092, %v2084
        %v3005 = vpack.c.b16 %v2093, %v2085
        %v3006 = vpack.c.b16 %v2094, %v2086
        %v3007 = vpack.c.b16 %v2095, %v2087
        %v3008 = vpack.c.b16 %v2096, %v2088
        %v3009 = vpack.c.b16 %v2097, %v2089
        %v3010 = vpack.c.b16 %v2106, %v2098
        %v3011 = vpack.c.b16 %v2107, %v2099
        %v3012 = vpack.c.b16 %v2108, %v2100
        %v3013 = vpack.c.b16 %v2109, %v2101
        %v3014 = vpack.c.b16 %v2110, %v2102
        %v3015 = vpack.c.b16 %v2111, %v2103
        %v3016 = vpack.c.b16 %v2112, %v2104
        %v3017 = vpack.c.b16 %v2113, %v2105
        %v3018 = vpack.c.b16 %v2122, %v2114
        %v3019 = vpack.c.b16 %v2123, %v2115
        %v3020 = vpack.c.b16 %v2124, %v2116
        %v3021 = vpack.c.b16 %v2125, %v2117
        %v3022 = vpack.c.b16 %v2126, %v2118
        %v3023 = vpack.c.b16 %v2127, %v2119
        %v3024 = vpack.c.b16 %v2128, %v2120
        %v3025 = vpack.c.b16 %v2129, %v2121
        %v3026 = vpack.c.b16 %v2138, %v2130
        %v3027 = vpack.c.b16 %v2139, %v2131
        %v3028 = vpack.c.b16 %v2140, %v2132
        %v3029 = vpack.c.b16 %v2141, %v2133
        %v3030 = vpack.c.b16 %v2142, %v2134
        %v3031 = vpack.c.b16 %v2143, %v2135
        %v3032 = vpack.c.b16 %v2144, %v2136
        %v3033 = vpack.c.b16 %v2145, %v2137
        %v3034 = vpack.c.b16 %v2154, %v2146
        %v3035 = vpack.c.b16 %v2155, %v2147
        %v3036 = vpack.c.b16 %v2156, %v2148
        %v3037 = vpack.c.b16 %v2157, %v2149
        %v3038 = vpack.c.b16 %v2158, %v2150
        %v3039 = vpack.c.b16 %v2159, %v2151
        %v3040 = vpack.c.b16 %v2160, %v2152
        %v3041 = vpack.c.b16 %v2161, %v2153
        %v3042 = vpack.c.b16 %v2170, %v2162
        %v3043 = vpack.c.b16 %v2171, %v2163
        %v3044 = vpack.c.b16 %v2172, %v2164
        %v3045 = vpack.c.b16 %v2173, %v2165
        %v3046 = vpack.c.b16 %v2174, %v2166
        %v3047 = vpack.c.b16 %v2175, %v2167
        %v3048 = vpack.c.b16 %v2176, %v2168
        %v3049 = vpack.c.b16 %v2177, %v2169
        %v3050 = vpack.c.b16 %v2186, %v2178
        %v3051 = vpack.c.b16 %v2187, %v2179
        %v3052 = vpack.c.b16 %v2188, %v2180
        %v3053 = vpack.c.b16 %v2189, %v2181
        %v3054 = vpack.c.b16 %v2190, %v2182
        %v3055 = vpack.c.b16 %v2191, %v2183
        %v3056 = vpack.c.b16 %v2192, %v2184
        %v3057 = vpack.c.b16 %v2193, %v2185
        %v3058 = vpack.c.b16 %v2202, %v2194
        %v3059 = vpack.c.b16 %v2203, %v2195
        %v3060 = vpack.c.b16 %v2204, %v2196
        %v3061 = vpack.c.b16 %v2205, %v2197
        %v3062 = vpack.c.b16 %v2206, %v2198
        %v3063 = vpack.c.b16 %v2207, %v2199
        %v3064 = vpack.c.b16 %v2208, %v2200
        %v3065 = vpack.c.b16 %v2209, %v2201
        %v3066 = vpack.c.b16 %v2218, %v2210
        %v3067 = vpack.c.b16 %v2219, %v2211
        %v3068 = vpack.c.b16 %v2220, %v2212
        %v3069 = vpack.c.b16 %v2221, %v2213
        %v3070 = vpack.c.b16 %v2222, %v2214
        %v3071 = vpack.c.b16 %v2223, %v2215
        %v3072 = vpack.c.b16 %v2224, %v2216
        %v3073 = vpack.c.b16 %v2225, %v2217
        %v3074 = vpack.c.b16 %v2234, %v2226
        %v3075 = vpack.c.b16 %v2235, %v2227
        %v3076 = vpack.c.b16 %v2236, %v2228
        %v3077 = vpack.c.b16 %v2237, %v2229
        %v3078 = vpack.c.b16 %v2238, %v2230
        %v3079 = vpack.c.b16 %v2239, %v2231
        %v3080 = vpack.c.b16 %v2240, %v2232
        %v3081 = vpack.c.b16 %v2241, %v2233
        %v3082 = vpack.c.b16 %v2250, %v2242
        %v3083 = vpack.c.b16 %v2251, %v2243
        %v3084 = vpack.c.b16 %v2252, %v2244
        %v3085 = vpack.c.b16 %v2253, %v2245
        %v3086 = vpack.c.b16 %v2254, %v2246
        %v3087 = vpack.c.b16 %v2255, %v2247
        %v3088 = vpack.c.b16 %v2256, %v2248
        %v3089 = vpack.c.b16 %v2257, %v2249
        %v3090 = vpack.c.b16 %v2266, %v2258
        %v3091 = vpack.c.b16 %v2267, %v2259
        %v3092 = vpack.c.b16 %v2268, %v2260
        %v3093 = vpack.c.b16 %v2269, %v2261
        %v3094 = vpack.c.b16 %v2270, %v2262
        %v3095 = vpack.c.b16 %v2271, %v2263
        %v3096 = vpack.c.b16 %v2272, %v2264
        %v3097 = vpack.c.b16 %v2273, %v2265
        %v3098 = vpack.c.b16 %v2282, %v2274
        %v3099 = vpack.c.b16 %v2283, %v2275
        %v3100 = vpack.c.b16 %v2284, %v2276
        %v3101 = vpack.c.b16 %v2285, %v2277
        %v3102 = vpack.c.b16 %v2286, %v2278
        %v3103 = vpack.c.b16 %v2287, %v2279
        %v3104 = vpack.c.b16 %v2288, %v2280
        %v3105 = vpack.c.b16 %v2289, %v2281
        %v3106 = vpack.c.b16 %v2298, %v2290
        %v3107 = vpack.c.b16 %v2299, %v2291
        %v3108 = vpack.c.b16 %v2300, %v2292
        %v3109 = vpack.c.b16 %v2301, %v2293
        %v3110 = vpack.c.b16 %v2302, %v2294
        %v3111 = vpack.c.b16 %v2303, %v2295
        %v3112 = vpack.c.b16 %v2304, %v2296
        %v3113 = vpack.c.b16 %v2305, %v2297
        %v3114 = vpack.c.b16 %v2314, %v2306
        %v3115 = vpack.c.b16 %v2315, %v2307
        %v3116 = vpack.c.b16 %v2316, %v2308
        %v3117 = vpack.c.b16 %v2317, %v2309
        %v3118 = vpack.c.b16 %v2318, %v2310
        %v3119 = vpack.c.b16 %v2319, %v2311
        %v3120 = vpack.c.b16 %v2320, %v2312
        %v3121 = vpack.c.b16 %v2321, %v2313
        %v3122 = vpack.c.b16 %v2330, %v2322
        %v3123 = vpack.c.b16 %v2331, %v2323
        %v3124 = vpack.c.b16 %v2332, %v2324
        %v3125 = vpack.c.b16 %v2333, %v2325
        %v3126 = vpack.c.b16 %v2334, %v2326
        %v3127 = vpack.c.b16 %v2335, %v2327
        %v3128 = vpack.c.b16 %v2336, %v2328
        %v3129 = vpack.c.b16 %v2337, %v2329
        %v3130 = vpack.c.b16 %v2346, %v2338
        %v3131 = vpack.c.b16 %v2347, %v2339
        %v3132 = vpack.c.b16 %v2348, %v2340
        %v3133 = vpack.c.b16 %v2349, %v2341
        %v3134 = vpack.c.b16 %v2350, %v2342
        %v3135 = vpack.c.b16 %v2351, %v2343
        %v3136 = vpack.c.b16 %v2352, %v2344
        %v3137 = vpack.c.b16 %v2353, %v2345
        %v3138 = vpack.c.b16 %v2362, %v2354
        %v3139 = vpack.c.b16 %v2363, %v2355
        %v3140 = vpack.c.b16 %v2364, %v2356
        %v3141 = vpack.c.b16 %v2365, %v2357
        %v3142 = vpack.c.b16 %v2366, %v2358
        %v3143 = vpack.c.b16 %v2367, %v2359
        %v3144 = vpack.c.b16 %v2368, %v2360
        %v3145 = vpack.c.b16 %v2369, %v2361
        %v3146 = vpack.c.b16 %v2378, %v2370
        %v3147 = vpack.c.b16 %v2379, %v2371
        %v3148 = vpack.c.b16 %v2380, %v2372
        %v3149 = vpack.c.b16 %v2381, %v2373
        %v3150 = vpack.c.b16 %v2382, %v2374
        %v3151 = vpack.c.b16 %v2383, %v2375
        %v3152 = vpack.c.b16 %v2384, %v2376
        %v3153 = vpack.c.b16 %v2385, %v2377
        %v3154 = vpack.c.b16 %v2394, %v2386
        %v3155 = vpack.c.b16 %v2395, %v2387
        %v3156 = vpack.c.b16 %v2396, %v2388
        %v3157 = vpack.c.b16 %v2397, %v2389
        %v3158 = vpack.c.b16 %v2398, %v2390
        %v3159 = vpack.c.b16 %v2399, %v2391
        %v3160 = vpack.c.b16 %v2400, %v2392
        %v3161 = vpack.c.b16 %v2401, %v2393
        %v3162 = vpack.c.b16 %v2410, %v2402
        %v3163 = vpack.c.b16 %v2411, %v2403
        %v3164 = vpack.c.b16 %v2412, %v2404
        %v3165 = vpack.c.b16 %v2413, %v2405
        %v3166 = vpack.c.b16 %v2414, %v2406
        %v3167 = vpack.c.b16 %v2415, %v2407
        %v3168 = vpack.c.b16 %v2416, %v2408
        %v3169 = vpack.c.b16 %v2417, %v2409
        %v3170 = vpack.c.b16 %v2426, %v2418
        %v3171 = vpack.c.b16 %v2427, %v2419
        %v3172 = vpack.c.b16 %v2428, %v2420
        %v3173 = vpack.c.b16 %v2429, %v2421
        %v3174 = vpack.c.b16 %v2430, %v2422
        %v3175 = vpack.c.b16 %v2431, %v2423
        %v3176 = vpack.c.b16 %v2432, %v2424
        %v3177 = vpack.c.b16 %v2433, %v2425
        %v3178 = vpack.c.b16 %v2442, %v2434
        %v3179 = vpack.c.b16 %v2443, %v2435
        %v3180 = vpack.c.b16 %v2444, %v2436
        %v3181 = vpack.c.b16 %v2445, %v2437
        %v3182 = vpack.c.b16 %v2446, %v2438
        %v3183 = vpack.c.b16 %v2447, %v2439
        %v3184 = vpack.c.b16 %v2448, %v2440
        %v3185 = vpack.c.b16 %v2449, %v2441
        %v3186 = vpack.c.b16 %v2458, %v2450
        %v3187 = vpack.c.b16 %v2459, %v2451
        %v3188 = vpack.c.b16 %v2460, %v2452
        %v3189 = vpack.c.b16 %v2461, %v2453
        %v3190 = vpack.c.b16 %v2462, %v2454
        %v3191 = vpack.c.b16 %v2463, %v2455
        %v3192 = vpack.c.b16 %v2464, %v2456
        %v3193 = vpack.c.b16 %v2465, %v2457
        %v3194 = vpack.c.b16 %v2474, %v2466
        %v3195 = vpack.c.b16 %v2475, %v2467
        %v3196 = vpack.c.b16 %v2476, %v2468
        %v3197 = vpack.c.b16 %v2477, %v2469
        %v3198 = vpack.c.b16 %v2478, %v2470
        %v3199 = vpack.c.b16 %v2479, %v2471
        %v3200 = vpack.c.b16 %v2480, %v2472
        %v3201 = vpack.c.b16 %v2481, %v2473
        %v3202 = vpack.c.b16 %v2490, %v2482
        %v3203 = vpack.c.b16 %v2491, %v2483
        %v3204 = vpack.c.b16 %v2492, %v2484
        %v3205 = vpack.c.b16 %v2493, %v2485
        %v3206 = vpack.c.b16 %v2494, %v2486
        %v3207 = vpack.c.b16 %v2495, %v2487
        %v3208 = vpack.c.b16 %v2496, %v2488
        %v3209 = vpack.c.b16 %v2497, %v2489
        %v3210 = vpack.c.b16 %v2506, %v2498
        %v3211 = vpack.c.b16 %v2507, %v2499
        %v3212 = vpack.c.b16 %v2508, %v2500
        %v3213 = vpack.c.b16 %v2509, %v2501
        %v3214 = vpack.c.b16 %v2510, %v2502
        %v3215 = vpack.c.b16 %v2511, %v2503
        %v3216 = vpack.c.b16 %v2512, %v2504
        %v3217 = vpack.c.b16 %v2513, %v2505
        %v3218 = vpack.c.b16 %v2522, %v2514
        %v3219 = vpack.c.b16 %v2523, %v2515
        %v3220 = vpack.c.b16 %v2524, %v2516
        %v3221 = vpack.c.b16 %v2525, %v2517
        %v3222 = vpack.c.b16 %v2526, %v2518
        %v3223 = vpack.c.b16 %v2527, %v2519
        %v3224 = vpack.c.b16 %v2528, %v2520
        %v3225 = vpack.c.b16 %v2529, %v2521
        %v3226 = vpack.c.b16 %v2538, %v2530
        %v3227 = vpack.c.b16 %v2539, %v2531
        %v3228 = vpack.c.b16 %v2540, %v2532
        %v3229 = vpack.c.b16 %v2541, %v2533
        %v3230 = vpack.c.b16 %v2542, %v2534
        %v3231 = vpack.c.b16 %v2543, %v2535
        %v3232 = vpack.c.b16 %v2544, %v2536
        %v3233 = vpack.c.b16 %v2545, %v2537
        %v3234 = vpack.c.b16 %v2554, %v2546
        %v3235 = vpack.c.b16 %v2555, %v2547
        %v3236 = vpack.c.b16 %v2556, %v2548
        %v3237 = vpack.c.b16 %v2557, %v2549
        %v3238 = vpack.c.b16 %v2558, %v2550
        %v3239 = vpack.c.b16 %v2559, %v2551
        %v3240 = vpack.c.b16 %v2560, %v2552
        %v3241 = vpack.c.b16 %v2561, %v2553
        %v3242 = vpack.c.b16 %v2570, %v2562
        %v3243 = vpack.c.b16 %v2571, %v2563
        %v3244 = vpack.c.b16 %v2572, %v2564
        %v3245 = vpack.c.b16 %v2573, %v2565
        %v3246 = vpack.c.b16 %v2574, %v2566
        %v3247 = vpack.c.b16 %v2575, %v2567
        %v3248 = vpack.c.b16 %v2576, %v2568
        %v3249 = vpack.c.b16 %v2577, %v2569
        %v3250 = vpack.c.b16 %v2586, %v2578
        %v3251 = vpack.c.b16 %v2587, %v2579
        %v3252 = vpack.c.b16 %v2588, %v2580
        %v3253 = vpack.c.b16 %v2589, %v2581
        %v3254 = vpack.c.b16 %v2590, %v2582
        %v3255 = vpack.c.b16 %v2591, %v2583
        %v3256 = vpack.c.b16 %v2592, %v2584
        %v3257 = vpack.c.b16 %v2593, %v2585
        %v3258 = vpack.c.b16 %v2602, %v2594
        %v3259 = vpack.c.b16 %v2603, %v2595
        %v3260 = vpack.c.b16 %v2604, %v2596
        %v3261 = vpack.c.b16 %v2605, %v2597
        %v3262 = vpack.c.b16 %v2606, %v2598
        %v3263 = vpack.c.b16 %v2607, %v2599
        %v3264 = vpack.c.b16 %v2608, %v2600
        %v3265 = vpack.c.b16 %v2609, %v2601
        %v3266 = vpack.c.b16 %v2618, %v2610
        %v3267 = vpack.c.b16 %v2619, %v2611
        %v3268 = vpack.c.b16 %v2620, %v2612
        %v3269 = vpack.c.b16 %v2621, %v2613
        %v3270 = vpack.c.b16 %v2622, %v2614
        %v3271 = vpack.c.b16 %v2623, %v2615
        %v3272 = vpack.c.b16 %v2624, %v2616
        %v3273 = vpack.c.b16 %v2625, %v2617
        %v3274 = vpack.c.b16 %v2634, %v2626
        %v3275 = vpack.c.b16 %v2635, %v2627
        %v3276 = vpack.c.b16 %v2636, %v2628
        %v3277 = vpack.c.b16 %v2637, %v2629
        %v3278 = vpack.c.b16 %v2638, %v2630
        %v3279 = vpack.c.b16 %v2639, %v2631
        %v3280 = vpack.c.b16 %v2640, %v2632
        %v3281 = vpack.c.b16 %v2641, %v2633
        %v3282 = vpack.c.b16 %v2650, %v2642
        %v3283 = vpack.c.b16 %v2651, %v2643
        %v3284 = vpack.c.b16 %v2652, %v2644
        %v3285 = vpack.c.b16 %v2653, %v2645
        %v3286 = vpack.c.b16 %v2654, %v2646
        %v3287 = vpack.c.b16 %v2655, %v2647
        %v3288 = vpack.c.b16 %v2656, %v2648
        %v3289 = vpack.c.b16 %v2657, %v2649
        %v3290 = vpack.c.b16 %v2666, %v2658
        %v3291 = vpack.c.b16 %v2667, %v2659
        %v3292 = vpack.c.b16 %v2668, %v2660
        %v3293 = vpack.c.b16 %v2669, %v2661
        %v3294 = vpack.c.b16 %v2670, %v2662
        %v3295 = vpack.c.b16 %v2671, %v2663
        %v3296 = vpack.c.b16 %v2672, %v2664
        %v3297 = vpack.c.b16 %v2673, %v2665
        %v3298 = vpack.c.b16 %v2682, %v2674
        %v3299 = vpack.c.b16 %v2683, %v2675
        %v3300 = vpack.c.b16 %v2684, %v2676
        %v3301 = vpack.c.b16 %v2685, %v2677
        %v3302 = vpack.c.b16 %v2686, %v2678
        %v3303 = vpack.c.b16 %v2687, %v2679
        %v3304 = vpack.c.b16 %v2688, %v2680
        %v3305 = vpack.c.b16 %v2689, %v2681
        %v3306 = vpack.c.b16 %v2698, %v2690
        %v3307 = vpack.c.b16 %v2699, %v2691
        %v3308 = vpack.c.b16 %v2700, %v2692
        %v3309 = vpack.c.b16 %v2701, %v2693
        %v3310 = vpack.c.b16 %v2702, %v2694
        %v3311 = vpack.c.b16 %v2703, %v2695
        %v3312 = vpack.c.b16 %v2704, %v2696
        %v3313 = vpack.c.b16 %v2705, %v2697
        %v3314 = vpack.c.b16 %v2714, %v2706
        %v3315 = vpack.c.b16 %v2715, %v2707
        %v3316 = vpack.c.b16 %v2716, %v2708
        %v3317 = vpack.c.b16 %v2717, %v2709
        %v3318 = vpack.c.b16 %v2718, %v2710
        %v3319 = vpack.c.b16 %v2719, %v2711
        %v3320 = vpack.c.b16 %v2720, %v2712
        %v3321 = vpack.c.b16 %v2721, %v2713
        %v3322 = vpack.c.b16 %v2730, %v2722
        %v3323 = vpack.c.b16 %v2731, %v2723
        %v3324 = vpack.c.b16 %v2732, %v2724
        %v3325 = vpack.c.b16 %v2733, %v2725
        %v3326 = vpack.c.b16 %v2734, %v2726
        %v3327 = vpack.c.b16 %v2735, %v2727
        %v3328 = vpack.c.b16 %v2736, %v2728
        %v3329 = vpack.c.b16 %v2737, %v2729
        %v3330 = vpack.c.b16 %v2746, %v2738
        %v3331 = vpack.c.b16 %v2747, %v2739
        %v3332 = vpack.c.b16 %v2748, %v2740
        %v3333 = vpack.c.b16 %v2749, %v2741
        %v3334 = vpack.c.b16 %v2750, %v2742
        %v3335 = vpack.c.b16 %v2751, %v2743
        %v3336 = vpack.c.b16 %v2752, %v2744
        %v3337 = vpack.c.b16 %v2753, %v2745
        %vm3922 = vcmask 130048
        %v3924 = vsel %vm3922, %v376, 0
        %3926 = vmatprep.subr.bf16.mxu0 %v2811
        %3927 = vmatpush1.bf16.msra.mxu0 %v2810
        %3928 = vmatprep.subr.bf16.mxu0 %v2803
        %3929 = vmatpush1.bf16.msra.mxu0 %v2802
        %3930 = vmatprep.subr.bf16.mxu0 %v2795
        %3931 = vmatpush1.bf16.msra.mxu0 %v2794
        %3932 = vmatprep.subr.bf16.mxu0 %v2787
        %3933 = vmatpush1.bf16.msra.mxu0 %v2786
        %3934 = vmatprep.subr.bf16.mxu0 %v2779
        %3935 = vmatpush1.bf16.msra.mxu0 %v2778
        %3936 = vmatprep.subr.bf16.mxu0 %v2771
        %3937 = vmatpush1.bf16.msra.mxu0 %v2770
        %3938 = vmatprep.subr.bf16.mxu0 %v2763
        %3939 = vmatpush1.bf16.msra.mxu0 %v2762
        %3940 = vmatprep.subr.bf16.mxu0 %v2755
        %3941 = vmatpush1.bf16.msra.mxu0 %v2754
        %3942 = vmatprep.subr.bf16.mxu0 %v2875
        %3943 = vmatpush2.bf16.msra.mxu0 %v2874
        %3944 = vmatprep.subr.bf16.mxu0 %v2867
        %3945 = vmatpush2.bf16.msra.mxu0 %v2866
        %3946 = vmatprep.subr.bf16.mxu0 %v2859
        %3947 = vmatpush2.bf16.msra.mxu0 %v2858
        %3948 = vmatprep.subr.bf16.mxu0 %v2851
        %3949 = vmatpush2.bf16.msra.mxu0 %v2850
        %3950 = vmatprep.subr.bf16.mxu0 %v2843
        %3951 = vmatpush2.bf16.msra.mxu0 %v2842
        %3952 = vmatprep.subr.bf16.mxu0 %v2835
        %3953 = vmatpush2.bf16.msra.mxu0 %v2834
        %3954 = vmatprep.subr.bf16.mxu0 %v2827
        %3955 = vmatpush2.bf16.msra.mxu0 %v2826
        %3956 = vmatprep.subr.bf16.mxu0 %v2819
        %3957 = vmatpush2.bf16.msra.mxu0 %v2818
        %3958 = vmatprep.mubr.bf16.mxu0 %v368
        %3959 = vmatmul.mubr.bf16.gmra.mxu0 %v367
        %v3960 = vpop.f32.mrf.mxu0
        %v3961 = vadd.f32 %v965, %v3960
        %v3962 = vpop.f32.mrf.mxu0
        %v3963 = vadd.f32 %v969, %v3962
        %v3964 = vpop.f32.mrf.mxu0
        %v3965 = vpop.f32.mrf.mxu0
        %3966 = vdwg.mxu0
        %3967 = vmatprep.subr.bf16.mxu0 %v2939
        %3968 = vmatpush1.bf16.msra.mxu0 %v2938
        %3969 = vmatprep.subr.bf16.mxu0 %v2931
        %3970 = vmatpush1.bf16.msra.mxu0 %v2930
        %3971 = vmatprep.subr.bf16.mxu0 %v2923
        %3972 = vmatpush1.bf16.msra.mxu0 %v2922
        %3973 = vmatprep.subr.bf16.mxu0 %v2915
        %3974 = vmatpush1.bf16.msra.mxu0 %v2914
        %3975 = vmatprep.subr.bf16.mxu0 %v2907
        %3976 = vmatpush1.bf16.msra.mxu0 %v2906
        %3977 = vmatprep.subr.bf16.mxu0 %v2899
        %3978 = vmatpush1.bf16.msra.mxu0 %v2898
        %3979 = vmatprep.subr.bf16.mxu0 %v2891
        %3980 = vmatpush1.bf16.msra.mxu0 %v2890
        %3981 = vmatprep.subr.bf16.mxu0 %v2883
        %3982 = vmatpush1.bf16.msra.mxu0 %v2882
        %3983 = vmatprep.subr.bf16.mxu0 %v3003
        %3984 = vmatpush2.bf16.msra.mxu0 %v3002
        %3985 = vmatprep.subr.bf16.mxu0 %v2995
        %3986 = vmatpush2.bf16.msra.mxu0 %v2994
        %3987 = vmatprep.subr.bf16.mxu0 %v2987
        %3988 = vmatpush2.bf16.msra.mxu0 %v2986
        %3989 = vmatprep.subr.bf16.mxu0 %v2979
        %3990 = vmatpush2.bf16.msra.mxu0 %v2978
        %3991 = vmatprep.subr.bf16.mxu0 %v2971
        %3992 = vmatpush2.bf16.msra.mxu0 %v2970
        %3993 = vmatprep.subr.bf16.mxu0 %v2963
        %3994 = vmatpush2.bf16.msra.mxu0 %v2962
        %3995 = vmatprep.subr.bf16.mxu0 %v2955
        %3996 = vmatpush2.bf16.msra.mxu0 %v2954
        %3997 = vmatprep.subr.bf16.mxu0 %v2947
        %3998 = vmatpush2.bf16.msra.mxu0 %v2946
        %3999 = vmatprep.mubr.bf16.mxu0 %v370
        %4000 = vmatmul.mubr.bf16.gmra.mxu0 %v369
        %v4001 = vpop.f32.mrf.mxu0
        %v4002 = vadd.f32 %v3961, %v4001
        %v4003 = vpop.f32.mrf.mxu0
        %v4004 = vadd.f32 %v3963, %v4003
        %v4005 = vpop.f32.mrf.mxu0
        %v4006 = vpop.f32.mrf.mxu0
        %4007 = vdwg.mxu0
        %4008 = vmatprep.subr.bf16.mxu0 %v3067
        %4009 = vmatpush1.bf16.msra.mxu0 %v3066
        %4010 = vmatprep.subr.bf16.mxu0 %v3059
        %4011 = vmatpush1.bf16.msra.mxu0 %v3058
        %4012 = vmatprep.subr.bf16.mxu0 %v3051
        %4013 = vmatpush1.bf16.msra.mxu0 %v3050
        %4014 = vmatprep.subr.bf16.mxu0 %v3043
        %4015 = vmatpush1.bf16.msra.mxu0 %v3042
        %4016 = vmatprep.subr.bf16.mxu0 %v3035
        %4017 = vmatpush1.bf16.msra.mxu0 %v3034
        %4018 = vmatprep.subr.bf16.mxu0 %v3027
        %4019 = vmatpush1.bf16.msra.mxu0 %v3026
        %4020 = vmatprep.subr.bf16.mxu0 %v3019
        %4021 = vmatpush1.bf16.msra.mxu0 %v3018
        %4022 = vmatprep.subr.bf16.mxu0 %v3011
        %4023 = vmatpush1.bf16.msra.mxu0 %v3010
        %4024 = vmatprep.subr.bf16.mxu0 %v3131
        %4025 = vmatpush2.bf16.msra.mxu0 %v3130
        %4026 = vmatprep.subr.bf16.mxu0 %v3123
        %4027 = vmatpush2.bf16.msra.mxu0 %v3122
        %4028 = vmatprep.subr.bf16.mxu0 %v3115
        %4029 = vmatpush2.bf16.msra.mxu0 %v3114
        %4030 = vmatprep.subr.bf16.mxu0 %v3107
        %4031 = vmatpush2.bf16.msra.mxu0 %v3106
        %4032 = vmatprep.subr.bf16.mxu0 %v3099
        %4033 = vmatpush2.bf16.msra.mxu0 %v3098
        %4034 = vmatprep.subr.bf16.mxu0 %v3091
        %4035 = vmatpush2.bf16.msra.mxu0 %v3090
        %4036 = vmatprep.subr.bf16.mxu0 %v3083
        %4037 = vmatpush2.bf16.msra.mxu0 %v3082
        %4038 = vmatprep.subr.bf16.mxu0 %v3075
        %4039 = vmatpush2.bf16.msra.mxu0 %v3074
        %4040 = vmatprep.mubr.bf16.mxu0 %v372
        %4041 = vmatmul.mubr.bf16.gmra.mxu0 %v371
        %v4042 = vpop.f32.mrf.mxu0
        %v4043 = vadd.f32 %v4002, %v4042
        %v4044 = vpop.f32.mrf.mxu0
        %v4045 = vadd.f32 %v4004, %v4044
        %v4046 = vpop.f32.mrf.mxu0
        %v4047 = vpop.f32.mrf.mxu0
        %4048 = vdwg.mxu0
        %4049 = vmatprep.subr.bf16.mxu0 %v3195
        %4050 = vmatpush1.bf16.msra.mxu0 %v3194
        %4051 = vmatprep.subr.bf16.mxu0 %v3187
        %4052 = vmatpush1.bf16.msra.mxu0 %v3186
        %4053 = vmatprep.subr.bf16.mxu0 %v3179
        %4054 = vmatpush1.bf16.msra.mxu0 %v3178
        %4055 = vmatprep.subr.bf16.mxu0 %v3171
        %4056 = vmatpush1.bf16.msra.mxu0 %v3170
        %4057 = vmatprep.subr.bf16.mxu0 %v3163
        %4058 = vmatpush1.bf16.msra.mxu0 %v3162
        %4059 = vmatprep.subr.bf16.mxu0 %v3155
        %4060 = vmatpush1.bf16.msra.mxu0 %v3154
        %4061 = vmatprep.subr.bf16.mxu0 %v3147
        %4062 = vmatpush1.bf16.msra.mxu0 %v3146
        %4063 = vmatprep.subr.bf16.mxu0 %v3139
        %4064 = vmatpush1.bf16.msra.mxu0 %v3138
        %4065 = vmatprep.subr.bf16.mxu0 %v3259
        %4066 = vmatpush2.bf16.msra.mxu0 %v3258
        %4067 = vmatprep.subr.bf16.mxu0 %v3251
        %4068 = vmatpush2.bf16.msra.mxu0 %v3250
        %4069 = vmatprep.subr.bf16.mxu0 %v3243
        %4070 = vmatpush2.bf16.msra.mxu0 %v3242
        %4071 = vmatprep.subr.bf16.mxu0 %v3235
        %4072 = vmatpush2.bf16.msra.mxu0 %v3234
        %4073 = vmatprep.subr.bf16.mxu0 %v3227
        %4074 = vmatpush2.bf16.msra.mxu0 %v3226
        %4075 = vmatprep.subr.bf16.mxu0 %v3219
        %4076 = vmatpush2.bf16.msra.mxu0 %v3218
        %4077 = vmatprep.subr.bf16.mxu0 %v3211
        %4078 = vmatpush2.bf16.msra.mxu0 %v3210
        %4079 = vmatprep.subr.bf16.mxu0 %v3203
        %4080 = vmatpush2.bf16.msra.mxu0 %v3202
        %4081 = vmatprep.mubr.bf16.mxu0 %v374
        %4082 = vmatmul.mubr.bf16.gmra.mxu0 %v373
        %v4083 = vpop.f32.mrf.mxu0
        %v4084 = vadd.f32 %v4043, %v4083
        %v4085 = vpop.f32.mrf.mxu0
        %v4086 = vadd.f32 %v4045, %v4085
        %v4087 = vpop.f32.mrf.mxu0
        %v4088 = vpop.f32.mrf.mxu0
        %4089 = vdwg.mxu0
        %4090 = vmatprep.subr.bf16.mxu0 %v3323
        %4091 = vmatpush1.bf16.msra.mxu0 %v3322
        %4092 = vmatprep.subr.bf16.mxu0 %v3315
        %4093 = vmatpush1.bf16.msra.mxu0 %v3314
        %4094 = vmatprep.subr.bf16.mxu0 %v3307
        %4095 = vmatpush1.bf16.msra.mxu0 %v3306
        %4096 = vmatprep.subr.bf16.mxu0 %v3299
        %4097 = vmatpush1.bf16.msra.mxu0 %v3298
        %4098 = vmatprep.subr.bf16.mxu0 %v3291
        %4099 = vmatpush1.bf16.msra.mxu0 %v3290
        %4100 = vmatprep.subr.bf16.mxu0 %v3283
        %4101 = vmatpush1.bf16.msra.mxu0 %v3282
        %4102 = vmatprep.subr.bf16.mxu0 %v3275
        %4103 = vmatpush1.bf16.msra.mxu0 %v3274
        %4104 = vmatprep.subr.bf16.mxu0 %v3267
        %4105 = vmatpush1.bf16.msra.mxu0 %v3266
        %4106 = vmatprep.subr.bf16.mxu0 0
        %4107 = vmatpush2.bf16.msra.mxu0 0
        %4108 = vmatprep.subr.bf16.mxu0 0
        %4109 = vmatpush2.bf16.msra.mxu0 0
        %4110 = vmatprep.subr.bf16.mxu0 0
        %4111 = vmatpush2.bf16.msra.mxu0 0
        %4112 = vmatprep.subr.bf16.mxu0 0
        %4113 = vmatpush2.bf16.msra.mxu0 0
        %4114 = vmatprep.subr.bf16.mxu0 0
        %4115 = vmatpush2.bf16.msra.mxu0 0
        %4116 = vmatprep.subr.bf16.mxu0 0
        %4117 = vmatpush2.bf16.msra.mxu0 0
        %4118 = vmatprep.subr.bf16.mxu0 0
        %4119 = vmatpush2.bf16.msra.mxu0 0
        %4120 = vmatprep.subr.bf16.mxu0 %v3331
        %4121 = vmatpush2.bf16.msra.mxu0 %v3330
        %4122 = vmatprep.mubr.bf16.mxu0 %v3924
        %4123 = vmatmul.mubr.bf16.gmra.mxu0 %v375
        %v4124 = vpop.f32.mrf.mxu0
        %v4125 = vadd.f32 %v4084, %v4124
        %v4126 = vpop.f32.mrf.mxu0
        %v4127 = vadd.f32 %v4086, %v4126
        %v4128 = vpop.f32.mrf.mxu0
        %v4129 = vpop.f32.mrf.mxu0
        %4130 = vdwg.mxu0
        %4131 = vmatprep.subr.bf16.mxu0 %v2813
        %4132 = vmatpush1.bf16.msra.mxu0 %v2812
        %4133 = vmatprep.subr.bf16.mxu0 %v2805
        %4134 = vmatpush1.bf16.msra.mxu0 %v2804
        %4135 = vmatprep.subr.bf16.mxu0 %v2797
        %4136 = vmatpush1.bf16.msra.mxu0 %v2796
        %4137 = vmatprep.subr.bf16.mxu0 %v2789
        %4138 = vmatpush1.bf16.msra.mxu0 %v2788
        %4139 = vmatprep.subr.bf16.mxu0 %v2781
        %4140 = vmatpush1.bf16.msra.mxu0 %v2780
        %4141 = vmatprep.subr.bf16.mxu0 %v2773
        %4142 = vmatpush1.bf16.msra.mxu0 %v2772
        %4143 = vmatprep.subr.bf16.mxu0 %v2765
        %4144 = vmatpush1.bf16.msra.mxu0 %v2764
        %4145 = vmatprep.subr.bf16.mxu0 %v2757
        %4146 = vmatpush1.bf16.msra.mxu0 %v2756
        %4147 = vmatprep.subr.bf16.mxu0 %v2877
        %4148 = vmatpush2.bf16.msra.mxu0 %v2876
        %4149 = vmatprep.subr.bf16.mxu0 %v2869
        %4150 = vmatpush2.bf16.msra.mxu0 %v2868
        %4151 = vmatprep.subr.bf16.mxu0 %v2861
        %4152 = vmatpush2.bf16.msra.mxu0 %v2860
        %4153 = vmatprep.subr.bf16.mxu0 %v2853
        %4154 = vmatpush2.bf16.msra.mxu0 %v2852
        %4155 = vmatprep.subr.bf16.mxu0 %v2845
        %4156 = vmatpush2.bf16.msra.mxu0 %v2844
        %4157 = vmatprep.subr.bf16.mxu0 %v2837
        %4158 = vmatpush2.bf16.msra.mxu0 %v2836
        %4159 = vmatprep.subr.bf16.mxu0 %v2829
        %4160 = vmatpush2.bf16.msra.mxu0 %v2828
        %4161 = vmatprep.subr.bf16.mxu0 %v2821
        %4162 = vmatpush2.bf16.msra.mxu0 %v2820
        %4163 = vmatprep.mubr.bf16.mxu0 %v368
        %4164 = vmatmul.mubr.bf16.gmra.mxu0 %v367
        %v4165 = vpop.f32.mrf.mxu0
        %v4166 = vadd.f32 %v973, %v4165
        %v4167 = vpop.f32.mrf.mxu0
        %v4168 = vadd.f32 %v977, %v4167
        %v4169 = vpop.f32.mrf.mxu0
        %v4170 = vpop.f32.mrf.mxu0
        %4171 = vdwg.mxu0
        %4172 = vmatprep.subr.bf16.mxu0 %v2941
        %4173 = vmatpush1.bf16.msra.mxu0 %v2940
        %4174 = vmatprep.subr.bf16.mxu0 %v2933
        %4175 = vmatpush1.bf16.msra.mxu0 %v2932
        %4176 = vmatprep.subr.bf16.mxu0 %v2925
        %4177 = vmatpush1.bf16.msra.mxu0 %v2924
        %4178 = vmatprep.subr.bf16.mxu0 %v2917
        %4179 = vmatpush1.bf16.msra.mxu0 %v2916
        %4180 = vmatprep.subr.bf16.mxu0 %v2909
        %4181 = vmatpush1.bf16.msra.mxu0 %v2908
        %4182 = vmatprep.subr.bf16.mxu0 %v2901
        %4183 = vmatpush1.bf16.msra.mxu0 %v2900
        %4184 = vmatprep.subr.bf16.mxu0 %v2893
        %4185 = vmatpush1.bf16.msra.mxu0 %v2892
        %4186 = vmatprep.subr.bf16.mxu0 %v2885
        %4187 = vmatpush1.bf16.msra.mxu0 %v2884
        %4188 = vmatprep.subr.bf16.mxu0 %v3005
        %4189 = vmatpush2.bf16.msra.mxu0 %v3004
        %4190 = vmatprep.subr.bf16.mxu0 %v2997
        %4191 = vmatpush2.bf16.msra.mxu0 %v2996
        %4192 = vmatprep.subr.bf16.mxu0 %v2989
        %4193 = vmatpush2.bf16.msra.mxu0 %v2988
        %4194 = vmatprep.subr.bf16.mxu0 %v2981
        %4195 = vmatpush2.bf16.msra.mxu0 %v2980
        %4196 = vmatprep.subr.bf16.mxu0 %v2973
        %4197 = vmatpush2.bf16.msra.mxu0 %v2972
        %4198 = vmatprep.subr.bf16.mxu0 %v2965
        %4199 = vmatpush2.bf16.msra.mxu0 %v2964
        %4200 = vmatprep.subr.bf16.mxu0 %v2957
        %4201 = vmatpush2.bf16.msra.mxu0 %v2956
        %4202 = vmatprep.subr.bf16.mxu0 %v2949
        %4203 = vmatpush2.bf16.msra.mxu0 %v2948
        %4204 = vmatprep.mubr.bf16.mxu0 %v370
        %4205 = vmatmul.mubr.bf16.gmra.mxu0 %v369
        %v4206 = vpop.f32.mrf.mxu0
        %v4207 = vadd.f32 %v4166, %v4206
        %v4208 = vpop.f32.mrf.mxu0
        %v4209 = vadd.f32 %v4168, %v4208
        %v4210 = vpop.f32.mrf.mxu0
        %v4211 = vpop.f32.mrf.mxu0
        %4212 = vdwg.mxu0
        %4213 = vmatprep.subr.bf16.mxu0 %v3069
        %4214 = vmatpush1.bf16.msra.mxu0 %v3068
        %4215 = vmatprep.subr.bf16.mxu0 %v3061
        %4216 = vmatpush1.bf16.msra.mxu0 %v3060
        %4217 = vmatprep.subr.bf16.mxu0 %v3053
        %4218 = vmatpush1.bf16.msra.mxu0 %v3052
        %4219 = vmatprep.subr.bf16.mxu0 %v3045
        %4220 = vmatpush1.bf16.msra.mxu0 %v3044
        %4221 = vmatprep.subr.bf16.mxu0 %v3037
        %4222 = vmatpush1.bf16.msra.mxu0 %v3036
        %4223 = vmatprep.subr.bf16.mxu0 %v3029
        %4224 = vmatpush1.bf16.msra.mxu0 %v3028
        %4225 = vmatprep.subr.bf16.mxu0 %v3021
        %4226 = vmatpush1.bf16.msra.mxu0 %v3020
        %4227 = vmatprep.subr.bf16.mxu0 %v3013
        %4228 = vmatpush1.bf16.msra.mxu0 %v3012
        %4229 = vmatprep.subr.bf16.mxu0 %v3133
        %4230 = vmatpush2.bf16.msra.mxu0 %v3132
        %4231 = vmatprep.subr.bf16.mxu0 %v3125
        %4232 = vmatpush2.bf16.msra.mxu0 %v3124
        %4233 = vmatprep.subr.bf16.mxu0 %v3117
        %4234 = vmatpush2.bf16.msra.mxu0 %v3116
        %4235 = vmatprep.subr.bf16.mxu0 %v3109
        %4236 = vmatpush2.bf16.msra.mxu0 %v3108
        %4237 = vmatprep.subr.bf16.mxu0 %v3101
        %4238 = vmatpush2.bf16.msra.mxu0 %v3100
        %4239 = vmatprep.subr.bf16.mxu0 %v3093
        %4240 = vmatpush2.bf16.msra.mxu0 %v3092
        %4241 = vmatprep.subr.bf16.mxu0 %v3085
        %4242 = vmatpush2.bf16.msra.mxu0 %v3084
        %4243 = vmatprep.subr.bf16.mxu0 %v3077
        %4244 = vmatpush2.bf16.msra.mxu0 %v3076
        %4245 = vmatprep.mubr.bf16.mxu0 %v372
        %4246 = vmatmul.mubr.bf16.gmra.mxu0 %v371
        %v4247 = vpop.f32.mrf.mxu0
        %v4248 = vadd.f32 %v4207, %v4247
        %v4249 = vpop.f32.mrf.mxu0
        %v4250 = vadd.f32 %v4209, %v4249
        %v4251 = vpop.f32.mrf.mxu0
        %v4252 = vpop.f32.mrf.mxu0
        %4253 = vdwg.mxu0
        %4254 = vmatprep.subr.bf16.mxu0 %v3197
        %4255 = vmatpush1.bf16.msra.mxu0 %v3196
        %4256 = vmatprep.subr.bf16.mxu0 %v3189
        %4257 = vmatpush1.bf16.msra.mxu0 %v3188
        %4258 = vmatprep.subr.bf16.mxu0 %v3181
        %4259 = vmatpush1.bf16.msra.mxu0 %v3180
        %4260 = vmatprep.subr.bf16.mxu0 %v3173
        %4261 = vmatpush1.bf16.msra.mxu0 %v3172
        %4262 = vmatprep.subr.bf16.mxu0 %v3165
        %4263 = vmatpush1.bf16.msra.mxu0 %v3164
        %4264 = vmatprep.subr.bf16.mxu0 %v3157
        %4265 = vmatpush1.bf16.msra.mxu0 %v3156
        %4266 = vmatprep.subr.bf16.mxu0 %v3149
        %4267 = vmatpush1.bf16.msra.mxu0 %v3148
        %4268 = vmatprep.subr.bf16.mxu0 %v3141
        %4269 = vmatpush1.bf16.msra.mxu0 %v3140
        %4270 = vmatprep.subr.bf16.mxu0 %v3261
        %4271 = vmatpush2.bf16.msra.mxu0 %v3260
        %4272 = vmatprep.subr.bf16.mxu0 %v3253
        %4273 = vmatpush2.bf16.msra.mxu0 %v3252
        %4274 = vmatprep.subr.bf16.mxu0 %v3245
        %4275 = vmatpush2.bf16.msra.mxu0 %v3244
        %4276 = vmatprep.subr.bf16.mxu0 %v3237
        %4277 = vmatpush2.bf16.msra.mxu0 %v3236
        %4278 = vmatprep.subr.bf16.mxu0 %v3229
        %4279 = vmatpush2.bf16.msra.mxu0 %v3228
        %4280 = vmatprep.subr.bf16.mxu0 %v3221
        %4281 = vmatpush2.bf16.msra.mxu0 %v3220
        %4282 = vmatprep.subr.bf16.mxu0 %v3213
        %4283 = vmatpush2.bf16.msra.mxu0 %v3212
        %4284 = vmatprep.subr.bf16.mxu0 %v3205
        %4285 = vmatpush2.bf16.msra.mxu0 %v3204
        %4286 = vmatprep.mubr.bf16.mxu0 %v374
        %4287 = vmatmul.mubr.bf16.gmra.mxu0 %v373
        %v4288 = vpop.f32.mrf.mxu0
        %v4289 = vadd.f32 %v4248, %v4288
        %v4290 = vpop.f32.mrf.mxu0
        %v4291 = vadd.f32 %v4250, %v4290
        %v4292 = vpop.f32.mrf.mxu0
        %v4293 = vpop.f32.mrf.mxu0
        %4294 = vdwg.mxu0
        %4295 = vmatprep.subr.bf16.mxu0 %v3325
        %4296 = vmatpush1.bf16.msra.mxu0 %v3324
        %4297 = vmatprep.subr.bf16.mxu0 %v3317
        %4298 = vmatpush1.bf16.msra.mxu0 %v3316
        %4299 = vmatprep.subr.bf16.mxu0 %v3309
        %4300 = vmatpush1.bf16.msra.mxu0 %v3308
        %4301 = vmatprep.subr.bf16.mxu0 %v3301
        %4302 = vmatpush1.bf16.msra.mxu0 %v3300
        %4303 = vmatprep.subr.bf16.mxu0 %v3293
        %4304 = vmatpush1.bf16.msra.mxu0 %v3292
        %4305 = vmatprep.subr.bf16.mxu0 %v3285
        %4306 = vmatpush1.bf16.msra.mxu0 %v3284
        %4307 = vmatprep.subr.bf16.mxu0 %v3277
        %4308 = vmatpush1.bf16.msra.mxu0 %v3276
        %4309 = vmatprep.subr.bf16.mxu0 %v3269
        %4310 = vmatpush1.bf16.msra.mxu0 %v3268
        %4311 = vmatprep.subr.bf16.mxu0 0
        %4312 = vmatpush2.bf16.msra.mxu0 0
        %4313 = vmatprep.subr.bf16.mxu0 0
        %4314 = vmatpush2.bf16.msra.mxu0 0
        %4315 = vmatprep.subr.bf16.mxu0 0
        %4316 = vmatpush2.bf16.msra.mxu0 0
        %4317 = vmatprep.subr.bf16.mxu0 0
        %4318 = vmatpush2.bf16.msra.mxu0 0
        %4319 = vmatprep.subr.bf16.mxu0 0
        %4320 = vmatpush2.bf16.msra.mxu0 0
        %4321 = vmatprep.subr.bf16.mxu0 0
        %4322 = vmatpush2.bf16.msra.mxu0 0
        %4323 = vmatprep.subr.bf16.mxu0 0
        %4324 = vmatpush2.bf16.msra.mxu0 0
        %4325 = vmatprep.subr.bf16.mxu0 %v3333
        %4326 = vmatpush2.bf16.msra.mxu0 %v3332
        %4327 = vmatprep.mubr.bf16.mxu0 %v3924
        %4328 = vmatmul.mubr.bf16.gmra.mxu0 %v375
        %v4329 = vpop.f32.mrf.mxu0
        %v4330 = vadd.f32 %v4289, %v4329
        %v4331 = vpop.f32.mrf.mxu0
        %v4332 = vadd.f32 %v4291, %v4331
        %v4333 = vpop.f32.mrf.mxu0
        %v4334 = vpop.f32.mrf.mxu0
        %4335 = vdwg.mxu0
        %4336 = vmatprep.subr.bf16.mxu0 %v2815
        %4337 = vmatpush1.bf16.msra.mxu0 %v2814
        %4338 = vmatprep.subr.bf16.mxu0 %v2807
        %4339 = vmatpush1.bf16.msra.mxu0 %v2806
        %4340 = vmatprep.subr.bf16.mxu0 %v2799
        %4341 = vmatpush1.bf16.msra.mxu0 %v2798
        %4342 = vmatprep.subr.bf16.mxu0 %v2791
        %4343 = vmatpush1.bf16.msra.mxu0 %v2790
        %4344 = vmatprep.subr.bf16.mxu0 %v2783
        %4345 = vmatpush1.bf16.msra.mxu0 %v2782
        %4346 = vmatprep.subr.bf16.mxu0 %v2775
        %4347 = vmatpush1.bf16.msra.mxu0 %v2774
        %4348 = vmatprep.subr.bf16.mxu0 %v2767
        %4349 = vmatpush1.bf16.msra.mxu0 %v2766
        %4350 = vmatprep.subr.bf16.mxu0 %v2759
        %4351 = vmatpush1.bf16.msra.mxu0 %v2758
        %4352 = vmatprep.subr.bf16.mxu0 %v2879
        %4353 = vmatpush2.bf16.msra.mxu0 %v2878
        %4354 = vmatprep.subr.bf16.mxu0 %v2871
        %4355 = vmatpush2.bf16.msra.mxu0 %v2870
        %4356 = vmatprep.subr.bf16.mxu0 %v2863
        %4357 = vmatpush2.bf16.msra.mxu0 %v2862
        %4358 = vmatprep.subr.bf16.mxu0 %v2855
        %4359 = vmatpush2.bf16.msra.mxu0 %v2854
        %4360 = vmatprep.subr.bf16.mxu0 %v2847
        %4361 = vmatpush2.bf16.msra.mxu0 %v2846
        %4362 = vmatprep.subr.bf16.mxu0 %v2839
        %4363 = vmatpush2.bf16.msra.mxu0 %v2838
        %4364 = vmatprep.subr.bf16.mxu0 %v2831
        %4365 = vmatpush2.bf16.msra.mxu0 %v2830
        %4366 = vmatprep.subr.bf16.mxu0 %v2823
        %4367 = vmatpush2.bf16.msra.mxu0 %v2822
        %4368 = vmatprep.mubr.bf16.mxu0 %v368
        %4369 = vmatmul.mubr.bf16.gmra.mxu0 %v367
        %v4370 = vpop.f32.mrf.mxu0
        %v4371 = vadd.f32 %v981, %v4370
        %v4372 = vpop.f32.mrf.mxu0
        %v4373 = vadd.f32 %v985, %v4372
        %v4374 = vpop.f32.mrf.mxu0
        %v4375 = vpop.f32.mrf.mxu0
        %4376 = vdwg.mxu0
        %4377 = vmatprep.subr.bf16.mxu0 %v2943
        %4378 = vmatpush1.bf16.msra.mxu0 %v2942
        %4379 = vmatprep.subr.bf16.mxu0 %v2935
        %4380 = vmatpush1.bf16.msra.mxu0 %v2934
        %4381 = vmatprep.subr.bf16.mxu0 %v2927
        %4382 = vmatpush1.bf16.msra.mxu0 %v2926
        %4383 = vmatprep.subr.bf16.mxu0 %v2919
        %4384 = vmatpush1.bf16.msra.mxu0 %v2918
        %4385 = vmatprep.subr.bf16.mxu0 %v2911
        %4386 = vmatpush1.bf16.msra.mxu0 %v2910
        %4387 = vmatprep.subr.bf16.mxu0 %v2903
        %4388 = vmatpush1.bf16.msra.mxu0 %v2902
        %4389 = vmatprep.subr.bf16.mxu0 %v2895
        %4390 = vmatpush1.bf16.msra.mxu0 %v2894
        %4391 = vmatprep.subr.bf16.mxu0 %v2887
        %4392 = vmatpush1.bf16.msra.mxu0 %v2886
        %4393 = vmatprep.subr.bf16.mxu0 %v3007
        %4394 = vmatpush2.bf16.msra.mxu0 %v3006
        %4395 = vmatprep.subr.bf16.mxu0 %v2999
        %4396 = vmatpush2.bf16.msra.mxu0 %v2998
        %4397 = vmatprep.subr.bf16.mxu0 %v2991
        %4398 = vmatpush2.bf16.msra.mxu0 %v2990
        %4399 = vmatprep.subr.bf16.mxu0 %v2983
        %4400 = vmatpush2.bf16.msra.mxu0 %v2982
        %4401 = vmatprep.subr.bf16.mxu0 %v2975
        %4402 = vmatpush2.bf16.msra.mxu0 %v2974
        %4403 = vmatprep.subr.bf16.mxu0 %v2967
        %4404 = vmatpush2.bf16.msra.mxu0 %v2966
        %4405 = vmatprep.subr.bf16.mxu0 %v2959
        %4406 = vmatpush2.bf16.msra.mxu0 %v2958
        %4407 = vmatprep.subr.bf16.mxu0 %v2951
        %4408 = vmatpush2.bf16.msra.mxu0 %v2950
        %4409 = vmatprep.mubr.bf16.mxu0 %v370
        %4410 = vmatmul.mubr.bf16.gmra.mxu0 %v369
        %v4411 = vpop.f32.mrf.mxu0
        %v4412 = vadd.f32 %v4371, %v4411
        %v4413 = vpop.f32.mrf.mxu0
        %v4414 = vadd.f32 %v4373, %v4413
        %v4415 = vpop.f32.mrf.mxu0
        %v4416 = vpop.f32.mrf.mxu0
        %4417 = vdwg.mxu0
        %4418 = vmatprep.subr.bf16.mxu0 %v3071
        %4419 = vmatpush1.bf16.msra.mxu0 %v3070
        %4420 = vmatprep.subr.bf16.mxu0 %v3063
        %4421 = vmatpush1.bf16.msra.mxu0 %v3062
        %4422 = vmatprep.subr.bf16.mxu0 %v3055
        %4423 = vmatpush1.bf16.msra.mxu0 %v3054
        %4424 = vmatprep.subr.bf16.mxu0 %v3047
        %4425 = vmatpush1.bf16.msra.mxu0 %v3046
        %4426 = vmatprep.subr.bf16.mxu0 %v3039
        %4427 = vmatpush1.bf16.msra.mxu0 %v3038
        %4428 = vmatprep.subr.bf16.mxu0 %v3031
        %4429 = vmatpush1.bf16.msra.mxu0 %v3030
        %4430 = vmatprep.subr.bf16.mxu0 %v3023
        %4431 = vmatpush1.bf16.msra.mxu0 %v3022
        %4432 = vmatprep.subr.bf16.mxu0 %v3015
        %4433 = vmatpush1.bf16.msra.mxu0 %v3014
        %4434 = vmatprep.subr.bf16.mxu0 %v3135
        %4435 = vmatpush2.bf16.msra.mxu0 %v3134
        %4436 = vmatprep.subr.bf16.mxu0 %v3127
        %4437 = vmatpush2.bf16.msra.mxu0 %v3126
        %4438 = vmatprep.subr.bf16.mxu0 %v3119
        %4439 = vmatpush2.bf16.msra.mxu0 %v3118
        %4440 = vmatprep.subr.bf16.mxu0 %v3111
        %4441 = vmatpush2.bf16.msra.mxu0 %v3110
        %4442 = vmatprep.subr.bf16.mxu0 %v3103
        %4443 = vmatpush2.bf16.msra.mxu0 %v3102
        %4444 = vmatprep.subr.bf16.mxu0 %v3095
        %4445 = vmatpush2.bf16.msra.mxu0 %v3094
        %4446 = vmatprep.subr.bf16.mxu0 %v3087
        %4447 = vmatpush2.bf16.msra.mxu0 %v3086
        %4448 = vmatprep.subr.bf16.mxu0 %v3079
        %4449 = vmatpush2.bf16.msra.mxu0 %v3078
        %4450 = vmatprep.mubr.bf16.mxu0 %v372
        %4451 = vmatmul.mubr.bf16.gmra.mxu0 %v371
        %v4452 = vpop.f32.mrf.mxu0
        %v4453 = vadd.f32 %v4412, %v4452
        %v4454 = vpop.f32.mrf.mxu0
        %v4455 = vadd.f32 %v4414, %v4454
        %v4456 = vpop.f32.mrf.mxu0
        %v4457 = vpop.f32.mrf.mxu0
        %4458 = vdwg.mxu0
        %4459 = vmatprep.subr.bf16.mxu0 %v3199
        %4460 = vmatpush1.bf16.msra.mxu0 %v3198
        %4461 = vmatprep.subr.bf16.mxu0 %v3191
        %4462 = vmatpush1.bf16.msra.mxu0 %v3190
        %4463 = vmatprep.subr.bf16.mxu0 %v3183
        %4464 = vmatpush1.bf16.msra.mxu0 %v3182
        %4465 = vmatprep.subr.bf16.mxu0 %v3175
        %4466 = vmatpush1.bf16.msra.mxu0 %v3174
        %4467 = vmatprep.subr.bf16.mxu0 %v3167
        %4468 = vmatpush1.bf16.msra.mxu0 %v3166
        %4469 = vmatprep.subr.bf16.mxu0 %v3159
        %4470 = vmatpush1.bf16.msra.mxu0 %v3158
        %4471 = vmatprep.subr.bf16.mxu0 %v3151
        %4472 = vmatpush1.bf16.msra.mxu0 %v3150
        %4473 = vmatprep.subr.bf16.mxu0 %v3143
        %4474 = vmatpush1.bf16.msra.mxu0 %v3142
        %4475 = vmatprep.subr.bf16.mxu0 %v3263
        %4476 = vmatpush2.bf16.msra.mxu0 %v3262
        %4477 = vmatprep.subr.bf16.mxu0 %v3255
        %4478 = vmatpush2.bf16.msra.mxu0 %v3254
        %4479 = vmatprep.subr.bf16.mxu0 %v3247
        %4480 = vmatpush2.bf16.msra.mxu0 %v3246
        %4481 = vmatprep.subr.bf16.mxu0 %v3239
        %4482 = vmatpush2.bf16.msra.mxu0 %v3238
        %4483 = vmatprep.subr.bf16.mxu0 %v3231
        %4484 = vmatpush2.bf16.msra.mxu0 %v3230
        %4485 = vmatprep.subr.bf16.mxu0 %v3223
        %4486 = vmatpush2.bf16.msra.mxu0 %v3222
        %4487 = vmatprep.subr.bf16.mxu0 %v3215
        %4488 = vmatpush2.bf16.msra.mxu0 %v3214
        %4489 = vmatprep.subr.bf16.mxu0 %v3207
        %4490 = vmatpush2.bf16.msra.mxu0 %v3206
        %4491 = vmatprep.mubr.bf16.mxu0 %v374
        %4492 = vmatmul.mubr.bf16.gmra.mxu0 %v373
        %v4493 = vpop.f32.mrf.mxu0
        %v4494 = vadd.f32 %v4453, %v4493
        %v4495 = vpop.f32.mrf.mxu0
        %v4496 = vadd.f32 %v4455, %v4495
        %v4497 = vpop.f32.mrf.mxu0
        %v4498 = vpop.f32.mrf.mxu0
        %4499 = vdwg.mxu0
        %4500 = vmatprep.subr.bf16.mxu0 %v3327
        %4501 = vmatpush1.bf16.msra.mxu0 %v3326
        %4502 = vmatprep.subr.bf16.mxu0 %v3319
        %4503 = vmatpush1.bf16.msra.mxu0 %v3318
        %4504 = vmatprep.subr.bf16.mxu0 %v3311
        %4505 = vmatpush1.bf16.msra.mxu0 %v3310
        %4506 = vmatprep.subr.bf16.mxu0 %v3303
        %4507 = vmatpush1.bf16.msra.mxu0 %v3302
        %4508 = vmatprep.subr.bf16.mxu0 %v3295
        %4509 = vmatpush1.bf16.msra.mxu0 %v3294
        %4510 = vmatprep.subr.bf16.mxu0 %v3287
        %4511 = vmatpush1.bf16.msra.mxu0 %v3286
        %4512 = vmatprep.subr.bf16.mxu0 %v3279
        %4513 = vmatpush1.bf16.msra.mxu0 %v3278
        %4514 = vmatprep.subr.bf16.mxu0 %v3271
        %4515 = vmatpush1.bf16.msra.mxu0 %v3270
        %4516 = vmatprep.subr.bf16.mxu0 0
        %4517 = vmatpush2.bf16.msra.mxu0 0
        %4518 = vmatprep.subr.bf16.mxu0 0
        %4519 = vmatpush2.bf16.msra.mxu0 0
        %4520 = vmatprep.subr.bf16.mxu0 0
        %4521 = vmatpush2.bf16.msra.mxu0 0
        %4522 = vmatprep.subr.bf16.mxu0 0
        %4523 = vmatpush2.bf16.msra.mxu0 0
        %4524 = vmatprep.subr.bf16.mxu0 0
        %4525 = vmatpush2.bf16.msra.mxu0 0
        %4526 = vmatprep.subr.bf16.mxu0 0
        %4527 = vmatpush2.bf16.msra.mxu0 0
        %4528 = vmatprep.subr.bf16.mxu0 0
        %4529 = vmatpush2.bf16.msra.mxu0 0
        %4530 = vmatprep.subr.bf16.mxu0 %v3335
        %4531 = vmatpush2.bf16.msra.mxu0 %v3334
        %4532 = vmatprep.mubr.bf16.mxu0 %v3924
        %4533 = vmatmul.mubr.bf16.gmra.mxu0 %v375
        %v4534 = vpop.f32.mrf.mxu0
        %v4535 = vadd.f32 %v4494, %v4534
        %v4536 = vpop.f32.mrf.mxu0
        %v4537 = vadd.f32 %v4496, %v4536
        %v4538 = vpop.f32.mrf.mxu0
        %v4539 = vpop.f32.mrf.mxu0
        %4540 = vdwg.mxu0
        %4541 = vmatprep.subr.bf16.mxu0 %v2817
        %4542 = vmatpush1.bf16.msra.mxu0 %v2816
        %4543 = vmatprep.subr.bf16.mxu0 %v2809
        %4544 = vmatpush1.bf16.msra.mxu0 %v2808
        %4545 = vmatprep.subr.bf16.mxu0 %v2801
        %4546 = vmatpush1.bf16.msra.mxu0 %v2800
        %4547 = vmatprep.subr.bf16.mxu0 %v2793
        %4548 = vmatpush1.bf16.msra.mxu0 %v2792
        %4549 = vmatprep.subr.bf16.mxu0 %v2785
        %4550 = vmatpush1.bf16.msra.mxu0 %v2784
        %4551 = vmatprep.subr.bf16.mxu0 %v2777
        %4552 = vmatpush1.bf16.msra.mxu0 %v2776
        %4553 = vmatprep.subr.bf16.mxu0 %v2769
        %4554 = vmatpush1.bf16.msra.mxu0 %v2768
        %4555 = vmatprep.subr.bf16.mxu0 %v2761
        %4556 = vmatpush1.bf16.msra.mxu0 %v2760
        %4557 = vmatprep.subr.bf16.mxu0 %v2881
        %4558 = vmatpush2.bf16.msra.mxu0 %v2880
        %4559 = vmatprep.subr.bf16.mxu0 %v2873
        %4560 = vmatpush2.bf16.msra.mxu0 %v2872
        %4561 = vmatprep.subr.bf16.mxu0 %v2865
        %4562 = vmatpush2.bf16.msra.mxu0 %v2864
        %4563 = vmatprep.subr.bf16.mxu0 %v2857
        %4564 = vmatpush2.bf16.msra.mxu0 %v2856
        %4565 = vmatprep.subr.bf16.mxu0 %v2849
        %4566 = vmatpush2.bf16.msra.mxu0 %v2848
        %4567 = vmatprep.subr.bf16.mxu0 %v2841
        %4568 = vmatpush2.bf16.msra.mxu0 %v2840
        %4569 = vmatprep.subr.bf16.mxu0 %v2833
        %4570 = vmatpush2.bf16.msra.mxu0 %v2832
        %4571 = vmatprep.subr.bf16.mxu0 %v2825
        %4572 = vmatpush2.bf16.msra.mxu0 %v2824
        %4573 = vmatprep.mubr.bf16.mxu0 %v368
        %4574 = vmatmul.mubr.bf16.gmra.mxu0 %v367
        %v4575 = vpop.f32.mrf.mxu0
        %v4576 = vadd.f32 %v989, %v4575
        %v4577 = vpop.f32.mrf.mxu0
        %v4578 = vadd.f32 %v993, %v4577
        %v4579 = vpop.f32.mrf.mxu0
        %v4580 = vpop.f32.mrf.mxu0
        %4581 = vdwg.mxu0
        %4582 = vmatprep.subr.bf16.mxu0 %v2945
        %4583 = vmatpush1.bf16.msra.mxu0 %v2944
        %4584 = vmatprep.subr.bf16.mxu0 %v2937
        %4585 = vmatpush1.bf16.msra.mxu0 %v2936
        %4586 = vmatprep.subr.bf16.mxu0 %v2929
        %4587 = vmatpush1.bf16.msra.mxu0 %v2928
        %4588 = vmatprep.subr.bf16.mxu0 %v2921
        %4589 = vmatpush1.bf16.msra.mxu0 %v2920
        %4590 = vmatprep.subr.bf16.mxu0 %v2913
        %4591 = vmatpush1.bf16.msra.mxu0 %v2912
        %4592 = vmatprep.subr.bf16.mxu0 %v2905
        %4593 = vmatpush1.bf16.msra.mxu0 %v2904
        %4594 = vmatprep.subr.bf16.mxu0 %v2897
        %4595 = vmatpush1.bf16.msra.mxu0 %v2896
        %4596 = vmatprep.subr.bf16.mxu0 %v2889
        %4597 = vmatpush1.bf16.msra.mxu0 %v2888
        %4598 = vmatprep.subr.bf16.mxu0 %v3009
        %4599 = vmatpush2.bf16.msra.mxu0 %v3008
        %4600 = vmatprep.subr.bf16.mxu0 %v3001
        %4601 = vmatpush2.bf16.msra.mxu0 %v3000
        %4602 = vmatprep.subr.bf16.mxu0 %v2993
        %4603 = vmatpush2.bf16.msra.mxu0 %v2992
        %4604 = vmatprep.subr.bf16.mxu0 %v2985
        %4605 = vmatpush2.bf16.msra.mxu0 %v2984
        %4606 = vmatprep.subr.bf16.mxu0 %v2977
        %4607 = vmatpush2.bf16.msra.mxu0 %v2976
        %4608 = vmatprep.subr.bf16.mxu0 %v2969
        %4609 = vmatpush2.bf16.msra.mxu0 %v2968
        %4610 = vmatprep.subr.bf16.mxu0 %v2961
        %4611 = vmatpush2.bf16.msra.mxu0 %v2960
        %4612 = vmatprep.subr.bf16.mxu0 %v2953
        %4613 = vmatpush2.bf16.msra.mxu0 %v2952
        %4614 = vmatprep.mubr.bf16.mxu0 %v370
        %4615 = vmatmul.mubr.bf16.gmra.mxu0 %v369
        %v4616 = vpop.f32.mrf.mxu0
        %v4617 = vadd.f32 %v4576, %v4616
        %v4618 = vpop.f32.mrf.mxu0
        %v4619 = vadd.f32 %v4578, %v4618
        %v4620 = vpop.f32.mrf.mxu0
        %v4621 = vpop.f32.mrf.mxu0
        %4622 = vdwg.mxu0
        %4623 = vmatprep.subr.bf16.mxu0 %v3073
        %4624 = vmatpush1.bf16.msra.mxu0 %v3072
        %4625 = vmatprep.subr.bf16.mxu0 %v3065
        %4626 = vmatpush1.bf16.msra.mxu0 %v3064
        %4627 = vmatprep.subr.bf16.mxu0 %v3057
        %4628 = vmatpush1.bf16.msra.mxu0 %v3056
        %4629 = vmatprep.subr.bf16.mxu0 %v3049
        %4630 = vmatpush1.bf16.msra.mxu0 %v3048
        %4631 = vmatprep.subr.bf16.mxu0 %v3041
        %4632 = vmatpush1.bf16.msra.mxu0 %v3040
        %4633 = vmatprep.subr.bf16.mxu0 %v3033
        %4634 = vmatpush1.bf16.msra.mxu0 %v3032
        %4635 = vmatprep.subr.bf16.mxu0 %v3025
        %4636 = vmatpush1.bf16.msra.mxu0 %v3024
        %4637 = vmatprep.subr.bf16.mxu0 %v3017
        %4638 = vmatpush1.bf16.msra.mxu0 %v3016
        %4639 = vmatprep.subr.bf16.mxu0 %v3137
        %4640 = vmatpush2.bf16.msra.mxu0 %v3136
        %4641 = vmatprep.subr.bf16.mxu0 %v3129
        %4642 = vmatpush2.bf16.msra.mxu0 %v3128
        %4643 = vmatprep.subr.bf16.mxu0 %v3121
        %4644 = vmatpush2.bf16.msra.mxu0 %v3120
        %4645 = vmatprep.subr.bf16.mxu0 %v3113
        %4646 = vmatpush2.bf16.msra.mxu0 %v3112
        %4647 = vmatprep.subr.bf16.mxu0 %v3105
        %4648 = vmatpush2.bf16.msra.mxu0 %v3104
        %4649 = vmatprep.subr.bf16.mxu0 %v3097
        %4650 = vmatpush2.bf16.msra.mxu0 %v3096
        %4651 = vmatprep.subr.bf16.mxu0 %v3089
        %4652 = vmatpush2.bf16.msra.mxu0 %v3088
        %4653 = vmatprep.subr.bf16.mxu0 %v3081
        %4654 = vmatpush2.bf16.msra.mxu0 %v3080
        %4655 = vmatprep.mubr.bf16.mxu0 %v372
        %4656 = vmatmul.mubr.bf16.gmra.mxu0 %v371
        %v4657 = vpop.f32.mrf.mxu0
        %v4658 = vadd.f32 %v4617, %v4657
        %v4659 = vpop.f32.mrf.mxu0
        %v4660 = vadd.f32 %v4619, %v4659
        %v4661 = vpop.f32.mrf.mxu0
        %v4662 = vpop.f32.mrf.mxu0
        %4663 = vdwg.mxu0
        %4664 = vmatprep.subr.bf16.mxu0 %v3201
        %4665 = vmatpush1.bf16.msra.mxu0 %v3200
        %4666 = vmatprep.subr.bf16.mxu0 %v3193
        %4667 = vmatpush1.bf16.msra.mxu0 %v3192
        %4668 = vmatprep.subr.bf16.mxu0 %v3185
        %4669 = vmatpush1.bf16.msra.mxu0 %v3184
        %4670 = vmatprep.subr.bf16.mxu0 %v3177
        %4671 = vmatpush1.bf16.msra.mxu0 %v3176
        %4672 = vmatprep.subr.bf16.mxu0 %v3169
        %4673 = vmatpush1.bf16.msra.mxu0 %v3168
        %4674 = vmatprep.subr.bf16.mxu0 %v3161
        %4675 = vmatpush1.bf16.msra.mxu0 %v3160
        %4676 = vmatprep.subr.bf16.mxu0 %v3153
        %4677 = vmatpush1.bf16.msra.mxu0 %v3152
        %4678 = vmatprep.subr.bf16.mxu0 %v3145
        %4679 = vmatpush1.bf16.msra.mxu0 %v3144
        %4680 = vmatprep.subr.bf16.mxu0 %v3265
        %4681 = vmatpush2.bf16.msra.mxu0 %v3264
        %4682 = vmatprep.subr.bf16.mxu0 %v3257
        %4683 = vmatpush2.bf16.msra.mxu0 %v3256
        %4684 = vmatprep.subr.bf16.mxu0 %v3249
        %4685 = vmatpush2.bf16.msra.mxu0 %v3248
        %4686 = vmatprep.subr.bf16.mxu0 %v3241
        %4687 = vmatpush2.bf16.msra.mxu0 %v3240
        %4688 = vmatprep.subr.bf16.mxu0 %v3233
        %4689 = vmatpush2.bf16.msra.mxu0 %v3232
        %4690 = vmatprep.subr.bf16.mxu0 %v3225
        %4691 = vmatpush2.bf16.msra.mxu0 %v3224
        %4692 = vmatprep.subr.bf16.mxu0 %v3217
        %4693 = vmatpush2.bf16.msra.mxu0 %v3216
        %4694 = vmatprep.subr.bf16.mxu0 %v3209
        %4695 = vmatpush2.bf16.msra.mxu0 %v3208
        %4696 = vmatprep.mubr.bf16.mxu0 %v374
        %4697 = vmatmul.mubr.bf16.gmra.mxu0 %v373
        %v4698 = vpop.f32.mrf.mxu0
        %v4699 = vadd.f32 %v4658, %v4698
        %v4700 = vpop.f32.mrf.mxu0
        %v4701 = vadd.f32 %v4660, %v4700
        %v4702 = vpop.f32.mrf.mxu0
        %v4703 = vpop.f32.mrf.mxu0
        %4704 = vdwg.mxu0
        %4705 = vmatprep.subr.bf16.mxu0 %v3329
        %4706 = vmatpush1.bf16.msra.mxu0 %v3328
        %4707 = vmatprep.subr.bf16.mxu0 %v3321
        %4708 = vmatpush1.bf16.msra.mxu0 %v3320
        %4709 = vmatprep.subr.bf16.mxu0 %v3313
        %4710 = vmatpush1.bf16.msra.mxu0 %v3312
        %4711 = vmatprep.subr.bf16.mxu0 %v3305
        %4712 = vmatpush1.bf16.msra.mxu0 %v3304
        %4713 = vmatprep.subr.bf16.mxu0 %v3297
        %4714 = vmatpush1.bf16.msra.mxu0 %v3296
        %4715 = vmatprep.subr.bf16.mxu0 %v3289
        %4716 = vmatpush1.bf16.msra.mxu0 %v3288
        %4717 = vmatprep.subr.bf16.mxu0 %v3281
        %4718 = vmatpush1.bf16.msra.mxu0 %v3280
        %4719 = vmatprep.subr.bf16.mxu0 %v3273
        %4720 = vmatpush1.bf16.msra.mxu0 %v3272
        %4721 = vmatprep.subr.bf16.mxu0 0
        %4722 = vmatpush2.bf16.msra.mxu0 0
        %4723 = vmatprep.subr.bf16.mxu0 0
        %4724 = vmatpush2.bf16.msra.mxu0 0
        %4725 = vmatprep.subr.bf16.mxu0 0
        %4726 = vmatpush2.bf16.msra.mxu0 0
        %4727 = vmatprep.subr.bf16.mxu0 0
        %4728 = vmatpush2.bf16.msra.mxu0 0
        %4729 = vmatprep.subr.bf16.mxu0 0
        %4730 = vmatpush2.bf16.msra.mxu0 0
        %4731 = vmatprep.subr.bf16.mxu0 0
        %4732 = vmatpush2.bf16.msra.mxu0 0
        %4733 = vmatprep.subr.bf16.mxu0 0
        %4734 = vmatpush2.bf16.msra.mxu0 0
        %4735 = vmatprep.subr.bf16.mxu0 %v3337
        %4736 = vmatpush2.bf16.msra.mxu0 %v3336
        %4737 = vmatprep.mubr.bf16.mxu0 %v3924
        %4738 = vmatmul.mubr.bf16.gmra.mxu0 %v375
        %v4739 = vpop.f32.mrf.mxu0
        %v4740 = vadd.f32 %v4699, %v4739
        %v4741 = vpop.f32.mrf.mxu0
        %v4742 = vadd.f32 %v4701, %v4741
        %v4743 = vpop.f32.mrf.mxu0
        %v4744 = vpop.f32.mrf.mxu0
        %4745 = vdwg.mxu0
        %v4746 = vmax.f32 %v4125, 0.0
        %v4747 = vmax.f32 %v4127, 0.0
        %v4748 = vmax.f32 %v4330, 0.0
        %v4749 = vmax.f32 %v4332, 0.0
        %v4750 = vmax.f32 %v4535, 0.0
        %v4751 = vmax.f32 %v4537, 0.0
        %v4752 = vmax.f32 %v4740, 0.0
        %v4753 = vmax.f32 %v4742, 0.0
        %v4754 = vld [vmem:[#allocation14] sm:$0xff]
        %v4755 = vld [vmem:[#allocation15] sm:$0xff]
        %v4756 = vrot.slane %v4746, 4
        %v4757 = vadd.f32 %v4746, %v4756
        %v4758 = vrot.slane %v4757, 2
        %v4759 = vadd.f32 %v4757, %v4758
        %v4760 = vrot.slane %v4759, 1
        %v4761 = vadd.f32 %v4759, %v4760
        %v4762 = vrot.slane %v4747, 4
        %v4763 = vadd.f32 %v4747, %v4762
        %v4764 = vrot.slane %v4763, 2
        %v4765 = vadd.f32 %v4763, %v4764
        %v4766 = vrot.slane %v4765, 1
        %v4767 = vadd.f32 %v4765, %v4766
        %v4768 = vrot.slane %v4748, 4
        %v4769 = vadd.f32 %v4748, %v4768
        %v4770 = vrot.slane %v4769, 2
        %v4771 = vadd.f32 %v4769, %v4770
        %v4772 = vrot.slane %v4771, 1
        %v4773 = vadd.f32 %v4771, %v4772
        %v4774 = vrot.slane %v4749, 4
        %v4775 = vadd.f32 %v4749, %v4774
        %v4776 = vrot.slane %v4775, 2
        %v4777 = vadd.f32 %v4775, %v4776
        %v4778 = vrot.slane %v4777, 1
        %v4779 = vadd.f32 %v4777, %v4778
        %v4780 = vrot.slane %v4750, 4
        %v4781 = vadd.f32 %v4750, %v4780
        %v4782 = vrot.slane %v4781, 2
        %v4783 = vadd.f32 %v4781, %v4782
        %v4784 = vrot.slane %v4783, 1
        %v4785 = vadd.f32 %v4783, %v4784
        %v4786 = vrot.slane %v4751, 4
        %v4787 = vadd.f32 %v4751, %v4786
        %v4788 = vrot.slane %v4787, 2
        %v4789 = vadd.f32 %v4787, %v4788
        %v4790 = vrot.slane %v4789, 1
        %v4791 = vadd.f32 %v4789, %v4790
        %v4792 = vrot.slane %v4752, 4
        %v4793 = vadd.f32 %v4752, %v4792
        %v4794 = vrot.slane %v4793, 2
        %v4795 = vadd.f32 %v4793, %v4794
        %v4796 = vrot.slane %v4795, 1
        %v4797 = vadd.f32 %v4795, %v4796
        %v4798 = vrot.slane %v4753, 4
        %v4799 = vadd.f32 %v4753, %v4798
        %v4800 = vrot.slane %v4799, 2
        %v4801 = vadd.f32 %v4799, %v4800
        %v4802 = vrot.slane %v4801, 1
        %v4803 = vadd.f32 %v4801, %v4802
        %v4804 = vrcp.pop 8.0
        %v4805 = vmul.f32 %v4761, %v4804
        %v4806 = vmul.f32 %v4767, %v4804
        %v4807 = vmul.f32 %v4773, %v4804
        %v4808 = vmul.f32 %v4779, %v4804
        %v4809 = vmul.f32 %v4785, %v4804
        %v4810 = vmul.f32 %v4791, %v4804
        %v4811 = vmul.f32 %v4797, %v4804
        %v4812 = vmul.f32 %v4803, %v4804
        %v4813 = vsub.f32 %v4746, %v4805
        %v4814 = vsub.f32 %v4747, %v4806
        %v4815 = vsub.f32 %v4748, %v4807
        %v4816 = vsub.f32 %v4749, %v4808
        %v4817 = vsub.f32 %v4750, %v4809
        %v4818 = vsub.f32 %v4751, %v4810
        %v4819 = vsub.f32 %v4752, %v4811
        %v4820 = vsub.f32 %v4753, %v4812
        %v4821 = vmul.f32 %v4813, %v4813
        %v4822 = vmul.f32 %v4814, %v4814
        %v4823 = vmul.f32 %v4815, %v4815
        %v4824 = vmul.f32 %v4816, %v4816
        %v4825 = vmul.f32 %v4817, %v4817
        %v4826 = vmul.f32 %v4818, %v4818
        %v4827 = vmul.f32 %v4819, %v4819
        %v4828 = vmul.f32 %v4820, %v4820
        %v4829 = vrot.slane %v4821, 4
        %v4830 = vadd.f32 %v4821, %v4829
        %v4831 = vrot.slane %v4830, 2
        %v4832 = vadd.f32 %v4830, %v4831
        %v4833 = vrot.slane %v4832, 1
        %v4834 = vadd.f32 %v4832, %v4833
        %v4835 = vrot.slane %v4822, 4
        %v4836 = vadd.f32 %v4822, %v4835
        %v4837 = vrot.slane %v4836, 2
        %v4838 = vadd.f32 %v4836, %v4837
        %v4839 = vrot.slane %v4838, 1
        %v4840 = vadd.f32 %v4838, %v4839
        %v4841 = vrot.slane %v4823, 4
        %v4842 = vadd.f32 %v4823, %v4841
        %v4843 = vrot.slane %v4842, 2
        %v4844 = vadd.f32 %v4842, %v4843
        %v4845 = vrot.slane %v4844, 1
        %v4846 = vadd.f32 %v4844, %v4845
        %v4847 = vrot.slane %v4824, 4
        %v4848 = vadd.f32 %v4824, %v4847
        %v4849 = vrot.slane %v4848, 2
        %v4850 = vadd.f32 %v4848, %v4849
        %v4851 = vrot.slane %v4850, 1
        %v4852 = vadd.f32 %v4850, %v4851
        %v4853 = vrot.slane %v4825, 4
        %v4854 = vadd.f32 %v4825, %v4853
        %v4855 = vrot.slane %v4854, 2
        %v4856 = vadd.f32 %v4854, %v4855
        %v4857 = vrot.slane %v4856, 1
        %v4858 = vadd.f32 %v4856, %v4857
        %v4859 = vrot.slane %v4826, 4
        %v4860 = vadd.f32 %v4826, %v4859
        %v4861 = vrot.slane %v4860, 2
        %v4862 = vadd.f32 %v4860, %v4861
        %v4863 = vrot.slane %v4862, 1
        %v4864 = vadd.f32 %v4862, %v4863
        %v4865 = vrot.slane %v4827, 4
        %v4866 = vadd.f32 %v4827, %v4865
        %v4867 = vrot.slane %v4866, 2
        %v4868 = vadd.f32 %v4866, %v4867
        %v4869 = vrot.slane %v4868, 1
        %v4870 = vadd.f32 %v4868, %v4869
        %v4871 = vrot.slane %v4828, 4
        %v4872 = vadd.f32 %v4828, %v4871
        %v4873 = vrot.slane %v4872, 2
        %v4874 = vadd.f32 %v4872, %v4873
        %v4875 = vrot.slane %v4874, 1
        %v4876 = vadd.f32 %v4874, %v4875
        %v4877 = vmul.f32 %v4834, %v4804
        %v4878 = vmul.f32 %v4840, %v4804
        %v4879 = vmul.f32 %v4846, %v4804
        %v4880 = vmul.f32 %v4852, %v4804
        %v4881 = vmul.f32 %v4858, %v4804
        %v4882 = vmul.f32 %v4864, %v4804
        %v4883 = vmul.f32 %v4870, %v4804
        %v4884 = vmul.f32 %v4876, %v4804
        %v4885 = vadd.f32 %v4877, 1e-05
        %v4886 = vadd.f32 %v4878, 1e-05
        %v4887 = vadd.f32 %v4879, 1e-05
        %v4888 = vadd.f32 %v4880, 1e-05
        %v4889 = vadd.f32 %v4881, 1e-05
        %v4890 = vadd.f32 %v4882, 1e-05
        %v4891 = vadd.f32 %v4883, 1e-05
        %v4892 = vadd.f32 %v4884, 1e-05
        %v4893 = vrsqrt.pop %v4885
        %v4894 = vrsqrt.pop %v4886
        %v4895 = vrsqrt.pop %v4887
        %v4896 = vrsqrt.pop %v4888
        %v4897 = vrsqrt.pop %v4889
        %v4898 = vrsqrt.pop %v4890
        %v4899 = vrsqrt.pop %v4891
        %v4900 = vrsqrt.pop %v4892
        %v4901 = vmul.f32 %v4813, %v4893
        %v4902 = vmul.f32 %v4814, %v4894
        %v4903 = vmul.f32 %v4815, %v4895
        %v4904 = vmul.f32 %v4816, %v4896
        %v4905 = vmul.f32 %v4817, %v4897
        %v4906 = vmul.f32 %v4818, %v4898
        %v4907 = vmul.f32 %v4819, %v4899
        %v4908 = vmul.f32 %v4820, %v4900
        %v4910 = vlaneseq
        %v4911 = vshrl.u32 %v4910, 7
        %v4912 = vsub.s32 0, %v4911
        %v4913 = vrot.slane %v4754, %v4912
        %v4914 = vlaneseq
        %v4915 = vshrl.u32 %v4914, 7
        %v4916 = vsub.s32 1, %v4915
        %v4917 = vrot.slane %v4754, %v4916
        %v4918 = vlaneseq
        %v4919 = vshrl.u32 %v4918, 7
        %v4920 = vsub.s32 2, %v4919
        %v4921 = vrot.slane %v4754, %v4920
        %v4922 = vlaneseq
        %v4923 = vshrl.u32 %v4922, 7
        %v4924 = vsub.s32 3, %v4923
        %v4925 = vrot.slane %v4754, %v4924
        %v4926 = vlaneseq
        %v4927 = vshrl.u32 %v4926, 7
        %v4928 = vsub.s32 4, %v4927
        %v4929 = vrot.slane %v4754, %v4928
        %v4930 = vlaneseq
        %v4931 = vshrl.u32 %v4930, 7
        %v4932 = vsub.s32 5, %v4931
        %v4933 = vrot.slane %v4754, %v4932
        %v4934 = vlaneseq
        %v4935 = vshrl.u32 %v4934, 7
        %v4936 = vsub.s32 6, %v4935
        %v4937 = vrot.slane %v4754, %v4936
        %v4938 = vlaneseq
        %v4939 = vshrl.u32 %v4938, 7
        %v4940 = vsub.s32 7, %v4939
        %v4941 = vrot.slane %v4754, %v4940
        %v4950 = vmul.f32 %v4901, %v4913
        %v4951 = vmul.f32 %v4902, %v4917
        %v4952 = vmul.f32 %v4903, %v4921
        %v4953 = vmul.f32 %v4904, %v4925
        %v4954 = vmul.f32 %v4905, %v4929
        %v4955 = vmul.f32 %v4906, %v4933
        %v4956 = vmul.f32 %v4907, %v4937
        %v4957 = vmul.f32 %v4908, %v4941
        %v4959 = vlaneseq
        %v4960 = vshrl.u32 %v4959, 7
        %v4961 = vsub.s32 0, %v4960
        %v4962 = vrot.slane %v4755, %v4961
        %v4963 = vlaneseq
        %v4964 = vshrl.u32 %v4963, 7
        %v4965 = vsub.s32 1, %v4964
        %v4966 = vrot.slane %v4755, %v4965
        %v4967 = vlaneseq
        %v4968 = vshrl.u32 %v4967, 7
        %v4969 = vsub.s32 2, %v4968
        %v4970 = vrot.slane %v4755, %v4969
        %v4971 = vlaneseq
        %v4972 = vshrl.u32 %v4971, 7
        %v4973 = vsub.s32 3, %v4972
        %v4974 = vrot.slane %v4755, %v4973
        %v4975 = vlaneseq
        %v4976 = vshrl.u32 %v4975, 7
        %v4977 = vsub.s32 4, %v4976
        %v4978 = vrot.slane %v4755, %v4977
        %v4979 = vlaneseq
        %v4980 = vshrl.u32 %v4979, 7
        %v4981 = vsub.s32 5, %v4980
        %v4982 = vrot.slane %v4755, %v4981
        %v4983 = vlaneseq
        %v4984 = vshrl.u32 %v4983, 7
        %v4985 = vsub.s32 6, %v4984
        %v4986 = vrot.slane %v4755, %v4985
        %v4987 = vlaneseq
        %v4988 = vshrl.u32 %v4987, 7
        %v4989 = vsub.s32 7, %v4988
        %v4990 = vrot.slane %v4755, %v4989
        %v4999 = vadd.f32 %v4950, %v4962
        %v5000 = vadd.f32 %v4951, %v4966
        %v5001 = vadd.f32 %v4952, %v4970
        %v5002 = vadd.f32 %v4953, %v4974
        %v5003 = vadd.f32 %v4954, %v4978
        %v5004 = vadd.f32 %v4955, %v4982
        %v5005 = vadd.f32 %v4956, %v4986
        %v5006 = vadd.f32 %v4957, %v4990
        %v5007 = vld [vmem:[#allocation12 + $0x8] sm:$0xff]
        %v5008 = vpack.c.bf16 %v4999, %v4999
        %v5009 = vpack.c.bf16 %v5000, %v5000
        %v5010 = vpack.c.bf16 %v5001, %v5001
        %v5011 = vpack.c.bf16 %v5002, %v5002
        %v5012 = vpack.c.bf16 %v5003, %v5003
        %v5013 = vpack.c.bf16 %v5004, %v5004
        %v5014 = vpack.c.bf16 %v5005, %v5005
        %v5015 = vpack.c.bf16 %v5006, %v5006
        %v5016 = vld [vmem:[#allocation3] sm:$0xff]
        %v5017 = vld [vmem:[#allocation3 + $0x8] sm:$0xff]
        %v5018 = vld [vmem:[#allocation3 + $0x10] sm:$0xff]
        %v5019 = vld [vmem:[#allocation3 + $0x18] sm:$0xff]
        %v5020 = vld [vmem:[#allocation3 + $0x20] sm:$0xff]
        %v5021 = vld [vmem:[#allocation3 + $0x28] sm:$0xff]
        %v5022 = vld [vmem:[#allocation3 + $0x30] sm:$0xff]
        %v5023 = vld [vmem:[#allocation3 + $0x38] sm:$0xff]
        %v5024 = vld [vmem:[#allocation3 + $0x40] sm:$0xff]
        %v5025 = vld [vmem:[#allocation3 + $0x48] sm:$0xff]
        %v5026 = vld [vmem:[#allocation3 + $0x50] sm:$0xff]
        %v5027 = vld [vmem:[#allocation3 + $0x58] sm:$0xff]
        %v5028 = vld [vmem:[#allocation3 + $0x60] sm:$0xff]
        %v5029 = vld [vmem:[#allocation3 + $0x68] sm:$0xff]
        %v5030 = vld [vmem:[#allocation3 + $0x70] sm:$0xff]
        %v5031 = vld [vmem:[#allocation3 + $0x78] sm:$0xff]
        %v5032 = vld [vmem:[#allocation3 + $0x80] sm:$0xff]
        %v5033 = vld [vmem:[#allocation3 + $0x88] sm:$0xff]
        %v5034 = vld [vmem:[#allocation3 + $0x90] sm:$0xff]
        %v5035 = vld [vmem:[#allocation3 + $0x98] sm:$0xff]
        %v5036 = vld [vmem:[#allocation3 + $0xa0] sm:$0xff]
        %v5037 = vld [vmem:[#allocation3 + $0xa8] sm:$0xff]
        %v5038 = vld [vmem:[#allocation3 + $0xb0] sm:$0xff]
        %v5039 = vld [vmem:[#allocation3 + $0xb8] sm:$0xff]
        %v5040 = vld [vmem:[#allocation3 + $0xc0] sm:$0xff]
        %v5041 = vld [vmem:[#allocation3 + $0xc8] sm:$0xff]
        %v5042 = vld [vmem:[#allocation3 + $0xd0] sm:$0xff]
        %v5043 = vld [vmem:[#allocation3 + $0xd8] sm:$0xff]
        %v5044 = vld [vmem:[#allocation3 + $0xe0] sm:$0xff]
        %v5045 = vld [vmem:[#allocation3 + $0xe8] sm:$0xff]
        %v5046 = vld [vmem:[#allocation3 + $0xf0] sm:$0xff]
        %v5047 = vld [vmem:[#allocation3 + $0xf8] sm:$0xff]
        %v5048 = vld [vmem:[#allocation3 + $0x100] sm:$0xff]
        %v5049 = vld [vmem:[#allocation3 + $0x108] sm:$0xff]
        %v5050 = vld [vmem:[#allocation3 + $0x110] sm:$0xff]
        %v5051 = vld [vmem:[#allocation3 + $0x118] sm:$0xff]
        %v5052 = vld [vmem:[#allocation3 + $0x120] sm:$0xff]
        %v5053 = vld [vmem:[#allocation3 + $0x128] sm:$0xff]
        %v5054 = vld [vmem:[#allocation3 + $0x130] sm:$0xff]
        %v5055 = vld [vmem:[#allocation3 + $0x138] sm:$0xff]
        %v5056 = vld [vmem:[#allocation3 + $0x140] sm:$0xff]
        %v5057 = vld [vmem:[#allocation3 + $0x148] sm:$0xff]
        %v5058 = vld [vmem:[#allocation3 + $0x150] sm:$0xff]
        %v5059 = vld [vmem:[#allocation3 + $0x158] sm:$0xff]
        %v5060 = vld [vmem:[#allocation3 + $0x160] sm:$0xff]
        %v5061 = vld [vmem:[#allocation3 + $0x168] sm:$0xff]
        %v5062 = vld [vmem:[#allocation3 + $0x170] sm:$0xff]
        %v5063 = vld [vmem:[#allocation3 + $0x178] sm:$0xff]
        %v5064 = vld [vmem:[#allocation3 + $0x180] sm:$0xff]
        %v5065 = vld [vmem:[#allocation3 + $0x188] sm:$0xff]
        %v5066 = vld [vmem:[#allocation3 + $0x190] sm:$0xff]
        %v5067 = vld [vmem:[#allocation3 + $0x198] sm:$0xff]
        %v5068 = vld [vmem:[#allocation3 + $0x1a0] sm:$0xff]
        %v5069 = vld [vmem:[#allocation3 + $0x1a8] sm:$0xff]
        %v5070 = vld [vmem:[#allocation3 + $0x1b0] sm:$0xff]
        %v5071 = vld [vmem:[#allocation3 + $0x1b8] sm:$0xff]
        %v5072 = vld [vmem:[#allocation3 + $0x1c0] sm:$0xff]
        %v5073 = vld [vmem:[#allocation3 + $0x1c8] sm:$0xff]
        %v5074 = vld [vmem:[#allocation3 + $0x1d0] sm:$0xff]
        %v5075 = vld [vmem:[#allocation3 + $0x1d8] sm:$0xff]
        %v5076 = vld [vmem:[#allocation3 + $0x1e0] sm:$0xff]
        %v5077 = vld [vmem:[#allocation3 + $0x1e8] sm:$0xff]
        %v5078 = vld [vmem:[#allocation3 + $0x1f0] sm:$0xff]
        %v5079 = vld [vmem:[#allocation3 + $0x1f8] sm:$0xff]
        %v5080 = vld [vmem:[#allocation3 + $0x200] sm:$0xff]
        %v5081 = vld [vmem:[#allocation3 + $0x208] sm:$0xff]
        %v5082 = vld [vmem:[#allocation3 + $0x210] sm:$0xff]
        %v5083 = vld [vmem:[#allocation3 + $0x218] sm:$0xff]
        %v5084 = vld [vmem:[#allocation3 + $0x220] sm:$0xff]
        %v5085 = vld [vmem:[#allocation3 + $0x228] sm:$0xff]
        %v5086 = vld [vmem:[#allocation3 + $0x230] sm:$0xff]
        %v5087 = vld [vmem:[#allocation3 + $0x238] sm:$0xff]
        %v5088 = vld [vmem:[#allocation3 + $0x240] sm:$0xff]
        %v5089 = vld [vmem:[#allocation3 + $0x248] sm:$0xff]
        %v5090 = vld [vmem:[#allocation3 + $0x250] sm:$0xff]
        %v5091 = vld [vmem:[#allocation3 + $0x258] sm:$0xff]
        %v5092 = vld [vmem:[#allocation3 + $0x260] sm:$0xff]
        %v5093 = vld [vmem:[#allocation3 + $0x268] sm:$0xff]
        %v5094 = vld [vmem:[#allocation3 + $0x270] sm:$0xff]
        %v5095 = vld [vmem:[#allocation3 + $0x278] sm:$0xff]
        %v5096 = vld [vmem:[#allocation3 + $0x280] sm:$0xff]
        %v5097 = vld [vmem:[#allocation3 + $0x288] sm:$0xff]
        %v5098 = vld [vmem:[#allocation3 + $0x290] sm:$0xff]
        %v5099 = vld [vmem:[#allocation3 + $0x298] sm:$0xff]
        %v5100 = vld [vmem:[#allocation3 + $0x2a0] sm:$0xff]
        %v5101 = vld [vmem:[#allocation3 + $0x2a8] sm:$0xff]
        %v5102 = vld [vmem:[#allocation3 + $0x2b0] sm:$0xff]
        %v5103 = vld [vmem:[#allocation3 + $0x2b8] sm:$0xff]
        %v5104 = vld [vmem:[#allocation3 + $0x2c0] sm:$0xff]
        %v5105 = vld [vmem:[#allocation3 + $0x2c8] sm:$0xff]
        %v5106 = vld [vmem:[#allocation3 + $0x2d0] sm:$0xff]
        %v5107 = vld [vmem:[#allocation3 + $0x2d8] sm:$0xff]
        %v5108 = vld [vmem:[#allocation3 + $0x2e0] sm:$0xff]
        %v5109 = vld [vmem:[#allocation3 + $0x2e8] sm:$0xff]
        %v5110 = vld [vmem:[#allocation3 + $0x2f0] sm:$0xff]
        %v5111 = vld [vmem:[#allocation3 + $0x2f8] sm:$0xff]
        %v5112 = vld [vmem:[#allocation3 + $0x300] sm:$0xff]
        %v5113 = vld [vmem:[#allocation3 + $0x308] sm:$0xff]
        %v5114 = vld [vmem:[#allocation3 + $0x310] sm:$0xff]
        %v5115 = vld [vmem:[#allocation3 + $0x318] sm:$0xff]
        %v5116 = vld [vmem:[#allocation3 + $0x320] sm:$0xff]
        %v5117 = vld [vmem:[#allocation3 + $0x328] sm:$0xff]
        %v5118 = vld [vmem:[#allocation3 + $0x330] sm:$0xff]
        %v5119 = vld [vmem:[#allocation3 + $0x338] sm:$0xff]
        %v5120 = vld [vmem:[#allocation3 + $0x340] sm:$0xff]
        %v5121 = vld [vmem:[#allocation3 + $0x348] sm:$0xff]
        %v5122 = vld [vmem:[#allocation3 + $0x350] sm:$0xff]
        %v5123 = vld [vmem:[#allocation3 + $0x358] sm:$0xff]
        %v5124 = vld [vmem:[#allocation3 + $0x360] sm:$0xff]
        %v5125 = vld [vmem:[#allocation3 + $0x368] sm:$0xff]
        %v5126 = vld [vmem:[#allocation3 + $0x370] sm:$0xff]
        %v5127 = vld [vmem:[#allocation3 + $0x378] sm:$0xff]
        %v5128 = vld [vmem:[#allocation3 + $0x380] sm:$0xff]
        %v5129 = vld [vmem:[#allocation3 + $0x388] sm:$0xff]
        %v5130 = vld [vmem:[#allocation3 + $0x390] sm:$0xff]
        %v5131 = vld [vmem:[#allocation3 + $0x398] sm:$0xff]
        %v5132 = vld [vmem:[#allocation3 + $0x3a0] sm:$0xff]
        %v5133 = vld [vmem:[#allocation3 + $0x3a8] sm:$0xff]
        %v5134 = vld [vmem:[#allocation3 + $0x3b0] sm:$0xff]
        %v5135 = vld [vmem:[#allocation3 + $0x3b8] sm:$0xff]
        %v5136 = vld [vmem:[#allocation3 + $0x3c0] sm:$0xff]
        %v5137 = vld [vmem:[#allocation3 + $0x3c8] sm:$0xff]
        %v5138 = vld [vmem:[#allocation3 + $0x3d0] sm:$0xff]
        %v5139 = vld [vmem:[#allocation3 + $0x3d8] sm:$0xff]
        %v5140 = vld [vmem:[#allocation3 + $0x3e0] sm:$0xff]
        %v5141 = vld [vmem:[#allocation3 + $0x3e8] sm:$0xff]
        %v5142 = vld [vmem:[#allocation3 + $0x3f0] sm:$0xff]
        %v5143 = vld [vmem:[#allocation3 + $0x3f8] sm:$0xff]
        %v5144 = vld [vmem:[#allocation3 + $0x400] sm:$0xff]
        %v5145 = vld [vmem:[#allocation3 + $0x408] sm:$0xff]
        %v5146 = vld [vmem:[#allocation3 + $0x410] sm:$0xff]
        %v5147 = vld [vmem:[#allocation3 + $0x418] sm:$0xff]
        %v5148 = vld [vmem:[#allocation3 + $0x420] sm:$0xff]
        %v5149 = vld [vmem:[#allocation3 + $0x428] sm:$0xff]
        %v5150 = vld [vmem:[#allocation3 + $0x430] sm:$0xff]
        %v5151 = vld [vmem:[#allocation3 + $0x438] sm:$0xff]
        %v5152 = vld [vmem:[#allocation3 + $0x440] sm:$0xff]
        %v5153 = vld [vmem:[#allocation3 + $0x448] sm:$0xff]
        %v5154 = vld [vmem:[#allocation3 + $0x450] sm:$0xff]
        %v5155 = vld [vmem:[#allocation3 + $0x458] sm:$0xff]
        %v5156 = vld [vmem:[#allocation3 + $0x460] sm:$0xff]
        %v5157 = vld [vmem:[#allocation3 + $0x468] sm:$0xff]
        %v5158 = vld [vmem:[#allocation3 + $0x470] sm:$0xff]
        %v5159 = vld [vmem:[#allocation3 + $0x478] sm:$0xff]
        %v5160 = vld [vmem:[#allocation3 + $0x480] sm:$0xff]
        %v5161 = vld [vmem:[#allocation3 + $0x488] sm:$0xff]
        %v5162 = vld [vmem:[#allocation3 + $0x490] sm:$0xff]
        %v5163 = vld [vmem:[#allocation3 + $0x498] sm:$0xff]
        %v5164 = vld [vmem:[#allocation3 + $0x4a0] sm:$0xff]
        %v5165 = vld [vmem:[#allocation3 + $0x4a8] sm:$0xff]
        %v5166 = vld [vmem:[#allocation3 + $0x4b0] sm:$0xff]
        %v5167 = vld [vmem:[#allocation3 + $0x4b8] sm:$0xff]
        %v5168 = vld [vmem:[#allocation3 + $0x4c0] sm:$0xff]
        %v5169 = vld [vmem:[#allocation3 + $0x4c8] sm:$0xff]
        %v5170 = vld [vmem:[#allocation3 + $0x4d0] sm:$0xff]
        %v5171 = vld [vmem:[#allocation3 + $0x4d8] sm:$0xff]
        %v5172 = vld [vmem:[#allocation3 + $0x4e0] sm:$0xff]
        %v5173 = vld [vmem:[#allocation3 + $0x4e8] sm:$0xff]
        %v5174 = vld [vmem:[#allocation3 + $0x4f0] sm:$0xff]
        %v5175 = vld [vmem:[#allocation3 + $0x4f8] sm:$0xff]
        %v5176 = vld [vmem:[#allocation3 + $0x500] sm:$0xff]
        %v5177 = vld [vmem:[#allocation3 + $0x508] sm:$0xff]
        %v5178 = vld [vmem:[#allocation3 + $0x510] sm:$0xff]
        %v5179 = vld [vmem:[#allocation3 + $0x518] sm:$0xff]
        %v5180 = vld [vmem:[#allocation3 + $0x520] sm:$0xff]
        %v5181 = vld [vmem:[#allocation3 + $0x528] sm:$0xff]
        %v5182 = vld [vmem:[#allocation3 + $0x530] sm:$0xff]
        %v5183 = vld [vmem:[#allocation3 + $0x538] sm:$0xff]
        %v5184 = vld [vmem:[#allocation3 + $0x540] sm:$0xff]
        %v5185 = vld [vmem:[#allocation3 + $0x548] sm:$0xff]
        %v5186 = vld [vmem:[#allocation3 + $0x550] sm:$0xff]
        %v5187 = vld [vmem:[#allocation3 + $0x558] sm:$0xff]
        %v5188 = vld [vmem:[#allocation3 + $0x560] sm:$0xff]
        %v5189 = vld [vmem:[#allocation3 + $0x568] sm:$0xff]
        %v5190 = vld [vmem:[#allocation3 + $0x570] sm:$0xff]
        %v5191 = vld [vmem:[#allocation3 + $0x578] sm:$0xff]
        %v5192 = vld [vmem:[#allocation3 + $0x580] sm:$0xff]
        %v5193 = vld [vmem:[#allocation3 + $0x588] sm:$0xff]
        %v5194 = vld [vmem:[#allocation3 + $0x590] sm:$0xff]
        %v5195 = vld [vmem:[#allocation3 + $0x598] sm:$0xff]
        %v5196 = vld [vmem:[#allocation3 + $0x5a0] sm:$0xff]
        %v5197 = vld [vmem:[#allocation3 + $0x5a8] sm:$0xff]
        %v5198 = vld [vmem:[#allocation3 + $0x5b0] sm:$0xff]
        %v5199 = vld [vmem:[#allocation3 + $0x5b8] sm:$0xff]
        %v5200 = vld [vmem:[#allocation3 + $0x5c0] sm:$0xff]
        %v5201 = vld [vmem:[#allocation3 + $0x5c8] sm:$0xff]
        %v5202 = vld [vmem:[#allocation3 + $0x5d0] sm:$0xff]
        %v5203 = vld [vmem:[#allocation3 + $0x5d8] sm:$0xff]
        %v5204 = vld [vmem:[#allocation3 + $0x5e0] sm:$0xff]
        %v5205 = vld [vmem:[#allocation3 + $0x5e8] sm:$0xff]
        %v5206 = vld [vmem:[#allocation3 + $0x5f0] sm:$0xff]
        %v5207 = vld [vmem:[#allocation3 + $0x5f8] sm:$0xff]
        %v5208 = vld [vmem:[#allocation3 + $0x600] sm:$0xff]
        %v5209 = vld [vmem:[#allocation3 + $0x608] sm:$0xff]
        %v5210 = vld [vmem:[#allocation3 + $0x610] sm:$0xff]
        %v5211 = vld [vmem:[#allocation3 + $0x618] sm:$0xff]
        %v5212 = vld [vmem:[#allocation3 + $0x620] sm:$0xff]
        %v5213 = vld [vmem:[#allocation3 + $0x628] sm:$0xff]
        %v5214 = vld [vmem:[#allocation3 + $0x630] sm:$0xff]
        %v5215 = vld [vmem:[#allocation3 + $0x638] sm:$0xff]
        %v5216 = vld [vmem:[#allocation3 + $0x640] sm:$0xff]
        %v5217 = vld [vmem:[#allocation3 + $0x648] sm:$0xff]
        %v5218 = vld [vmem:[#allocation3 + $0x650] sm:$0xff]
        %v5219 = vld [vmem:[#allocation3 + $0x658] sm:$0xff]
        %v5220 = vld [vmem:[#allocation3 + $0x660] sm:$0xff]
        %v5221 = vld [vmem:[#allocation3 + $0x668] sm:$0xff]
        %v5222 = vld [vmem:[#allocation3 + $0x670] sm:$0xff]
        %v5223 = vld [vmem:[#allocation3 + $0x678] sm:$0xff]
        %v5224 = vld [vmem:[#allocation3 + $0x680] sm:$0xff]
        %v5225 = vld [vmem:[#allocation3 + $0x688] sm:$0xff]
        %v5226 = vld [vmem:[#allocation3 + $0x690] sm:$0xff]
        %v5227 = vld [vmem:[#allocation3 + $0x698] sm:$0xff]
        %v5228 = vld [vmem:[#allocation3 + $0x6a0] sm:$0xff]
        %v5229 = vld [vmem:[#allocation3 + $0x6a8] sm:$0xff]
        %v5230 = vld [vmem:[#allocation3 + $0x6b0] sm:$0xff]
        %v5231 = vld [vmem:[#allocation3 + $0x6b8] sm:$0xff]
        %v5232 = vld [vmem:[#allocation3 + $0x6c0] sm:$0xff]
        %v5233 = vld [vmem:[#allocation3 + $0x6c8] sm:$0xff]
        %v5234 = vld [vmem:[#allocation3 + $0x6d0] sm:$0xff]
        %v5235 = vld [vmem:[#allocation3 + $0x6d8] sm:$0xff]
        %v5236 = vld [vmem:[#allocation3 + $0x6e0] sm:$0xff]
        %v5237 = vld [vmem:[#allocation3 + $0x6e8] sm:$0xff]
        %v5238 = vld [vmem:[#allocation3 + $0x6f0] sm:$0xff]
        %v5239 = vld [vmem:[#allocation3 + $0x6f8] sm:$0xff]
        %v5240 = vld [vmem:[#allocation3 + $0x700] sm:$0xff]
        %v5241 = vld [vmem:[#allocation3 + $0x708] sm:$0xff]
        %v5242 = vld [vmem:[#allocation3 + $0x710] sm:$0xff]
        %v5243 = vld [vmem:[#allocation3 + $0x718] sm:$0xff]
        %v5244 = vld [vmem:[#allocation3 + $0x720] sm:$0xff]
        %v5245 = vld [vmem:[#allocation3 + $0x728] sm:$0xff]
        %v5246 = vld [vmem:[#allocation3 + $0x730] sm:$0xff]
        %v5247 = vld [vmem:[#allocation3 + $0x738] sm:$0xff]
        %v5248 = vld [vmem:[#allocation3 + $0x740] sm:$0xff]
        %v5249 = vld [vmem:[#allocation3 + $0x748] sm:$0xff]
        %v5250 = vld [vmem:[#allocation3 + $0x750] sm:$0xff]
        %v5251 = vld [vmem:[#allocation3 + $0x758] sm:$0xff]
        %v5252 = vld [vmem:[#allocation3 + $0x760] sm:$0xff]
        %v5253 = vld [vmem:[#allocation3 + $0x768] sm:$0xff]
        %v5254 = vld [vmem:[#allocation3 + $0x770] sm:$0xff]
        %v5255 = vld [vmem:[#allocation3 + $0x778] sm:$0xff]
        %v5256 = vld [vmem:[#allocation3 + $0x780] sm:$0xff]
        %v5257 = vld [vmem:[#allocation3 + $0x788] sm:$0xff]
        %v5258 = vld [vmem:[#allocation3 + $0x790] sm:$0xff]
        %v5259 = vld [vmem:[#allocation3 + $0x798] sm:$0xff]
        %v5260 = vld [vmem:[#allocation3 + $0x7a0] sm:$0xff]
        %v5261 = vld [vmem:[#allocation3 + $0x7a8] sm:$0xff]
        %v5262 = vld [vmem:[#allocation3 + $0x7b0] sm:$0xff]
        %v5263 = vld [vmem:[#allocation3 + $0x7b8] sm:$0xff]
        %v5264 = vld [vmem:[#allocation3 + $0x7c0] sm:$0xff]
        %v5265 = vld [vmem:[#allocation3 + $0x7c8] sm:$0xff]
        %v5266 = vld [vmem:[#allocation3 + $0x7d0] sm:$0xff]
        %v5267 = vld [vmem:[#allocation3 + $0x7d8] sm:$0xff]
        %v5268 = vld [vmem:[#allocation3 + $0x7e0] sm:$0xff]
        %v5269 = vld [vmem:[#allocation3 + $0x7e8] sm:$0xff]
        %v5270 = vld [vmem:[#allocation3 + $0x7f0] sm:$0xff]
        %v5271 = vld [vmem:[#allocation3 + $0x7f8] sm:$0xff]
        %v5272 = vld [vmem:[#allocation3 + $0x800] sm:$0xff]
        %v5273 = vld [vmem:[#allocation3 + $0x808] sm:$0xff]
        %v5274 = vld [vmem:[#allocation3 + $0x810] sm:$0xff]
        %v5275 = vld [vmem:[#allocation3 + $0x818] sm:$0xff]
        %v5276 = vld [vmem:[#allocation3 + $0x820] sm:$0xff]
        %v5277 = vld [vmem:[#allocation3 + $0x828] sm:$0xff]
        %v5278 = vld [vmem:[#allocation3 + $0x830] sm:$0xff]
        %v5279 = vld [vmem:[#allocation3 + $0x838] sm:$0xff]
        %v5280 = vld [vmem:[#allocation3 + $0x840] sm:$0xff]
        %v5281 = vld [vmem:[#allocation3 + $0x848] sm:$0xff]
        %v5282 = vld [vmem:[#allocation3 + $0x850] sm:$0xff]
        %v5283 = vld [vmem:[#allocation3 + $0x858] sm:$0xff]
        %v5284 = vld [vmem:[#allocation3 + $0x860] sm:$0xff]
        %v5285 = vld [vmem:[#allocation3 + $0x868] sm:$0xff]
        %v5286 = vld [vmem:[#allocation3 + $0x870] sm:$0xff]
        %v5287 = vld [vmem:[#allocation3 + $0x878] sm:$0xff]
        %v5288 = vld [vmem:[#allocation3 + $0x880] sm:$0xff]
        %v5289 = vld [vmem:[#allocation3 + $0x888] sm:$0xff]
        %v5290 = vld [vmem:[#allocation3 + $0x890] sm:$0xff]
        %v5291 = vld [vmem:[#allocation3 + $0x898] sm:$0xff]
        %v5292 = vld [vmem:[#allocation3 + $0x8a0] sm:$0xff]
        %v5293 = vld [vmem:[#allocation3 + $0x8a8] sm:$0xff]
        %v5294 = vld [vmem:[#allocation3 + $0x8b0] sm:$0xff]
        %v5295 = vld [vmem:[#allocation3 + $0x8b8] sm:$0xff]
        %v5296 = vld [vmem:[#allocation3 + $0x8c0] sm:$0xff]
        %v5297 = vld [vmem:[#allocation3 + $0x8c8] sm:$0xff]
        %v5298 = vld [vmem:[#allocation3 + $0x8d0] sm:$0xff]
        %v5299 = vld [vmem:[#allocation3 + $0x8d8] sm:$0xff]
        %v5300 = vld [vmem:[#allocation3 + $0x8e0] sm:$0xff]
        %v5301 = vld [vmem:[#allocation3 + $0x8e8] sm:$0xff]
        %v5302 = vld [vmem:[#allocation3 + $0x8f0] sm:$0xff]
        %v5303 = vld [vmem:[#allocation3 + $0x8f8] sm:$0xff]
        %v5304 = vld [vmem:[#allocation3 + $0x900] sm:$0xff]
        %v5305 = vld [vmem:[#allocation3 + $0x908] sm:$0xff]
        %v5306 = vld [vmem:[#allocation3 + $0x910] sm:$0xff]
        %v5307 = vld [vmem:[#allocation3 + $0x918] sm:$0xff]
        %v5308 = vld [vmem:[#allocation3 + $0x920] sm:$0xff]
        %v5309 = vld [vmem:[#allocation3 + $0x928] sm:$0xff]
        %v5310 = vld [vmem:[#allocation3 + $0x930] sm:$0xff]
        %v5311 = vld [vmem:[#allocation3 + $0x938] sm:$0xff]
        %v5312 = vld [vmem:[#allocation3 + $0x940] sm:$0xff]
        %v5313 = vld [vmem:[#allocation3 + $0x948] sm:$0xff]
        %v5314 = vld [vmem:[#allocation3 + $0x950] sm:$0xff]
        %v5315 = vld [vmem:[#allocation3 + $0x958] sm:$0xff]
        %v5316 = vld [vmem:[#allocation3 + $0x960] sm:$0xff]
        %v5317 = vld [vmem:[#allocation3 + $0x968] sm:$0xff]
        %v5318 = vld [vmem:[#allocation3 + $0x970] sm:$0xff]
        %v5319 = vld [vmem:[#allocation3 + $0x978] sm:$0xff]
        %v5320 = vld [vmem:[#allocation3 + $0x980] sm:$0xff]
        %v5321 = vld [vmem:[#allocation3 + $0x988] sm:$0xff]
        %v5322 = vld [vmem:[#allocation3 + $0x990] sm:$0xff]
        %v5323 = vld [vmem:[#allocation3 + $0x998] sm:$0xff]
        %v5324 = vld [vmem:[#allocation3 + $0x9a0] sm:$0xff]
        %v5325 = vld [vmem:[#allocation3 + $0x9a8] sm:$0xff]
        %v5326 = vld [vmem:[#allocation3 + $0x9b0] sm:$0xff]
        %v5327 = vld [vmem:[#allocation3 + $0x9b8] sm:$0xff]
        %v5328 = vld [vmem:[#allocation3 + $0x9c0] sm:$0xff]
        %v5329 = vld [vmem:[#allocation3 + $0x9c8] sm:$0xff]
        %v5330 = vld [vmem:[#allocation3 + $0x9d0] sm:$0xff]
        %v5331 = vld [vmem:[#allocation3 + $0x9d8] sm:$0xff]
        %v5332 = vld [vmem:[#allocation3 + $0x9e0] sm:$0xff]
        %v5333 = vld [vmem:[#allocation3 + $0x9e8] sm:$0xff]
        %v5334 = vld [vmem:[#allocation3 + $0x9f0] sm:$0xff]
        %v5335 = vld [vmem:[#allocation3 + $0x9f8] sm:$0xff]
        %v5336 = vld [vmem:[#allocation3 + $0xa00] sm:$0xff]
        %v5337 = vld [vmem:[#allocation3 + $0xa08] sm:$0xff]
        %v5338 = vld [vmem:[#allocation3 + $0xa10] sm:$0xff]
        %v5339 = vld [vmem:[#allocation3 + $0xa18] sm:$0xff]
        %v5340 = vld [vmem:[#allocation3 + $0xa20] sm:$0xff]
        %v5341 = vld [vmem:[#allocation3 + $0xa28] sm:$0xff]
        %v5342 = vld [vmem:[#allocation3 + $0xa30] sm:$0xff]
        %v5343 = vld [vmem:[#allocation3 + $0xa38] sm:$0xff]
        %v5344 = vld [vmem:[#allocation3 + $0xa40] sm:$0xff]
        %v5345 = vld [vmem:[#allocation3 + $0xa48] sm:$0xff]
        %v5346 = vld [vmem:[#allocation3 + $0xa50] sm:$0xff]
        %v5347 = vld [vmem:[#allocation3 + $0xa58] sm:$0xff]
        %v5348 = vld [vmem:[#allocation3 + $0xa60] sm:$0xff]
        %v5349 = vld [vmem:[#allocation3 + $0xa68] sm:$0xff]
        %v5350 = vld [vmem:[#allocation3 + $0xa70] sm:$0xff]
        %v5351 = vld [vmem:[#allocation3 + $0xa78] sm:$0xff]
        %v5352 = vld [vmem:[#allocation3 + $0xa80] sm:$0xff]
        %v5353 = vld [vmem:[#allocation3 + $0xa88] sm:$0xff]
        %v5354 = vld [vmem:[#allocation3 + $0xa90] sm:$0xff]
        %v5355 = vld [vmem:[#allocation3 + $0xa98] sm:$0xff]
        %v5356 = vld [vmem:[#allocation3 + $0xaa0] sm:$0xff]
        %v5357 = vld [vmem:[#allocation3 + $0xaa8] sm:$0xff]
        %v5358 = vld [vmem:[#allocation3 + $0xab0] sm:$0xff]
        %v5359 = vld [vmem:[#allocation3 + $0xab8] sm:$0xff]
        %v5360 = vld [vmem:[#allocation3 + $0xac0] sm:$0xff]
        %v5361 = vld [vmem:[#allocation3 + $0xac8] sm:$0xff]
        %v5362 = vld [vmem:[#allocation3 + $0xad0] sm:$0xff]
        %v5363 = vld [vmem:[#allocation3 + $0xad8] sm:$0xff]
        %v5364 = vld [vmem:[#allocation3 + $0xae0] sm:$0xff]
        %v5365 = vld [vmem:[#allocation3 + $0xae8] sm:$0xff]
        %v5366 = vld [vmem:[#allocation3 + $0xaf0] sm:$0xff]
        %v5367 = vld [vmem:[#allocation3 + $0xaf8] sm:$0xff]
        %v5368 = vld [vmem:[#allocation3 + $0xb00] sm:$0xff]
        %v5369 = vld [vmem:[#allocation3 + $0xb08] sm:$0xff]
        %v5370 = vld [vmem:[#allocation3 + $0xb10] sm:$0xff]
        %v5371 = vld [vmem:[#allocation3 + $0xb18] sm:$0xff]
        %v5372 = vld [vmem:[#allocation3 + $0xb20] sm:$0xff]
        %v5373 = vld [vmem:[#allocation3 + $0xb28] sm:$0xff]
        %v5374 = vld [vmem:[#allocation3 + $0xb30] sm:$0xff]
        %v5375 = vld [vmem:[#allocation3 + $0xb38] sm:$0xff]
        %v5376 = vld [vmem:[#allocation3 + $0xb40] sm:$0xff]
        %v5377 = vld [vmem:[#allocation3 + $0xb48] sm:$0xff]
        %v5378 = vld [vmem:[#allocation3 + $0xb50] sm:$0xff]
        %v5379 = vld [vmem:[#allocation3 + $0xb58] sm:$0xff]
        %v5380 = vld [vmem:[#allocation3 + $0xb60] sm:$0xff]
        %v5381 = vld [vmem:[#allocation3 + $0xb68] sm:$0xff]
        %v5382 = vld [vmem:[#allocation3 + $0xb70] sm:$0xff]
        %v5383 = vld [vmem:[#allocation3 + $0xb78] sm:$0xff]
        %v5384 = vld [vmem:[#allocation3 + $0xb80] sm:$0xff]
        %v5385 = vld [vmem:[#allocation3 + $0xb88] sm:$0xff]
        %v5386 = vld [vmem:[#allocation3 + $0xb90] sm:$0xff]
        %v5387 = vld [vmem:[#allocation3 + $0xb98] sm:$0xff]
        %v5388 = vld [vmem:[#allocation3 + $0xba0] sm:$0xff]
        %v5389 = vld [vmem:[#allocation3 + $0xba8] sm:$0xff]
        %v5390 = vld [vmem:[#allocation3 + $0xbb0] sm:$0xff]
        %v5391 = vld [vmem:[#allocation3 + $0xbb8] sm:$0xff]
        %v5392 = vld [vmem:[#allocation3 + $0xbc0] sm:$0xff]
        %v5393 = vld [vmem:[#allocation3 + $0xbc8] sm:$0xff]
        %v5394 = vld [vmem:[#allocation3 + $0xbd0] sm:$0xff]
        %v5395 = vld [vmem:[#allocation3 + $0xbd8] sm:$0xff]
        %v5396 = vld [vmem:[#allocation3 + $0xbe0] sm:$0xff]
        %v5397 = vld [vmem:[#allocation3 + $0xbe8] sm:$0xff]
        %v5398 = vld [vmem:[#allocation3 + $0xbf0] sm:$0xff]
        %v5399 = vld [vmem:[#allocation3 + $0xbf8] sm:$0xff]
        %v5400 = vld [vmem:[#allocation3 + $0xc00] sm:$0xff]
        %v5401 = vld [vmem:[#allocation3 + $0xc08] sm:$0xff]
        %v5402 = vld [vmem:[#allocation3 + $0xc10] sm:$0xff]
        %v5403 = vld [vmem:[#allocation3 + $0xc18] sm:$0xff]
        %v5404 = vld [vmem:[#allocation3 + $0xc20] sm:$0xff]
        %v5405 = vld [vmem:[#allocation3 + $0xc28] sm:$0xff]
        %v5406 = vld [vmem:[#allocation3 + $0xc30] sm:$0xff]
        %v5407 = vld [vmem:[#allocation3 + $0xc38] sm:$0xff]
        %v5408 = vld [vmem:[#allocation3 + $0xc40] sm:$0xff]
        %v5409 = vld [vmem:[#allocation3 + $0xc48] sm:$0xff]
        %v5410 = vld [vmem:[#allocation3 + $0xc50] sm:$0xff]
        %v5411 = vld [vmem:[#allocation3 + $0xc58] sm:$0xff]
        %v5412 = vld [vmem:[#allocation3 + $0xc60] sm:$0xff]
        %v5413 = vld [vmem:[#allocation3 + $0xc68] sm:$0xff]
        %v5414 = vld [vmem:[#allocation3 + $0xc70] sm:$0xff]
        %v5415 = vld [vmem:[#allocation3 + $0xc78] sm:$0xff]
        %v5416 = vld [vmem:[#allocation3 + $0xc80] sm:$0xff]
        %v5417 = vld [vmem:[#allocation3 + $0xc88] sm:$0xff]
        %v5418 = vld [vmem:[#allocation3 + $0xc90] sm:$0xff]
        %v5419 = vld [vmem:[#allocation3 + $0xc98] sm:$0xff]
        %v5420 = vld [vmem:[#allocation3 + $0xca0] sm:$0xff]
        %v5421 = vld [vmem:[#allocation3 + $0xca8] sm:$0xff]
        %v5422 = vld [vmem:[#allocation3 + $0xcb0] sm:$0xff]
        %v5423 = vld [vmem:[#allocation3 + $0xcb8] sm:$0xff]
        %v5424 = vld [vmem:[#allocation3 + $0xcc0] sm:$0xff]
        %v5425 = vld [vmem:[#allocation3 + $0xcc8] sm:$0xff]
        %v5426 = vld [vmem:[#allocation3 + $0xcd0] sm:$0xff]
        %v5427 = vld [vmem:[#allocation3 + $0xcd8] sm:$0xff]
        %v5428 = vld [vmem:[#allocation3 + $0xce0] sm:$0xff]
        %v5429 = vld [vmem:[#allocation3 + $0xce8] sm:$0xff]
        %v5430 = vld [vmem:[#allocation3 + $0xcf0] sm:$0xff]
        %v5431 = vld [vmem:[#allocation3 + $0xcf8] sm:$0xff]
        %v5432 = vld [vmem:[#allocation3 + $0xd00] sm:$0xff]
        %v5433 = vld [vmem:[#allocation3 + $0xd08] sm:$0xff]
        %v5434 = vld [vmem:[#allocation3 + $0xd10] sm:$0xff]
        %v5435 = vld [vmem:[#allocation3 + $0xd18] sm:$0xff]
        %v5436 = vld [vmem:[#allocation3 + $0xd20] sm:$0xff]
        %v5437 = vld [vmem:[#allocation3 + $0xd28] sm:$0xff]
        %v5438 = vld [vmem:[#allocation3 + $0xd30] sm:$0xff]
        %v5439 = vld [vmem:[#allocation3 + $0xd38] sm:$0xff]
        %v5440 = vld [vmem:[#allocation3 + $0xd40] sm:$0xff]
        %v5441 = vld [vmem:[#allocation3 + $0xd48] sm:$0xff]
        %v5442 = vld [vmem:[#allocation3 + $0xd50] sm:$0xff]
        %v5443 = vld [vmem:[#allocation3 + $0xd58] sm:$0xff]
        %v5444 = vld [vmem:[#allocation3 + $0xd60] sm:$0xff]
        %v5445 = vld [vmem:[#allocation3 + $0xd68] sm:$0xff]
        %v5446 = vld [vmem:[#allocation3 + $0xd70] sm:$0xff]
        %v5447 = vld [vmem:[#allocation3 + $0xd78] sm:$0xff]
        %v5448 = vld [vmem:[#allocation3 + $0xd80] sm:$0xff]
        %v5449 = vld [vmem:[#allocation3 + $0xd88] sm:$0xff]
        %v5450 = vld [vmem:[#allocation3 + $0xd90] sm:$0xff]
        %v5451 = vld [vmem:[#allocation3 + $0xd98] sm:$0xff]
        %v5452 = vld [vmem:[#allocation3 + $0xda0] sm:$0xff]
        %v5453 = vld [vmem:[#allocation3 + $0xda8] sm:$0xff]
        %v5454 = vld [vmem:[#allocation3 + $0xdb0] sm:$0xff]
        %v5455 = vld [vmem:[#allocation3 + $0xdb8] sm:$0xff]
        %v5456 = vld [vmem:[#allocation3 + $0xdc0] sm:$0xff]
        %v5457 = vld [vmem:[#allocation3 + $0xdc8] sm:$0xff]
        %v5458 = vld [vmem:[#allocation3 + $0xdd0] sm:$0xff]
        %v5459 = vld [vmem:[#allocation3 + $0xdd8] sm:$0xff]
        %v5460 = vld [vmem:[#allocation3 + $0xde0] sm:$0xff]
        %v5461 = vld [vmem:[#allocation3 + $0xde8] sm:$0xff]
        %v5462 = vld [vmem:[#allocation3 + $0xdf0] sm:$0xff]
        %v5463 = vld [vmem:[#allocation3 + $0xdf8] sm:$0xff]
        %v5464 = vld [vmem:[#allocation3 + $0xe00] sm:$0xff]
        %v5465 = vld [vmem:[#allocation3 + $0xe08] sm:$0xff]
        %v5466 = vld [vmem:[#allocation3 + $0xe10] sm:$0xff]
        %v5467 = vld [vmem:[#allocation3 + $0xe18] sm:$0xff]
        %v5468 = vld [vmem:[#allocation3 + $0xe20] sm:$0xff]
        %v5469 = vld [vmem:[#allocation3 + $0xe28] sm:$0xff]
        %v5470 = vld [vmem:[#allocation3 + $0xe30] sm:$0xff]
        %v5471 = vld [vmem:[#allocation3 + $0xe38] sm:$0xff]
        %v5472 = vld [vmem:[#allocation3 + $0xe40] sm:$0xff]
        %v5473 = vld [vmem:[#allocation3 + $0xe48] sm:$0xff]
        %v5474 = vld [vmem:[#allocation3 + $0xe50] sm:$0xff]
        %v5475 = vld [vmem:[#allocation3 + $0xe58] sm:$0xff]
        %v5476 = vld [vmem:[#allocation3 + $0xe60] sm:$0xff]
        %v5477 = vld [vmem:[#allocation3 + $0xe68] sm:$0xff]
        %v5478 = vld [vmem:[#allocation3 + $0xe70] sm:$0xff]
        %v5479 = vld [vmem:[#allocation3 + $0xe78] sm:$0xff]
        %v5480 = vld [vmem:[#allocation3 + $0xe80] sm:$0xff]
        %v5481 = vld [vmem:[#allocation3 + $0xe88] sm:$0xff]
        %v5482 = vld [vmem:[#allocation3 + $0xe90] sm:$0xff]
        %v5483 = vld [vmem:[#allocation3 + $0xe98] sm:$0xff]
        %v5484 = vld [vmem:[#allocation3 + $0xea0] sm:$0xff]
        %v5485 = vld [vmem:[#allocation3 + $0xea8] sm:$0xff]
        %v5486 = vld [vmem:[#allocation3 + $0xeb0] sm:$0xff]
        %v5487 = vld [vmem:[#allocation3 + $0xeb8] sm:$0xff]
        %v5488 = vld [vmem:[#allocation3 + $0xec0] sm:$0xff]
        %v5489 = vld [vmem:[#allocation3 + $0xec8] sm:$0xff]
        %v5490 = vld [vmem:[#allocation3 + $0xed0] sm:$0xff]
        %v5491 = vld [vmem:[#allocation3 + $0xed8] sm:$0xff]
        %v5492 = vld [vmem:[#allocation3 + $0xee0] sm:$0xff]
        %v5493 = vld [vmem:[#allocation3 + $0xee8] sm:$0xff]
        %v5494 = vld [vmem:[#allocation3 + $0xef0] sm:$0xff]
        %v5495 = vld [vmem:[#allocation3 + $0xef8] sm:$0xff]
        %v5496 = vld [vmem:[#allocation3 + $0xf00] sm:$0xff]
        %v5497 = vld [vmem:[#allocation3 + $0xf08] sm:$0xff]
        %v5498 = vld [vmem:[#allocation3 + $0xf10] sm:$0xff]
        %v5499 = vld [vmem:[#allocation3 + $0xf18] sm:$0xff]
        %v5500 = vld [vmem:[#allocation3 + $0xf20] sm:$0xff]
        %v5501 = vld [vmem:[#allocation3 + $0xf28] sm:$0xff]
        %v5502 = vld [vmem:[#allocation3 + $0xf30] sm:$0xff]
        %v5503 = vld [vmem:[#allocation3 + $0xf38] sm:$0xff]
        %v5504 = vld [vmem:[#allocation3 + $0xf40] sm:$0xff]
        %v5505 = vld [vmem:[#allocation3 + $0xf48] sm:$0xff]
        %v5506 = vld [vmem:[#allocation3 + $0xf50] sm:$0xff]
        %v5507 = vld [vmem:[#allocation3 + $0xf58] sm:$0xff]
        %v5508 = vld [vmem:[#allocation3 + $0xf60] sm:$0xff]
        %v5509 = vld [vmem:[#allocation3 + $0xf68] sm:$0xff]
        %v5510 = vld [vmem:[#allocation3 + $0xf70] sm:$0xff]
        %v5511 = vld [vmem:[#allocation3 + $0xf78] sm:$0xff]
        %v5512 = vld [vmem:[#allocation3 + $0xf80] sm:$0xff]
        %v5513 = vld [vmem:[#allocation3 + $0xf88] sm:$0xff]
        %v5514 = vld [vmem:[#allocation3 + $0xf90] sm:$0xff]
        %v5515 = vld [vmem:[#allocation3 + $0xf98] sm:$0xff]
        %v5516 = vld [vmem:[#allocation3 + $0xfa0] sm:$0xff]
        %v5517 = vld [vmem:[#allocation3 + $0xfa8] sm:$0xff]
        %v5518 = vld [vmem:[#allocation3 + $0xfb0] sm:$0xff]
        %v5519 = vld [vmem:[#allocation3 + $0xfb8] sm:$0xff]
        %v5520 = vld [vmem:[#allocation3 + $0xfc0] sm:$0xff]
        %v5521 = vld [vmem:[#allocation3 + $0xfc8] sm:$0xff]
        %v5522 = vld [vmem:[#allocation3 + $0xfd0] sm:$0xff]
        %v5523 = vld [vmem:[#allocation3 + $0xfd8] sm:$0xff]
        %v5524 = vld [vmem:[#allocation3 + $0xfe0] sm:$0xff]
        %v5525 = vld [vmem:[#allocation3 + $0xfe8] sm:$0xff]
        %v5526 = vld [vmem:[#allocation3 + $0xff0] sm:$0xff]
        %v5527 = vld [vmem:[#allocation3 + $0xff8] sm:$0xff]
        %v5529 = vlaneseq
        %v5530 = vshrl.u32 %v5529, 7
        %v5531 = vsub.s32 0, %v5530
        %v5532 = vrot.slane %v5007, %v5531
        %v5533 = vlaneseq
        %v5534 = vshrl.u32 %v5533, 7
        %v5535 = vsub.s32 1, %v5534
        %v5536 = vrot.slane %v5007, %v5535
        %v5537 = vlaneseq
        %v5538 = vshrl.u32 %v5537, 7
        %v5539 = vsub.s32 2, %v5538
        %v5540 = vrot.slane %v5007, %v5539
        %v5541 = vlaneseq
        %v5542 = vshrl.u32 %v5541, 7
        %v5543 = vsub.s32 3, %v5542
        %v5544 = vrot.slane %v5007, %v5543
        %v5545 = vlaneseq
        %v5546 = vshrl.u32 %v5545, 7
        %v5547 = vsub.s32 4, %v5546
        %v5548 = vrot.slane %v5007, %v5547
        %v5549 = vlaneseq
        %v5550 = vshrl.u32 %v5549, 7
        %v5551 = vsub.s32 5, %v5550
        %v5552 = vrot.slane %v5007, %v5551
        %v5553 = vlaneseq
        %v5554 = vshrl.u32 %v5553, 7
        %v5555 = vsub.s32 6, %v5554
        %v5556 = vrot.slane %v5007, %v5555
        %v5557 = vlaneseq
        %v5558 = vshrl.u32 %v5557, 7
        %v5559 = vsub.s32 7, %v5558
        %v5560 = vrot.slane %v5007, %v5559
        %v6081 = vunpack.c.l.b16 %v5016
        %v6082 = vunpack.c.h.b16 %v5016
        %v6083 = vunpack.c.l.b16 %v5017
        %v6084 = vunpack.c.h.b16 %v5017
        %v6085 = vunpack.c.l.b16 %v5018
        %v6086 = vunpack.c.h.b16 %v5018
        %v6087 = vunpack.c.l.b16 %v5019
        %v6088 = vunpack.c.h.b16 %v5019
        %v6089 = vunpack.c.l.b16 %v5020
        %v6090 = vunpack.c.h.b16 %v5020
        %v6091 = vunpack.c.l.b16 %v5021
        %v6092 = vunpack.c.h.b16 %v5021
        %v6093 = vunpack.c.l.b16 %v5022
        %v6094 = vunpack.c.h.b16 %v5022
        %v6095 = vunpack.c.l.b16 %v5023
        %v6096 = vunpack.c.h.b16 %v5023
        %v6097 = vunpack.c.l.b16 %v5024
        %v6098 = vunpack.c.h.b16 %v5024
        %v6099 = vunpack.c.l.b16 %v5025
        %v6100 = vunpack.c.h.b16 %v5025
        %v6101 = vunpack.c.l.b16 %v5026
        %v6102 = vunpack.c.h.b16 %v5026
        %v6103 = vunpack.c.l.b16 %v5027
        %v6104 = vunpack.c.h.b16 %v5027
        %v6105 = vunpack.c.l.b16 %v5028
        %v6106 = vunpack.c.h.b16 %v5028
        %v6107 = vunpack.c.l.b16 %v5029
        %v6108 = vunpack.c.h.b16 %v5029
        %v6109 = vunpack.c.l.b16 %v5030
        %v6110 = vunpack.c.h.b16 %v5030
        %v6111 = vunpack.c.l.b16 %v5031
        %v6112 = vunpack.c.h.b16 %v5031
        %v6113 = vunpack.c.l.b16 %v5032
        %v6114 = vunpack.c.h.b16 %v5032
        %v6115 = vunpack.c.l.b16 %v5033
        %v6116 = vunpack.c.h.b16 %v5033
        %v6117 = vunpack.c.l.b16 %v5034
        %v6118 = vunpack.c.h.b16 %v5034
        %v6119 = vunpack.c.l.b16 %v5035
        %v6120 = vunpack.c.h.b16 %v5035
        %v6121 = vunpack.c.l.b16 %v5036
        %v6122 = vunpack.c.h.b16 %v5036
        %v6123 = vunpack.c.l.b16 %v5037
        %v6124 = vunpack.c.h.b16 %v5037
        %v6125 = vunpack.c.l.b16 %v5038
        %v6126 = vunpack.c.h.b16 %v5038
        %v6127 = vunpack.c.l.b16 %v5039
        %v6128 = vunpack.c.h.b16 %v5039
        %v6129 = vunpack.c.l.b16 %v5040
        %v6130 = vunpack.c.h.b16 %v5040
        %v6131 = vunpack.c.l.b16 %v5041
        %v6132 = vunpack.c.h.b16 %v5041
        %v6133 = vunpack.c.l.b16 %v5042
        %v6134 = vunpack.c.h.b16 %v5042
        %v6135 = vunpack.c.l.b16 %v5043
        %v6136 = vunpack.c.h.b16 %v5043
        %v6137 = vunpack.c.l.b16 %v5044
        %v6138 = vunpack.c.h.b16 %v5044
        %v6139 = vunpack.c.l.b16 %v5045
        %v6140 = vunpack.c.h.b16 %v5045
        %v6141 = vunpack.c.l.b16 %v5046
        %v6142 = vunpack.c.h.b16 %v5046
        %v6143 = vunpack.c.l.b16 %v5047
        %v6144 = vunpack.c.h.b16 %v5047
        %v6145 = vunpack.c.l.b16 %v5048
        %v6146 = vunpack.c.h.b16 %v5048
        %v6147 = vunpack.c.l.b16 %v5049
        %v6148 = vunpack.c.h.b16 %v5049
        %v6149 = vunpack.c.l.b16 %v5050
        %v6150 = vunpack.c.h.b16 %v5050
        %v6151 = vunpack.c.l.b16 %v5051
        %v6152 = vunpack.c.h.b16 %v5051
        %v6153 = vunpack.c.l.b16 %v5052
        %v6154 = vunpack.c.h.b16 %v5052
        %v6155 = vunpack.c.l.b16 %v5053
        %v6156 = vunpack.c.h.b16 %v5053
        %v6157 = vunpack.c.l.b16 %v5054
        %v6158 = vunpack.c.h.b16 %v5054
        %v6159 = vunpack.c.l.b16 %v5055
        %v6160 = vunpack.c.h.b16 %v5055
        %v6161 = vunpack.c.l.b16 %v5056
        %v6162 = vunpack.c.h.b16 %v5056
        %v6163 = vunpack.c.l.b16 %v5057
        %v6164 = vunpack.c.h.b16 %v5057
        %v6165 = vunpack.c.l.b16 %v5058
        %v6166 = vunpack.c.h.b16 %v5058
        %v6167 = vunpack.c.l.b16 %v5059
        %v6168 = vunpack.c.h.b16 %v5059
        %v6169 = vunpack.c.l.b16 %v5060
        %v6170 = vunpack.c.h.b16 %v5060
        %v6171 = vunpack.c.l.b16 %v5061
        %v6172 = vunpack.c.h.b16 %v5061
        %v6173 = vunpack.c.l.b16 %v5062
        %v6174 = vunpack.c.h.b16 %v5062
        %v6175 = vunpack.c.l.b16 %v5063
        %v6176 = vunpack.c.h.b16 %v5063
        %v6177 = vunpack.c.l.b16 %v5064
        %v6178 = vunpack.c.h.b16 %v5064
        %v6179 = vunpack.c.l.b16 %v5065
        %v6180 = vunpack.c.h.b16 %v5065
        %v6181 = vunpack.c.l.b16 %v5066
        %v6182 = vunpack.c.h.b16 %v5066
        %v6183 = vunpack.c.l.b16 %v5067
        %v6184 = vunpack.c.h.b16 %v5067
        %v6185 = vunpack.c.l.b16 %v5068
        %v6186 = vunpack.c.h.b16 %v5068
        %v6187 = vunpack.c.l.b16 %v5069
        %v6188 = vunpack.c.h.b16 %v5069
        %v6189 = vunpack.c.l.b16 %v5070
        %v6190 = vunpack.c.h.b16 %v5070
        %v6191 = vunpack.c.l.b16 %v5071
        %v6192 = vunpack.c.h.b16 %v5071
        %v6193 = vunpack.c.l.b16 %v5072
        %v6194 = vunpack.c.h.b16 %v5072
        %v6195 = vunpack.c.l.b16 %v5073
        %v6196 = vunpack.c.h.b16 %v5073
        %v6197 = vunpack.c.l.b16 %v5074
        %v6198 = vunpack.c.h.b16 %v5074
        %v6199 = vunpack.c.l.b16 %v5075
        %v6200 = vunpack.c.h.b16 %v5075
        %v6201 = vunpack.c.l.b16 %v5076
        %v6202 = vunpack.c.h.b16 %v5076
        %v6203 = vunpack.c.l.b16 %v5077
        %v6204 = vunpack.c.h.b16 %v5077
        %v6205 = vunpack.c.l.b16 %v5078
        %v6206 = vunpack.c.h.b16 %v5078
        %v6207 = vunpack.c.l.b16 %v5079
        %v6208 = vunpack.c.h.b16 %v5079
        %v6209 = vunpack.c.l.b16 %v5080
        %v6210 = vunpack.c.h.b16 %v5080
        %v6211 = vunpack.c.l.b16 %v5081
        %v6212 = vunpack.c.h.b16 %v5081
        %v6213 = vunpack.c.l.b16 %v5082
        %v6214 = vunpack.c.h.b16 %v5082
        %v6215 = vunpack.c.l.b16 %v5083
        %v6216 = vunpack.c.h.b16 %v5083
        %v6217 = vunpack.c.l.b16 %v5084
        %v6218 = vunpack.c.h.b16 %v5084
        %v6219 = vunpack.c.l.b16 %v5085
        %v6220 = vunpack.c.h.b16 %v5085
        %v6221 = vunpack.c.l.b16 %v5086
        %v6222 = vunpack.c.h.b16 %v5086
        %v6223 = vunpack.c.l.b16 %v5087
        %v6224 = vunpack.c.h.b16 %v5087
        %v6225 = vunpack.c.l.b16 %v5088
        %v6226 = vunpack.c.h.b16 %v5088
        %v6227 = vunpack.c.l.b16 %v5089
        %v6228 = vunpack.c.h.b16 %v5089
        %v6229 = vunpack.c.l.b16 %v5090
        %v6230 = vunpack.c.h.b16 %v5090
        %v6231 = vunpack.c.l.b16 %v5091
        %v6232 = vunpack.c.h.b16 %v5091
        %v6233 = vunpack.c.l.b16 %v5092
        %v6234 = vunpack.c.h.b16 %v5092
        %v6235 = vunpack.c.l.b16 %v5093
        %v6236 = vunpack.c.h.b16 %v5093
        %v6237 = vunpack.c.l.b16 %v5094
        %v6238 = vunpack.c.h.b16 %v5094
        %v6239 = vunpack.c.l.b16 %v5095
        %v6240 = vunpack.c.h.b16 %v5095
        %v6241 = vunpack.c.l.b16 %v5096
        %v6242 = vunpack.c.h.b16 %v5096
        %v6243 = vunpack.c.l.b16 %v5097
        %v6244 = vunpack.c.h.b16 %v5097
        %v6245 = vunpack.c.l.b16 %v5098
        %v6246 = vunpack.c.h.b16 %v5098
        %v6247 = vunpack.c.l.b16 %v5099
        %v6248 = vunpack.c.h.b16 %v5099
        %v6249 = vunpack.c.l.b16 %v5100
        %v6250 = vunpack.c.h.b16 %v5100
        %v6251 = vunpack.c.l.b16 %v5101
        %v6252 = vunpack.c.h.b16 %v5101
        %v6253 = vunpack.c.l.b16 %v5102
        %v6254 = vunpack.c.h.b16 %v5102
        %v6255 = vunpack.c.l.b16 %v5103
        %v6256 = vunpack.c.h.b16 %v5103
        %v6257 = vunpack.c.l.b16 %v5104
        %v6258 = vunpack.c.h.b16 %v5104
        %v6259 = vunpack.c.l.b16 %v5105
        %v6260 = vunpack.c.h.b16 %v5105
        %v6261 = vunpack.c.l.b16 %v5106
        %v6262 = vunpack.c.h.b16 %v5106
        %v6263 = vunpack.c.l.b16 %v5107
        %v6264 = vunpack.c.h.b16 %v5107
        %v6265 = vunpack.c.l.b16 %v5108
        %v6266 = vunpack.c.h.b16 %v5108
        %v6267 = vunpack.c.l.b16 %v5109
        %v6268 = vunpack.c.h.b16 %v5109
        %v6269 = vunpack.c.l.b16 %v5110
        %v6270 = vunpack.c.h.b16 %v5110
        %v6271 = vunpack.c.l.b16 %v5111
        %v6272 = vunpack.c.h.b16 %v5111
        %v6273 = vunpack.c.l.b16 %v5112
        %v6274 = vunpack.c.h.b16 %v5112
        %v6275 = vunpack.c.l.b16 %v5113
        %v6276 = vunpack.c.h.b16 %v5113
        %v6277 = vunpack.c.l.b16 %v5114
        %v6278 = vunpack.c.h.b16 %v5114
        %v6279 = vunpack.c.l.b16 %v5115
        %v6280 = vunpack.c.h.b16 %v5115
        %v6281 = vunpack.c.l.b16 %v5116
        %v6282 = vunpack.c.h.b16 %v5116
        %v6283 = vunpack.c.l.b16 %v5117
        %v6284 = vunpack.c.h.b16 %v5117
        %v6285 = vunpack.c.l.b16 %v5118
        %v6286 = vunpack.c.h.b16 %v5118
        %v6287 = vunpack.c.l.b16 %v5119
        %v6288 = vunpack.c.h.b16 %v5119
        %v6289 = vunpack.c.l.b16 %v5120
        %v6290 = vunpack.c.h.b16 %v5120
        %v6291 = vunpack.c.l.b16 %v5121
        %v6292 = vunpack.c.h.b16 %v5121
        %v6293 = vunpack.c.l.b16 %v5122
        %v6294 = vunpack.c.h.b16 %v5122
        %v6295 = vunpack.c.l.b16 %v5123
        %v6296 = vunpack.c.h.b16 %v5123
        %v6297 = vunpack.c.l.b16 %v5124
        %v6298 = vunpack.c.h.b16 %v5124
        %v6299 = vunpack.c.l.b16 %v5125
        %v6300 = vunpack.c.h.b16 %v5125
        %v6301 = vunpack.c.l.b16 %v5126
        %v6302 = vunpack.c.h.b16 %v5126
        %v6303 = vunpack.c.l.b16 %v5127
        %v6304 = vunpack.c.h.b16 %v5127
        %v6305 = vunpack.c.l.b16 %v5128
        %v6306 = vunpack.c.h.b16 %v5128
        %v6307 = vunpack.c.l.b16 %v5129
        %v6308 = vunpack.c.h.b16 %v5129
        %v6309 = vunpack.c.l.b16 %v5130
        %v6310 = vunpack.c.h.b16 %v5130
        %v6311 = vunpack.c.l.b16 %v5131
        %v6312 = vunpack.c.h.b16 %v5131
        %v6313 = vunpack.c.l.b16 %v5132
        %v6314 = vunpack.c.h.b16 %v5132
        %v6315 = vunpack.c.l.b16 %v5133
        %v6316 = vunpack.c.h.b16 %v5133
        %v6317 = vunpack.c.l.b16 %v5134
        %v6318 = vunpack.c.h.b16 %v5134
        %v6319 = vunpack.c.l.b16 %v5135
        %v6320 = vunpack.c.h.b16 %v5135
        %v6321 = vunpack.c.l.b16 %v5136
        %v6322 = vunpack.c.h.b16 %v5136
        %v6323 = vunpack.c.l.b16 %v5137
        %v6324 = vunpack.c.h.b16 %v5137
        %v6325 = vunpack.c.l.b16 %v5138
        %v6326 = vunpack.c.h.b16 %v5138
        %v6327 = vunpack.c.l.b16 %v5139
        %v6328 = vunpack.c.h.b16 %v5139
        %v6329 = vunpack.c.l.b16 %v5140
        %v6330 = vunpack.c.h.b16 %v5140
        %v6331 = vunpack.c.l.b16 %v5141
        %v6332 = vunpack.c.h.b16 %v5141
        %v6333 = vunpack.c.l.b16 %v5142
        %v6334 = vunpack.c.h.b16 %v5142
        %v6335 = vunpack.c.l.b16 %v5143
        %v6336 = vunpack.c.h.b16 %v5143
        %v6337 = vunpack.c.l.b16 %v5144
        %v6338 = vunpack.c.h.b16 %v5144
        %v6339 = vunpack.c.l.b16 %v5145
        %v6340 = vunpack.c.h.b16 %v5145
        %v6341 = vunpack.c.l.b16 %v5146
        %v6342 = vunpack.c.h.b16 %v5146
        %v6343 = vunpack.c.l.b16 %v5147
        %v6344 = vunpack.c.h.b16 %v5147
        %v6345 = vunpack.c.l.b16 %v5148
        %v6346 = vunpack.c.h.b16 %v5148
        %v6347 = vunpack.c.l.b16 %v5149
        %v6348 = vunpack.c.h.b16 %v5149
        %v6349 = vunpack.c.l.b16 %v5150
        %v6350 = vunpack.c.h.b16 %v5150
        %v6351 = vunpack.c.l.b16 %v5151
        %v6352 = vunpack.c.h.b16 %v5151
        %v6353 = vunpack.c.l.b16 %v5152
        %v6354 = vunpack.c.h.b16 %v5152
        %v6355 = vunpack.c.l.b16 %v5153
        %v6356 = vunpack.c.h.b16 %v5153
        %v6357 = vunpack.c.l.b16 %v5154
        %v6358 = vunpack.c.h.b16 %v5154
        %v6359 = vunpack.c.l.b16 %v5155
        %v6360 = vunpack.c.h.b16 %v5155
        %v6361 = vunpack.c.l.b16 %v5156
        %v6362 = vunpack.c.h.b16 %v5156
        %v6363 = vunpack.c.l.b16 %v5157
        %v6364 = vunpack.c.h.b16 %v5157
        %v6365 = vunpack.c.l.b16 %v5158
        %v6366 = vunpack.c.h.b16 %v5158
        %v6367 = vunpack.c.l.b16 %v5159
        %v6368 = vunpack.c.h.b16 %v5159
        %v6369 = vunpack.c.l.b16 %v5160
        %v6370 = vunpack.c.h.b16 %v5160
        %v6371 = vunpack.c.l.b16 %v5161
        %v6372 = vunpack.c.h.b16 %v5161
        %v6373 = vunpack.c.l.b16 %v5162
        %v6374 = vunpack.c.h.b16 %v5162
        %v6375 = vunpack.c.l.b16 %v5163
        %v6376 = vunpack.c.h.b16 %v5163
        %v6377 = vunpack.c.l.b16 %v5164
        %v6378 = vunpack.c.h.b16 %v5164
        %v6379 = vunpack.c.l.b16 %v5165
        %v6380 = vunpack.c.h.b16 %v5165
        %v6381 = vunpack.c.l.b16 %v5166
        %v6382 = vunpack.c.h.b16 %v5166
        %v6383 = vunpack.c.l.b16 %v5167
        %v6384 = vunpack.c.h.b16 %v5167
        %v6385 = vunpack.c.l.b16 %v5168
        %v6386 = vunpack.c.h.b16 %v5168
        %v6387 = vunpack.c.l.b16 %v5169
        %v6388 = vunpack.c.h.b16 %v5169
        %v6389 = vunpack.c.l.b16 %v5170
        %v6390 = vunpack.c.h.b16 %v5170
        %v6391 = vunpack.c.l.b16 %v5171
        %v6392 = vunpack.c.h.b16 %v5171
        %v6393 = vunpack.c.l.b16 %v5172
        %v6394 = vunpack.c.h.b16 %v5172
        %v6395 = vunpack.c.l.b16 %v5173
        %v6396 = vunpack.c.h.b16 %v5173
        %v6397 = vunpack.c.l.b16 %v5174
        %v6398 = vunpack.c.h.b16 %v5174
        %v6399 = vunpack.c.l.b16 %v5175
        %v6400 = vunpack.c.h.b16 %v5175
        %v6401 = vunpack.c.l.b16 %v5176
        %v6402 = vunpack.c.h.b16 %v5176
        %v6403 = vunpack.c.l.b16 %v5177
        %v6404 = vunpack.c.h.b16 %v5177
        %v6405 = vunpack.c.l.b16 %v5178
        %v6406 = vunpack.c.h.b16 %v5178
        %v6407 = vunpack.c.l.b16 %v5179
        %v6408 = vunpack.c.h.b16 %v5179
        %v6409 = vunpack.c.l.b16 %v5180
        %v6410 = vunpack.c.h.b16 %v5180
        %v6411 = vunpack.c.l.b16 %v5181
        %v6412 = vunpack.c.h.b16 %v5181
        %v6413 = vunpack.c.l.b16 %v5182
        %v6414 = vunpack.c.h.b16 %v5182
        %v6415 = vunpack.c.l.b16 %v5183
        %v6416 = vunpack.c.h.b16 %v5183
        %v6417 = vunpack.c.l.b16 %v5184
        %v6418 = vunpack.c.h.b16 %v5184
        %v6419 = vunpack.c.l.b16 %v5185
        %v6420 = vunpack.c.h.b16 %v5185
        %v6421 = vunpack.c.l.b16 %v5186
        %v6422 = vunpack.c.h.b16 %v5186
        %v6423 = vunpack.c.l.b16 %v5187
        %v6424 = vunpack.c.h.b16 %v5187
        %v6425 = vunpack.c.l.b16 %v5188
        %v6426 = vunpack.c.h.b16 %v5188
        %v6427 = vunpack.c.l.b16 %v5189
        %v6428 = vunpack.c.h.b16 %v5189
        %v6429 = vunpack.c.l.b16 %v5190
        %v6430 = vunpack.c.h.b16 %v5190
        %v6431 = vunpack.c.l.b16 %v5191
        %v6432 = vunpack.c.h.b16 %v5191
        %v6433 = vunpack.c.l.b16 %v5192
        %v6434 = vunpack.c.h.b16 %v5192
        %v6435 = vunpack.c.l.b16 %v5193
        %v6436 = vunpack.c.h.b16 %v5193
        %v6437 = vunpack.c.l.b16 %v5194
        %v6438 = vunpack.c.h.b16 %v5194
        %v6439 = vunpack.c.l.b16 %v5195
        %v6440 = vunpack.c.h.b16 %v5195
        %v6441 = vunpack.c.l.b16 %v5196
        %v6442 = vunpack.c.h.b16 %v5196
        %v6443 = vunpack.c.l.b16 %v5197
        %v6444 = vunpack.c.h.b16 %v5197
        %v6445 = vunpack.c.l.b16 %v5198
        %v6446 = vunpack.c.h.b16 %v5198
        %v6447 = vunpack.c.l.b16 %v5199
        %v6448 = vunpack.c.h.b16 %v5199
        %v6449 = vunpack.c.l.b16 %v5200
        %v6450 = vunpack.c.h.b16 %v5200
        %v6451 = vunpack.c.l.b16 %v5201
        %v6452 = vunpack.c.h.b16 %v5201
        %v6453 = vunpack.c.l.b16 %v5202
        %v6454 = vunpack.c.h.b16 %v5202
        %v6455 = vunpack.c.l.b16 %v5203
        %v6456 = vunpack.c.h.b16 %v5203
        %v6457 = vunpack.c.l.b16 %v5204
        %v6458 = vunpack.c.h.b16 %v5204
        %v6459 = vunpack.c.l.b16 %v5205
        %v6460 = vunpack.c.h.b16 %v5205
        %v6461 = vunpack.c.l.b16 %v5206
        %v6462 = vunpack.c.h.b16 %v5206
        %v6463 = vunpack.c.l.b16 %v5207
        %v6464 = vunpack.c.h.b16 %v5207
        %v6465 = vunpack.c.l.b16 %v5208
        %v6466 = vunpack.c.h.b16 %v5208
        %v6467 = vunpack.c.l.b16 %v5209
        %v6468 = vunpack.c.h.b16 %v5209
        %v6469 = vunpack.c.l.b16 %v5210
        %v6470 = vunpack.c.h.b16 %v5210
        %v6471 = vunpack.c.l.b16 %v5211
        %v6472 = vunpack.c.h.b16 %v5211
        %v6473 = vunpack.c.l.b16 %v5212
        %v6474 = vunpack.c.h.b16 %v5212
        %v6475 = vunpack.c.l.b16 %v5213
        %v6476 = vunpack.c.h.b16 %v5213
        %v6477 = vunpack.c.l.b16 %v5214
        %v6478 = vunpack.c.h.b16 %v5214
        %v6479 = vunpack.c.l.b16 %v5215
        %v6480 = vunpack.c.h.b16 %v5215
        %v6481 = vunpack.c.l.b16 %v5216
        %v6482 = vunpack.c.h.b16 %v5216
        %v6483 = vunpack.c.l.b16 %v5217
        %v6484 = vunpack.c.h.b16 %v5217
        %v6485 = vunpack.c.l.b16 %v5218
        %v6486 = vunpack.c.h.b16 %v5218
        %v6487 = vunpack.c.l.b16 %v5219
        %v6488 = vunpack.c.h.b16 %v5219
        %v6489 = vunpack.c.l.b16 %v5220
        %v6490 = vunpack.c.h.b16 %v5220
        %v6491 = vunpack.c.l.b16 %v5221
        %v6492 = vunpack.c.h.b16 %v5221
        %v6493 = vunpack.c.l.b16 %v5222
        %v6494 = vunpack.c.h.b16 %v5222
        %v6495 = vunpack.c.l.b16 %v5223
        %v6496 = vunpack.c.h.b16 %v5223
        %v6497 = vunpack.c.l.b16 %v5224
        %v6498 = vunpack.c.h.b16 %v5224
        %v6499 = vunpack.c.l.b16 %v5225
        %v6500 = vunpack.c.h.b16 %v5225
        %v6501 = vunpack.c.l.b16 %v5226
        %v6502 = vunpack.c.h.b16 %v5226
        %v6503 = vunpack.c.l.b16 %v5227
        %v6504 = vunpack.c.h.b16 %v5227
        %v6505 = vunpack.c.l.b16 %v5228
        %v6506 = vunpack.c.h.b16 %v5228
        %v6507 = vunpack.c.l.b16 %v5229
        %v6508 = vunpack.c.h.b16 %v5229
        %v6509 = vunpack.c.l.b16 %v5230
        %v6510 = vunpack.c.h.b16 %v5230
        %v6511 = vunpack.c.l.b16 %v5231
        %v6512 = vunpack.c.h.b16 %v5231
        %v6513 = vunpack.c.l.b16 %v5232
        %v6514 = vunpack.c.h.b16 %v5232
        %v6515 = vunpack.c.l.b16 %v5233
        %v6516 = vunpack.c.h.b16 %v5233
        %v6517 = vunpack.c.l.b16 %v5234
        %v6518 = vunpack.c.h.b16 %v5234
        %v6519 = vunpack.c.l.b16 %v5235
        %v6520 = vunpack.c.h.b16 %v5235
        %v6521 = vunpack.c.l.b16 %v5236
        %v6522 = vunpack.c.h.b16 %v5236
        %v6523 = vunpack.c.l.b16 %v5237
        %v6524 = vunpack.c.h.b16 %v5237
        %v6525 = vunpack.c.l.b16 %v5238
        %v6526 = vunpack.c.h.b16 %v5238
        %v6527 = vunpack.c.l.b16 %v5239
        %v6528 = vunpack.c.h.b16 %v5239
        %v6529 = vunpack.c.l.b16 %v5240
        %v6530 = vunpack.c.h.b16 %v5240
        %v6531 = vunpack.c.l.b16 %v5241
        %v6532 = vunpack.c.h.b16 %v5241
        %v6533 = vunpack.c.l.b16 %v5242
        %v6534 = vunpack.c.h.b16 %v5242
        %v6535 = vunpack.c.l.b16 %v5243
        %v6536 = vunpack.c.h.b16 %v5243
        %v6537 = vunpack.c.l.b16 %v5244
        %v6538 = vunpack.c.h.b16 %v5244
        %v6539 = vunpack.c.l.b16 %v5245
        %v6540 = vunpack.c.h.b16 %v5245
        %v6541 = vunpack.c.l.b16 %v5246
        %v6542 = vunpack.c.h.b16 %v5246
        %v6543 = vunpack.c.l.b16 %v5247
        %v6544 = vunpack.c.h.b16 %v5247
        %v6545 = vunpack.c.l.b16 %v5248
        %v6546 = vunpack.c.h.b16 %v5248
        %v6547 = vunpack.c.l.b16 %v5249
        %v6548 = vunpack.c.h.b16 %v5249
        %v6549 = vunpack.c.l.b16 %v5250
        %v6550 = vunpack.c.h.b16 %v5250
        %v6551 = vunpack.c.l.b16 %v5251
        %v6552 = vunpack.c.h.b16 %v5251
        %v6553 = vunpack.c.l.b16 %v5252
        %v6554 = vunpack.c.h.b16 %v5252
        %v6555 = vunpack.c.l.b16 %v5253
        %v6556 = vunpack.c.h.b16 %v5253
        %v6557 = vunpack.c.l.b16 %v5254
        %v6558 = vunpack.c.h.b16 %v5254
        %v6559 = vunpack.c.l.b16 %v5255
        %v6560 = vunpack.c.h.b16 %v5255
        %v6561 = vunpack.c.l.b16 %v5256
        %v6562 = vunpack.c.h.b16 %v5256
        %v6563 = vunpack.c.l.b16 %v5257
        %v6564 = vunpack.c.h.b16 %v5257
        %v6565 = vunpack.c.l.b16 %v5258
        %v6566 = vunpack.c.h.b16 %v5258
        %v6567 = vunpack.c.l.b16 %v5259
        %v6568 = vunpack.c.h.b16 %v5259
        %v6569 = vunpack.c.l.b16 %v5260
        %v6570 = vunpack.c.h.b16 %v5260
        %v6571 = vunpack.c.l.b16 %v5261
        %v6572 = vunpack.c.h.b16 %v5261
        %v6573 = vunpack.c.l.b16 %v5262
        %v6574 = vunpack.c.h.b16 %v5262
        %v6575 = vunpack.c.l.b16 %v5263
        %v6576 = vunpack.c.h.b16 %v5263
        %v6577 = vunpack.c.l.b16 %v5264
        %v6578 = vunpack.c.h.b16 %v5264
        %v6579 = vunpack.c.l.b16 %v5265
        %v6580 = vunpack.c.h.b16 %v5265
        %v6581 = vunpack.c.l.b16 %v5266
        %v6582 = vunpack.c.h.b16 %v5266
        %v6583 = vunpack.c.l.b16 %v5267
        %v6584 = vunpack.c.h.b16 %v5267
        %v6585 = vunpack.c.l.b16 %v5268
        %v6586 = vunpack.c.h.b16 %v5268
        %v6587 = vunpack.c.l.b16 %v5269
        %v6588 = vunpack.c.h.b16 %v5269
        %v6589 = vunpack.c.l.b16 %v5270
        %v6590 = vunpack.c.h.b16 %v5270
        %v6591 = vunpack.c.l.b16 %v5271
        %v6592 = vunpack.c.h.b16 %v5271
        %v6593 = vunpack.c.l.b16 %v5272
        %v6594 = vunpack.c.h.b16 %v5272
        %v6595 = vunpack.c.l.b16 %v5273
        %v6596 = vunpack.c.h.b16 %v5273
        %v6597 = vunpack.c.l.b16 %v5274
        %v6598 = vunpack.c.h.b16 %v5274
        %v6599 = vunpack.c.l.b16 %v5275
        %v6600 = vunpack.c.h.b16 %v5275
        %v6601 = vunpack.c.l.b16 %v5276
        %v6602 = vunpack.c.h.b16 %v5276
        %v6603 = vunpack.c.l.b16 %v5277
        %v6604 = vunpack.c.h.b16 %v5277
        %v6605 = vunpack.c.l.b16 %v5278
        %v6606 = vunpack.c.h.b16 %v5278
        %v6607 = vunpack.c.l.b16 %v5279
        %v6608 = vunpack.c.h.b16 %v5279
        %v6609 = vunpack.c.l.b16 %v5280
        %v6610 = vunpack.c.h.b16 %v5280
        %v6611 = vunpack.c.l.b16 %v5281
        %v6612 = vunpack.c.h.b16 %v5281
        %v6613 = vunpack.c.l.b16 %v5282
        %v6614 = vunpack.c.h.b16 %v5282
        %v6615 = vunpack.c.l.b16 %v5283
        %v6616 = vunpack.c.h.b16 %v5283
        %v6617 = vunpack.c.l.b16 %v5284
        %v6618 = vunpack.c.h.b16 %v5284
        %v6619 = vunpack.c.l.b16 %v5285
        %v6620 = vunpack.c.h.b16 %v5285
        %v6621 = vunpack.c.l.b16 %v5286
        %v6622 = vunpack.c.h.b16 %v5286
        %v6623 = vunpack.c.l.b16 %v5287
        %v6624 = vunpack.c.h.b16 %v5287
        %v6625 = vunpack.c.l.b16 %v5288
        %v6626 = vunpack.c.h.b16 %v5288
        %v6627 = vunpack.c.l.b16 %v5289
        %v6628 = vunpack.c.h.b16 %v5289
        %v6629 = vunpack.c.l.b16 %v5290
        %v6630 = vunpack.c.h.b16 %v5290
        %v6631 = vunpack.c.l.b16 %v5291
        %v6632 = vunpack.c.h.b16 %v5291
        %v6633 = vunpack.c.l.b16 %v5292
        %v6634 = vunpack.c.h.b16 %v5292
        %v6635 = vunpack.c.l.b16 %v5293
        %v6636 = vunpack.c.h.b16 %v5293
        %v6637 = vunpack.c.l.b16 %v5294
        %v6638 = vunpack.c.h.b16 %v5294
        %v6639 = vunpack.c.l.b16 %v5295
        %v6640 = vunpack.c.h.b16 %v5295
        %v6641 = vunpack.c.l.b16 %v5296
        %v6642 = vunpack.c.h.b16 %v5296
        %v6643 = vunpack.c.l.b16 %v5297
        %v6644 = vunpack.c.h.b16 %v5297
        %v6645 = vunpack.c.l.b16 %v5298
        %v6646 = vunpack.c.h.b16 %v5298
        %v6647 = vunpack.c.l.b16 %v5299
        %v6648 = vunpack.c.h.b16 %v5299
        %v6649 = vunpack.c.l.b16 %v5300
        %v6650 = vunpack.c.h.b16 %v5300
        %v6651 = vunpack.c.l.b16 %v5301
        %v6652 = vunpack.c.h.b16 %v5301
        %v6653 = vunpack.c.l.b16 %v5302
        %v6654 = vunpack.c.h.b16 %v5302
        %v6655 = vunpack.c.l.b16 %v5303
        %v6656 = vunpack.c.h.b16 %v5303
        %v6657 = vunpack.c.l.b16 %v5304
        %v6658 = vunpack.c.h.b16 %v5304
        %v6659 = vunpack.c.l.b16 %v5305
        %v6660 = vunpack.c.h.b16 %v5305
        %v6661 = vunpack.c.l.b16 %v5306
        %v6662 = vunpack.c.h.b16 %v5306
        %v6663 = vunpack.c.l.b16 %v5307
        %v6664 = vunpack.c.h.b16 %v5307
        %v6665 = vunpack.c.l.b16 %v5308
        %v6666 = vunpack.c.h.b16 %v5308
        %v6667 = vunpack.c.l.b16 %v5309
        %v6668 = vunpack.c.h.b16 %v5309
        %v6669 = vunpack.c.l.b16 %v5310
        %v6670 = vunpack.c.h.b16 %v5310
        %v6671 = vunpack.c.l.b16 %v5311
        %v6672 = vunpack.c.h.b16 %v5311
        %v6673 = vunpack.c.l.b16 %v5312
        %v6674 = vunpack.c.h.b16 %v5312
        %v6675 = vunpack.c.l.b16 %v5313
        %v6676 = vunpack.c.h.b16 %v5313
        %v6677 = vunpack.c.l.b16 %v5314
        %v6678 = vunpack.c.h.b16 %v5314
        %v6679 = vunpack.c.l.b16 %v5315
        %v6680 = vunpack.c.h.b16 %v5315
        %v6681 = vunpack.c.l.b16 %v5316
        %v6682 = vunpack.c.h.b16 %v5316
        %v6683 = vunpack.c.l.b16 %v5317
        %v6684 = vunpack.c.h.b16 %v5317
        %v6685 = vunpack.c.l.b16 %v5318
        %v6686 = vunpack.c.h.b16 %v5318
        %v6687 = vunpack.c.l.b16 %v5319
        %v6688 = vunpack.c.h.b16 %v5319
        %v6689 = vunpack.c.l.b16 %v5320
        %v6690 = vunpack.c.h.b16 %v5320
        %v6691 = vunpack.c.l.b16 %v5321
        %v6692 = vunpack.c.h.b16 %v5321
        %v6693 = vunpack.c.l.b16 %v5322
        %v6694 = vunpack.c.h.b16 %v5322
        %v6695 = vunpack.c.l.b16 %v5323
        %v6696 = vunpack.c.h.b16 %v5323
        %v6697 = vunpack.c.l.b16 %v5324
        %v6698 = vunpack.c.h.b16 %v5324
        %v6699 = vunpack.c.l.b16 %v5325
        %v6700 = vunpack.c.h.b16 %v5325
        %v6701 = vunpack.c.l.b16 %v5326
        %v6702 = vunpack.c.h.b16 %v5326
        %v6703 = vunpack.c.l.b16 %v5327
        %v6704 = vunpack.c.h.b16 %v5327
        %v6705 = vunpack.c.l.b16 %v5328
        %v6706 = vunpack.c.h.b16 %v5328
        %v6707 = vunpack.c.l.b16 %v5329
        %v6708 = vunpack.c.h.b16 %v5329
        %v6709 = vunpack.c.l.b16 %v5330
        %v6710 = vunpack.c.h.b16 %v5330
        %v6711 = vunpack.c.l.b16 %v5331
        %v6712 = vunpack.c.h.b16 %v5331
        %v6713 = vunpack.c.l.b16 %v5332
        %v6714 = vunpack.c.h.b16 %v5332
        %v6715 = vunpack.c.l.b16 %v5333
        %v6716 = vunpack.c.h.b16 %v5333
        %v6717 = vunpack.c.l.b16 %v5334
        %v6718 = vunpack.c.h.b16 %v5334
        %v6719 = vunpack.c.l.b16 %v5335
        %v6720 = vunpack.c.h.b16 %v5335
        %v6721 = vunpack.c.l.b16 %v5336
        %v6722 = vunpack.c.h.b16 %v5336
        %v6723 = vunpack.c.l.b16 %v5337
        %v6724 = vunpack.c.h.b16 %v5337
        %v6725 = vunpack.c.l.b16 %v5338
        %v6726 = vunpack.c.h.b16 %v5338
        %v6727 = vunpack.c.l.b16 %v5339
        %v6728 = vunpack.c.h.b16 %v5339
        %v6729 = vunpack.c.l.b16 %v5340
        %v6730 = vunpack.c.h.b16 %v5340
        %v6731 = vunpack.c.l.b16 %v5341
        %v6732 = vunpack.c.h.b16 %v5341
        %v6733 = vunpack.c.l.b16 %v5342
        %v6734 = vunpack.c.h.b16 %v5342
        %v6735 = vunpack.c.l.b16 %v5343
        %v6736 = vunpack.c.h.b16 %v5343
        %v6737 = vunpack.c.l.b16 %v5344
        %v6738 = vunpack.c.h.b16 %v5344
        %v6739 = vunpack.c.l.b16 %v5345
        %v6740 = vunpack.c.h.b16 %v5345
        %v6741 = vunpack.c.l.b16 %v5346
        %v6742 = vunpack.c.h.b16 %v5346
        %v6743 = vunpack.c.l.b16 %v5347
        %v6744 = vunpack.c.h.b16 %v5347
        %v6745 = vunpack.c.l.b16 %v5348
        %v6746 = vunpack.c.h.b16 %v5348
        %v6747 = vunpack.c.l.b16 %v5349
        %v6748 = vunpack.c.h.b16 %v5349
        %v6749 = vunpack.c.l.b16 %v5350
        %v6750 = vunpack.c.h.b16 %v5350
        %v6751 = vunpack.c.l.b16 %v5351
        %v6752 = vunpack.c.h.b16 %v5351
        %v6753 = vunpack.c.l.b16 %v5352
        %v6754 = vunpack.c.h.b16 %v5352
        %v6755 = vunpack.c.l.b16 %v5353
        %v6756 = vunpack.c.h.b16 %v5353
        %v6757 = vunpack.c.l.b16 %v5354
        %v6758 = vunpack.c.h.b16 %v5354
        %v6759 = vunpack.c.l.b16 %v5355
        %v6760 = vunpack.c.h.b16 %v5355
        %v6761 = vunpack.c.l.b16 %v5356
        %v6762 = vunpack.c.h.b16 %v5356
        %v6763 = vunpack.c.l.b16 %v5357
        %v6764 = vunpack.c.h.b16 %v5357
        %v6765 = vunpack.c.l.b16 %v5358
        %v6766 = vunpack.c.h.b16 %v5358
        %v6767 = vunpack.c.l.b16 %v5359
        %v6768 = vunpack.c.h.b16 %v5359
        %v6769 = vunpack.c.l.b16 %v5360
        %v6770 = vunpack.c.h.b16 %v5360
        %v6771 = vunpack.c.l.b16 %v5361
        %v6772 = vunpack.c.h.b16 %v5361
        %v6773 = vunpack.c.l.b16 %v5362
        %v6774 = vunpack.c.h.b16 %v5362
        %v6775 = vunpack.c.l.b16 %v5363
        %v6776 = vunpack.c.h.b16 %v5363
        %v6777 = vunpack.c.l.b16 %v5364
        %v6778 = vunpack.c.h.b16 %v5364
        %v6779 = vunpack.c.l.b16 %v5365
        %v6780 = vunpack.c.h.b16 %v5365
        %v6781 = vunpack.c.l.b16 %v5366
        %v6782 = vunpack.c.h.b16 %v5366
        %v6783 = vunpack.c.l.b16 %v5367
        %v6784 = vunpack.c.h.b16 %v5367
        %v6785 = vunpack.c.l.b16 %v5368
        %v6786 = vunpack.c.h.b16 %v5368
        %v6787 = vunpack.c.l.b16 %v5369
        %v6788 = vunpack.c.h.b16 %v5369
        %v6789 = vunpack.c.l.b16 %v5370
        %v6790 = vunpack.c.h.b16 %v5370
        %v6791 = vunpack.c.l.b16 %v5371
        %v6792 = vunpack.c.h.b16 %v5371
        %v6793 = vunpack.c.l.b16 %v5372
        %v6794 = vunpack.c.h.b16 %v5372
        %v6795 = vunpack.c.l.b16 %v5373
        %v6796 = vunpack.c.h.b16 %v5373
        %v6797 = vunpack.c.l.b16 %v5374
        %v6798 = vunpack.c.h.b16 %v5374
        %v6799 = vunpack.c.l.b16 %v5375
        %v6800 = vunpack.c.h.b16 %v5375
        %v6801 = vunpack.c.l.b16 %v5376
        %v6802 = vunpack.c.h.b16 %v5376
        %v6803 = vunpack.c.l.b16 %v5377
        %v6804 = vunpack.c.h.b16 %v5377
        %v6805 = vunpack.c.l.b16 %v5378
        %v6806 = vunpack.c.h.b16 %v5378
        %v6807 = vunpack.c.l.b16 %v5379
        %v6808 = vunpack.c.h.b16 %v5379
        %v6809 = vunpack.c.l.b16 %v5380
        %v6810 = vunpack.c.h.b16 %v5380
        %v6811 = vunpack.c.l.b16 %v5381
        %v6812 = vunpack.c.h.b16 %v5381
        %v6813 = vunpack.c.l.b16 %v5382
        %v6814 = vunpack.c.h.b16 %v5382
        %v6815 = vunpack.c.l.b16 %v5383
        %v6816 = vunpack.c.h.b16 %v5383
        %v6817 = vunpack.c.l.b16 %v5384
        %v6818 = vunpack.c.h.b16 %v5384
        %v6819 = vunpack.c.l.b16 %v5385
        %v6820 = vunpack.c.h.b16 %v5385
        %v6821 = vunpack.c.l.b16 %v5386
        %v6822 = vunpack.c.h.b16 %v5386
        %v6823 = vunpack.c.l.b16 %v5387
        %v6824 = vunpack.c.h.b16 %v5387
        %v6825 = vunpack.c.l.b16 %v5388
        %v6826 = vunpack.c.h.b16 %v5388
        %v6827 = vunpack.c.l.b16 %v5389
        %v6828 = vunpack.c.h.b16 %v5389
        %v6829 = vunpack.c.l.b16 %v5390
        %v6830 = vunpack.c.h.b16 %v5390
        %v6831 = vunpack.c.l.b16 %v5391
        %v6832 = vunpack.c.h.b16 %v5391
        %v6833 = vunpack.c.l.b16 %v5392
        %v6834 = vunpack.c.h.b16 %v5392
        %v6835 = vunpack.c.l.b16 %v5393
        %v6836 = vunpack.c.h.b16 %v5393
        %v6837 = vunpack.c.l.b16 %v5394
        %v6838 = vunpack.c.h.b16 %v5394
        %v6839 = vunpack.c.l.b16 %v5395
        %v6840 = vunpack.c.h.b16 %v5395
        %v6841 = vunpack.c.l.b16 %v5396
        %v6842 = vunpack.c.h.b16 %v5396
        %v6843 = vunpack.c.l.b16 %v5397
        %v6844 = vunpack.c.h.b16 %v5397
        %v6845 = vunpack.c.l.b16 %v5398
        %v6846 = vunpack.c.h.b16 %v5398
        %v6847 = vunpack.c.l.b16 %v5399
        %v6848 = vunpack.c.h.b16 %v5399
        %v6849 = vunpack.c.l.b16 %v5400
        %v6850 = vunpack.c.h.b16 %v5400
        %v6851 = vunpack.c.l.b16 %v5401
        %v6852 = vunpack.c.h.b16 %v5401
        %v6853 = vunpack.c.l.b16 %v5402
        %v6854 = vunpack.c.h.b16 %v5402
        %v6855 = vunpack.c.l.b16 %v5403
        %v6856 = vunpack.c.h.b16 %v5403
        %v6857 = vunpack.c.l.b16 %v5404
        %v6858 = vunpack.c.h.b16 %v5404
        %v6859 = vunpack.c.l.b16 %v5405
        %v6860 = vunpack.c.h.b16 %v5405
        %v6861 = vunpack.c.l.b16 %v5406
        %v6862 = vunpack.c.h.b16 %v5406
        %v6863 = vunpack.c.l.b16 %v5407
        %v6864 = vunpack.c.h.b16 %v5407
        %v6865 = vunpack.c.l.b16 %v5408
        %v6866 = vunpack.c.h.b16 %v5408
        %v6867 = vunpack.c.l.b16 %v5409
        %v6868 = vunpack.c.h.b16 %v5409
        %v6869 = vunpack.c.l.b16 %v5410
        %v6870 = vunpack.c.h.b16 %v5410
        %v6871 = vunpack.c.l.b16 %v5411
        %v6872 = vunpack.c.h.b16 %v5411
        %v6873 = vunpack.c.l.b16 %v5412
        %v6874 = vunpack.c.h.b16 %v5412
        %v6875 = vunpack.c.l.b16 %v5413
        %v6876 = vunpack.c.h.b16 %v5413
        %v6877 = vunpack.c.l.b16 %v5414
        %v6878 = vunpack.c.h.b16 %v5414
        %v6879 = vunpack.c.l.b16 %v5415
        %v6880 = vunpack.c.h.b16 %v5415
        %v6881 = vunpack.c.l.b16 %v5416
        %v6882 = vunpack.c.h.b16 %v5416
        %v6883 = vunpack.c.l.b16 %v5417
        %v6884 = vunpack.c.h.b16 %v5417
        %v6885 = vunpack.c.l.b16 %v5418
        %v6886 = vunpack.c.h.b16 %v5418
        %v6887 = vunpack.c.l.b16 %v5419
        %v6888 = vunpack.c.h.b16 %v5419
        %v6889 = vunpack.c.l.b16 %v5420
        %v6890 = vunpack.c.h.b16 %v5420
        %v6891 = vunpack.c.l.b16 %v5421
        %v6892 = vunpack.c.h.b16 %v5421
        %v6893 = vunpack.c.l.b16 %v5422
        %v6894 = vunpack.c.h.b16 %v5422
        %v6895 = vunpack.c.l.b16 %v5423
        %v6896 = vunpack.c.h.b16 %v5423
        %v6897 = vunpack.c.l.b16 %v5424
        %v6898 = vunpack.c.h.b16 %v5424
        %v6899 = vunpack.c.l.b16 %v5425
        %v6900 = vunpack.c.h.b16 %v5425
        %v6901 = vunpack.c.l.b16 %v5426
        %v6902 = vunpack.c.h.b16 %v5426
        %v6903 = vunpack.c.l.b16 %v5427
        %v6904 = vunpack.c.h.b16 %v5427
        %v6905 = vunpack.c.l.b16 %v5428
        %v6906 = vunpack.c.h.b16 %v5428
        %v6907 = vunpack.c.l.b16 %v5429
        %v6908 = vunpack.c.h.b16 %v5429
        %v6909 = vunpack.c.l.b16 %v5430
        %v6910 = vunpack.c.h.b16 %v5430
        %v6911 = vunpack.c.l.b16 %v5431
        %v6912 = vunpack.c.h.b16 %v5431
        %v6913 = vunpack.c.l.b16 %v5432
        %v6914 = vunpack.c.h.b16 %v5432
        %v6915 = vunpack.c.l.b16 %v5433
        %v6916 = vunpack.c.h.b16 %v5433
        %v6917 = vunpack.c.l.b16 %v5434
        %v6918 = vunpack.c.h.b16 %v5434
        %v6919 = vunpack.c.l.b16 %v5435
        %v6920 = vunpack.c.h.b16 %v5435
        %v6921 = vunpack.c.l.b16 %v5436
        %v6922 = vunpack.c.h.b16 %v5436
        %v6923 = vunpack.c.l.b16 %v5437
        %v6924 = vunpack.c.h.b16 %v5437
        %v6925 = vunpack.c.l.b16 %v5438
        %v6926 = vunpack.c.h.b16 %v5438
        %v6927 = vunpack.c.l.b16 %v5439
        %v6928 = vunpack.c.h.b16 %v5439
        %v6929 = vunpack.c.l.b16 %v5440
        %v6930 = vunpack.c.h.b16 %v5440
        %v6931 = vunpack.c.l.b16 %v5441
        %v6932 = vunpack.c.h.b16 %v5441
        %v6933 = vunpack.c.l.b16 %v5442
        %v6934 = vunpack.c.h.b16 %v5442
        %v6935 = vunpack.c.l.b16 %v5443
        %v6936 = vunpack.c.h.b16 %v5443
        %v6937 = vunpack.c.l.b16 %v5444
        %v6938 = vunpack.c.h.b16 %v5444
        %v6939 = vunpack.c.l.b16 %v5445
        %v6940 = vunpack.c.h.b16 %v5445
        %v6941 = vunpack.c.l.b16 %v5446
        %v6942 = vunpack.c.h.b16 %v5446
        %v6943 = vunpack.c.l.b16 %v5447
        %v6944 = vunpack.c.h.b16 %v5447
        %v6945 = vunpack.c.l.b16 %v5448
        %v6946 = vunpack.c.h.b16 %v5448
        %v6947 = vunpack.c.l.b16 %v5449
        %v6948 = vunpack.c.h.b16 %v5449
        %v6949 = vunpack.c.l.b16 %v5450
        %v6950 = vunpack.c.h.b16 %v5450
        %v6951 = vunpack.c.l.b16 %v5451
        %v6952 = vunpack.c.h.b16 %v5451
        %v6953 = vunpack.c.l.b16 %v5452
        %v6954 = vunpack.c.h.b16 %v5452
        %v6955 = vunpack.c.l.b16 %v5453
        %v6956 = vunpack.c.h.b16 %v5453
        %v6957 = vunpack.c.l.b16 %v5454
        %v6958 = vunpack.c.h.b16 %v5454
        %v6959 = vunpack.c.l.b16 %v5455
        %v6960 = vunpack.c.h.b16 %v5455
        %v6961 = vunpack.c.l.b16 %v5456
        %v6962 = vunpack.c.h.b16 %v5456
        %v6963 = vunpack.c.l.b16 %v5457
        %v6964 = vunpack.c.h.b16 %v5457
        %v6965 = vunpack.c.l.b16 %v5458
        %v6966 = vunpack.c.h.b16 %v5458
        %v6967 = vunpack.c.l.b16 %v5459
        %v6968 = vunpack.c.h.b16 %v5459
        %v6969 = vunpack.c.l.b16 %v5460
        %v6970 = vunpack.c.h.b16 %v5460
        %v6971 = vunpack.c.l.b16 %v5461
        %v6972 = vunpack.c.h.b16 %v5461
        %v6973 = vunpack.c.l.b16 %v5462
        %v6974 = vunpack.c.h.b16 %v5462
        %v6975 = vunpack.c.l.b16 %v5463
        %v6976 = vunpack.c.h.b16 %v5463
        %v6977 = vunpack.c.l.b16 %v5464
        %v6978 = vunpack.c.h.b16 %v5464
        %v6979 = vunpack.c.l.b16 %v5465
        %v6980 = vunpack.c.h.b16 %v5465
        %v6981 = vunpack.c.l.b16 %v5466
        %v6982 = vunpack.c.h.b16 %v5466
        %v6983 = vunpack.c.l.b16 %v5467
        %v6984 = vunpack.c.h.b16 %v5467
        %v6985 = vunpack.c.l.b16 %v5468
        %v6986 = vunpack.c.h.b16 %v5468
        %v6987 = vunpack.c.l.b16 %v5469
        %v6988 = vunpack.c.h.b16 %v5469
        %v6989 = vunpack.c.l.b16 %v5470
        %v6990 = vunpack.c.h.b16 %v5470
        %v6991 = vunpack.c.l.b16 %v5471
        %v6992 = vunpack.c.h.b16 %v5471
        %v6993 = vunpack.c.l.b16 %v5472
        %v6994 = vunpack.c.h.b16 %v5472
        %v6995 = vunpack.c.l.b16 %v5473
        %v6996 = vunpack.c.h.b16 %v5473
        %v6997 = vunpack.c.l.b16 %v5474
        %v6998 = vunpack.c.h.b16 %v5474
        %v6999 = vunpack.c.l.b16 %v5475
        %v7000 = vunpack.c.h.b16 %v5475
        %v7001 = vunpack.c.l.b16 %v5476
        %v7002 = vunpack.c.h.b16 %v5476
        %v7003 = vunpack.c.l.b16 %v5477
        %v7004 = vunpack.c.h.b16 %v5477
        %v7005 = vunpack.c.l.b16 %v5478
        %v7006 = vunpack.c.h.b16 %v5478
        %v7007 = vunpack.c.l.b16 %v5479
        %v7008 = vunpack.c.h.b16 %v5479
        %v7009 = vunpack.c.l.b16 %v5480
        %v7010 = vunpack.c.h.b16 %v5480
        %v7011 = vunpack.c.l.b16 %v5481
        %v7012 = vunpack.c.h.b16 %v5481
        %v7013 = vunpack.c.l.b16 %v5482
        %v7014 = vunpack.c.h.b16 %v5482
        %v7015 = vunpack.c.l.b16 %v5483
        %v7016 = vunpack.c.h.b16 %v5483
        %v7017 = vunpack.c.l.b16 %v5484
        %v7018 = vunpack.c.h.b16 %v5484
        %v7019 = vunpack.c.l.b16 %v5485
        %v7020 = vunpack.c.h.b16 %v5485
        %v7021 = vunpack.c.l.b16 %v5486
        %v7022 = vunpack.c.h.b16 %v5486
        %v7023 = vunpack.c.l.b16 %v5487
        %v7024 = vunpack.c.h.b16 %v5487
        %v7025 = vunpack.c.l.b16 %v5488
        %v7026 = vunpack.c.h.b16 %v5488
        %v7027 = vunpack.c.l.b16 %v5489
        %v7028 = vunpack.c.h.b16 %v5489
        %v7029 = vunpack.c.l.b16 %v5490
        %v7030 = vunpack.c.h.b16 %v5490
        %v7031 = vunpack.c.l.b16 %v5491
        %v7032 = vunpack.c.h.b16 %v5491
        %v7033 = vunpack.c.l.b16 %v5492
        %v7034 = vunpack.c.h.b16 %v5492
        %v7035 = vunpack.c.l.b16 %v5493
        %v7036 = vunpack.c.h.b16 %v5493
        %v7037 = vunpack.c.l.b16 %v5494
        %v7038 = vunpack.c.h.b16 %v5494
        %v7039 = vunpack.c.l.b16 %v5495
        %v7040 = vunpack.c.h.b16 %v5495
        %v7041 = vunpack.c.l.b16 %v5496
        %v7042 = vunpack.c.h.b16 %v5496
        %v7043 = vunpack.c.l.b16 %v5497
        %v7044 = vunpack.c.h.b16 %v5497
        %v7045 = vunpack.c.l.b16 %v5498
        %v7046 = vunpack.c.h.b16 %v5498
        %v7047 = vunpack.c.l.b16 %v5499
        %v7048 = vunpack.c.h.b16 %v5499
        %v7049 = vunpack.c.l.b16 %v5500
        %v7050 = vunpack.c.h.b16 %v5500
        %v7051 = vunpack.c.l.b16 %v5501
        %v7052 = vunpack.c.h.b16 %v5501
        %v7053 = vunpack.c.l.b16 %v5502
        %v7054 = vunpack.c.h.b16 %v5502
        %v7055 = vunpack.c.l.b16 %v5503
        %v7056 = vunpack.c.h.b16 %v5503
        %v7057 = vunpack.c.l.b16 %v5504
        %v7058 = vunpack.c.h.b16 %v5504
        %v7059 = vunpack.c.l.b16 %v5505
        %v7060 = vunpack.c.h.b16 %v5505
        %v7061 = vunpack.c.l.b16 %v5506
        %v7062 = vunpack.c.h.b16 %v5506
        %v7063 = vunpack.c.l.b16 %v5507
        %v7064 = vunpack.c.h.b16 %v5507
        %v7065 = vunpack.c.l.b16 %v5508
        %v7066 = vunpack.c.h.b16 %v5508
        %v7067 = vunpack.c.l.b16 %v5509
        %v7068 = vunpack.c.h.b16 %v5509
        %v7069 = vunpack.c.l.b16 %v5510
        %v7070 = vunpack.c.h.b16 %v5510
        %v7071 = vunpack.c.l.b16 %v5511
        %v7072 = vunpack.c.h.b16 %v5511
        %v7073 = vunpack.c.l.b16 %v5512
        %v7074 = vunpack.c.h.b16 %v5512
        %v7075 = vunpack.c.l.b16 %v5513
        %v7076 = vunpack.c.h.b16 %v5513
        %v7077 = vunpack.c.l.b16 %v5514
        %v7078 = vunpack.c.h.b16 %v5514
        %v7079 = vunpack.c.l.b16 %v5515
        %v7080 = vunpack.c.h.b16 %v5515
        %v7081 = vunpack.c.l.b16 %v5516
        %v7082 = vunpack.c.h.b16 %v5516
        %v7083 = vunpack.c.l.b16 %v5517
        %v7084 = vunpack.c.h.b16 %v5517
        %v7085 = vunpack.c.l.b16 %v5518
        %v7086 = vunpack.c.h.b16 %v5518
        %v7087 = vunpack.c.l.b16 %v5519
        %v7088 = vunpack.c.h.b16 %v5519
        %v7089 = vunpack.c.l.b16 %v5520
        %v7090 = vunpack.c.h.b16 %v5520
        %v7091 = vunpack.c.l.b16 %v5521
        %v7092 = vunpack.c.h.b16 %v5521
        %v7093 = vunpack.c.l.b16 %v5522
        %v7094 = vunpack.c.h.b16 %v5522
        %v7095 = vunpack.c.l.b16 %v5523
        %v7096 = vunpack.c.h.b16 %v5523
        %v7097 = vunpack.c.l.b16 %v5524
        %v7098 = vunpack.c.h.b16 %v5524
        %v7099 = vunpack.c.l.b16 %v5525
        %v7100 = vunpack.c.h.b16 %v5525
        %v7101 = vunpack.c.l.b16 %v5526
        %v7102 = vunpack.c.h.b16 %v5526
        %v7103 = vunpack.c.l.b16 %v5527
        %v7104 = vunpack.c.h.b16 %v5527
        %v7105 = vpack.c.b16 %v6089, %v6081
        %v7106 = vpack.c.b16 %v6090, %v6082
        %v7107 = vpack.c.b16 %v6091, %v6083
        %v7108 = vpack.c.b16 %v6092, %v6084
        %v7109 = vpack.c.b16 %v6093, %v6085
        %v7110 = vpack.c.b16 %v6094, %v6086
        %v7111 = vpack.c.b16 %v6095, %v6087
        %v7112 = vpack.c.b16 %v6096, %v6088
        %v7113 = vpack.c.b16 %v6105, %v6097
        %v7114 = vpack.c.b16 %v6106, %v6098
        %v7115 = vpack.c.b16 %v6107, %v6099
        %v7116 = vpack.c.b16 %v6108, %v6100
        %v7117 = vpack.c.b16 %v6109, %v6101
        %v7118 = vpack.c.b16 %v6110, %v6102
        %v7119 = vpack.c.b16 %v6111, %v6103
        %v7120 = vpack.c.b16 %v6112, %v6104
        %v7121 = vpack.c.b16 %v6121, %v6113
        %v7122 = vpack.c.b16 %v6122, %v6114
        %v7123 = vpack.c.b16 %v6123, %v6115
        %v7124 = vpack.c.b16 %v6124, %v6116
        %v7125 = vpack.c.b16 %v6125, %v6117
        %v7126 = vpack.c.b16 %v6126, %v6118
        %v7127 = vpack.c.b16 %v6127, %v6119
        %v7128 = vpack.c.b16 %v6128, %v6120
        %v7129 = vpack.c.b16 %v6137, %v6129
        %v7130 = vpack.c.b16 %v6138, %v6130
        %v7131 = vpack.c.b16 %v6139, %v6131
        %v7132 = vpack.c.b16 %v6140, %v6132
        %v7133 = vpack.c.b16 %v6141, %v6133
        %v7134 = vpack.c.b16 %v6142, %v6134
        %v7135 = vpack.c.b16 %v6143, %v6135
        %v7136 = vpack.c.b16 %v6144, %v6136
        %v7137 = vpack.c.b16 %v6153, %v6145
        %v7138 = vpack.c.b16 %v6154, %v6146
        %v7139 = vpack.c.b16 %v6155, %v6147
        %v7140 = vpack.c.b16 %v6156, %v6148
        %v7141 = vpack.c.b16 %v6157, %v6149
        %v7142 = vpack.c.b16 %v6158, %v6150
        %v7143 = vpack.c.b16 %v6159, %v6151
        %v7144 = vpack.c.b16 %v6160, %v6152
        %v7145 = vpack.c.b16 %v6169, %v6161
        %v7146 = vpack.c.b16 %v6170, %v6162
        %v7147 = vpack.c.b16 %v6171, %v6163
        %v7148 = vpack.c.b16 %v6172, %v6164
        %v7149 = vpack.c.b16 %v6173, %v6165
        %v7150 = vpack.c.b16 %v6174, %v6166
        %v7151 = vpack.c.b16 %v6175, %v6167
        %v7152 = vpack.c.b16 %v6176, %v6168
        %v7153 = vpack.c.b16 %v6185, %v6177
        %v7154 = vpack.c.b16 %v6186, %v6178
        %v7155 = vpack.c.b16 %v6187, %v6179
        %v7156 = vpack.c.b16 %v6188, %v6180
        %v7157 = vpack.c.b16 %v6189, %v6181
        %v7158 = vpack.c.b16 %v6190, %v6182
        %v7159 = vpack.c.b16 %v6191, %v6183
        %v7160 = vpack.c.b16 %v6192, %v6184
        %v7161 = vpack.c.b16 %v6201, %v6193
        %v7162 = vpack.c.b16 %v6202, %v6194
        %v7163 = vpack.c.b16 %v6203, %v6195
        %v7164 = vpack.c.b16 %v6204, %v6196
        %v7165 = vpack.c.b16 %v6205, %v6197
        %v7166 = vpack.c.b16 %v6206, %v6198
        %v7167 = vpack.c.b16 %v6207, %v6199
        %v7168 = vpack.c.b16 %v6208, %v6200
        %v7169 = vpack.c.b16 %v6217, %v6209
        %v7170 = vpack.c.b16 %v6218, %v6210
        %v7171 = vpack.c.b16 %v6219, %v6211
        %v7172 = vpack.c.b16 %v6220, %v6212
        %v7173 = vpack.c.b16 %v6221, %v6213
        %v7174 = vpack.c.b16 %v6222, %v6214
        %v7175 = vpack.c.b16 %v6223, %v6215
        %v7176 = vpack.c.b16 %v6224, %v6216
        %v7177 = vpack.c.b16 %v6233, %v6225
        %v7178 = vpack.c.b16 %v6234, %v6226
        %v7179 = vpack.c.b16 %v6235, %v6227
        %v7180 = vpack.c.b16 %v6236, %v6228
        %v7181 = vpack.c.b16 %v6237, %v6229
        %v7182 = vpack.c.b16 %v6238, %v6230
        %v7183 = vpack.c.b16 %v6239, %v6231
        %v7184 = vpack.c.b16 %v6240, %v6232
        %v7185 = vpack.c.b16 %v6249, %v6241
        %v7186 = vpack.c.b16 %v6250, %v6242
        %v7187 = vpack.c.b16 %v6251, %v6243
        %v7188 = vpack.c.b16 %v6252, %v6244
        %v7189 = vpack.c.b16 %v6253, %v6245
        %v7190 = vpack.c.b16 %v6254, %v6246
        %v7191 = vpack.c.b16 %v6255, %v6247
        %v7192 = vpack.c.b16 %v6256, %v6248
        %v7193 = vpack.c.b16 %v6265, %v6257
        %v7194 = vpack.c.b16 %v6266, %v6258
        %v7195 = vpack.c.b16 %v6267, %v6259
        %v7196 = vpack.c.b16 %v6268, %v6260
        %v7197 = vpack.c.b16 %v6269, %v6261
        %v7198 = vpack.c.b16 %v6270, %v6262
        %v7199 = vpack.c.b16 %v6271, %v6263
        %v7200 = vpack.c.b16 %v6272, %v6264
        %v7201 = vpack.c.b16 %v6281, %v6273
        %v7202 = vpack.c.b16 %v6282, %v6274
        %v7203 = vpack.c.b16 %v6283, %v6275
        %v7204 = vpack.c.b16 %v6284, %v6276
        %v7205 = vpack.c.b16 %v6285, %v6277
        %v7206 = vpack.c.b16 %v6286, %v6278
        %v7207 = vpack.c.b16 %v6287, %v6279
        %v7208 = vpack.c.b16 %v6288, %v6280
        %v7209 = vpack.c.b16 %v6297, %v6289
        %v7210 = vpack.c.b16 %v6298, %v6290
        %v7211 = vpack.c.b16 %v6299, %v6291
        %v7212 = vpack.c.b16 %v6300, %v6292
        %v7213 = vpack.c.b16 %v6301, %v6293
        %v7214 = vpack.c.b16 %v6302, %v6294
        %v7215 = vpack.c.b16 %v6303, %v6295
        %v7216 = vpack.c.b16 %v6304, %v6296
        %v7217 = vpack.c.b16 %v6313, %v6305
        %v7218 = vpack.c.b16 %v6314, %v6306
        %v7219 = vpack.c.b16 %v6315, %v6307
        %v7220 = vpack.c.b16 %v6316, %v6308
        %v7221 = vpack.c.b16 %v6317, %v6309
        %v7222 = vpack.c.b16 %v6318, %v6310
        %v7223 = vpack.c.b16 %v6319, %v6311
        %v7224 = vpack.c.b16 %v6320, %v6312
        %v7225 = vpack.c.b16 %v6329, %v6321
        %v7226 = vpack.c.b16 %v6330, %v6322
        %v7227 = vpack.c.b16 %v6331, %v6323
        %v7228 = vpack.c.b16 %v6332, %v6324
        %v7229 = vpack.c.b16 %v6333, %v6325
        %v7230 = vpack.c.b16 %v6334, %v6326
        %v7231 = vpack.c.b16 %v6335, %v6327
        %v7232 = vpack.c.b16 %v6336, %v6328
        %v7233 = vpack.c.b16 %v6345, %v6337
        %v7234 = vpack.c.b16 %v6346, %v6338
        %v7235 = vpack.c.b16 %v6347, %v6339
        %v7236 = vpack.c.b16 %v6348, %v6340
        %v7237 = vpack.c.b16 %v6349, %v6341
        %v7238 = vpack.c.b16 %v6350, %v6342
        %v7239 = vpack.c.b16 %v6351, %v6343
        %v7240 = vpack.c.b16 %v6352, %v6344
        %v7241 = vpack.c.b16 %v6361, %v6353
        %v7242 = vpack.c.b16 %v6362, %v6354
        %v7243 = vpack.c.b16 %v6363, %v6355
        %v7244 = vpack.c.b16 %v6364, %v6356
        %v7245 = vpack.c.b16 %v6365, %v6357
        %v7246 = vpack.c.b16 %v6366, %v6358
        %v7247 = vpack.c.b16 %v6367, %v6359
        %v7248 = vpack.c.b16 %v6368, %v6360
        %v7249 = vpack.c.b16 %v6377, %v6369
        %v7250 = vpack.c.b16 %v6378, %v6370
        %v7251 = vpack.c.b16 %v6379, %v6371
        %v7252 = vpack.c.b16 %v6380, %v6372
        %v7253 = vpack.c.b16 %v6381, %v6373
        %v7254 = vpack.c.b16 %v6382, %v6374
        %v7255 = vpack.c.b16 %v6383, %v6375
        %v7256 = vpack.c.b16 %v6384, %v6376
        %v7257 = vpack.c.b16 %v6393, %v6385
        %v7258 = vpack.c.b16 %v6394, %v6386
        %v7259 = vpack.c.b16 %v6395, %v6387
        %v7260 = vpack.c.b16 %v6396, %v6388
        %v7261 = vpack.c.b16 %v6397, %v6389
        %v7262 = vpack.c.b16 %v6398, %v6390
        %v7263 = vpack.c.b16 %v6399, %v6391
        %v7264 = vpack.c.b16 %v6400, %v6392
        %v7265 = vpack.c.b16 %v6409, %v6401
        %v7266 = vpack.c.b16 %v6410, %v6402
        %v7267 = vpack.c.b16 %v6411, %v6403
        %v7268 = vpack.c.b16 %v6412, %v6404
        %v7269 = vpack.c.b16 %v6413, %v6405
        %v7270 = vpack.c.b16 %v6414, %v6406
        %v7271 = vpack.c.b16 %v6415, %v6407
        %v7272 = vpack.c.b16 %v6416, %v6408
        %v7273 = vpack.c.b16 %v6425, %v6417
        %v7274 = vpack.c.b16 %v6426, %v6418
        %v7275 = vpack.c.b16 %v6427, %v6419
        %v7276 = vpack.c.b16 %v6428, %v6420
        %v7277 = vpack.c.b16 %v6429, %v6421
        %v7278 = vpack.c.b16 %v6430, %v6422
        %v7279 = vpack.c.b16 %v6431, %v6423
        %v7280 = vpack.c.b16 %v6432, %v6424
        %v7281 = vpack.c.b16 %v6441, %v6433
        %v7282 = vpack.c.b16 %v6442, %v6434
        %v7283 = vpack.c.b16 %v6443, %v6435
        %v7284 = vpack.c.b16 %v6444, %v6436
        %v7285 = vpack.c.b16 %v6445, %v6437
        %v7286 = vpack.c.b16 %v6446, %v6438
        %v7287 = vpack.c.b16 %v6447, %v6439
        %v7288 = vpack.c.b16 %v6448, %v6440
        %v7289 = vpack.c.b16 %v6457, %v6449
        %v7290 = vpack.c.b16 %v6458, %v6450
        %v7291 = vpack.c.b16 %v6459, %v6451
        %v7292 = vpack.c.b16 %v6460, %v6452
        %v7293 = vpack.c.b16 %v6461, %v6453
        %v7294 = vpack.c.b16 %v6462, %v6454
        %v7295 = vpack.c.b16 %v6463, %v6455
        %v7296 = vpack.c.b16 %v6464, %v6456
        %v7297 = vpack.c.b16 %v6473, %v6465
        %v7298 = vpack.c.b16 %v6474, %v6466
        %v7299 = vpack.c.b16 %v6475, %v6467
        %v7300 = vpack.c.b16 %v6476, %v6468
        %v7301 = vpack.c.b16 %v6477, %v6469
        %v7302 = vpack.c.b16 %v6478, %v6470
        %v7303 = vpack.c.b16 %v6479, %v6471
        %v7304 = vpack.c.b16 %v6480, %v6472
        %v7305 = vpack.c.b16 %v6489, %v6481
        %v7306 = vpack.c.b16 %v6490, %v6482
        %v7307 = vpack.c.b16 %v6491, %v6483
        %v7308 = vpack.c.b16 %v6492, %v6484
        %v7309 = vpack.c.b16 %v6493, %v6485
        %v7310 = vpack.c.b16 %v6494, %v6486
        %v7311 = vpack.c.b16 %v6495, %v6487
        %v7312 = vpack.c.b16 %v6496, %v6488
        %v7313 = vpack.c.b16 %v6505, %v6497
        %v7314 = vpack.c.b16 %v6506, %v6498
        %v7315 = vpack.c.b16 %v6507, %v6499
        %v7316 = vpack.c.b16 %v6508, %v6500
        %v7317 = vpack.c.b16 %v6509, %v6501
        %v7318 = vpack.c.b16 %v6510, %v6502
        %v7319 = vpack.c.b16 %v6511, %v6503
        %v7320 = vpack.c.b16 %v6512, %v6504
        %v7321 = vpack.c.b16 %v6521, %v6513
        %v7322 = vpack.c.b16 %v6522, %v6514
        %v7323 = vpack.c.b16 %v6523, %v6515
        %v7324 = vpack.c.b16 %v6524, %v6516
        %v7325 = vpack.c.b16 %v6525, %v6517
        %v7326 = vpack.c.b16 %v6526, %v6518
        %v7327 = vpack.c.b16 %v6527, %v6519
        %v7328 = vpack.c.b16 %v6528, %v6520
        %v7329 = vpack.c.b16 %v6537, %v6529
        %v7330 = vpack.c.b16 %v6538, %v6530
        %v7331 = vpack.c.b16 %v6539, %v6531
        %v7332 = vpack.c.b16 %v6540, %v6532
        %v7333 = vpack.c.b16 %v6541, %v6533
        %v7334 = vpack.c.b16 %v6542, %v6534
        %v7335 = vpack.c.b16 %v6543, %v6535
        %v7336 = vpack.c.b16 %v6544, %v6536
        %v7337 = vpack.c.b16 %v6553, %v6545
        %v7338 = vpack.c.b16 %v6554, %v6546
        %v7339 = vpack.c.b16 %v6555, %v6547
        %v7340 = vpack.c.b16 %v6556, %v6548
        %v7341 = vpack.c.b16 %v6557, %v6549
        %v7342 = vpack.c.b16 %v6558, %v6550
        %v7343 = vpack.c.b16 %v6559, %v6551
        %v7344 = vpack.c.b16 %v6560, %v6552
        %v7345 = vpack.c.b16 %v6569, %v6561
        %v7346 = vpack.c.b16 %v6570, %v6562
        %v7347 = vpack.c.b16 %v6571, %v6563
        %v7348 = vpack.c.b16 %v6572, %v6564
        %v7349 = vpack.c.b16 %v6573, %v6565
        %v7350 = vpack.c.b16 %v6574, %v6566
        %v7351 = vpack.c.b16 %v6575, %v6567
        %v7352 = vpack.c.b16 %v6576, %v6568
        %v7353 = vpack.c.b16 %v6585, %v6577
        %v7354 = vpack.c.b16 %v6586, %v6578
        %v7355 = vpack.c.b16 %v6587, %v6579
        %v7356 = vpack.c.b16 %v6588, %v6580
        %v7357 = vpack.c.b16 %v6589, %v6581
        %v7358 = vpack.c.b16 %v6590, %v6582
        %v7359 = vpack.c.b16 %v6591, %v6583
        %v7360 = vpack.c.b16 %v6592, %v6584
        %v7361 = vpack.c.b16 %v6601, %v6593
        %v7362 = vpack.c.b16 %v6602, %v6594
        %v7363 = vpack.c.b16 %v6603, %v6595
        %v7364 = vpack.c.b16 %v6604, %v6596
        %v7365 = vpack.c.b16 %v6605, %v6597
        %v7366 = vpack.c.b16 %v6606, %v6598
        %v7367 = vpack.c.b16 %v6607, %v6599
        %v7368 = vpack.c.b16 %v6608, %v6600
        %v7369 = vpack.c.b16 %v6617, %v6609
        %v7370 = vpack.c.b16 %v6618, %v6610
        %v7371 = vpack.c.b16 %v6619, %v6611
        %v7372 = vpack.c.b16 %v6620, %v6612
        %v7373 = vpack.c.b16 %v6621, %v6613
        %v7374 = vpack.c.b16 %v6622, %v6614
        %v7375 = vpack.c.b16 %v6623, %v6615
        %v7376 = vpack.c.b16 %v6624, %v6616
        %v7377 = vpack.c.b16 %v6633, %v6625
        %v7378 = vpack.c.b16 %v6634, %v6626
        %v7379 = vpack.c.b16 %v6635, %v6627
        %v7380 = vpack.c.b16 %v6636, %v6628
        %v7381 = vpack.c.b16 %v6637, %v6629
        %v7382 = vpack.c.b16 %v6638, %v6630
        %v7383 = vpack.c.b16 %v6639, %v6631
        %v7384 = vpack.c.b16 %v6640, %v6632
        %v7385 = vpack.c.b16 %v6649, %v6641
        %v7386 = vpack.c.b16 %v6650, %v6642
        %v7387 = vpack.c.b16 %v6651, %v6643
        %v7388 = vpack.c.b16 %v6652, %v6644
        %v7389 = vpack.c.b16 %v6653, %v6645
        %v7390 = vpack.c.b16 %v6654, %v6646
        %v7391 = vpack.c.b16 %v6655, %v6647
        %v7392 = vpack.c.b16 %v6656, %v6648
        %v7393 = vpack.c.b16 %v6665, %v6657
        %v7394 = vpack.c.b16 %v6666, %v6658
        %v7395 = vpack.c.b16 %v6667, %v6659
        %v7396 = vpack.c.b16 %v6668, %v6660
        %v7397 = vpack.c.b16 %v6669, %v6661
        %v7398 = vpack.c.b16 %v6670, %v6662
        %v7399 = vpack.c.b16 %v6671, %v6663
        %v7400 = vpack.c.b16 %v6672, %v6664
        %v7401 = vpack.c.b16 %v6681, %v6673
        %v7402 = vpack.c.b16 %v6682, %v6674
        %v7403 = vpack.c.b16 %v6683, %v6675
        %v7404 = vpack.c.b16 %v6684, %v6676
        %v7405 = vpack.c.b16 %v6685, %v6677
        %v7406 = vpack.c.b16 %v6686, %v6678
        %v7407 = vpack.c.b16 %v6687, %v6679
        %v7408 = vpack.c.b16 %v6688, %v6680
        %v7409 = vpack.c.b16 %v6697, %v6689
        %v7410 = vpack.c.b16 %v6698, %v6690
        %v7411 = vpack.c.b16 %v6699, %v6691
        %v7412 = vpack.c.b16 %v6700, %v6692
        %v7413 = vpack.c.b16 %v6701, %v6693
        %v7414 = vpack.c.b16 %v6702, %v6694
        %v7415 = vpack.c.b16 %v6703, %v6695
        %v7416 = vpack.c.b16 %v6704, %v6696
        %v7417 = vpack.c.b16 %v6713, %v6705
        %v7418 = vpack.c.b16 %v6714, %v6706
        %v7419 = vpack.c.b16 %v6715, %v6707
        %v7420 = vpack.c.b16 %v6716, %v6708
        %v7421 = vpack.c.b16 %v6717, %v6709
        %v7422 = vpack.c.b16 %v6718, %v6710
        %v7423 = vpack.c.b16 %v6719, %v6711
        %v7424 = vpack.c.b16 %v6720, %v6712
        %v7425 = vpack.c.b16 %v6729, %v6721
        %v7426 = vpack.c.b16 %v6730, %v6722
        %v7427 = vpack.c.b16 %v6731, %v6723
        %v7428 = vpack.c.b16 %v6732, %v6724
        %v7429 = vpack.c.b16 %v6733, %v6725
        %v7430 = vpack.c.b16 %v6734, %v6726
        %v7431 = vpack.c.b16 %v6735, %v6727
        %v7432 = vpack.c.b16 %v6736, %v6728
        %v7433 = vpack.c.b16 %v6745, %v6737
        %v7434 = vpack.c.b16 %v6746, %v6738
        %v7435 = vpack.c.b16 %v6747, %v6739
        %v7436 = vpack.c.b16 %v6748, %v6740
        %v7437 = vpack.c.b16 %v6749, %v6741
        %v7438 = vpack.c.b16 %v6750, %v6742
        %v7439 = vpack.c.b16 %v6751, %v6743
        %v7440 = vpack.c.b16 %v6752, %v6744
        %v7441 = vpack.c.b16 %v6761, %v6753
        %v7442 = vpack.c.b16 %v6762, %v6754
        %v7443 = vpack.c.b16 %v6763, %v6755
        %v7444 = vpack.c.b16 %v6764, %v6756
        %v7445 = vpack.c.b16 %v6765, %v6757
        %v7446 = vpack.c.b16 %v6766, %v6758
        %v7447 = vpack.c.b16 %v6767, %v6759
        %v7448 = vpack.c.b16 %v6768, %v6760
        %v7449 = vpack.c.b16 %v6777, %v6769
        %v7450 = vpack.c.b16 %v6778, %v6770
        %v7451 = vpack.c.b16 %v6779, %v6771
        %v7452 = vpack.c.b16 %v6780, %v6772
        %v7453 = vpack.c.b16 %v6781, %v6773
        %v7454 = vpack.c.b16 %v6782, %v6774
        %v7455 = vpack.c.b16 %v6783, %v6775
        %v7456 = vpack.c.b16 %v6784, %v6776
        %v7457 = vpack.c.b16 %v6793, %v6785
        %v7458 = vpack.c.b16 %v6794, %v6786
        %v7459 = vpack.c.b16 %v6795, %v6787
        %v7460 = vpack.c.b16 %v6796, %v6788
        %v7461 = vpack.c.b16 %v6797, %v6789
        %v7462 = vpack.c.b16 %v6798, %v6790
        %v7463 = vpack.c.b16 %v6799, %v6791
        %v7464 = vpack.c.b16 %v6800, %v6792
        %v7465 = vpack.c.b16 %v6809, %v6801
        %v7466 = vpack.c.b16 %v6810, %v6802
        %v7467 = vpack.c.b16 %v6811, %v6803
        %v7468 = vpack.c.b16 %v6812, %v6804
        %v7469 = vpack.c.b16 %v6813, %v6805
        %v7470 = vpack.c.b16 %v6814, %v6806
        %v7471 = vpack.c.b16 %v6815, %v6807
        %v7472 = vpack.c.b16 %v6816, %v6808
        %v7473 = vpack.c.b16 %v6825, %v6817
        %v7474 = vpack.c.b16 %v6826, %v6818
        %v7475 = vpack.c.b16 %v6827, %v6819
        %v7476 = vpack.c.b16 %v6828, %v6820
        %v7477 = vpack.c.b16 %v6829, %v6821
        %v7478 = vpack.c.b16 %v6830, %v6822
        %v7479 = vpack.c.b16 %v6831, %v6823
        %v7480 = vpack.c.b16 %v6832, %v6824
        %v7481 = vpack.c.b16 %v6841, %v6833
        %v7482 = vpack.c.b16 %v6842, %v6834
        %v7483 = vpack.c.b16 %v6843, %v6835
        %v7484 = vpack.c.b16 %v6844, %v6836
        %v7485 = vpack.c.b16 %v6845, %v6837
        %v7486 = vpack.c.b16 %v6846, %v6838
        %v7487 = vpack.c.b16 %v6847, %v6839
        %v7488 = vpack.c.b16 %v6848, %v6840
        %v7489 = vpack.c.b16 %v6857, %v6849
        %v7490 = vpack.c.b16 %v6858, %v6850
        %v7491 = vpack.c.b16 %v6859, %v6851
        %v7492 = vpack.c.b16 %v6860, %v6852
        %v7493 = vpack.c.b16 %v6861, %v6853
        %v7494 = vpack.c.b16 %v6862, %v6854
        %v7495 = vpack.c.b16 %v6863, %v6855
        %v7496 = vpack.c.b16 %v6864, %v6856
        %v7497 = vpack.c.b16 %v6873, %v6865
        %v7498 = vpack.c.b16 %v6874, %v6866
        %v7499 = vpack.c.b16 %v6875, %v6867
        %v7500 = vpack.c.b16 %v6876, %v6868
        %v7501 = vpack.c.b16 %v6877, %v6869
        %v7502 = vpack.c.b16 %v6878, %v6870
        %v7503 = vpack.c.b16 %v6879, %v6871
        %v7504 = vpack.c.b16 %v6880, %v6872
        %v7505 = vpack.c.b16 %v6889, %v6881
        %v7506 = vpack.c.b16 %v6890, %v6882
        %v7507 = vpack.c.b16 %v6891, %v6883
        %v7508 = vpack.c.b16 %v6892, %v6884
        %v7509 = vpack.c.b16 %v6893, %v6885
        %v7510 = vpack.c.b16 %v6894, %v6886
        %v7511 = vpack.c.b16 %v6895, %v6887
        %v7512 = vpack.c.b16 %v6896, %v6888
        %v7513 = vpack.c.b16 %v6905, %v6897
        %v7514 = vpack.c.b16 %v6906, %v6898
        %v7515 = vpack.c.b16 %v6907, %v6899
        %v7516 = vpack.c.b16 %v6908, %v6900
        %v7517 = vpack.c.b16 %v6909, %v6901
        %v7518 = vpack.c.b16 %v6910, %v6902
        %v7519 = vpack.c.b16 %v6911, %v6903
        %v7520 = vpack.c.b16 %v6912, %v6904
        %v7521 = vpack.c.b16 %v6921, %v6913
        %v7522 = vpack.c.b16 %v6922, %v6914
        %v7523 = vpack.c.b16 %v6923, %v6915
        %v7524 = vpack.c.b16 %v6924, %v6916
        %v7525 = vpack.c.b16 %v6925, %v6917
        %v7526 = vpack.c.b16 %v6926, %v6918
        %v7527 = vpack.c.b16 %v6927, %v6919
        %v7528 = vpack.c.b16 %v6928, %v6920
        %v7529 = vpack.c.b16 %v6937, %v6929
        %v7530 = vpack.c.b16 %v6938, %v6930
        %v7531 = vpack.c.b16 %v6939, %v6931
        %v7532 = vpack.c.b16 %v6940, %v6932
        %v7533 = vpack.c.b16 %v6941, %v6933
        %v7534 = vpack.c.b16 %v6942, %v6934
        %v7535 = vpack.c.b16 %v6943, %v6935
        %v7536 = vpack.c.b16 %v6944, %v6936
        %v7537 = vpack.c.b16 %v6953, %v6945
        %v7538 = vpack.c.b16 %v6954, %v6946
        %v7539 = vpack.c.b16 %v6955, %v6947
        %v7540 = vpack.c.b16 %v6956, %v6948
        %v7541 = vpack.c.b16 %v6957, %v6949
        %v7542 = vpack.c.b16 %v6958, %v6950
        %v7543 = vpack.c.b16 %v6959, %v6951
        %v7544 = vpack.c.b16 %v6960, %v6952
        %v7545 = vpack.c.b16 %v6969, %v6961
        %v7546 = vpack.c.b16 %v6970, %v6962
        %v7547 = vpack.c.b16 %v6971, %v6963
        %v7548 = vpack.c.b16 %v6972, %v6964
        %v7549 = vpack.c.b16 %v6973, %v6965
        %v7550 = vpack.c.b16 %v6974, %v6966
        %v7551 = vpack.c.b16 %v6975, %v6967
        %v7552 = vpack.c.b16 %v6976, %v6968
        %v7553 = vpack.c.b16 %v6985, %v6977
        %v7554 = vpack.c.b16 %v6986, %v6978
        %v7555 = vpack.c.b16 %v6987, %v6979
        %v7556 = vpack.c.b16 %v6988, %v6980
        %v7557 = vpack.c.b16 %v6989, %v6981
        %v7558 = vpack.c.b16 %v6990, %v6982
        %v7559 = vpack.c.b16 %v6991, %v6983
        %v7560 = vpack.c.b16 %v6992, %v6984
        %v7561 = vpack.c.b16 %v7001, %v6993
        %v7562 = vpack.c.b16 %v7002, %v6994
        %v7563 = vpack.c.b16 %v7003, %v6995
        %v7564 = vpack.c.b16 %v7004, %v6996
        %v7565 = vpack.c.b16 %v7005, %v6997
        %v7566 = vpack.c.b16 %v7006, %v6998
        %v7567 = vpack.c.b16 %v7007, %v6999
        %v7568 = vpack.c.b16 %v7008, %v7000
        %v7569 = vpack.c.b16 %v7017, %v7009
        %v7570 = vpack.c.b16 %v7018, %v7010
        %v7571 = vpack.c.b16 %v7019, %v7011
        %v7572 = vpack.c.b16 %v7020, %v7012
        %v7573 = vpack.c.b16 %v7021, %v7013
        %v7574 = vpack.c.b16 %v7022, %v7014
        %v7575 = vpack.c.b16 %v7023, %v7015
        %v7576 = vpack.c.b16 %v7024, %v7016
        %v7577 = vpack.c.b16 %v7033, %v7025
        %v7578 = vpack.c.b16 %v7034, %v7026
        %v7579 = vpack.c.b16 %v7035, %v7027
        %v7580 = vpack.c.b16 %v7036, %v7028
        %v7581 = vpack.c.b16 %v7037, %v7029
        %v7582 = vpack.c.b16 %v7038, %v7030
        %v7583 = vpack.c.b16 %v7039, %v7031
        %v7584 = vpack.c.b16 %v7040, %v7032
        %v7585 = vpack.c.b16 %v7049, %v7041
        %v7586 = vpack.c.b16 %v7050, %v7042
        %v7587 = vpack.c.b16 %v7051, %v7043
        %v7588 = vpack.c.b16 %v7052, %v7044
        %v7589 = vpack.c.b16 %v7053, %v7045
        %v7590 = vpack.c.b16 %v7054, %v7046
        %v7591 = vpack.c.b16 %v7055, %v7047
        %v7592 = vpack.c.b16 %v7056, %v7048
        %v7593 = vpack.c.b16 %v7065, %v7057
        %v7594 = vpack.c.b16 %v7066, %v7058
        %v7595 = vpack.c.b16 %v7067, %v7059
        %v7596 = vpack.c.b16 %v7068, %v7060
        %v7597 = vpack.c.b16 %v7069, %v7061
        %v7598 = vpack.c.b16 %v7070, %v7062
        %v7599 = vpack.c.b16 %v7071, %v7063
        %v7600 = vpack.c.b16 %v7072, %v7064
        %v7601 = vpack.c.b16 %v7081, %v7073
        %v7602 = vpack.c.b16 %v7082, %v7074
        %v7603 = vpack.c.b16 %v7083, %v7075
        %v7604 = vpack.c.b16 %v7084, %v7076
        %v7605 = vpack.c.b16 %v7085, %v7077
        %v7606 = vpack.c.b16 %v7086, %v7078
        %v7607 = vpack.c.b16 %v7087, %v7079
        %v7608 = vpack.c.b16 %v7088, %v7080
        %v7609 = vpack.c.b16 %v7097, %v7089
        %v7610 = vpack.c.b16 %v7098, %v7090
        %v7611 = vpack.c.b16 %v7099, %v7091
        %v7612 = vpack.c.b16 %v7100, %v7092
        %v7613 = vpack.c.b16 %v7101, %v7093
        %v7614 = vpack.c.b16 %v7102, %v7094
        %v7615 = vpack.c.b16 %v7103, %v7095
        %v7616 = vpack.c.b16 %v7104, %v7096
        %8129 = vmatprep.subr.bf16.mxu0 %v7162
        %8130 = vmatpush1.bf16.msra.mxu0 %v7161
        %8131 = vmatprep.subr.bf16.mxu0 %v7154
        %8132 = vmatpush1.bf16.msra.mxu0 %v7153
        %8133 = vmatprep.subr.bf16.mxu0 %v7146
        %8134 = vmatpush1.bf16.msra.mxu0 %v7145
        %8135 = vmatprep.subr.bf16.mxu0 %v7138
        %8136 = vmatpush1.bf16.msra.mxu0 %v7137
        %8137 = vmatprep.subr.bf16.mxu0 %v7130
        %8138 = vmatpush1.bf16.msra.mxu0 %v7129
        %8139 = vmatprep.subr.bf16.mxu0 %v7122
        %8140 = vmatpush1.bf16.msra.mxu0 %v7121
        %8141 = vmatprep.subr.bf16.mxu0 %v7114
        %8142 = vmatpush1.bf16.msra.mxu0 %v7113
        %8143 = vmatprep.subr.bf16.mxu0 %v7106
        %8144 = vmatpush1.bf16.msra.mxu0 %v7105
        %8145 = vmatprep.subr.bf16.mxu0 %v7226
        %8146 = vmatpush2.bf16.msra.mxu0 %v7225
        %8147 = vmatprep.subr.bf16.mxu0 %v7218
        %8148 = vmatpush2.bf16.msra.mxu0 %v7217
        %8149 = vmatprep.subr.bf16.mxu0 %v7210
        %8150 = vmatpush2.bf16.msra.mxu0 %v7209
        %8151 = vmatprep.subr.bf16.mxu0 %v7202
        %8152 = vmatpush2.bf16.msra.mxu0 %v7201
        %8153 = vmatprep.subr.bf16.mxu0 %v7194
        %8154 = vmatpush2.bf16.msra.mxu0 %v7193
        %8155 = vmatprep.subr.bf16.mxu0 %v7186
        %8156 = vmatpush2.bf16.msra.mxu0 %v7185
        %8157 = vmatprep.subr.bf16.mxu0 %v7178
        %8158 = vmatpush2.bf16.msra.mxu0 %v7177
        %8159 = vmatprep.subr.bf16.mxu0 %v7170
        %8160 = vmatpush2.bf16.msra.mxu0 %v7169
        %8161 = vmatprep.mubr.bf16.mxu0 %v5009
        %8162 = vmatmul.mubr.bf16.gmra.mxu0 %v5008
        %v8163 = vpop.f32.mrf.mxu0
        %v8164 = vadd.f32 %v5532, %v8163
        %v8165 = vpop.f32.mrf.mxu0
        %v8166 = vadd.f32 %v5536, %v8165
        %v8167 = vpop.f32.mrf.mxu0
        %v8168 = vpop.f32.mrf.mxu0
        %8169 = vdwg.mxu0
        %8170 = vmatprep.subr.bf16.mxu0 %v7290
        %8171 = vmatpush1.bf16.msra.mxu0 %v7289
        %8172 = vmatprep.subr.bf16.mxu0 %v7282
        %8173 = vmatpush1.bf16.msra.mxu0 %v7281
        %8174 = vmatprep.subr.bf16.mxu0 %v7274
        %8175 = vmatpush1.bf16.msra.mxu0 %v7273
        %8176 = vmatprep.subr.bf16.mxu0 %v7266
        %8177 = vmatpush1.bf16.msra.mxu0 %v7265
        %8178 = vmatprep.subr.bf16.mxu0 %v7258
        %8179 = vmatpush1.bf16.msra.mxu0 %v7257
        %8180 = vmatprep.subr.bf16.mxu0 %v7250
        %8181 = vmatpush1.bf16.msra.mxu0 %v7249
        %8182 = vmatprep.subr.bf16.mxu0 %v7242
        %8183 = vmatpush1.bf16.msra.mxu0 %v7241
        %8184 = vmatprep.subr.bf16.mxu0 %v7234
        %8185 = vmatpush1.bf16.msra.mxu0 %v7233
        %8186 = vmatprep.subr.bf16.mxu0 %v7354
        %8187 = vmatpush2.bf16.msra.mxu0 %v7353
        %8188 = vmatprep.subr.bf16.mxu0 %v7346
        %8189 = vmatpush2.bf16.msra.mxu0 %v7345
        %8190 = vmatprep.subr.bf16.mxu0 %v7338
        %8191 = vmatpush2.bf16.msra.mxu0 %v7337
        %8192 = vmatprep.subr.bf16.mxu0 %v7330
        %8193 = vmatpush2.bf16.msra.mxu0 %v7329
        %8194 = vmatprep.subr.bf16.mxu0 %v7322
        %8195 = vmatpush2.bf16.msra.mxu0 %v7321
        %8196 = vmatprep.subr.bf16.mxu0 %v7314
        %8197 = vmatpush2.bf16.msra.mxu0 %v7313
        %8198 = vmatprep.subr.bf16.mxu0 %v7306
        %8199 = vmatpush2.bf16.msra.mxu0 %v7305
        %8200 = vmatprep.subr.bf16.mxu0 %v7298
        %8201 = vmatpush2.bf16.msra.mxu0 %v7297
        %8202 = vmatprep.mubr.bf16.mxu0 %v5011
        %8203 = vmatmul.mubr.bf16.gmra.mxu0 %v5010
        %v8204 = vpop.f32.mrf.mxu0
        %v8205 = vadd.f32 %v8164, %v8204
        %v8206 = vpop.f32.mrf.mxu0
        %v8207 = vadd.f32 %v8166, %v8206
        %v8208 = vpop.f32.mrf.mxu0
        %v8209 = vpop.f32.mrf.mxu0
        %8210 = vdwg.mxu0
        %8211 = vmatprep.subr.bf16.mxu0 %v7418
        %8212 = vmatpush1.bf16.msra.mxu0 %v7417
        %8213 = vmatprep.subr.bf16.mxu0 %v7410
        %8214 = vmatpush1.bf16.msra.mxu0 %v7409
        %8215 = vmatprep.subr.bf16.mxu0 %v7402
        %8216 = vmatpush1.bf16.msra.mxu0 %v7401
        %8217 = vmatprep.subr.bf16.mxu0 %v7394
        %8218 = vmatpush1.bf16.msra.mxu0 %v7393
        %8219 = vmatprep.subr.bf16.mxu0 %v7386
        %8220 = vmatpush1.bf16.msra.mxu0 %v7385
        %8221 = vmatprep.subr.bf16.mxu0 %v7378
        %8222 = vmatpush1.bf16.msra.mxu0 %v7377
        %8223 = vmatprep.subr.bf16.mxu0 %v7370
        %8224 = vmatpush1.bf16.msra.mxu0 %v7369
        %8225 = vmatprep.subr.bf16.mxu0 %v7362
        %8226 = vmatpush1.bf16.msra.mxu0 %v7361
        %8227 = vmatprep.subr.bf16.mxu0 %v7482
        %8228 = vmatpush2.bf16.msra.mxu0 %v7481
        %8229 = vmatprep.subr.bf16.mxu0 %v7474
        %8230 = vmatpush2.bf16.msra.mxu0 %v7473
        %8231 = vmatprep.subr.bf16.mxu0 %v7466
        %8232 = vmatpush2.bf16.msra.mxu0 %v7465
        %8233 = vmatprep.subr.bf16.mxu0 %v7458
        %8234 = vmatpush2.bf16.msra.mxu0 %v7457
        %8235 = vmatprep.subr.bf16.mxu0 %v7450
        %8236 = vmatpush2.bf16.msra.mxu0 %v7449
        %8237 = vmatprep.subr.bf16.mxu0 %v7442
        %8238 = vmatpush2.bf16.msra.mxu0 %v7441
        %8239 = vmatprep.subr.bf16.mxu0 %v7434
        %8240 = vmatpush2.bf16.msra.mxu0 %v7433
        %8241 = vmatprep.subr.bf16.mxu0 %v7426
        %8242 = vmatpush2.bf16.msra.mxu0 %v7425
        %8243 = vmatprep.mubr.bf16.mxu0 %v5013
        %8244 = vmatmul.mubr.bf16.gmra.mxu0 %v5012
        %v8245 = vpop.f32.mrf.mxu0
        %v8246 = vadd.f32 %v8205, %v8245
        %v8247 = vpop.f32.mrf.mxu0
        %v8248 = vadd.f32 %v8207, %v8247
        %v8249 = vpop.f32.mrf.mxu0
        %v8250 = vpop.f32.mrf.mxu0
        %8251 = vdwg.mxu0
        %8252 = vmatprep.subr.bf16.mxu0 %v7546
        %8253 = vmatpush1.bf16.msra.mxu0 %v7545
        %8254 = vmatprep.subr.bf16.mxu0 %v7538
        %8255 = vmatpush1.bf16.msra.mxu0 %v7537
        %8256 = vmatprep.subr.bf16.mxu0 %v7530
        %8257 = vmatpush1.bf16.msra.mxu0 %v7529
        %8258 = vmatprep.subr.bf16.mxu0 %v7522
        %8259 = vmatpush1.bf16.msra.mxu0 %v7521
        %8260 = vmatprep.subr.bf16.mxu0 %v7514
        %8261 = vmatpush1.bf16.msra.mxu0 %v7513
        %8262 = vmatprep.subr.bf16.mxu0 %v7506
        %8263 = vmatpush1.bf16.msra.mxu0 %v7505
        %8264 = vmatprep.subr.bf16.mxu0 %v7498
        %8265 = vmatpush1.bf16.msra.mxu0 %v7497
        %8266 = vmatprep.subr.bf16.mxu0 %v7490
        %8267 = vmatpush1.bf16.msra.mxu0 %v7489
        %8268 = vmatprep.subr.bf16.mxu0 %v7610
        %8269 = vmatpush2.bf16.msra.mxu0 %v7609
        %8270 = vmatprep.subr.bf16.mxu0 %v7602
        %8271 = vmatpush2.bf16.msra.mxu0 %v7601
        %8272 = vmatprep.subr.bf16.mxu0 %v7594
        %8273 = vmatpush2.bf16.msra.mxu0 %v7593
        %8274 = vmatprep.subr.bf16.mxu0 %v7586
        %8275 = vmatpush2.bf16.msra.mxu0 %v7585
        %8276 = vmatprep.subr.bf16.mxu0 %v7578
        %8277 = vmatpush2.bf16.msra.mxu0 %v7577
        %8278 = vmatprep.subr.bf16.mxu0 %v7570
        %8279 = vmatpush2.bf16.msra.mxu0 %v7569
        %8280 = vmatprep.subr.bf16.mxu0 %v7562
        %8281 = vmatpush2.bf16.msra.mxu0 %v7561
        %8282 = vmatprep.subr.bf16.mxu0 %v7554
        %8283 = vmatpush2.bf16.msra.mxu0 %v7553
        %8284 = vmatprep.mubr.bf16.mxu0 %v5015
        %8285 = vmatmul.mubr.bf16.gmra.mxu0 %v5014
        %v8286 = vpop.f32.mrf.mxu0
        %v8287 = vadd.f32 %v8246, %v8286
        %v8288 = vpop.f32.mrf.mxu0
        %v8289 = vadd.f32 %v8248, %v8288
        %v8290 = vpop.f32.mrf.mxu0
        %v8291 = vpop.f32.mrf.mxu0
        %8292 = vdwg.mxu0
        %8293 = vmatprep.subr.bf16.mxu0 %v7164
        %8294 = vmatpush1.bf16.msra.mxu0 %v7163
        %8295 = vmatprep.subr.bf16.mxu0 %v7156
        %8296 = vmatpush1.bf16.msra.mxu0 %v7155
        %8297 = vmatprep.subr.bf16.mxu0 %v7148
        %8298 = vmatpush1.bf16.msra.mxu0 %v7147
        %8299 = vmatprep.subr.bf16.mxu0 %v7140
        %8300 = vmatpush1.bf16.msra.mxu0 %v7139
        %8301 = vmatprep.subr.bf16.mxu0 %v7132
        %8302 = vmatpush1.bf16.msra.mxu0 %v7131
        %8303 = vmatprep.subr.bf16.mxu0 %v7124
        %8304 = vmatpush1.bf16.msra.mxu0 %v7123
        %8305 = vmatprep.subr.bf16.mxu0 %v7116
        %8306 = vmatpush1.bf16.msra.mxu0 %v7115
        %8307 = vmatprep.subr.bf16.mxu0 %v7108
        %8308 = vmatpush1.bf16.msra.mxu0 %v7107
        %8309 = vmatprep.subr.bf16.mxu0 %v7228
        %8310 = vmatpush2.bf16.msra.mxu0 %v7227
        %8311 = vmatprep.subr.bf16.mxu0 %v7220
        %8312 = vmatpush2.bf16.msra.mxu0 %v7219
        %8313 = vmatprep.subr.bf16.mxu0 %v7212
        %8314 = vmatpush2.bf16.msra.mxu0 %v7211
        %8315 = vmatprep.subr.bf16.mxu0 %v7204
        %8316 = vmatpush2.bf16.msra.mxu0 %v7203
        %8317 = vmatprep.subr.bf16.mxu0 %v7196
        %8318 = vmatpush2.bf16.msra.mxu0 %v7195
        %8319 = vmatprep.subr.bf16.mxu0 %v7188
        %8320 = vmatpush2.bf16.msra.mxu0 %v7187
        %8321 = vmatprep.subr.bf16.mxu0 %v7180
        %8322 = vmatpush2.bf16.msra.mxu0 %v7179
        %8323 = vmatprep.subr.bf16.mxu0 %v7172
        %8324 = vmatpush2.bf16.msra.mxu0 %v7171
        %8325 = vmatprep.mubr.bf16.mxu0 %v5009
        %8326 = vmatmul.mubr.bf16.gmra.mxu0 %v5008
        %v8327 = vpop.f32.mrf.mxu0
        %v8328 = vadd.f32 %v5540, %v8327
        %v8329 = vpop.f32.mrf.mxu0
        %v8330 = vadd.f32 %v5544, %v8329
        %v8331 = vpop.f32.mrf.mxu0
        %v8332 = vpop.f32.mrf.mxu0
        %8333 = vdwg.mxu0
        %8334 = vmatprep.subr.bf16.mxu0 %v7292
        %8335 = vmatpush1.bf16.msra.mxu0 %v7291
        %8336 = vmatprep.subr.bf16.mxu0 %v7284
        %8337 = vmatpush1.bf16.msra.mxu0 %v7283
        %8338 = vmatprep.subr.bf16.mxu0 %v7276
        %8339 = vmatpush1.bf16.msra.mxu0 %v7275
        %8340 = vmatprep.subr.bf16.mxu0 %v7268
        %8341 = vmatpush1.bf16.msra.mxu0 %v7267
        %8342 = vmatprep.subr.bf16.mxu0 %v7260
        %8343 = vmatpush1.bf16.msra.mxu0 %v7259
        %8344 = vmatprep.subr.bf16.mxu0 %v7252
        %8345 = vmatpush1.bf16.msra.mxu0 %v7251
        %8346 = vmatprep.subr.bf16.mxu0 %v7244
        %8347 = vmatpush1.bf16.msra.mxu0 %v7243
        %8348 = vmatprep.subr.bf16.mxu0 %v7236
        %8349 = vmatpush1.bf16.msra.mxu0 %v7235
        %8350 = vmatprep.subr.bf16.mxu0 %v7356
        %8351 = vmatpush2.bf16.msra.mxu0 %v7355
        %8352 = vmatprep.subr.bf16.mxu0 %v7348
        %8353 = vmatpush2.bf16.msra.mxu0 %v7347
        %8354 = vmatprep.subr.bf16.mxu0 %v7340
        %8355 = vmatpush2.bf16.msra.mxu0 %v7339
        %8356 = vmatprep.subr.bf16.mxu0 %v7332
        %8357 = vmatpush2.bf16.msra.mxu0 %v7331
        %8358 = vmatprep.subr.bf16.mxu0 %v7324
        %8359 = vmatpush2.bf16.msra.mxu0 %v7323
        %8360 = vmatprep.subr.bf16.mxu0 %v7316
        %8361 = vmatpush2.bf16.msra.mxu0 %v7315
        %8362 = vmatprep.subr.bf16.mxu0 %v7308
        %8363 = vmatpush2.bf16.msra.mxu0 %v7307
        %8364 = vmatprep.subr.bf16.mxu0 %v7300
        %8365 = vmatpush2.bf16.msra.mxu0 %v7299
        %8366 = vmatprep.mubr.bf16.mxu0 %v5011
        %8367 = vmatmul.mubr.bf16.gmra.mxu0 %v5010
        %v8368 = vpop.f32.mrf.mxu0
        %v8369 = vadd.f32 %v8328, %v8368
        %v8370 = vpop.f32.mrf.mxu0
        %v8371 = vadd.f32 %v8330, %v8370
        %v8372 = vpop.f32.mrf.mxu0
        %v8373 = vpop.f32.mrf.mxu0
        %8374 = vdwg.mxu0
        %8375 = vmatprep.subr.bf16.mxu0 %v7420
        %8376 = vmatpush1.bf16.msra.mxu0 %v7419
        %8377 = vmatprep.subr.bf16.mxu0 %v7412
        %8378 = vmatpush1.bf16.msra.mxu0 %v7411
        %8379 = vmatprep.subr.bf16.mxu0 %v7404
        %8380 = vmatpush1.bf16.msra.mxu0 %v7403
        %8381 = vmatprep.subr.bf16.mxu0 %v7396
        %8382 = vmatpush1.bf16.msra.mxu0 %v7395
        %8383 = vmatprep.subr.bf16.mxu0 %v7388
        %8384 = vmatpush1.bf16.msra.mxu0 %v7387
        %8385 = vmatprep.subr.bf16.mxu0 %v7380
        %8386 = vmatpush1.bf16.msra.mxu0 %v7379
        %8387 = vmatprep.subr.bf16.mxu0 %v7372
        %8388 = vmatpush1.bf16.msra.mxu0 %v7371
        %8389 = vmatprep.subr.bf16.mxu0 %v7364
        %8390 = vmatpush1.bf16.msra.mxu0 %v7363
        %8391 = vmatprep.subr.bf16.mxu0 %v7484
        %8392 = vmatpush2.bf16.msra.mxu0 %v7483
        %8393 = vmatprep.subr.bf16.mxu0 %v7476
        %8394 = vmatpush2.bf16.msra.mxu0 %v7475
        %8395 = vmatprep.subr.bf16.mxu0 %v7468
        %8396 = vmatpush2.bf16.msra.mxu0 %v7467
        %8397 = vmatprep.subr.bf16.mxu0 %v7460
        %8398 = vmatpush2.bf16.msra.mxu0 %v7459
        %8399 = vmatprep.subr.bf16.mxu0 %v7452
        %8400 = vmatpush2.bf16.msra.mxu0 %v7451
        %8401 = vmatprep.subr.bf16.mxu0 %v7444
        %8402 = vmatpush2.bf16.msra.mxu0 %v7443
        %8403 = vmatprep.subr.bf16.mxu0 %v7436
        %8404 = vmatpush2.bf16.msra.mxu0 %v7435
        %8405 = vmatprep.subr.bf16.mxu0 %v7428
        %8406 = vmatpush2.bf16.msra.mxu0 %v7427
        %8407 = vmatprep.mubr.bf16.mxu0 %v5013
        %8408 = vmatmul.mubr.bf16.gmra.mxu0 %v5012
        %v8409 = vpop.f32.mrf.mxu0
        %v8410 = vadd.f32 %v8369, %v8409
        %v8411 = vpop.f32.mrf.mxu0
        %v8412 = vadd.f32 %v8371, %v8411
        %v8413 = vpop.f32.mrf.mxu0
        %v8414 = vpop.f32.mrf.mxu0
        %8415 = vdwg.mxu0
        %8416 = vmatprep.subr.bf16.mxu0 %v7548
        %8417 = vmatpush1.bf16.msra.mxu0 %v7547
        %8418 = vmatprep.subr.bf16.mxu0 %v7540
        %8419 = vmatpush1.bf16.msra.mxu0 %v7539
        %8420 = vmatprep.subr.bf16.mxu0 %v7532
        %8421 = vmatpush1.bf16.msra.mxu0 %v7531
        %8422 = vmatprep.subr.bf16.mxu0 %v7524
        %8423 = vmatpush1.bf16.msra.mxu0 %v7523
        %8424 = vmatprep.subr.bf16.mxu0 %v7516
        %8425 = vmatpush1.bf16.msra.mxu0 %v7515
        %8426 = vmatprep.subr.bf16.mxu0 %v7508
        %8427 = vmatpush1.bf16.msra.mxu0 %v7507
        %8428 = vmatprep.subr.bf16.mxu0 %v7500
        %8429 = vmatpush1.bf16.msra.mxu0 %v7499
        %8430 = vmatprep.subr.bf16.mxu0 %v7492
        %8431 = vmatpush1.bf16.msra.mxu0 %v7491
        %8432 = vmatprep.subr.bf16.mxu0 %v7612
        %8433 = vmatpush2.bf16.msra.mxu0 %v7611
        %8434 = vmatprep.subr.bf16.mxu0 %v7604
        %8435 = vmatpush2.bf16.msra.mxu0 %v7603
        %8436 = vmatprep.subr.bf16.mxu0 %v7596
        %8437 = vmatpush2.bf16.msra.mxu0 %v7595
        %8438 = vmatprep.subr.bf16.mxu0 %v7588
        %8439 = vmatpush2.bf16.msra.mxu0 %v7587
        %8440 = vmatprep.subr.bf16.mxu0 %v7580
        %8441 = vmatpush2.bf16.msra.mxu0 %v7579
        %8442 = vmatprep.subr.bf16.mxu0 %v7572
        %8443 = vmatpush2.bf16.msra.mxu0 %v7571
        %8444 = vmatprep.subr.bf16.mxu0 %v7564
        %8445 = vmatpush2.bf16.msra.mxu0 %v7563
        %8446 = vmatprep.subr.bf16.mxu0 %v7556
        %8447 = vmatpush2.bf16.msra.mxu0 %v7555
        %8448 = vmatprep.mubr.bf16.mxu0 %v5015
        %8449 = vmatmul.mubr.bf16.gmra.mxu0 %v5014
        %v8450 = vpop.f32.mrf.mxu0
        %v8451 = vadd.f32 %v8410, %v8450
        %v8452 = vpop.f32.mrf.mxu0
        %v8453 = vadd.f32 %v8412, %v8452
        %v8454 = vpop.f32.mrf.mxu0
        %v8455 = vpop.f32.mrf.mxu0
        %8456 = vdwg.mxu0
        %8457 = vmatprep.subr.bf16.mxu0 %v7166
        %8458 = vmatpush1.bf16.msra.mxu0 %v7165
        %8459 = vmatprep.subr.bf16.mxu0 %v7158
        %8460 = vmatpush1.bf16.msra.mxu0 %v7157
        %8461 = vmatprep.subr.bf16.mxu0 %v7150
        %8462 = vmatpush1.bf16.msra.mxu0 %v7149
        %8463 = vmatprep.subr.bf16.mxu0 %v7142
        %8464 = vmatpush1.bf16.msra.mxu0 %v7141
        %8465 = vmatprep.subr.bf16.mxu0 %v7134
        %8466 = vmatpush1.bf16.msra.mxu0 %v7133
        %8467 = vmatprep.subr.bf16.mxu0 %v7126
        %8468 = vmatpush1.bf16.msra.mxu0 %v7125
        %8469 = vmatprep.subr.bf16.mxu0 %v7118
        %8470 = vmatpush1.bf16.msra.mxu0 %v7117
        %8471 = vmatprep.subr.bf16.mxu0 %v7110
        %8472 = vmatpush1.bf16.msra.mxu0 %v7109
        %8473 = vmatprep.subr.bf16.mxu0 %v7230
        %8474 = vmatpush2.bf16.msra.mxu0 %v7229
        %8475 = vmatprep.subr.bf16.mxu0 %v7222
        %8476 = vmatpush2.bf16.msra.mxu0 %v7221
        %8477 = vmatprep.subr.bf16.mxu0 %v7214
        %8478 = vmatpush2.bf16.msra.mxu0 %v7213
        %8479 = vmatprep.subr.bf16.mxu0 %v7206
        %8480 = vmatpush2.bf16.msra.mxu0 %v7205
        %8481 = vmatprep.subr.bf16.mxu0 %v7198
        %8482 = vmatpush2.bf16.msra.mxu0 %v7197
        %8483 = vmatprep.subr.bf16.mxu0 %v7190
        %8484 = vmatpush2.bf16.msra.mxu0 %v7189
        %8485 = vmatprep.subr.bf16.mxu0 %v7182
        %8486 = vmatpush2.bf16.msra.mxu0 %v7181
        %8487 = vmatprep.subr.bf16.mxu0 %v7174
        %8488 = vmatpush2.bf16.msra.mxu0 %v7173
        %8489 = vmatprep.mubr.bf16.mxu0 %v5009
        %8490 = vmatmul.mubr.bf16.gmra.mxu0 %v5008
        %v8491 = vpop.f32.mrf.mxu0
        %v8492 = vadd.f32 %v5548, %v8491
        %v8493 = vpop.f32.mrf.mxu0
        %v8494 = vadd.f32 %v5552, %v8493
        %v8495 = vpop.f32.mrf.mxu0
        %v8496 = vpop.f32.mrf.mxu0
        %8497 = vdwg.mxu0
        %8498 = vmatprep.subr.bf16.mxu0 %v7294
        %8499 = vmatpush1.bf16.msra.mxu0 %v7293
        %8500 = vmatprep.subr.bf16.mxu0 %v7286
        %8501 = vmatpush1.bf16.msra.mxu0 %v7285
        %8502 = vmatprep.subr.bf16.mxu0 %v7278
        %8503 = vmatpush1.bf16.msra.mxu0 %v7277
        %8504 = vmatprep.subr.bf16.mxu0 %v7270
        %8505 = vmatpush1.bf16.msra.mxu0 %v7269
        %8506 = vmatprep.subr.bf16.mxu0 %v7262
        %8507 = vmatpush1.bf16.msra.mxu0 %v7261
        %8508 = vmatprep.subr.bf16.mxu0 %v7254
        %8509 = vmatpush1.bf16.msra.mxu0 %v7253
        %8510 = vmatprep.subr.bf16.mxu0 %v7246
        %8511 = vmatpush1.bf16.msra.mxu0 %v7245
        %8512 = vmatprep.subr.bf16.mxu0 %v7238
        %8513 = vmatpush1.bf16.msra.mxu0 %v7237
        %8514 = vmatprep.subr.bf16.mxu0 %v7358
        %8515 = vmatpush2.bf16.msra.mxu0 %v7357
        %8516 = vmatprep.subr.bf16.mxu0 %v7350
        %8517 = vmatpush2.bf16.msra.mxu0 %v7349
        %8518 = vmatprep.subr.bf16.mxu0 %v7342
        %8519 = vmatpush2.bf16.msra.mxu0 %v7341
        %8520 = vmatprep.subr.bf16.mxu0 %v7334
        %8521 = vmatpush2.bf16.msra.mxu0 %v7333
        %8522 = vmatprep.subr.bf16.mxu0 %v7326
        %8523 = vmatpush2.bf16.msra.mxu0 %v7325
        %8524 = vmatprep.subr.bf16.mxu0 %v7318
        %8525 = vmatpush2.bf16.msra.mxu0 %v7317
        %8526 = vmatprep.subr.bf16.mxu0 %v7310
        %8527 = vmatpush2.bf16.msra.mxu0 %v7309
        %8528 = vmatprep.subr.bf16.mxu0 %v7302
        %8529 = vmatpush2.bf16.msra.mxu0 %v7301
        %8530 = vmatprep.mubr.bf16.mxu0 %v5011
        %8531 = vmatmul.mubr.bf16.gmra.mxu0 %v5010
        %v8532 = vpop.f32.mrf.mxu0
        %v8533 = vadd.f32 %v8492, %v8532
        %v8534 = vpop.f32.mrf.mxu0
        %v8535 = vadd.f32 %v8494, %v8534
        %v8536 = vpop.f32.mrf.mxu0
        %v8537 = vpop.f32.mrf.mxu0
        %8538 = vdwg.mxu0
        %8539 = vmatprep.subr.bf16.mxu0 %v7422
        %8540 = vmatpush1.bf16.msra.mxu0 %v7421
        %8541 = vmatprep.subr.bf16.mxu0 %v7414
        %8542 = vmatpush1.bf16.msra.mxu0 %v7413
        %8543 = vmatprep.subr.bf16.mxu0 %v7406
        %8544 = vmatpush1.bf16.msra.mxu0 %v7405
        %8545 = vmatprep.subr.bf16.mxu0 %v7398
        %8546 = vmatpush1.bf16.msra.mxu0 %v7397
        %8547 = vmatprep.subr.bf16.mxu0 %v7390
        %8548 = vmatpush1.bf16.msra.mxu0 %v7389
        %8549 = vmatprep.subr.bf16.mxu0 %v7382
        %8550 = vmatpush1.bf16.msra.mxu0 %v7381
        %8551 = vmatprep.subr.bf16.mxu0 %v7374
        %8552 = vmatpush1.bf16.msra.mxu0 %v7373
        %8553 = vmatprep.subr.bf16.mxu0 %v7366
        %8554 = vmatpush1.bf16.msra.mxu0 %v7365
        %8555 = vmatprep.subr.bf16.mxu0 %v7486
        %8556 = vmatpush2.bf16.msra.mxu0 %v7485
        %8557 = vmatprep.subr.bf16.mxu0 %v7478
        %8558 = vmatpush2.bf16.msra.mxu0 %v7477
        %8559 = vmatprep.subr.bf16.mxu0 %v7470
        %8560 = vmatpush2.bf16.msra.mxu0 %v7469
        %8561 = vmatprep.subr.bf16.mxu0 %v7462
        %8562 = vmatpush2.bf16.msra.mxu0 %v7461
        %8563 = vmatprep.subr.bf16.mxu0 %v7454
        %8564 = vmatpush2.bf16.msra.mxu0 %v7453
        %8565 = vmatprep.subr.bf16.mxu0 %v7446
        %8566 = vmatpush2.bf16.msra.mxu0 %v7445
        %8567 = vmatprep.subr.bf16.mxu0 %v7438
        %8568 = vmatpush2.bf16.msra.mxu0 %v7437
        %8569 = vmatprep.subr.bf16.mxu0 %v7430
        %8570 = vmatpush2.bf16.msra.mxu0 %v7429
        %8571 = vmatprep.mubr.bf16.mxu0 %v5013
        %8572 = vmatmul.mubr.bf16.gmra.mxu0 %v5012
        %v8573 = vpop.f32.mrf.mxu0
        %v8574 = vadd.f32 %v8533, %v8573
        %v8575 = vpop.f32.mrf.mxu0
        %v8576 = vadd.f32 %v8535, %v8575
        %v8577 = vpop.f32.mrf.mxu0
        %v8578 = vpop.f32.mrf.mxu0
        %8579 = vdwg.mxu0
        %8580 = vmatprep.subr.bf16.mxu0 %v7550
        %8581 = vmatpush1.bf16.msra.mxu0 %v7549
        %8582 = vmatprep.subr.bf16.mxu0 %v7542
        %8583 = vmatpush1.bf16.msra.mxu0 %v7541
        %8584 = vmatprep.subr.bf16.mxu0 %v7534
        %8585 = vmatpush1.bf16.msra.mxu0 %v7533
        %8586 = vmatprep.subr.bf16.mxu0 %v7526
        %8587 = vmatpush1.bf16.msra.mxu0 %v7525
        %8588 = vmatprep.subr.bf16.mxu0 %v7518
        %8589 = vmatpush1.bf16.msra.mxu0 %v7517
        %8590 = vmatprep.subr.bf16.mxu0 %v7510
        %8591 = vmatpush1.bf16.msra.mxu0 %v7509
        %8592 = vmatprep.subr.bf16.mxu0 %v7502
        %8593 = vmatpush1.bf16.msra.mxu0 %v7501
        %8594 = vmatprep.subr.bf16.mxu0 %v7494
        %8595 = vmatpush1.bf16.msra.mxu0 %v7493
        %8596 = vmatprep.subr.bf16.mxu0 %v7614
        %8597 = vmatpush2.bf16.msra.mxu0 %v7613
        %8598 = vmatprep.subr.bf16.mxu0 %v7606
        %8599 = vmatpush2.bf16.msra.mxu0 %v7605
        %8600 = vmatprep.subr.bf16.mxu0 %v7598
        %8601 = vmatpush2.bf16.msra.mxu0 %v7597
        %8602 = vmatprep.subr.bf16.mxu0 %v7590
        %8603 = vmatpush2.bf16.msra.mxu0 %v7589
        %8604 = vmatprep.subr.bf16.mxu0 %v7582
        %8605 = vmatpush2.bf16.msra.mxu0 %v7581
        %8606 = vmatprep.subr.bf16.mxu0 %v7574
        %8607 = vmatpush2.bf16.msra.mxu0 %v7573
        %8608 = vmatprep.subr.bf16.mxu0 %v7566
        %8609 = vmatpush2.bf16.msra.mxu0 %v7565
        %8610 = vmatprep.subr.bf16.mxu0 %v7558
        %8611 = vmatpush2.bf16.msra.mxu0 %v7557
        %8612 = vmatprep.mubr.bf16.mxu0 %v5015
        %8613 = vmatmul.mubr.bf16.gmra.mxu0 %v5014
        %v8614 = vpop.f32.mrf.mxu0
        %v8615 = vadd.f32 %v8574, %v8614
        %v8616 = vpop.f32.mrf.mxu0
        %v8617 = vadd.f32 %v8576, %v8616
        %v8618 = vpop.f32.mrf.mxu0
        %v8619 = vpop.f32.mrf.mxu0
        %8620 = vdwg.mxu0
        %8621 = vmatprep.subr.bf16.mxu0 %v7168
        %8622 = vmatpush1.bf16.msra.mxu0 %v7167
        %8623 = vmatprep.subr.bf16.mxu0 %v7160
        %8624 = vmatpush1.bf16.msra.mxu0 %v7159
        %8625 = vmatprep.subr.bf16.mxu0 %v7152
        %8626 = vmatpush1.bf16.msra.mxu0 %v7151
        %8627 = vmatprep.subr.bf16.mxu0 %v7144
        %8628 = vmatpush1.bf16.msra.mxu0 %v7143
        %8629 = vmatprep.subr.bf16.mxu0 %v7136
        %8630 = vmatpush1.bf16.msra.mxu0 %v7135
        %8631 = vmatprep.subr.bf16.mxu0 %v7128
        %8632 = vmatpush1.bf16.msra.mxu0 %v7127
        %8633 = vmatprep.subr.bf16.mxu0 %v7120
        %8634 = vmatpush1.bf16.msra.mxu0 %v7119
        %8635 = vmatprep.subr.bf16.mxu0 %v7112
        %8636 = vmatpush1.bf16.msra.mxu0 %v7111
        %8637 = vmatprep.subr.bf16.mxu0 %v7232
        %8638 = vmatpush2.bf16.msra.mxu0 %v7231
        %8639 = vmatprep.subr.bf16.mxu0 %v7224
        %8640 = vmatpush2.bf16.msra.mxu0 %v7223
        %8641 = vmatprep.subr.bf16.mxu0 %v7216
        %8642 = vmatpush2.bf16.msra.mxu0 %v7215
        %8643 = vmatprep.subr.bf16.mxu0 %v7208
        %8644 = vmatpush2.bf16.msra.mxu0 %v7207
        %8645 = vmatprep.subr.bf16.mxu0 %v7200
        %8646 = vmatpush2.bf16.msra.mxu0 %v7199
        %8647 = vmatprep.subr.bf16.mxu0 %v7192
        %8648 = vmatpush2.bf16.msra.mxu0 %v7191
        %8649 = vmatprep.subr.bf16.mxu0 %v7184
        %8650 = vmatpush2.bf16.msra.mxu0 %v7183
        %8651 = vmatprep.subr.bf16.mxu0 %v7176
        %8652 = vmatpush2.bf16.msra.mxu0 %v7175
        %8653 = vmatprep.mubr.bf16.mxu0 %v5009
        %8654 = vmatmul.mubr.bf16.gmra.mxu0 %v5008
        %v8655 = vpop.f32.mrf.mxu0
        %v8656 = vadd.f32 %v5556, %v8655
        %v8657 = vpop.f32.mrf.mxu0
        %v8658 = vadd.f32 %v5560, %v8657
        %v8659 = vpop.f32.mrf.mxu0
        %v8660 = vpop.f32.mrf.mxu0
        %8661 = vdwg.mxu0
        %8662 = vmatprep.subr.bf16.mxu0 %v7296
        %8663 = vmatpush1.bf16.msra.mxu0 %v7295
        %8664 = vmatprep.subr.bf16.mxu0 %v7288
        %8665 = vmatpush1.bf16.msra.mxu0 %v7287
        %8666 = vmatprep.subr.bf16.mxu0 %v7280
        %8667 = vmatpush1.bf16.msra.mxu0 %v7279
        %8668 = vmatprep.subr.bf16.mxu0 %v7272
        %8669 = vmatpush1.bf16.msra.mxu0 %v7271
        %8670 = vmatprep.subr.bf16.mxu0 %v7264
        %8671 = vmatpush1.bf16.msra.mxu0 %v7263
        %8672 = vmatprep.subr.bf16.mxu0 %v7256
        %8673 = vmatpush1.bf16.msra.mxu0 %v7255
        %8674 = vmatprep.subr.bf16.mxu0 %v7248
        %8675 = vmatpush1.bf16.msra.mxu0 %v7247
        %8676 = vmatprep.subr.bf16.mxu0 %v7240
        %8677 = vmatpush1.bf16.msra.mxu0 %v7239
        %8678 = vmatprep.subr.bf16.mxu0 %v7360
        %8679 = vmatpush2.bf16.msra.mxu0 %v7359
        %8680 = vmatprep.subr.bf16.mxu0 %v7352
        %8681 = vmatpush2.bf16.msra.mxu0 %v7351
        %8682 = vmatprep.subr.bf16.mxu0 %v7344
        %8683 = vmatpush2.bf16.msra.mxu0 %v7343
        %8684 = vmatprep.subr.bf16.mxu0 %v7336
        %8685 = vmatpush2.bf16.msra.mxu0 %v7335
        %8686 = vmatprep.subr.bf16.mxu0 %v7328
        %8687 = vmatpush2.bf16.msra.mxu0 %v7327
        %8688 = vmatprep.subr.bf16.mxu0 %v7320
        %8689 = vmatpush2.bf16.msra.mxu0 %v7319
        %8690 = vmatprep.subr.bf16.mxu0 %v7312
        %8691 = vmatpush2.bf16.msra.mxu0 %v7311
        %8692 = vmatprep.subr.bf16.mxu0 %v7304
        %8693 = vmatpush2.bf16.msra.mxu0 %v7303
        %8694 = vmatprep.mubr.bf16.mxu0 %v5011
        %8695 = vmatmul.mubr.bf16.gmra.mxu0 %v5010
        %v8696 = vpop.f32.mrf.mxu0
        %v8697 = vadd.f32 %v8656, %v8696
        %v8698 = vpop.f32.mrf.mxu0
        %v8699 = vadd.f32 %v8658, %v8698
        %v8700 = vpop.f32.mrf.mxu0
        %v8701 = vpop.f32.mrf.mxu0
        %8702 = vdwg.mxu0
        %8703 = vmatprep.subr.bf16.mxu0 %v7424
        %8704 = vmatpush1.bf16.msra.mxu0 %v7423
        %8705 = vmatprep.subr.bf16.mxu0 %v7416
        %8706 = vmatpush1.bf16.msra.mxu0 %v7415
        %8707 = vmatprep.subr.bf16.mxu0 %v7408
        %8708 = vmatpush1.bf16.msra.mxu0 %v7407
        %8709 = vmatprep.subr.bf16.mxu0 %v7400
        %8710 = vmatpush1.bf16.msra.mxu0 %v7399
        %8711 = vmatprep.subr.bf16.mxu0 %v7392
        %8712 = vmatpush1.bf16.msra.mxu0 %v7391
        %8713 = vmatprep.subr.bf16.mxu0 %v7384
        %8714 = vmatpush1.bf16.msra.mxu0 %v7383
        %8715 = vmatprep.subr.bf16.mxu0 %v7376
        %8716 = vmatpush1.bf16.msra.mxu0 %v7375
        %8717 = vmatprep.subr.bf16.mxu0 %v7368
        %8718 = vmatpush1.bf16.msra.mxu0 %v7367
        %8719 = vmatprep.subr.bf16.mxu0 %v7488
        %8720 = vmatpush2.bf16.msra.mxu0 %v7487
        %8721 = vmatprep.subr.bf16.mxu0 %v7480
        %8722 = vmatpush2.bf16.msra.mxu0 %v7479
        %8723 = vmatprep.subr.bf16.mxu0 %v7472
        %8724 = vmatpush2.bf16.msra.mxu0 %v7471
        %8725 = vmatprep.subr.bf16.mxu0 %v7464
        %8726 = vmatpush2.bf16.msra.mxu0 %v7463
        %8727 = vmatprep.subr.bf16.mxu0 %v7456
        %8728 = vmatpush2.bf16.msra.mxu0 %v7455
        %8729 = vmatprep.subr.bf16.mxu0 %v7448
        %8730 = vmatpush2.bf16.msra.mxu0 %v7447
        %8731 = vmatprep.subr.bf16.mxu0 %v7440
        %8732 = vmatpush2.bf16.msra.mxu0 %v7439
        %8733 = vmatprep.subr.bf16.mxu0 %v7432
        %8734 = vmatpush2.bf16.msra.mxu0 %v7431
        %8735 = vmatprep.mubr.bf16.mxu0 %v5013
        %8736 = vmatmul.mubr.bf16.gmra.mxu0 %v5012
        %v8737 = vpop.f32.mrf.mxu0
        %v8738 = vadd.f32 %v8697, %v8737
        %v8739 = vpop.f32.mrf.mxu0
        %v8740 = vadd.f32 %v8699, %v8739
        %v8741 = vpop.f32.mrf.mxu0
        %v8742 = vpop.f32.mrf.mxu0
        %8743 = vdwg.mxu0
        %8744 = vmatprep.subr.bf16.mxu0 %v7552
        %8745 = vmatpush1.bf16.msra.mxu0 %v7551
        %8746 = vmatprep.subr.bf16.mxu0 %v7544
        %8747 = vmatpush1.bf16.msra.mxu0 %v7543
        %8748 = vmatprep.subr.bf16.mxu0 %v7536
        %8749 = vmatpush1.bf16.msra.mxu0 %v7535
        %8750 = vmatprep.subr.bf16.mxu0 %v7528
        %8751 = vmatpush1.bf16.msra.mxu0 %v7527
        %8752 = vmatprep.subr.bf16.mxu0 %v7520
        %8753 = vmatpush1.bf16.msra.mxu0 %v7519
        %8754 = vmatprep.subr.bf16.mxu0 %v7512
        %8755 = vmatpush1.bf16.msra.mxu0 %v7511
        %8756 = vmatprep.subr.bf16.mxu0 %v7504
        %8757 = vmatpush1.bf16.msra.mxu0 %v7503
        %8758 = vmatprep.subr.bf16.mxu0 %v7496
        %8759 = vmatpush1.bf16.msra.mxu0 %v7495
        %8760 = vmatprep.subr.bf16.mxu0 %v7616
        %8761 = vmatpush2.bf16.msra.mxu0 %v7615
        %8762 = vmatprep.subr.bf16.mxu0 %v7608
        %8763 = vmatpush2.bf16.msra.mxu0 %v7607
        %8764 = vmatprep.subr.bf16.mxu0 %v7600
        %8765 = vmatpush2.bf16.msra.mxu0 %v7599
        %8766 = vmatprep.subr.bf16.mxu0 %v7592
        %8767 = vmatpush2.bf16.msra.mxu0 %v7591
        %8768 = vmatprep.subr.bf16.mxu0 %v7584
        %8769 = vmatpush2.bf16.msra.mxu0 %v7583
        %8770 = vmatprep.subr.bf16.mxu0 %v7576
        %8771 = vmatpush2.bf16.msra.mxu0 %v7575
        %8772 = vmatprep.subr.bf16.mxu0 %v7568
        %8773 = vmatpush2.bf16.msra.mxu0 %v7567
        %8774 = vmatprep.subr.bf16.mxu0 %v7560
        %8775 = vmatpush2.bf16.msra.mxu0 %v7559
        %8776 = vmatprep.mubr.bf16.mxu0 %v5015
        %8777 = vmatmul.mubr.bf16.gmra.mxu0 %v5014
        %v8778 = vpop.f32.mrf.mxu0
        %v8779 = vadd.f32 %v8738, %v8778
        %v8780 = vpop.f32.mrf.mxu0
        %v8781 = vadd.f32 %v8740, %v8780
        %v8782 = vpop.f32.mrf.mxu0
        %v8783 = vpop.f32.mrf.mxu0
        %8784 = vdwg.mxu0
        %v8785 = vmax.f32 %v8287, 0.0
        %v8786 = vmax.f32 %v8289, 0.0
        %v8787 = vmax.f32 %v8451, 0.0
        %v8788 = vmax.f32 %v8453, 0.0
        %v8789 = vmax.f32 %v8615, 0.0
        %v8790 = vmax.f32 %v8617, 0.0
        %v8791 = vmax.f32 %v8779, 0.0
        %v8792 = vmax.f32 %v8781, 0.0
        %v8793 = vld [vmem:[#allocation14 + $0x8] sm:$0xff]
        %v8794 = vld [vmem:[#allocation15 + $0x8] sm:$0xff]
        %v8795 = vrot.slane %v8785, 4
        %v8796 = vadd.f32 %v8785, %v8795
        %v8797 = vrot.slane %v8796, 2
        %v8798 = vadd.f32 %v8796, %v8797
        %v8799 = vrot.slane %v8798, 1
        %v8800 = vadd.f32 %v8798, %v8799
        %v8801 = vrot.slane %v8786, 4
        %v8802 = vadd.f32 %v8786, %v8801
        %v8803 = vrot.slane %v8802, 2
        %v8804 = vadd.f32 %v8802, %v8803
        %v8805 = vrot.slane %v8804, 1
        %v8806 = vadd.f32 %v8804, %v8805
        %v8807 = vrot.slane %v8787, 4
        %v8808 = vadd.f32 %v8787, %v8807
        %v8809 = vrot.slane %v8808, 2
        %v8810 = vadd.f32 %v8808, %v8809
        %v8811 = vrot.slane %v8810, 1
        %v8812 = vadd.f32 %v8810, %v8811
        %v8813 = vrot.slane %v8788, 4
        %v8814 = vadd.f32 %v8788, %v8813
        %v8815 = vrot.slane %v8814, 2
        %v8816 = vadd.f32 %v8814, %v8815
        %v8817 = vrot.slane %v8816, 1
        %v8818 = vadd.f32 %v8816, %v8817
        %v8819 = vrot.slane %v8789, 4
        %v8820 = vadd.f32 %v8789, %v8819
        %v8821 = vrot.slane %v8820, 2
        %v8822 = vadd.f32 %v8820, %v8821
        %v8823 = vrot.slane %v8822, 1
        %v8824 = vadd.f32 %v8822, %v8823
        %v8825 = vrot.slane %v8790, 4
        %v8826 = vadd.f32 %v8790, %v8825
        %v8827 = vrot.slane %v8826, 2
        %v8828 = vadd.f32 %v8826, %v8827
        %v8829 = vrot.slane %v8828, 1
        %v8830 = vadd.f32 %v8828, %v8829
        %v8831 = vrot.slane %v8791, 4
        %v8832 = vadd.f32 %v8791, %v8831
        %v8833 = vrot.slane %v8832, 2
        %v8834 = vadd.f32 %v8832, %v8833
        %v8835 = vrot.slane %v8834, 1
        %v8836 = vadd.f32 %v8834, %v8835
        %v8837 = vrot.slane %v8792, 4
        %v8838 = vadd.f32 %v8792, %v8837
        %v8839 = vrot.slane %v8838, 2
        %v8840 = vadd.f32 %v8838, %v8839
        %v8841 = vrot.slane %v8840, 1
        %v8842 = vadd.f32 %v8840, %v8841
        %v8843 = vmul.f32 %v8800, %v4804
        %v8844 = vmul.f32 %v8806, %v4804
        %v8845 = vmul.f32 %v8812, %v4804
        %v8846 = vmul.f32 %v8818, %v4804
        %v8847 = vmul.f32 %v8824, %v4804
        %v8848 = vmul.f32 %v8830, %v4804
        %v8849 = vmul.f32 %v8836, %v4804
        %v8850 = vmul.f32 %v8842, %v4804
        %v8851 = vsub.f32 %v8785, %v8843
        %v8852 = vsub.f32 %v8786, %v8844
        %v8853 = vsub.f32 %v8787, %v8845
        %v8854 = vsub.f32 %v8788, %v8846
        %v8855 = vsub.f32 %v8789, %v8847
        %v8856 = vsub.f32 %v8790, %v8848
        %v8857 = vsub.f32 %v8791, %v8849
        %v8858 = vsub.f32 %v8792, %v8850
        %v8859 = vmul.f32 %v8851, %v8851
        %v8860 = vmul.f32 %v8852, %v8852
        %v8861 = vmul.f32 %v8853, %v8853
        %v8862 = vmul.f32 %v8854, %v8854
        %v8863 = vmul.f32 %v8855, %v8855
        %v8864 = vmul.f32 %v8856, %v8856
        %v8865 = vmul.f32 %v8857, %v8857
        %v8866 = vmul.f32 %v8858, %v8858
        %v8867 = vrot.slane %v8859, 4
        %v8868 = vadd.f32 %v8859, %v8867
        %v8869 = vrot.slane %v8868, 2
        %v8870 = vadd.f32 %v8868, %v8869
        %v8871 = vrot.slane %v8870, 1
        %v8872 = vadd.f32 %v8870, %v8871
        %v8873 = vrot.slane %v8860, 4
        %v8874 = vadd.f32 %v8860, %v8873
        %v8875 = vrot.slane %v8874, 2
        %v8876 = vadd.f32 %v8874, %v8875
        %v8877 = vrot.slane %v8876, 1
        %v8878 = vadd.f32 %v8876, %v8877
        %v8879 = vrot.slane %v8861, 4
        %v8880 = vadd.f32 %v8861, %v8879
        %v8881 = vrot.slane %v8880, 2
        %v8882 = vadd.f32 %v8880, %v8881
        %v8883 = vrot.slane %v8882, 1
        %v8884 = vadd.f32 %v8882, %v8883
        %v8885 = vrot.slane %v8862, 4
        %v8886 = vadd.f32 %v8862, %v8885
        %v8887 = vrot.slane %v8886, 2
        %v8888 = vadd.f32 %v8886, %v8887
        %v8889 = vrot.slane %v8888, 1
        %v8890 = vadd.f32 %v8888, %v8889
        %v8891 = vrot.slane %v8863, 4
        %v8892 = vadd.f32 %v8863, %v8891
        %v8893 = vrot.slane %v8892, 2
        %v8894 = vadd.f32 %v8892, %v8893
        %v8895 = vrot.slane %v8894, 1
        %v8896 = vadd.f32 %v8894, %v8895
        %v8897 = vrot.slane %v8864, 4
        %v8898 = vadd.f32 %v8864, %v8897
        %v8899 = vrot.slane %v8898, 2
        %v8900 = vadd.f32 %v8898, %v8899
        %v8901 = vrot.slane %v8900, 1
        %v8902 = vadd.f32 %v8900, %v8901
        %v8903 = vrot.slane %v8865, 4
        %v8904 = vadd.f32 %v8865, %v8903
        %v8905 = vrot.slane %v8904, 2
        %v8906 = vadd.f32 %v8904, %v8905
        %v8907 = vrot.slane %v8906, 1
        %v8908 = vadd.f32 %v8906, %v8907
        %v8909 = vrot.slane %v8866, 4
        %v8910 = vadd.f32 %v8866, %v8909
        %v8911 = vrot.slane %v8910, 2
        %v8912 = vadd.f32 %v8910, %v8911
        %v8913 = vrot.slane %v8912, 1
        %v8914 = vadd.f32 %v8912, %v8913
        %v8915 = vmul.f32 %v8872, %v4804
        %v8916 = vmul.f32 %v8878, %v4804
        %v8917 = vmul.f32 %v8884, %v4804
        %v8918 = vmul.f32 %v8890, %v4804
        %v8919 = vmul.f32 %v8896, %v4804
        %v8920 = vmul.f32 %v8902, %v4804
        %v8921 = vmul.f32 %v8908, %v4804
        %v8922 = vmul.f32 %v8914, %v4804
        %v8923 = vadd.f32 %v8915, 1e-05
        %v8924 = vadd.f32 %v8916, 1e-05
        %v8925 = vadd.f32 %v8917, 1e-05
        %v8926 = vadd.f32 %v8918, 1e-05
        %v8927 = vadd.f32 %v8919, 1e-05
        %v8928 = vadd.f32 %v8920, 1e-05
        %v8929 = vadd.f32 %v8921, 1e-05
        %v8930 = vadd.f32 %v8922, 1e-05
        %v8931 = vrsqrt.pop %v8923
        %v8932 = vrsqrt.pop %v8924
        %v8933 = vrsqrt.pop %v8925
        %v8934 = vrsqrt.pop %v8926
        %v8935 = vrsqrt.pop %v8927
        %v8936 = vrsqrt.pop %v8928
        %v8937 = vrsqrt.pop %v8929
        %v8938 = vrsqrt.pop %v8930
        %v8939 = vmul.f32 %v8851, %v8931
        %v8940 = vmul.f32 %v8852, %v8932
        %v8941 = vmul.f32 %v8853, %v8933
        %v8942 = vmul.f32 %v8854, %v8934
        %v8943 = vmul.f32 %v8855, %v8935
        %v8944 = vmul.f32 %v8856, %v8936
        %v8945 = vmul.f32 %v8857, %v8937
        %v8946 = vmul.f32 %v8858, %v8938
        %v8948 = vlaneseq
        %v8949 = vshrl.u32 %v8948, 7
        %v8950 = vsub.s32 0, %v8949
        %v8951 = vrot.slane %v8793, %v8950
        %v8952 = vlaneseq
        %v8953 = vshrl.u32 %v8952, 7
        %v8954 = vsub.s32 1, %v8953
        %v8955 = vrot.slane %v8793, %v8954
        %v8956 = vlaneseq
        %v8957 = vshrl.u32 %v8956, 7
        %v8958 = vsub.s32 2, %v8957
        %v8959 = vrot.slane %v8793, %v8958
        %v8960 = vlaneseq
        %v8961 = vshrl.u32 %v8960, 7
        %v8962 = vsub.s32 3, %v8961
        %v8963 = vrot.slane %v8793, %v8962
        %v8964 = vlaneseq
        %v8965 = vshrl.u32 %v8964, 7
        %v8966 = vsub.s32 4, %v8965
        %v8967 = vrot.slane %v8793, %v8966
        %v8968 = vlaneseq
        %v8969 = vshrl.u32 %v8968, 7
        %v8970 = vsub.s32 5, %v8969
        %v8971 = vrot.slane %v8793, %v8970
        %v8972 = vlaneseq
        %v8973 = vshrl.u32 %v8972, 7
        %v8974 = vsub.s32 6, %v8973
        %v8975 = vrot.slane %v8793, %v8974
        %v8976 = vlaneseq
        %v8977 = vshrl.u32 %v8976, 7
        %v8978 = vsub.s32 7, %v8977
        %v8979 = vrot.slane %v8793, %v8978
        %v8988 = vmul.f32 %v8939, %v8951
        %v8989 = vmul.f32 %v8940, %v8955
        %v8990 = vmul.f32 %v8941, %v8959
        %v8991 = vmul.f32 %v8942, %v8963
        %v8992 = vmul.f32 %v8943, %v8967
        %v8993 = vmul.f32 %v8944, %v8971
        %v8994 = vmul.f32 %v8945, %v8975
        %v8995 = vmul.f32 %v8946, %v8979
        %v8997 = vlaneseq
        %v8998 = vshrl.u32 %v8997, 7
        %v8999 = vsub.s32 0, %v8998
        %v9000 = vrot.slane %v8794, %v8999
        %v9001 = vlaneseq
        %v9002 = vshrl.u32 %v9001, 7
        %v9003 = vsub.s32 1, %v9002
        %v9004 = vrot.slane %v8794, %v9003
        %v9005 = vlaneseq
        %v9006 = vshrl.u32 %v9005, 7
        %v9007 = vsub.s32 2, %v9006
        %v9008 = vrot.slane %v8794, %v9007
        %v9009 = vlaneseq
        %v9010 = vshrl.u32 %v9009, 7
        %v9011 = vsub.s32 3, %v9010
        %v9012 = vrot.slane %v8794, %v9011
        %v9013 = vlaneseq
        %v9014 = vshrl.u32 %v9013, 7
        %v9015 = vsub.s32 4, %v9014
        %v9016 = vrot.slane %v8794, %v9015
        %v9017 = vlaneseq
        %v9018 = vshrl.u32 %v9017, 7
        %v9019 = vsub.s32 5, %v9018
        %v9020 = vrot.slane %v8794, %v9019
        %v9021 = vlaneseq
        %v9022 = vshrl.u32 %v9021, 7
        %v9023 = vsub.s32 6, %v9022
        %v9024 = vrot.slane %v8794, %v9023
        %v9025 = vlaneseq
        %v9026 = vshrl.u32 %v9025, 7
        %v9027 = vsub.s32 7, %v9026
        %v9028 = vrot.slane %v8794, %v9027
        %v9037 = vadd.f32 %v8988, %v9000
        %v9038 = vadd.f32 %v8989, %v9004
        %v9039 = vadd.f32 %v8990, %v9008
        %v9040 = vadd.f32 %v8991, %v9012
        %v9041 = vadd.f32 %v8992, %v9016
        %v9042 = vadd.f32 %v8993, %v9020
        %v9043 = vadd.f32 %v8994, %v9024
        %v9044 = vadd.f32 %v8995, %v9028
        %v9045 = vld [vmem:[#allocation12 + $0x10] sm:$0xf]
        %v9046 = vpack.c.bf16 %v9037, %v9037
        %v9047 = vpack.c.bf16 %v9038, %v9038
        %v9048 = vpack.c.bf16 %v9039, %v9039
        %v9049 = vpack.c.bf16 %v9040, %v9040
        %v9050 = vpack.c.bf16 %v9041, %v9041
        %v9051 = vpack.c.bf16 %v9042, %v9042
        %v9052 = vpack.c.bf16 %v9043, %v9043
        %v9053 = vpack.c.bf16 %v9044, %v9044
        %v9054 = vld [vmem:[#allocation4] sm:$0xff]
        %v9055 = vld [vmem:[#allocation4 + $0x8] sm:$0xff]
        %v9056 = vld [vmem:[#allocation4 + $0x10] sm:$0xff]
        %v9057 = vld [vmem:[#allocation4 + $0x18] sm:$0xff]
        %v9058 = vld [vmem:[#allocation4 + $0x20] sm:$0xff]
        %v9059 = vld [vmem:[#allocation4 + $0x28] sm:$0xff]
        %v9060 = vld [vmem:[#allocation4 + $0x30] sm:$0xff]
        %v9061 = vld [vmem:[#allocation4 + $0x38] sm:$0xff]
        %v9062 = vld [vmem:[#allocation4 + $0x40] sm:$0xff]
        %v9063 = vld [vmem:[#allocation4 + $0x48] sm:$0xff]
        %v9064 = vld [vmem:[#allocation4 + $0x50] sm:$0xff]
        %v9065 = vld [vmem:[#allocation4 + $0x58] sm:$0xff]
        %v9066 = vld [vmem:[#allocation4 + $0x60] sm:$0xff]
        %v9067 = vld [vmem:[#allocation4 + $0x68] sm:$0xff]
        %v9068 = vld [vmem:[#allocation4 + $0x70] sm:$0xff]
        %v9069 = vld [vmem:[#allocation4 + $0x78] sm:$0xff]
        %v9070 = vld [vmem:[#allocation4 + $0x80] sm:$0xff]
        %v9071 = vld [vmem:[#allocation4 + $0x88] sm:$0xff]
        %v9072 = vld [vmem:[#allocation4 + $0x90] sm:$0xff]
        %v9073 = vld [vmem:[#allocation4 + $0x98] sm:$0xff]
        %v9074 = vld [vmem:[#allocation4 + $0xa0] sm:$0xff]
        %v9075 = vld [vmem:[#allocation4 + $0xa8] sm:$0xff]
        %v9076 = vld [vmem:[#allocation4 + $0xb0] sm:$0xff]
        %v9077 = vld [vmem:[#allocation4 + $0xb8] sm:$0xff]
        %v9078 = vld [vmem:[#allocation4 + $0xc0] sm:$0xff]
        %v9079 = vld [vmem:[#allocation4 + $0xc8] sm:$0xff]
        %v9080 = vld [vmem:[#allocation4 + $0xd0] sm:$0xff]
        %v9081 = vld [vmem:[#allocation4 + $0xd8] sm:$0xff]
        %v9082 = vld [vmem:[#allocation4 + $0xe0] sm:$0xff]
        %v9083 = vld [vmem:[#allocation4 + $0xe8] sm:$0xff]
        %v9084 = vld [vmem:[#allocation4 + $0xf0] sm:$0xff]
        %v9085 = vld [vmem:[#allocation4 + $0xf8] sm:$0xff]
        %v9086 = vld [vmem:[#allocation4 + $0x100] sm:$0xff]
        %v9087 = vld [vmem:[#allocation4 + $0x108] sm:$0xff]
        %v9088 = vld [vmem:[#allocation4 + $0x110] sm:$0xff]
        %v9089 = vld [vmem:[#allocation4 + $0x118] sm:$0xff]
        %v9090 = vld [vmem:[#allocation4 + $0x120] sm:$0xff]
        %v9091 = vld [vmem:[#allocation4 + $0x128] sm:$0xff]
        %v9092 = vld [vmem:[#allocation4 + $0x130] sm:$0xff]
        %v9093 = vld [vmem:[#allocation4 + $0x138] sm:$0xff]
        %v9094 = vld [vmem:[#allocation4 + $0x140] sm:$0xff]
        %v9095 = vld [vmem:[#allocation4 + $0x148] sm:$0xff]
        %v9096 = vld [vmem:[#allocation4 + $0x150] sm:$0xff]
        %v9097 = vld [vmem:[#allocation4 + $0x158] sm:$0xff]
        %v9098 = vld [vmem:[#allocation4 + $0x160] sm:$0xff]
        %v9099 = vld [vmem:[#allocation4 + $0x168] sm:$0xff]
        %v9100 = vld [vmem:[#allocation4 + $0x170] sm:$0xff]
        %v9101 = vld [vmem:[#allocation4 + $0x178] sm:$0xff]
        %v9102 = vld [vmem:[#allocation4 + $0x180] sm:$0xff]
        %v9103 = vld [vmem:[#allocation4 + $0x188] sm:$0xff]
        %v9104 = vld [vmem:[#allocation4 + $0x190] sm:$0xff]
        %v9105 = vld [vmem:[#allocation4 + $0x198] sm:$0xff]
        %v9106 = vld [vmem:[#allocation4 + $0x1a0] sm:$0xff]
        %v9107 = vld [vmem:[#allocation4 + $0x1a8] sm:$0xff]
        %v9108 = vld [vmem:[#allocation4 + $0x1b0] sm:$0xff]
        %v9109 = vld [vmem:[#allocation4 + $0x1b8] sm:$0xff]
        %v9110 = vld [vmem:[#allocation4 + $0x1c0] sm:$0xff]
        %v9111 = vld [vmem:[#allocation4 + $0x1c8] sm:$0xff]
        %v9112 = vld [vmem:[#allocation4 + $0x1d0] sm:$0xff]
        %v9113 = vld [vmem:[#allocation4 + $0x1d8] sm:$0xff]
        %v9114 = vld [vmem:[#allocation4 + $0x1e0] sm:$0xff]
        %v9115 = vld [vmem:[#allocation4 + $0x1e8] sm:$0xff]
        %v9116 = vld [vmem:[#allocation4 + $0x1f0] sm:$0xff]
        %v9117 = vld [vmem:[#allocation4 + $0x1f8] sm:$0xff]
        %v9118 = vld [vmem:[#allocation4 + $0x200] sm:$0xff]
        %v9119 = vld [vmem:[#allocation4 + $0x208] sm:$0xff]
        %v9120 = vld [vmem:[#allocation4 + $0x210] sm:$0xff]
        %v9121 = vld [vmem:[#allocation4 + $0x218] sm:$0xff]
        %v9122 = vld [vmem:[#allocation4 + $0x220] sm:$0xff]
        %v9123 = vld [vmem:[#allocation4 + $0x228] sm:$0xff]
        %v9124 = vld [vmem:[#allocation4 + $0x230] sm:$0xff]
        %v9125 = vld [vmem:[#allocation4 + $0x238] sm:$0xff]
        %v9126 = vld [vmem:[#allocation4 + $0x240] sm:$0xff]
        %v9127 = vld [vmem:[#allocation4 + $0x248] sm:$0xff]
        %v9128 = vld [vmem:[#allocation4 + $0x250] sm:$0xff]
        %v9129 = vld [vmem:[#allocation4 + $0x258] sm:$0xff]
        %v9130 = vld [vmem:[#allocation4 + $0x260] sm:$0xff]
        %v9131 = vld [vmem:[#allocation4 + $0x268] sm:$0xff]
        %v9132 = vld [vmem:[#allocation4 + $0x270] sm:$0xff]
        %v9133 = vld [vmem:[#allocation4 + $0x278] sm:$0xff]
        %v9134 = vld [vmem:[#allocation4 + $0x280] sm:$0xff]
        %v9135 = vld [vmem:[#allocation4 + $0x288] sm:$0xff]
        %v9136 = vld [vmem:[#allocation4 + $0x290] sm:$0xff]
        %v9137 = vld [vmem:[#allocation4 + $0x298] sm:$0xff]
        %v9138 = vld [vmem:[#allocation4 + $0x2a0] sm:$0xff]
        %v9139 = vld [vmem:[#allocation4 + $0x2a8] sm:$0xff]
        %v9140 = vld [vmem:[#allocation4 + $0x2b0] sm:$0xff]
        %v9141 = vld [vmem:[#allocation4 + $0x2b8] sm:$0xff]
        %v9142 = vld [vmem:[#allocation4 + $0x2c0] sm:$0xff]
        %v9143 = vld [vmem:[#allocation4 + $0x2c8] sm:$0xff]
        %v9144 = vld [vmem:[#allocation4 + $0x2d0] sm:$0xff]
        %v9145 = vld [vmem:[#allocation4 + $0x2d8] sm:$0xff]
        %v9146 = vld [vmem:[#allocation4 + $0x2e0] sm:$0xff]
        %v9147 = vld [vmem:[#allocation4 + $0x2e8] sm:$0xff]
        %v9148 = vld [vmem:[#allocation4 + $0x2f0] sm:$0xff]
        %v9149 = vld [vmem:[#allocation4 + $0x2f8] sm:$0xff]
        %v9150 = vld [vmem:[#allocation4 + $0x300] sm:$0xff]
        %v9151 = vld [vmem:[#allocation4 + $0x308] sm:$0xff]
        %v9152 = vld [vmem:[#allocation4 + $0x310] sm:$0xff]
        %v9153 = vld [vmem:[#allocation4 + $0x318] sm:$0xff]
        %v9154 = vld [vmem:[#allocation4 + $0x320] sm:$0xff]
        %v9155 = vld [vmem:[#allocation4 + $0x328] sm:$0xff]
        %v9156 = vld [vmem:[#allocation4 + $0x330] sm:$0xff]
        %v9157 = vld [vmem:[#allocation4 + $0x338] sm:$0xff]
        %v9158 = vld [vmem:[#allocation4 + $0x340] sm:$0xff]
        %v9159 = vld [vmem:[#allocation4 + $0x348] sm:$0xff]
        %v9160 = vld [vmem:[#allocation4 + $0x350] sm:$0xff]
        %v9161 = vld [vmem:[#allocation4 + $0x358] sm:$0xff]
        %v9162 = vld [vmem:[#allocation4 + $0x360] sm:$0xff]
        %v9163 = vld [vmem:[#allocation4 + $0x368] sm:$0xff]
        %v9164 = vld [vmem:[#allocation4 + $0x370] sm:$0xff]
        %v9165 = vld [vmem:[#allocation4 + $0x378] sm:$0xff]
        %v9166 = vld [vmem:[#allocation4 + $0x380] sm:$0xff]
        %v9167 = vld [vmem:[#allocation4 + $0x388] sm:$0xff]
        %v9168 = vld [vmem:[#allocation4 + $0x390] sm:$0xff]
        %v9169 = vld [vmem:[#allocation4 + $0x398] sm:$0xff]
        %v9170 = vld [vmem:[#allocation4 + $0x3a0] sm:$0xff]
        %v9171 = vld [vmem:[#allocation4 + $0x3a8] sm:$0xff]
        %v9172 = vld [vmem:[#allocation4 + $0x3b0] sm:$0xff]
        %v9173 = vld [vmem:[#allocation4 + $0x3b8] sm:$0xff]
        %v9174 = vld [vmem:[#allocation4 + $0x3c0] sm:$0xff]
        %v9175 = vld [vmem:[#allocation4 + $0x3c8] sm:$0xff]
        %v9176 = vld [vmem:[#allocation4 + $0x3d0] sm:$0xff]
        %v9177 = vld [vmem:[#allocation4 + $0x3d8] sm:$0xff]
        %v9178 = vld [vmem:[#allocation4 + $0x3e0] sm:$0xff]
        %v9179 = vld [vmem:[#allocation4 + $0x3e8] sm:$0xff]
        %v9180 = vld [vmem:[#allocation4 + $0x3f0] sm:$0xff]
        %v9181 = vld [vmem:[#allocation4 + $0x3f8] sm:$0xff]
        %v9182 = vld [vmem:[#allocation4 + $0x400] sm:$0xff]
        %v9183 = vld [vmem:[#allocation4 + $0x408] sm:$0xff]
        %v9184 = vld [vmem:[#allocation4 + $0x410] sm:$0xff]
        %v9185 = vld [vmem:[#allocation4 + $0x418] sm:$0xff]
        %v9186 = vld [vmem:[#allocation4 + $0x420] sm:$0xff]
        %v9187 = vld [vmem:[#allocation4 + $0x428] sm:$0xff]
        %v9188 = vld [vmem:[#allocation4 + $0x430] sm:$0xff]
        %v9189 = vld [vmem:[#allocation4 + $0x438] sm:$0xff]
        %v9190 = vld [vmem:[#allocation4 + $0x440] sm:$0xff]
        %v9191 = vld [vmem:[#allocation4 + $0x448] sm:$0xff]
        %v9192 = vld [vmem:[#allocation4 + $0x450] sm:$0xff]
        %v9193 = vld [vmem:[#allocation4 + $0x458] sm:$0xff]
        %v9194 = vld [vmem:[#allocation4 + $0x460] sm:$0xff]
        %v9195 = vld [vmem:[#allocation4 + $0x468] sm:$0xff]
        %v9196 = vld [vmem:[#allocation4 + $0x470] sm:$0xff]
        %v9197 = vld [vmem:[#allocation4 + $0x478] sm:$0xff]
        %v9198 = vld [vmem:[#allocation4 + $0x480] sm:$0xff]
        %v9199 = vld [vmem:[#allocation4 + $0x488] sm:$0xff]
        %v9200 = vld [vmem:[#allocation4 + $0x490] sm:$0xff]
        %v9201 = vld [vmem:[#allocation4 + $0x498] sm:$0xff]
        %v9202 = vld [vmem:[#allocation4 + $0x4a0] sm:$0xff]
        %v9203 = vld [vmem:[#allocation4 + $0x4a8] sm:$0xff]
        %v9204 = vld [vmem:[#allocation4 + $0x4b0] sm:$0xff]
        %v9205 = vld [vmem:[#allocation4 + $0x4b8] sm:$0xff]
        %v9206 = vld [vmem:[#allocation4 + $0x4c0] sm:$0xff]
        %v9207 = vld [vmem:[#allocation4 + $0x4c8] sm:$0xff]
        %v9208 = vld [vmem:[#allocation4 + $0x4d0] sm:$0xff]
        %v9209 = vld [vmem:[#allocation4 + $0x4d8] sm:$0xff]
        %v9210 = vld [vmem:[#allocation4 + $0x4e0] sm:$0xff]
        %v9211 = vld [vmem:[#allocation4 + $0x4e8] sm:$0xff]
        %v9212 = vld [vmem:[#allocation4 + $0x4f0] sm:$0xff]
        %v9213 = vld [vmem:[#allocation4 + $0x4f8] sm:$0xff]
        %v9214 = vld [vmem:[#allocation4 + $0x500] sm:$0xff]
        %v9215 = vld [vmem:[#allocation4 + $0x508] sm:$0xff]
        %v9216 = vld [vmem:[#allocation4 + $0x510] sm:$0xff]
        %v9217 = vld [vmem:[#allocation4 + $0x518] sm:$0xff]
        %v9218 = vld [vmem:[#allocation4 + $0x520] sm:$0xff]
        %v9219 = vld [vmem:[#allocation4 + $0x528] sm:$0xff]
        %v9220 = vld [vmem:[#allocation4 + $0x530] sm:$0xff]
        %v9221 = vld [vmem:[#allocation4 + $0x538] sm:$0xff]
        %v9222 = vld [vmem:[#allocation4 + $0x540] sm:$0xff]
        %v9223 = vld [vmem:[#allocation4 + $0x548] sm:$0xff]
        %v9224 = vld [vmem:[#allocation4 + $0x550] sm:$0xff]
        %v9225 = vld [vmem:[#allocation4 + $0x558] sm:$0xff]
        %v9226 = vld [vmem:[#allocation4 + $0x560] sm:$0xff]
        %v9227 = vld [vmem:[#allocation4 + $0x568] sm:$0xff]
        %v9228 = vld [vmem:[#allocation4 + $0x570] sm:$0xff]
        %v9229 = vld [vmem:[#allocation4 + $0x578] sm:$0xff]
        %v9230 = vld [vmem:[#allocation4 + $0x580] sm:$0xff]
        %v9231 = vld [vmem:[#allocation4 + $0x588] sm:$0xff]
        %v9232 = vld [vmem:[#allocation4 + $0x590] sm:$0xff]
        %v9233 = vld [vmem:[#allocation4 + $0x598] sm:$0xff]
        %v9234 = vld [vmem:[#allocation4 + $0x5a0] sm:$0xff]
        %v9235 = vld [vmem:[#allocation4 + $0x5a8] sm:$0xff]
        %v9236 = vld [vmem:[#allocation4 + $0x5b0] sm:$0xff]
        %v9237 = vld [vmem:[#allocation4 + $0x5b8] sm:$0xff]
        %v9238 = vld [vmem:[#allocation4 + $0x5c0] sm:$0xff]
        %v9239 = vld [vmem:[#allocation4 + $0x5c8] sm:$0xff]
        %v9240 = vld [vmem:[#allocation4 + $0x5d0] sm:$0xff]
        %v9241 = vld [vmem:[#allocation4 + $0x5d8] sm:$0xff]
        %v9242 = vld [vmem:[#allocation4 + $0x5e0] sm:$0xff]
        %v9243 = vld [vmem:[#allocation4 + $0x5e8] sm:$0xff]
        %v9244 = vld [vmem:[#allocation4 + $0x5f0] sm:$0xff]
        %v9245 = vld [vmem:[#allocation4 + $0x5f8] sm:$0xff]
        %v9246 = vld [vmem:[#allocation4 + $0x600] sm:$0xff]
        %v9247 = vld [vmem:[#allocation4 + $0x608] sm:$0xff]
        %v9248 = vld [vmem:[#allocation4 + $0x610] sm:$0xff]
        %v9249 = vld [vmem:[#allocation4 + $0x618] sm:$0xff]
        %v9250 = vld [vmem:[#allocation4 + $0x620] sm:$0xff]
        %v9251 = vld [vmem:[#allocation4 + $0x628] sm:$0xff]
        %v9252 = vld [vmem:[#allocation4 + $0x630] sm:$0xff]
        %v9253 = vld [vmem:[#allocation4 + $0x638] sm:$0xff]
        %v9254 = vld [vmem:[#allocation4 + $0x640] sm:$0xff]
        %v9255 = vld [vmem:[#allocation4 + $0x648] sm:$0xff]
        %v9256 = vld [vmem:[#allocation4 + $0x650] sm:$0xff]
        %v9257 = vld [vmem:[#allocation4 + $0x658] sm:$0xff]
        %v9258 = vld [vmem:[#allocation4 + $0x660] sm:$0xff]
        %v9259 = vld [vmem:[#allocation4 + $0x668] sm:$0xff]
        %v9260 = vld [vmem:[#allocation4 + $0x670] sm:$0xff]
        %v9261 = vld [vmem:[#allocation4 + $0x678] sm:$0xff]
        %v9262 = vld [vmem:[#allocation4 + $0x680] sm:$0xff]
        %v9263 = vld [vmem:[#allocation4 + $0x688] sm:$0xff]
        %v9264 = vld [vmem:[#allocation4 + $0x690] sm:$0xff]
        %v9265 = vld [vmem:[#allocation4 + $0x698] sm:$0xff]
        %v9266 = vld [vmem:[#allocation4 + $0x6a0] sm:$0xff]
        %v9267 = vld [vmem:[#allocation4 + $0x6a8] sm:$0xff]
        %v9268 = vld [vmem:[#allocation4 + $0x6b0] sm:$0xff]
        %v9269 = vld [vmem:[#allocation4 + $0x6b8] sm:$0xff]
        %v9270 = vld [vmem:[#allocation4 + $0x6c0] sm:$0xff]
        %v9271 = vld [vmem:[#allocation4 + $0x6c8] sm:$0xff]
        %v9272 = vld [vmem:[#allocation4 + $0x6d0] sm:$0xff]
        %v9273 = vld [vmem:[#allocation4 + $0x6d8] sm:$0xff]
        %v9274 = vld [vmem:[#allocation4 + $0x6e0] sm:$0xff]
        %v9275 = vld [vmem:[#allocation4 + $0x6e8] sm:$0xff]
        %v9276 = vld [vmem:[#allocation4 + $0x6f0] sm:$0xff]
        %v9277 = vld [vmem:[#allocation4 + $0x6f8] sm:$0xff]
        %v9278 = vld [vmem:[#allocation4 + $0x700] sm:$0xff]
        %v9279 = vld [vmem:[#allocation4 + $0x708] sm:$0xff]
        %v9280 = vld [vmem:[#allocation4 + $0x710] sm:$0xff]
        %v9281 = vld [vmem:[#allocation4 + $0x718] sm:$0xff]
        %v9282 = vld [vmem:[#allocation4 + $0x720] sm:$0xff]
        %v9283 = vld [vmem:[#allocation4 + $0x728] sm:$0xff]
        %v9284 = vld [vmem:[#allocation4 + $0x730] sm:$0xff]
        %v9285 = vld [vmem:[#allocation4 + $0x738] sm:$0xff]
        %v9286 = vld [vmem:[#allocation4 + $0x740] sm:$0xff]
        %v9287 = vld [vmem:[#allocation4 + $0x748] sm:$0xff]
        %v9288 = vld [vmem:[#allocation4 + $0x750] sm:$0xff]
        %v9289 = vld [vmem:[#allocation4 + $0x758] sm:$0xff]
        %v9290 = vld [vmem:[#allocation4 + $0x760] sm:$0xff]
        %v9291 = vld [vmem:[#allocation4 + $0x768] sm:$0xff]
        %v9292 = vld [vmem:[#allocation4 + $0x770] sm:$0xff]
        %v9293 = vld [vmem:[#allocation4 + $0x778] sm:$0xff]
        %v9294 = vld [vmem:[#allocation4 + $0x780] sm:$0xff]
        %v9295 = vld [vmem:[#allocation4 + $0x788] sm:$0xff]
        %v9296 = vld [vmem:[#allocation4 + $0x790] sm:$0xff]
        %v9297 = vld [vmem:[#allocation4 + $0x798] sm:$0xff]
        %v9298 = vld [vmem:[#allocation4 + $0x7a0] sm:$0xff]
        %v9299 = vld [vmem:[#allocation4 + $0x7a8] sm:$0xff]
        %v9300 = vld [vmem:[#allocation4 + $0x7b0] sm:$0xff]
        %v9301 = vld [vmem:[#allocation4 + $0x7b8] sm:$0xff]
        %v9302 = vld [vmem:[#allocation4 + $0x7c0] sm:$0xff]
        %v9303 = vld [vmem:[#allocation4 + $0x7c8] sm:$0xff]
        %v9304 = vld [vmem:[#allocation4 + $0x7d0] sm:$0xff]
        %v9305 = vld [vmem:[#allocation4 + $0x7d8] sm:$0xff]
        %v9306 = vld [vmem:[#allocation4 + $0x7e0] sm:$0xff]
        %v9307 = vld [vmem:[#allocation4 + $0x7e8] sm:$0xff]
        %v9308 = vld [vmem:[#allocation4 + $0x7f0] sm:$0xff]
        %v9309 = vld [vmem:[#allocation4 + $0x7f8] sm:$0xff]
        %v9311 = vlaneseq
        %v9312 = vshrl.u32 %v9311, 7
        %v9313 = vsub.s32 0, %v9312
        %v9314 = vrot.slane %v9045, %v9313
        %v9315 = vlaneseq
        %v9316 = vshrl.u32 %v9315, 7
        %v9317 = vsub.s32 1, %v9316
        %v9318 = vrot.slane %v9045, %v9317
        %v9319 = vlaneseq
        %v9320 = vshrl.u32 %v9319, 7
        %v9321 = vsub.s32 2, %v9320
        %v9322 = vrot.slane %v9045, %v9321
        %v9323 = vlaneseq
        %v9324 = vshrl.u32 %v9323, 7
        %v9325 = vsub.s32 3, %v9324
        %v9326 = vrot.slane %v9045, %v9325
        %v9587 = vunpack.c.l.b16 %v9054
        %v9588 = vunpack.c.h.b16 %v9054
        %v9589 = vunpack.c.l.b16 %v9055
        %v9590 = vunpack.c.h.b16 %v9055
        %v9591 = vunpack.c.l.b16 %v9056
        %v9592 = vunpack.c.h.b16 %v9056
        %v9593 = vunpack.c.l.b16 %v9057
        %v9594 = vunpack.c.h.b16 %v9057
        %v9595 = vunpack.c.l.b16 %v9058
        %v9596 = vunpack.c.h.b16 %v9058
        %v9597 = vunpack.c.l.b16 %v9059
        %v9598 = vunpack.c.h.b16 %v9059
        %v9599 = vunpack.c.l.b16 %v9060
        %v9600 = vunpack.c.h.b16 %v9060
        %v9601 = vunpack.c.l.b16 %v9061
        %v9602 = vunpack.c.h.b16 %v9061
        %v9603 = vunpack.c.l.b16 %v9062
        %v9604 = vunpack.c.h.b16 %v9062
        %v9605 = vunpack.c.l.b16 %v9063
        %v9606 = vunpack.c.h.b16 %v9063
        %v9607 = vunpack.c.l.b16 %v9064
        %v9608 = vunpack.c.h.b16 %v9064
        %v9609 = vunpack.c.l.b16 %v9065
        %v9610 = vunpack.c.h.b16 %v9065
        %v9611 = vunpack.c.l.b16 %v9066
        %v9612 = vunpack.c.h.b16 %v9066
        %v9613 = vunpack.c.l.b16 %v9067
        %v9614 = vunpack.c.h.b16 %v9067
        %v9615 = vunpack.c.l.b16 %v9068
        %v9616 = vunpack.c.h.b16 %v9068
        %v9617 = vunpack.c.l.b16 %v9069
        %v9618 = vunpack.c.h.b16 %v9069
        %v9619 = vunpack.c.l.b16 %v9070
        %v9620 = vunpack.c.h.b16 %v9070
        %v9621 = vunpack.c.l.b16 %v9071
        %v9622 = vunpack.c.h.b16 %v9071
        %v9623 = vunpack.c.l.b16 %v9072
        %v9624 = vunpack.c.h.b16 %v9072
        %v9625 = vunpack.c.l.b16 %v9073
        %v9626 = vunpack.c.h.b16 %v9073
        %v9627 = vunpack.c.l.b16 %v9074
        %v9628 = vunpack.c.h.b16 %v9074
        %v9629 = vunpack.c.l.b16 %v9075
        %v9630 = vunpack.c.h.b16 %v9075
        %v9631 = vunpack.c.l.b16 %v9076
        %v9632 = vunpack.c.h.b16 %v9076
        %v9633 = vunpack.c.l.b16 %v9077
        %v9634 = vunpack.c.h.b16 %v9077
        %v9635 = vunpack.c.l.b16 %v9078
        %v9636 = vunpack.c.h.b16 %v9078
        %v9637 = vunpack.c.l.b16 %v9079
        %v9638 = vunpack.c.h.b16 %v9079
        %v9639 = vunpack.c.l.b16 %v9080
        %v9640 = vunpack.c.h.b16 %v9080
        %v9641 = vunpack.c.l.b16 %v9081
        %v9642 = vunpack.c.h.b16 %v9081
        %v9643 = vunpack.c.l.b16 %v9082
        %v9644 = vunpack.c.h.b16 %v9082
        %v9645 = vunpack.c.l.b16 %v9083
        %v9646 = vunpack.c.h.b16 %v9083
        %v9647 = vunpack.c.l.b16 %v9084
        %v9648 = vunpack.c.h.b16 %v9084
        %v9649 = vunpack.c.l.b16 %v9085
        %v9650 = vunpack.c.h.b16 %v9085
        %v9651 = vunpack.c.l.b16 %v9086
        %v9652 = vunpack.c.h.b16 %v9086
        %v9653 = vunpack.c.l.b16 %v9087
        %v9654 = vunpack.c.h.b16 %v9087
        %v9655 = vunpack.c.l.b16 %v9088
        %v9656 = vunpack.c.h.b16 %v9088
        %v9657 = vunpack.c.l.b16 %v9089
        %v9658 = vunpack.c.h.b16 %v9089
        %v9659 = vunpack.c.l.b16 %v9090
        %v9660 = vunpack.c.h.b16 %v9090
        %v9661 = vunpack.c.l.b16 %v9091
        %v9662 = vunpack.c.h.b16 %v9091
        %v9663 = vunpack.c.l.b16 %v9092
        %v9664 = vunpack.c.h.b16 %v9092
        %v9665 = vunpack.c.l.b16 %v9093
        %v9666 = vunpack.c.h.b16 %v9093
        %v9667 = vunpack.c.l.b16 %v9094
        %v9668 = vunpack.c.h.b16 %v9094
        %v9669 = vunpack.c.l.b16 %v9095
        %v9670 = vunpack.c.h.b16 %v9095
        %v9671 = vunpack.c.l.b16 %v9096
        %v9672 = vunpack.c.h.b16 %v9096
        %v9673 = vunpack.c.l.b16 %v9097
        %v9674 = vunpack.c.h.b16 %v9097
        %v9675 = vunpack.c.l.b16 %v9098
        %v9676 = vunpack.c.h.b16 %v9098
        %v9677 = vunpack.c.l.b16 %v9099
        %v9678 = vunpack.c.h.b16 %v9099
        %v9679 = vunpack.c.l.b16 %v9100
        %v9680 = vunpack.c.h.b16 %v9100
        %v9681 = vunpack.c.l.b16 %v9101
        %v9682 = vunpack.c.h.b16 %v9101
        %v9683 = vunpack.c.l.b16 %v9102
        %v9684 = vunpack.c.h.b16 %v9102
        %v9685 = vunpack.c.l.b16 %v9103
        %v9686 = vunpack.c.h.b16 %v9103
        %v9687 = vunpack.c.l.b16 %v9104
        %v9688 = vunpack.c.h.b16 %v9104
        %v9689 = vunpack.c.l.b16 %v9105
        %v9690 = vunpack.c.h.b16 %v9105
        %v9691 = vunpack.c.l.b16 %v9106
        %v9692 = vunpack.c.h.b16 %v9106
        %v9693 = vunpack.c.l.b16 %v9107
        %v9694 = vunpack.c.h.b16 %v9107
        %v9695 = vunpack.c.l.b16 %v9108
        %v9696 = vunpack.c.h.b16 %v9108
        %v9697 = vunpack.c.l.b16 %v9109
        %v9698 = vunpack.c.h.b16 %v9109
        %v9699 = vunpack.c.l.b16 %v9110
        %v9700 = vunpack.c.h.b16 %v9110
        %v9701 = vunpack.c.l.b16 %v9111
        %v9702 = vunpack.c.h.b16 %v9111
        %v9703 = vunpack.c.l.b16 %v9112
        %v9704 = vunpack.c.h.b16 %v9112
        %v9705 = vunpack.c.l.b16 %v9113
        %v9706 = vunpack.c.h.b16 %v9113
        %v9707 = vunpack.c.l.b16 %v9114
        %v9708 = vunpack.c.h.b16 %v9114
        %v9709 = vunpack.c.l.b16 %v9115
        %v9710 = vunpack.c.h.b16 %v9115
        %v9711 = vunpack.c.l.b16 %v9116
        %v9712 = vunpack.c.h.b16 %v9116
        %v9713 = vunpack.c.l.b16 %v9117
        %v9714 = vunpack.c.h.b16 %v9117
        %v9715 = vunpack.c.l.b16 %v9118
        %v9716 = vunpack.c.h.b16 %v9118
        %v9717 = vunpack.c.l.b16 %v9119
        %v9718 = vunpack.c.h.b16 %v9119
        %v9719 = vunpack.c.l.b16 %v9120
        %v9720 = vunpack.c.h.b16 %v9120
        %v9721 = vunpack.c.l.b16 %v9121
        %v9722 = vunpack.c.h.b16 %v9121
        %v9723 = vunpack.c.l.b16 %v9122
        %v9724 = vunpack.c.h.b16 %v9122
        %v9725 = vunpack.c.l.b16 %v9123
        %v9726 = vunpack.c.h.b16 %v9123
        %v9727 = vunpack.c.l.b16 %v9124
        %v9728 = vunpack.c.h.b16 %v9124
        %v9729 = vunpack.c.l.b16 %v9125
        %v9730 = vunpack.c.h.b16 %v9125
        %v9731 = vunpack.c.l.b16 %v9126
        %v9732 = vunpack.c.h.b16 %v9126
        %v9733 = vunpack.c.l.b16 %v9127
        %v9734 = vunpack.c.h.b16 %v9127
        %v9735 = vunpack.c.l.b16 %v9128
        %v9736 = vunpack.c.h.b16 %v9128
        %v9737 = vunpack.c.l.b16 %v9129
        %v9738 = vunpack.c.h.b16 %v9129
        %v9739 = vunpack.c.l.b16 %v9130
        %v9740 = vunpack.c.h.b16 %v9130
        %v9741 = vunpack.c.l.b16 %v9131
        %v9742 = vunpack.c.h.b16 %v9131
        %v9743 = vunpack.c.l.b16 %v9132
        %v9744 = vunpack.c.h.b16 %v9132
        %v9745 = vunpack.c.l.b16 %v9133
        %v9746 = vunpack.c.h.b16 %v9133
        %v9747 = vunpack.c.l.b16 %v9134
        %v9748 = vunpack.c.h.b16 %v9134
        %v9749 = vunpack.c.l.b16 %v9135
        %v9750 = vunpack.c.h.b16 %v9135
        %v9751 = vunpack.c.l.b16 %v9136
        %v9752 = vunpack.c.h.b16 %v9136
        %v9753 = vunpack.c.l.b16 %v9137
        %v9754 = vunpack.c.h.b16 %v9137
        %v9755 = vunpack.c.l.b16 %v9138
        %v9756 = vunpack.c.h.b16 %v9138
        %v9757 = vunpack.c.l.b16 %v9139
        %v9758 = vunpack.c.h.b16 %v9139
        %v9759 = vunpack.c.l.b16 %v9140
        %v9760 = vunpack.c.h.b16 %v9140
        %v9761 = vunpack.c.l.b16 %v9141
        %v9762 = vunpack.c.h.b16 %v9141
        %v9763 = vunpack.c.l.b16 %v9142
        %v9764 = vunpack.c.h.b16 %v9142
        %v9765 = vunpack.c.l.b16 %v9143
        %v9766 = vunpack.c.h.b16 %v9143
        %v9767 = vunpack.c.l.b16 %v9144
        %v9768 = vunpack.c.h.b16 %v9144
        %v9769 = vunpack.c.l.b16 %v9145
        %v9770 = vunpack.c.h.b16 %v9145
        %v9771 = vunpack.c.l.b16 %v9146
        %v9772 = vunpack.c.h.b16 %v9146
        %v9773 = vunpack.c.l.b16 %v9147
        %v9774 = vunpack.c.h.b16 %v9147
        %v9775 = vunpack.c.l.b16 %v9148
        %v9776 = vunpack.c.h.b16 %v9148
        %v9777 = vunpack.c.l.b16 %v9149
        %v9778 = vunpack.c.h.b16 %v9149
        %v9779 = vunpack.c.l.b16 %v9150
        %v9780 = vunpack.c.h.b16 %v9150
        %v9781 = vunpack.c.l.b16 %v9151
        %v9782 = vunpack.c.h.b16 %v9151
        %v9783 = vunpack.c.l.b16 %v9152
        %v9784 = vunpack.c.h.b16 %v9152
        %v9785 = vunpack.c.l.b16 %v9153
        %v9786 = vunpack.c.h.b16 %v9153
        %v9787 = vunpack.c.l.b16 %v9154
        %v9788 = vunpack.c.h.b16 %v9154
        %v9789 = vunpack.c.l.b16 %v9155
        %v9790 = vunpack.c.h.b16 %v9155
        %v9791 = vunpack.c.l.b16 %v9156
        %v9792 = vunpack.c.h.b16 %v9156
        %v9793 = vunpack.c.l.b16 %v9157
        %v9794 = vunpack.c.h.b16 %v9157
        %v9795 = vunpack.c.l.b16 %v9158
        %v9796 = vunpack.c.h.b16 %v9158
        %v9797 = vunpack.c.l.b16 %v9159
        %v9798 = vunpack.c.h.b16 %v9159
        %v9799 = vunpack.c.l.b16 %v9160
        %v9800 = vunpack.c.h.b16 %v9160
        %v9801 = vunpack.c.l.b16 %v9161
        %v9802 = vunpack.c.h.b16 %v9161
        %v9803 = vunpack.c.l.b16 %v9162
        %v9804 = vunpack.c.h.b16 %v9162
        %v9805 = vunpack.c.l.b16 %v9163
        %v9806 = vunpack.c.h.b16 %v9163
        %v9807 = vunpack.c.l.b16 %v9164
        %v9808 = vunpack.c.h.b16 %v9164
        %v9809 = vunpack.c.l.b16 %v9165
        %v9810 = vunpack.c.h.b16 %v9165
        %v9811 = vunpack.c.l.b16 %v9166
        %v9812 = vunpack.c.h.b16 %v9166
        %v9813 = vunpack.c.l.b16 %v9167
        %v9814 = vunpack.c.h.b16 %v9167
        %v9815 = vunpack.c.l.b16 %v9168
        %v9816 = vunpack.c.h.b16 %v9168
        %v9817 = vunpack.c.l.b16 %v9169
        %v9818 = vunpack.c.h.b16 %v9169
        %v9819 = vunpack.c.l.b16 %v9170
        %v9820 = vunpack.c.h.b16 %v9170
        %v9821 = vunpack.c.l.b16 %v9171
        %v9822 = vunpack.c.h.b16 %v9171
        %v9823 = vunpack.c.l.b16 %v9172
        %v9824 = vunpack.c.h.b16 %v9172
        %v9825 = vunpack.c.l.b16 %v9173
        %v9826 = vunpack.c.h.b16 %v9173
        %v9827 = vunpack.c.l.b16 %v9174
        %v9828 = vunpack.c.h.b16 %v9174
        %v9829 = vunpack.c.l.b16 %v9175
        %v9830 = vunpack.c.h.b16 %v9175
        %v9831 = vunpack.c.l.b16 %v9176
        %v9832 = vunpack.c.h.b16 %v9176
        %v9833 = vunpack.c.l.b16 %v9177
        %v9834 = vunpack.c.h.b16 %v9177
        %v9835 = vunpack.c.l.b16 %v9178
        %v9836 = vunpack.c.h.b16 %v9178
        %v9837 = vunpack.c.l.b16 %v9179
        %v9838 = vunpack.c.h.b16 %v9179
        %v9839 = vunpack.c.l.b16 %v9180
        %v9840 = vunpack.c.h.b16 %v9180
        %v9841 = vunpack.c.l.b16 %v9181
        %v9842 = vunpack.c.h.b16 %v9181
        %v9843 = vunpack.c.l.b16 %v9182
        %v9844 = vunpack.c.h.b16 %v9182
        %v9845 = vunpack.c.l.b16 %v9183
        %v9846 = vunpack.c.h.b16 %v9183
        %v9847 = vunpack.c.l.b16 %v9184
        %v9848 = vunpack.c.h.b16 %v9184
        %v9849 = vunpack.c.l.b16 %v9185
        %v9850 = vunpack.c.h.b16 %v9185
        %v9851 = vunpack.c.l.b16 %v9186
        %v9852 = vunpack.c.h.b16 %v9186
        %v9853 = vunpack.c.l.b16 %v9187
        %v9854 = vunpack.c.h.b16 %v9187
        %v9855 = vunpack.c.l.b16 %v9188
        %v9856 = vunpack.c.h.b16 %v9188
        %v9857 = vunpack.c.l.b16 %v9189
        %v9858 = vunpack.c.h.b16 %v9189
        %v9859 = vunpack.c.l.b16 %v9190
        %v9860 = vunpack.c.h.b16 %v9190
        %v9861 = vunpack.c.l.b16 %v9191
        %v9862 = vunpack.c.h.b16 %v9191
        %v9863 = vunpack.c.l.b16 %v9192
        %v9864 = vunpack.c.h.b16 %v9192
        %v9865 = vunpack.c.l.b16 %v9193
        %v9866 = vunpack.c.h.b16 %v9193
        %v9867 = vunpack.c.l.b16 %v9194
        %v9868 = vunpack.c.h.b16 %v9194
        %v9869 = vunpack.c.l.b16 %v9195
        %v9870 = vunpack.c.h.b16 %v9195
        %v9871 = vunpack.c.l.b16 %v9196
        %v9872 = vunpack.c.h.b16 %v9196
        %v9873 = vunpack.c.l.b16 %v9197
        %v9874 = vunpack.c.h.b16 %v9197
        %v9875 = vunpack.c.l.b16 %v9198
        %v9876 = vunpack.c.h.b16 %v9198
        %v9877 = vunpack.c.l.b16 %v9199
        %v9878 = vunpack.c.h.b16 %v9199
        %v9879 = vunpack.c.l.b16 %v9200
        %v9880 = vunpack.c.h.b16 %v9200
        %v9881 = vunpack.c.l.b16 %v9201
        %v9882 = vunpack.c.h.b16 %v9201
        %v9883 = vunpack.c.l.b16 %v9202
        %v9884 = vunpack.c.h.b16 %v9202
        %v9885 = vunpack.c.l.b16 %v9203
        %v9886 = vunpack.c.h.b16 %v9203
        %v9887 = vunpack.c.l.b16 %v9204
        %v9888 = vunpack.c.h.b16 %v9204
        %v9889 = vunpack.c.l.b16 %v9205
        %v9890 = vunpack.c.h.b16 %v9205
        %v9891 = vunpack.c.l.b16 %v9206
        %v9892 = vunpack.c.h.b16 %v9206
        %v9893 = vunpack.c.l.b16 %v9207
        %v9894 = vunpack.c.h.b16 %v9207
        %v9895 = vunpack.c.l.b16 %v9208
        %v9896 = vunpack.c.h.b16 %v9208
        %v9897 = vunpack.c.l.b16 %v9209
        %v9898 = vunpack.c.h.b16 %v9209
        %v9899 = vunpack.c.l.b16 %v9210
        %v9900 = vunpack.c.h.b16 %v9210
        %v9901 = vunpack.c.l.b16 %v9211
        %v9902 = vunpack.c.h.b16 %v9211
        %v9903 = vunpack.c.l.b16 %v9212
        %v9904 = vunpack.c.h.b16 %v9212
        %v9905 = vunpack.c.l.b16 %v9213
        %v9906 = vunpack.c.h.b16 %v9213
        %v9907 = vunpack.c.l.b16 %v9214
        %v9908 = vunpack.c.h.b16 %v9214
        %v9909 = vunpack.c.l.b16 %v9215
        %v9910 = vunpack.c.h.b16 %v9215
        %v9911 = vunpack.c.l.b16 %v9216
        %v9912 = vunpack.c.h.b16 %v9216
        %v9913 = vunpack.c.l.b16 %v9217
        %v9914 = vunpack.c.h.b16 %v9217
        %v9915 = vunpack.c.l.b16 %v9218
        %v9916 = vunpack.c.h.b16 %v9218
        %v9917 = vunpack.c.l.b16 %v9219
        %v9918 = vunpack.c.h.b16 %v9219
        %v9919 = vunpack.c.l.b16 %v9220
        %v9920 = vunpack.c.h.b16 %v9220
        %v9921 = vunpack.c.l.b16 %v9221
        %v9922 = vunpack.c.h.b16 %v9221
        %v9923 = vunpack.c.l.b16 %v9222
        %v9924 = vunpack.c.h.b16 %v9222
        %v9925 = vunpack.c.l.b16 %v9223
        %v9926 = vunpack.c.h.b16 %v9223
        %v9927 = vunpack.c.l.b16 %v9224
        %v9928 = vunpack.c.h.b16 %v9224
        %v9929 = vunpack.c.l.b16 %v9225
        %v9930 = vunpack.c.h.b16 %v9225
        %v9931 = vunpack.c.l.b16 %v9226
        %v9932 = vunpack.c.h.b16 %v9226
        %v9933 = vunpack.c.l.b16 %v9227
        %v9934 = vunpack.c.h.b16 %v9227
        %v9935 = vunpack.c.l.b16 %v9228
        %v9936 = vunpack.c.h.b16 %v9228
        %v9937 = vunpack.c.l.b16 %v9229
        %v9938 = vunpack.c.h.b16 %v9229
        %v9939 = vunpack.c.l.b16 %v9230
        %v9940 = vunpack.c.h.b16 %v9230
        %v9941 = vunpack.c.l.b16 %v9231
        %v9942 = vunpack.c.h.b16 %v9231
        %v9943 = vunpack.c.l.b16 %v9232
        %v9944 = vunpack.c.h.b16 %v9232
        %v9945 = vunpack.c.l.b16 %v9233
        %v9946 = vunpack.c.h.b16 %v9233
        %v9947 = vunpack.c.l.b16 %v9234
        %v9948 = vunpack.c.h.b16 %v9234
        %v9949 = vunpack.c.l.b16 %v9235
        %v9950 = vunpack.c.h.b16 %v9235
        %v9951 = vunpack.c.l.b16 %v9236
        %v9952 = vunpack.c.h.b16 %v9236
        %v9953 = vunpack.c.l.b16 %v9237
        %v9954 = vunpack.c.h.b16 %v9237
        %v9955 = vunpack.c.l.b16 %v9238
        %v9956 = vunpack.c.h.b16 %v9238
        %v9957 = vunpack.c.l.b16 %v9239
        %v9958 = vunpack.c.h.b16 %v9239
        %v9959 = vunpack.c.l.b16 %v9240
        %v9960 = vunpack.c.h.b16 %v9240
        %v9961 = vunpack.c.l.b16 %v9241
        %v9962 = vunpack.c.h.b16 %v9241
        %v9963 = vunpack.c.l.b16 %v9242
        %v9964 = vunpack.c.h.b16 %v9242
        %v9965 = vunpack.c.l.b16 %v9243
        %v9966 = vunpack.c.h.b16 %v9243
        %v9967 = vunpack.c.l.b16 %v9244
        %v9968 = vunpack.c.h.b16 %v9244
        %v9969 = vunpack.c.l.b16 %v9245
        %v9970 = vunpack.c.h.b16 %v9245
        %v9971 = vunpack.c.l.b16 %v9246
        %v9972 = vunpack.c.h.b16 %v9246
        %v9973 = vunpack.c.l.b16 %v9247
        %v9974 = vunpack.c.h.b16 %v9247
        %v9975 = vunpack.c.l.b16 %v9248
        %v9976 = vunpack.c.h.b16 %v9248
        %v9977 = vunpack.c.l.b16 %v9249
        %v9978 = vunpack.c.h.b16 %v9249
        %v9979 = vunpack.c.l.b16 %v9250
        %v9980 = vunpack.c.h.b16 %v9250
        %v9981 = vunpack.c.l.b16 %v9251
        %v9982 = vunpack.c.h.b16 %v9251
        %v9983 = vunpack.c.l.b16 %v9252
        %v9984 = vunpack.c.h.b16 %v9252
        %v9985 = vunpack.c.l.b16 %v9253
        %v9986 = vunpack.c.h.b16 %v9253
        %v9987 = vunpack.c.l.b16 %v9254
        %v9988 = vunpack.c.h.b16 %v9254
        %v9989 = vunpack.c.l.b16 %v9255
        %v9990 = vunpack.c.h.b16 %v9255
        %v9991 = vunpack.c.l.b16 %v9256
        %v9992 = vunpack.c.h.b16 %v9256
        %v9993 = vunpack.c.l.b16 %v9257
        %v9994 = vunpack.c.h.b16 %v9257
        %v9995 = vunpack.c.l.b16 %v9258
        %v9996 = vunpack.c.h.b16 %v9258
        %v9997 = vunpack.c.l.b16 %v9259
        %v9998 = vunpack.c.h.b16 %v9259
        %v9999 = vunpack.c.l.b16 %v9260
        %v10000 = vunpack.c.h.b16 %v9260
        %v10001 = vunpack.c.l.b16 %v9261
        %v10002 = vunpack.c.h.b16 %v9261
        %v10003 = vunpack.c.l.b16 %v9262
        %v10004 = vunpack.c.h.b16 %v9262
        %v10005 = vunpack.c.l.b16 %v9263
        %v10006 = vunpack.c.h.b16 %v9263
        %v10007 = vunpack.c.l.b16 %v9264
        %v10008 = vunpack.c.h.b16 %v9264
        %v10009 = vunpack.c.l.b16 %v9265
        %v10010 = vunpack.c.h.b16 %v9265
        %v10011 = vunpack.c.l.b16 %v9266
        %v10012 = vunpack.c.h.b16 %v9266
        %v10013 = vunpack.c.l.b16 %v9267
        %v10014 = vunpack.c.h.b16 %v9267
        %v10015 = vunpack.c.l.b16 %v9268
        %v10016 = vunpack.c.h.b16 %v9268
        %v10017 = vunpack.c.l.b16 %v9269
        %v10018 = vunpack.c.h.b16 %v9269
        %v10019 = vunpack.c.l.b16 %v9270
        %v10020 = vunpack.c.h.b16 %v9270
        %v10021 = vunpack.c.l.b16 %v9271
        %v10022 = vunpack.c.h.b16 %v9271
        %v10023 = vunpack.c.l.b16 %v9272
        %v10024 = vunpack.c.h.b16 %v9272
        %v10025 = vunpack.c.l.b16 %v9273
        %v10026 = vunpack.c.h.b16 %v9273
        %v10027 = vunpack.c.l.b16 %v9274
        %v10028 = vunpack.c.h.b16 %v9274
        %v10029 = vunpack.c.l.b16 %v9275
        %v10030 = vunpack.c.h.b16 %v9275
        %v10031 = vunpack.c.l.b16 %v9276
        %v10032 = vunpack.c.h.b16 %v9276
        %v10033 = vunpack.c.l.b16 %v9277
        %v10034 = vunpack.c.h.b16 %v9277
        %v10035 = vunpack.c.l.b16 %v9278
        %v10036 = vunpack.c.h.b16 %v9278
        %v10037 = vunpack.c.l.b16 %v9279
        %v10038 = vunpack.c.h.b16 %v9279
        %v10039 = vunpack.c.l.b16 %v9280
        %v10040 = vunpack.c.h.b16 %v9280
        %v10041 = vunpack.c.l.b16 %v9281
        %v10042 = vunpack.c.h.b16 %v9281
        %v10043 = vunpack.c.l.b16 %v9282
        %v10044 = vunpack.c.h.b16 %v9282
        %v10045 = vunpack.c.l.b16 %v9283
        %v10046 = vunpack.c.h.b16 %v9283
        %v10047 = vunpack.c.l.b16 %v9284
        %v10048 = vunpack.c.h.b16 %v9284
        %v10049 = vunpack.c.l.b16 %v9285
        %v10050 = vunpack.c.h.b16 %v9285
        %v10051 = vunpack.c.l.b16 %v9286
        %v10052 = vunpack.c.h.b16 %v9286
        %v10053 = vunpack.c.l.b16 %v9287
        %v10054 = vunpack.c.h.b16 %v9287
        %v10055 = vunpack.c.l.b16 %v9288
        %v10056 = vunpack.c.h.b16 %v9288
        %v10057 = vunpack.c.l.b16 %v9289
        %v10058 = vunpack.c.h.b16 %v9289
        %v10059 = vunpack.c.l.b16 %v9290
        %v10060 = vunpack.c.h.b16 %v9290
        %v10061 = vunpack.c.l.b16 %v9291
        %v10062 = vunpack.c.h.b16 %v9291
        %v10063 = vunpack.c.l.b16 %v9292
        %v10064 = vunpack.c.h.b16 %v9292
        %v10065 = vunpack.c.l.b16 %v9293
        %v10066 = vunpack.c.h.b16 %v9293
        %v10067 = vunpack.c.l.b16 %v9294
        %v10068 = vunpack.c.h.b16 %v9294
        %v10069 = vunpack.c.l.b16 %v9295
        %v10070 = vunpack.c.h.b16 %v9295
        %v10071 = vunpack.c.l.b16 %v9296
        %v10072 = vunpack.c.h.b16 %v9296
        %v10073 = vunpack.c.l.b16 %v9297
        %v10074 = vunpack.c.h.b16 %v9297
        %v10075 = vunpack.c.l.b16 %v9298
        %v10076 = vunpack.c.h.b16 %v9298
        %v10077 = vunpack.c.l.b16 %v9299
        %v10078 = vunpack.c.h.b16 %v9299
        %v10079 = vunpack.c.l.b16 %v9300
        %v10080 = vunpack.c.h.b16 %v9300
        %v10081 = vunpack.c.l.b16 %v9301
        %v10082 = vunpack.c.h.b16 %v9301
        %v10083 = vunpack.c.l.b16 %v9302
        %v10084 = vunpack.c.h.b16 %v9302
        %v10085 = vunpack.c.l.b16 %v9303
        %v10086 = vunpack.c.h.b16 %v9303
        %v10087 = vunpack.c.l.b16 %v9304
        %v10088 = vunpack.c.h.b16 %v9304
        %v10089 = vunpack.c.l.b16 %v9305
        %v10090 = vunpack.c.h.b16 %v9305
        %v10091 = vunpack.c.l.b16 %v9306
        %v10092 = vunpack.c.h.b16 %v9306
        %v10093 = vunpack.c.l.b16 %v9307
        %v10094 = vunpack.c.h.b16 %v9307
        %v10095 = vunpack.c.l.b16 %v9308
        %v10096 = vunpack.c.h.b16 %v9308
        %v10097 = vunpack.c.l.b16 %v9309
        %v10098 = vunpack.c.h.b16 %v9309
        %v10099 = vpack.c.b16 %v9591, %v9587
        %v10100 = vpack.c.b16 %v9592, %v9588
        %v10101 = vpack.c.b16 %v9593, %v9589
        %v10102 = vpack.c.b16 %v9594, %v9590
        %v10103 = vpack.c.b16 %v9599, %v9595
        %v10104 = vpack.c.b16 %v9600, %v9596
        %v10105 = vpack.c.b16 %v9601, %v9597
        %v10106 = vpack.c.b16 %v9602, %v9598
        %v10107 = vpack.c.b16 %v9607, %v9603
        %v10108 = vpack.c.b16 %v9608, %v9604
        %v10109 = vpack.c.b16 %v9609, %v9605
        %v10110 = vpack.c.b16 %v9610, %v9606
        %v10111 = vpack.c.b16 %v9615, %v9611
        %v10112 = vpack.c.b16 %v9616, %v9612
        %v10113 = vpack.c.b16 %v9617, %v9613
        %v10114 = vpack.c.b16 %v9618, %v9614
        %v10115 = vpack.c.b16 %v9623, %v9619
        %v10116 = vpack.c.b16 %v9624, %v9620
        %v10117 = vpack.c.b16 %v9625, %v9621
        %v10118 = vpack.c.b16 %v9626, %v9622
        %v10119 = vpack.c.b16 %v9631, %v9627
        %v10120 = vpack.c.b16 %v9632, %v9628
        %v10121 = vpack.c.b16 %v9633, %v9629
        %v10122 = vpack.c.b16 %v9634, %v9630
        %v10123 = vpack.c.b16 %v9639, %v9635
        %v10124 = vpack.c.b16 %v9640, %v9636
        %v10125 = vpack.c.b16 %v9641, %v9637
        %v10126 = vpack.c.b16 %v9642, %v9638
        %v10127 = vpack.c.b16 %v9647, %v9643
        %v10128 = vpack.c.b16 %v9648, %v9644
        %v10129 = vpack.c.b16 %v9649, %v9645
        %v10130 = vpack.c.b16 %v9650, %v9646
        %v10131 = vpack.c.b16 %v9655, %v9651
        %v10132 = vpack.c.b16 %v9656, %v9652
        %v10133 = vpack.c.b16 %v9657, %v9653
        %v10134 = vpack.c.b16 %v9658, %v9654
        %v10135 = vpack.c.b16 %v9663, %v9659
        %v10136 = vpack.c.b16 %v9664, %v9660
        %v10137 = vpack.c.b16 %v9665, %v9661
        %v10138 = vpack.c.b16 %v9666, %v9662
        %v10139 = vpack.c.b16 %v9671, %v9667
        %v10140 = vpack.c.b16 %v9672, %v9668
        %v10141 = vpack.c.b16 %v9673, %v9669
        %v10142 = vpack.c.b16 %v9674, %v9670
        %v10143 = vpack.c.b16 %v9679, %v9675
        %v10144 = vpack.c.b16 %v9680, %v9676
        %v10145 = vpack.c.b16 %v9681, %v9677
        %v10146 = vpack.c.b16 %v9682, %v9678
        %v10147 = vpack.c.b16 %v9687, %v9683
        %v10148 = vpack.c.b16 %v9688, %v9684
        %v10149 = vpack.c.b16 %v9689, %v9685
        %v10150 = vpack.c.b16 %v9690, %v9686
        %v10151 = vpack.c.b16 %v9695, %v9691
        %v10152 = vpack.c.b16 %v9696, %v9692
        %v10153 = vpack.c.b16 %v9697, %v9693
        %v10154 = vpack.c.b16 %v9698, %v9694
        %v10155 = vpack.c.b16 %v9703, %v9699
        %v10156 = vpack.c.b16 %v9704, %v9700
        %v10157 = vpack.c.b16 %v9705, %v9701
        %v10158 = vpack.c.b16 %v9706, %v9702
        %v10159 = vpack.c.b16 %v9711, %v9707
        %v10160 = vpack.c.b16 %v9712, %v9708
        %v10161 = vpack.c.b16 %v9713, %v9709
        %v10162 = vpack.c.b16 %v9714, %v9710
        %v10163 = vpack.c.b16 %v9719, %v9715
        %v10164 = vpack.c.b16 %v9720, %v9716
        %v10165 = vpack.c.b16 %v9721, %v9717
        %v10166 = vpack.c.b16 %v9722, %v9718
        %v10167 = vpack.c.b16 %v9727, %v9723
        %v10168 = vpack.c.b16 %v9728, %v9724
        %v10169 = vpack.c.b16 %v9729, %v9725
        %v10170 = vpack.c.b16 %v9730, %v9726
        %v10171 = vpack.c.b16 %v9735, %v9731
        %v10172 = vpack.c.b16 %v9736, %v9732
        %v10173 = vpack.c.b16 %v9737, %v9733
        %v10174 = vpack.c.b16 %v9738, %v9734
        %v10175 = vpack.c.b16 %v9743, %v9739
        %v10176 = vpack.c.b16 %v9744, %v9740
        %v10177 = vpack.c.b16 %v9745, %v9741
        %v10178 = vpack.c.b16 %v9746, %v9742
        %v10179 = vpack.c.b16 %v9751, %v9747
        %v10180 = vpack.c.b16 %v9752, %v9748
        %v10181 = vpack.c.b16 %v9753, %v9749
        %v10182 = vpack.c.b16 %v9754, %v9750
        %v10183 = vpack.c.b16 %v9759, %v9755
        %v10184 = vpack.c.b16 %v9760, %v9756
        %v10185 = vpack.c.b16 %v9761, %v9757
        %v10186 = vpack.c.b16 %v9762, %v9758
        %v10187 = vpack.c.b16 %v9767, %v9763
        %v10188 = vpack.c.b16 %v9768, %v9764
        %v10189 = vpack.c.b16 %v9769, %v9765
        %v10190 = vpack.c.b16 %v9770, %v9766
        %v10191 = vpack.c.b16 %v9775, %v9771
        %v10192 = vpack.c.b16 %v9776, %v9772
        %v10193 = vpack.c.b16 %v9777, %v9773
        %v10194 = vpack.c.b16 %v9778, %v9774
        %v10195 = vpack.c.b16 %v9783, %v9779
        %v10196 = vpack.c.b16 %v9784, %v9780
        %v10197 = vpack.c.b16 %v9785, %v9781
        %v10198 = vpack.c.b16 %v9786, %v9782
        %v10199 = vpack.c.b16 %v9791, %v9787
        %v10200 = vpack.c.b16 %v9792, %v9788
        %v10201 = vpack.c.b16 %v9793, %v9789
        %v10202 = vpack.c.b16 %v9794, %v9790
        %v10203 = vpack.c.b16 %v9799, %v9795
        %v10204 = vpack.c.b16 %v9800, %v9796
        %v10205 = vpack.c.b16 %v9801, %v9797
        %v10206 = vpack.c.b16 %v9802, %v9798
        %v10207 = vpack.c.b16 %v9807, %v9803
        %v10208 = vpack.c.b16 %v9808, %v9804
        %v10209 = vpack.c.b16 %v9809, %v9805
        %v10210 = vpack.c.b16 %v9810, %v9806
        %v10211 = vpack.c.b16 %v9815, %v9811
        %v10212 = vpack.c.b16 %v9816, %v9812
        %v10213 = vpack.c.b16 %v9817, %v9813
        %v10214 = vpack.c.b16 %v9818, %v9814
        %v10215 = vpack.c.b16 %v9823, %v9819
        %v10216 = vpack.c.b16 %v9824, %v9820
        %v10217 = vpack.c.b16 %v9825, %v9821
        %v10218 = vpack.c.b16 %v9826, %v9822
        %v10219 = vpack.c.b16 %v9831, %v9827
        %v10220 = vpack.c.b16 %v9832, %v9828
        %v10221 = vpack.c.b16 %v9833, %v9829
        %v10222 = vpack.c.b16 %v9834, %v9830
        %v10223 = vpack.c.b16 %v9839, %v9835
        %v10224 = vpack.c.b16 %v9840, %v9836
        %v10225 = vpack.c.b16 %v9841, %v9837
        %v10226 = vpack.c.b16 %v9842, %v9838
        %v10227 = vpack.c.b16 %v9847, %v9843
        %v10228 = vpack.c.b16 %v9848, %v9844
        %v10229 = vpack.c.b16 %v9849, %v9845
        %v10230 = vpack.c.b16 %v9850, %v9846
        %v10231 = vpack.c.b16 %v9855, %v9851
        %v10232 = vpack.c.b16 %v9856, %v9852
        %v10233 = vpack.c.b16 %v9857, %v9853
        %v10234 = vpack.c.b16 %v9858, %v9854
        %v10235 = vpack.c.b16 %v9863, %v9859
        %v10236 = vpack.c.b16 %v9864, %v9860
        %v10237 = vpack.c.b16 %v9865, %v9861
        %v10238 = vpack.c.b16 %v9866, %v9862
        %v10239 = vpack.c.b16 %v9871, %v9867
        %v10240 = vpack.c.b16 %v9872, %v9868
        %v10241 = vpack.c.b16 %v9873, %v9869
        %v10242 = vpack.c.b16 %v9874, %v9870
        %v10243 = vpack.c.b16 %v9879, %v9875
        %v10244 = vpack.c.b16 %v9880, %v9876
        %v10245 = vpack.c.b16 %v9881, %v9877
        %v10246 = vpack.c.b16 %v9882, %v9878
        %v10247 = vpack.c.b16 %v9887, %v9883
        %v10248 = vpack.c.b16 %v9888, %v9884
        %v10249 = vpack.c.b16 %v9889, %v9885
        %v10250 = vpack.c.b16 %v9890, %v9886
        %v10251 = vpack.c.b16 %v9895, %v9891
        %v10252 = vpack.c.b16 %v9896, %v9892
        %v10253 = vpack.c.b16 %v9897, %v9893
        %v10254 = vpack.c.b16 %v9898, %v9894
        %v10255 = vpack.c.b16 %v9903, %v9899
        %v10256 = vpack.c.b16 %v9904, %v9900
        %v10257 = vpack.c.b16 %v9905, %v9901
        %v10258 = vpack.c.b16 %v9906, %v9902
        %v10259 = vpack.c.b16 %v9911, %v9907
        %v10260 = vpack.c.b16 %v9912, %v9908
        %v10261 = vpack.c.b16 %v9913, %v9909
        %v10262 = vpack.c.b16 %v9914, %v9910
        %v10263 = vpack.c.b16 %v9919, %v9915
        %v10264 = vpack.c.b16 %v9920, %v9916
        %v10265 = vpack.c.b16 %v9921, %v9917
        %v10266 = vpack.c.b16 %v9922, %v9918
        %v10267 = vpack.c.b16 %v9927, %v9923
        %v10268 = vpack.c.b16 %v9928, %v9924
        %v10269 = vpack.c.b16 %v9929, %v9925
        %v10270 = vpack.c.b16 %v9930, %v9926
        %v10271 = vpack.c.b16 %v9935, %v9931
        %v10272 = vpack.c.b16 %v9936, %v9932
        %v10273 = vpack.c.b16 %v9937, %v9933
        %v10274 = vpack.c.b16 %v9938, %v9934
        %v10275 = vpack.c.b16 %v9943, %v9939
        %v10276 = vpack.c.b16 %v9944, %v9940
        %v10277 = vpack.c.b16 %v9945, %v9941
        %v10278 = vpack.c.b16 %v9946, %v9942
        %v10279 = vpack.c.b16 %v9951, %v9947
        %v10280 = vpack.c.b16 %v9952, %v9948
        %v10281 = vpack.c.b16 %v9953, %v9949
        %v10282 = vpack.c.b16 %v9954, %v9950
        %v10283 = vpack.c.b16 %v9959, %v9955
        %v10284 = vpack.c.b16 %v9960, %v9956
        %v10285 = vpack.c.b16 %v9961, %v9957
        %v10286 = vpack.c.b16 %v9962, %v9958
        %v10287 = vpack.c.b16 %v9967, %v9963
        %v10288 = vpack.c.b16 %v9968, %v9964
        %v10289 = vpack.c.b16 %v9969, %v9965
        %v10290 = vpack.c.b16 %v9970, %v9966
        %v10291 = vpack.c.b16 %v9975, %v9971
        %v10292 = vpack.c.b16 %v9976, %v9972
        %v10293 = vpack.c.b16 %v9977, %v9973
        %v10294 = vpack.c.b16 %v9978, %v9974
        %v10295 = vpack.c.b16 %v9983, %v9979
        %v10296 = vpack.c.b16 %v9984, %v9980
        %v10297 = vpack.c.b16 %v9985, %v9981
        %v10298 = vpack.c.b16 %v9986, %v9982
        %v10299 = vpack.c.b16 %v9991, %v9987
        %v10300 = vpack.c.b16 %v9992, %v9988
        %v10301 = vpack.c.b16 %v9993, %v9989
        %v10302 = vpack.c.b16 %v9994, %v9990
        %v10303 = vpack.c.b16 %v9999, %v9995
        %v10304 = vpack.c.b16 %v10000, %v9996
        %v10305 = vpack.c.b16 %v10001, %v9997
        %v10306 = vpack.c.b16 %v10002, %v9998
        %v10307 = vpack.c.b16 %v10007, %v10003
        %v10308 = vpack.c.b16 %v10008, %v10004
        %v10309 = vpack.c.b16 %v10009, %v10005
        %v10310 = vpack.c.b16 %v10010, %v10006
        %v10311 = vpack.c.b16 %v10015, %v10011
        %v10312 = vpack.c.b16 %v10016, %v10012
        %v10313 = vpack.c.b16 %v10017, %v10013
        %v10314 = vpack.c.b16 %v10018, %v10014
        %v10315 = vpack.c.b16 %v10023, %v10019
        %v10316 = vpack.c.b16 %v10024, %v10020
        %v10317 = vpack.c.b16 %v10025, %v10021
        %v10318 = vpack.c.b16 %v10026, %v10022
        %v10319 = vpack.c.b16 %v10031, %v10027
        %v10320 = vpack.c.b16 %v10032, %v10028
        %v10321 = vpack.c.b16 %v10033, %v10029
        %v10322 = vpack.c.b16 %v10034, %v10030
        %v10323 = vpack.c.b16 %v10039, %v10035
        %v10324 = vpack.c.b16 %v10040, %v10036
        %v10325 = vpack.c.b16 %v10041, %v10037
        %v10326 = vpack.c.b16 %v10042, %v10038
        %v10327 = vpack.c.b16 %v10047, %v10043
        %v10328 = vpack.c.b16 %v10048, %v10044
        %v10329 = vpack.c.b16 %v10049, %v10045
        %v10330 = vpack.c.b16 %v10050, %v10046
        %v10331 = vpack.c.b16 %v10055, %v10051
        %v10332 = vpack.c.b16 %v10056, %v10052
        %v10333 = vpack.c.b16 %v10057, %v10053
        %v10334 = vpack.c.b16 %v10058, %v10054
        %v10335 = vpack.c.b16 %v10063, %v10059
        %v10336 = vpack.c.b16 %v10064, %v10060
        %v10337 = vpack.c.b16 %v10065, %v10061
        %v10338 = vpack.c.b16 %v10066, %v10062
        %v10339 = vpack.c.b16 %v10071, %v10067
        %v10340 = vpack.c.b16 %v10072, %v10068
        %v10341 = vpack.c.b16 %v10073, %v10069
        %v10342 = vpack.c.b16 %v10074, %v10070
        %v10343 = vpack.c.b16 %v10079, %v10075
        %v10344 = vpack.c.b16 %v10080, %v10076
        %v10345 = vpack.c.b16 %v10081, %v10077
        %v10346 = vpack.c.b16 %v10082, %v10078
        %v10347 = vpack.c.b16 %v10087, %v10083
        %v10348 = vpack.c.b16 %v10088, %v10084
        %v10349 = vpack.c.b16 %v10089, %v10085
        %v10350 = vpack.c.b16 %v10090, %v10086
        %v10351 = vpack.c.b16 %v10095, %v10091
        %v10352 = vpack.c.b16 %v10096, %v10092
        %v10353 = vpack.c.b16 %v10097, %v10093
        %v10354 = vpack.c.b16 %v10098, %v10094
        %10611 = vmatprep.subr.bf16.mxu0 %v10128
        %10612 = vmatpush1.bf16.msra.mxu0 %v10127
        %10613 = vmatprep.subr.bf16.mxu0 %v10124
        %10614 = vmatpush1.bf16.msra.mxu0 %v10123
        %10615 = vmatprep.subr.bf16.mxu0 %v10120
        %10616 = vmatpush1.bf16.msra.mxu0 %v10119
        %10617 = vmatprep.subr.bf16.mxu0 %v10116
        %10618 = vmatpush1.bf16.msra.mxu0 %v10115
        %10619 = vmatprep.subr.bf16.mxu0 %v10112
        %10620 = vmatpush1.bf16.msra.mxu0 %v10111
        %10621 = vmatprep.subr.bf16.mxu0 %v10108
        %10622 = vmatpush1.bf16.msra.mxu0 %v10107
        %10623 = vmatprep.subr.bf16.mxu0 %v10104
        %10624 = vmatpush1.bf16.msra.mxu0 %v10103
        %10625 = vmatprep.subr.bf16.mxu0 %v10100
        %10626 = vmatpush1.bf16.msra.mxu0 %v10099
        %10627 = vmatprep.subr.bf16.mxu0 %v10160
        %10628 = vmatpush2.bf16.msra.mxu0 %v10159
        %10629 = vmatprep.subr.bf16.mxu0 %v10156
        %10630 = vmatpush2.bf16.msra.mxu0 %v10155
        %10631 = vmatprep.subr.bf16.mxu0 %v10152
        %10632 = vmatpush2.bf16.msra.mxu0 %v10151
        %10633 = vmatprep.subr.bf16.mxu0 %v10148
        %10634 = vmatpush2.bf16.msra.mxu0 %v10147
        %10635 = vmatprep.subr.bf16.mxu0 %v10144
        %10636 = vmatpush2.bf16.msra.mxu0 %v10143
        %10637 = vmatprep.subr.bf16.mxu0 %v10140
        %10638 = vmatpush2.bf16.msra.mxu0 %v10139
        %10639 = vmatprep.subr.bf16.mxu0 %v10136
        %10640 = vmatpush2.bf16.msra.mxu0 %v10135
        %10641 = vmatprep.subr.bf16.mxu0 %v10132
        %10642 = vmatpush2.bf16.msra.mxu0 %v10131
        %10643 = vmatprep.mubr.bf16.mxu0 %v9047
        %10644 = vmatmul.mubr.bf16.gmra.mxu0 %v9046
        %v10645 = vpop.f32.mrf.mxu0
        %v10646 = vadd.f32 %v9314, %v10645
        %v10647 = vpop.f32.mrf.mxu0
        %v10648 = vadd.f32 %v9318, %v10647
        %v10649 = vpop.f32.mrf.mxu0
        %v10650 = vpop.f32.mrf.mxu0
        %10651 = vdwg.mxu0
        %10652 = vmatprep.subr.bf16.mxu0 %v10192
        %10653 = vmatpush1.bf16.msra.mxu0 %v10191
        %10654 = vmatprep.subr.bf16.mxu0 %v10188
        %10655 = vmatpush1.bf16.msra.mxu0 %v10187
        %10656 = vmatprep.subr.bf16.mxu0 %v10184
        %10657 = vmatpush1.bf16.msra.mxu0 %v10183
        %10658 = vmatprep.subr.bf16.mxu0 %v10180
        %10659 = vmatpush1.bf16.msra.mxu0 %v10179
        %10660 = vmatprep.subr.bf16.mxu0 %v10176
        %10661 = vmatpush1.bf16.msra.mxu0 %v10175
        %10662 = vmatprep.subr.bf16.mxu0 %v10172
        %10663 = vmatpush1.bf16.msra.mxu0 %v10171
        %10664 = vmatprep.subr.bf16.mxu0 %v10168
        %10665 = vmatpush1.bf16.msra.mxu0 %v10167
        %10666 = vmatprep.subr.bf16.mxu0 %v10164
        %10667 = vmatpush1.bf16.msra.mxu0 %v10163
        %10668 = vmatprep.subr.bf16.mxu0 %v10224
        %10669 = vmatpush2.bf16.msra.mxu0 %v10223
        %10670 = vmatprep.subr.bf16.mxu0 %v10220
        %10671 = vmatpush2.bf16.msra.mxu0 %v10219
        %10672 = vmatprep.subr.bf16.mxu0 %v10216
        %10673 = vmatpush2.bf16.msra.mxu0 %v10215
        %10674 = vmatprep.subr.bf16.mxu0 %v10212
        %10675 = vmatpush2.bf16.msra.mxu0 %v10211
        %10676 = vmatprep.subr.bf16.mxu0 %v10208
        %10677 = vmatpush2.bf16.msra.mxu0 %v10207
        %10678 = vmatprep.subr.bf16.mxu0 %v10204
        %10679 = vmatpush2.bf16.msra.mxu0 %v10203
        %10680 = vmatprep.subr.bf16.mxu0 %v10200
        %10681 = vmatpush2.bf16.msra.mxu0 %v10199
        %10682 = vmatprep.subr.bf16.mxu0 %v10196
        %10683 = vmatpush2.bf16.msra.mxu0 %v10195
        %10684 = vmatprep.mubr.bf16.mxu0 %v9049
        %10685 = vmatmul.mubr.bf16.gmra.mxu0 %v9048
        %v10686 = vpop.f32.mrf.mxu0
        %v10687 = vadd.f32 %v10646, %v10686
        %v10688 = vpop.f32.mrf.mxu0
        %v10689 = vadd.f32 %v10648, %v10688
        %v10690 = vpop.f32.mrf.mxu0
        %v10691 = vpop.f32.mrf.mxu0
        %10692 = vdwg.mxu0
        %10693 = vmatprep.subr.bf16.mxu0 %v10256
        %10694 = vmatpush1.bf16.msra.mxu0 %v10255
        %10695 = vmatprep.subr.bf16.mxu0 %v10252
        %10696 = vmatpush1.bf16.msra.mxu0 %v10251
        %10697 = vmatprep.subr.bf16.mxu0 %v10248
        %10698 = vmatpush1.bf16.msra.mxu0 %v10247
        %10699 = vmatprep.subr.bf16.mxu0 %v10244
        %10700 = vmatpush1.bf16.msra.mxu0 %v10243
        %10701 = vmatprep.subr.bf16.mxu0 %v10240
        %10702 = vmatpush1.bf16.msra.mxu0 %v10239
        %10703 = vmatprep.subr.bf16.mxu0 %v10236
        %10704 = vmatpush1.bf16.msra.mxu0 %v10235
        %10705 = vmatprep.subr.bf16.mxu0 %v10232
        %10706 = vmatpush1.bf16.msra.mxu0 %v10231
        %10707 = vmatprep.subr.bf16.mxu0 %v10228
        %10708 = vmatpush1.bf16.msra.mxu0 %v10227
        %10709 = vmatprep.subr.bf16.mxu0 %v10288
        %10710 = vmatpush2.bf16.msra.mxu0 %v10287
        %10711 = vmatprep.subr.bf16.mxu0 %v10284
        %10712 = vmatpush2.bf16.msra.mxu0 %v10283
        %10713 = vmatprep.subr.bf16.mxu0 %v10280
        %10714 = vmatpush2.bf16.msra.mxu0 %v10279
        %10715 = vmatprep.subr.bf16.mxu0 %v10276
        %10716 = vmatpush2.bf16.msra.mxu0 %v10275
        %10717 = vmatprep.subr.bf16.mxu0 %v10272
        %10718 = vmatpush2.bf16.msra.mxu0 %v10271
        %10719 = vmatprep.subr.bf16.mxu0 %v10268
        %10720 = vmatpush2.bf16.msra.mxu0 %v10267
        %10721 = vmatprep.subr.bf16.mxu0 %v10264
        %10722 = vmatpush2.bf16.msra.mxu0 %v10263
        %10723 = vmatprep.subr.bf16.mxu0 %v10260
        %10724 = vmatpush2.bf16.msra.mxu0 %v10259
        %10725 = vmatprep.mubr.bf16.mxu0 %v9051
        %10726 = vmatmul.mubr.bf16.gmra.mxu0 %v9050
        %v10727 = vpop.f32.mrf.mxu0
        %v10728 = vadd.f32 %v10687, %v10727
        %v10729 = vpop.f32.mrf.mxu0
        %v10730 = vadd.f32 %v10689, %v10729
        %v10731 = vpop.f32.mrf.mxu0
        %v10732 = vpop.f32.mrf.mxu0
        %10733 = vdwg.mxu0
        %10734 = vmatprep.subr.bf16.mxu0 %v10320
        %10735 = vmatpush1.bf16.msra.mxu0 %v10319
        %10736 = vmatprep.subr.bf16.mxu0 %v10316
        %10737 = vmatpush1.bf16.msra.mxu0 %v10315
        %10738 = vmatprep.subr.bf16.mxu0 %v10312
        %10739 = vmatpush1.bf16.msra.mxu0 %v10311
        %10740 = vmatprep.subr.bf16.mxu0 %v10308
        %10741 = vmatpush1.bf16.msra.mxu0 %v10307
        %10742 = vmatprep.subr.bf16.mxu0 %v10304
        %10743 = vmatpush1.bf16.msra.mxu0 %v10303
        %10744 = vmatprep.subr.bf16.mxu0 %v10300
        %10745 = vmatpush1.bf16.msra.mxu0 %v10299
        %10746 = vmatprep.subr.bf16.mxu0 %v10296
        %10747 = vmatpush1.bf16.msra.mxu0 %v10295
        %10748 = vmatprep.subr.bf16.mxu0 %v10292
        %10749 = vmatpush1.bf16.msra.mxu0 %v10291
        %10750 = vmatprep.subr.bf16.mxu0 %v10352
        %10751 = vmatpush2.bf16.msra.mxu0 %v10351
        %10752 = vmatprep.subr.bf16.mxu0 %v10348
        %10753 = vmatpush2.bf16.msra.mxu0 %v10347
        %10754 = vmatprep.subr.bf16.mxu0 %v10344
        %10755 = vmatpush2.bf16.msra.mxu0 %v10343
        %10756 = vmatprep.subr.bf16.mxu0 %v10340
        %10757 = vmatpush2.bf16.msra.mxu0 %v10339
        %10758 = vmatprep.subr.bf16.mxu0 %v10336
        %10759 = vmatpush2.bf16.msra.mxu0 %v10335
        %10760 = vmatprep.subr.bf16.mxu0 %v10332
        %10761 = vmatpush2.bf16.msra.mxu0 %v10331
        %10762 = vmatprep.subr.bf16.mxu0 %v10328
        %10763 = vmatpush2.bf16.msra.mxu0 %v10327
        %10764 = vmatprep.subr.bf16.mxu0 %v10324
        %10765 = vmatpush2.bf16.msra.mxu0 %v10323
        %10766 = vmatprep.mubr.bf16.mxu0 %v9053
        %10767 = vmatmul.mubr.bf16.gmra.mxu0 %v9052
        %v10768 = vpop.f32.mrf.mxu0
        %v10769 = vadd.f32 %v10728, %v10768
        %v10770 = vpop.f32.mrf.mxu0
        %v10771 = vadd.f32 %v10730, %v10770
        %v10772 = vpop.f32.mrf.mxu0
        %v10773 = vpop.f32.mrf.mxu0
        %10774 = vdwg.mxu0
        %10775 = vmatprep.subr.bf16.mxu0 %v10130
        %10776 = vmatpush1.bf16.msra.mxu0 %v10129
        %10777 = vmatprep.subr.bf16.mxu0 %v10126
        %10778 = vmatpush1.bf16.msra.mxu0 %v10125
        %10779 = vmatprep.subr.bf16.mxu0 %v10122
        %10780 = vmatpush1.bf16.msra.mxu0 %v10121
        %10781 = vmatprep.subr.bf16.mxu0 %v10118
        %10782 = vmatpush1.bf16.msra.mxu0 %v10117
        %10783 = vmatprep.subr.bf16.mxu0 %v10114
        %10784 = vmatpush1.bf16.msra.mxu0 %v10113
        %10785 = vmatprep.subr.bf16.mxu0 %v10110
        %10786 = vmatpush1.bf16.msra.mxu0 %v10109
        %10787 = vmatprep.subr.bf16.mxu0 %v10106
        %10788 = vmatpush1.bf16.msra.mxu0 %v10105
        %10789 = vmatprep.subr.bf16.mxu0 %v10102
        %10790 = vmatpush1.bf16.msra.mxu0 %v10101
        %10791 = vmatprep.subr.bf16.mxu0 %v10162
        %10792 = vmatpush2.bf16.msra.mxu0 %v10161
        %10793 = vmatprep.subr.bf16.mxu0 %v10158
        %10794 = vmatpush2.bf16.msra.mxu0 %v10157
        %10795 = vmatprep.subr.bf16.mxu0 %v10154
        %10796 = vmatpush2.bf16.msra.mxu0 %v10153
        %10797 = vmatprep.subr.bf16.mxu0 %v10150
        %10798 = vmatpush2.bf16.msra.mxu0 %v10149
        %10799 = vmatprep.subr.bf16.mxu0 %v10146
        %10800 = vmatpush2.bf16.msra.mxu0 %v10145
        %10801 = vmatprep.subr.bf16.mxu0 %v10142
        %10802 = vmatpush2.bf16.msra.mxu0 %v10141
        %10803 = vmatprep.subr.bf16.mxu0 %v10138
        %10804 = vmatpush2.bf16.msra.mxu0 %v10137
        %10805 = vmatprep.subr.bf16.mxu0 %v10134
        %10806 = vmatpush2.bf16.msra.mxu0 %v10133
        %10807 = vmatprep.mubr.bf16.mxu0 %v9047
        %10808 = vmatmul.mubr.bf16.gmra.mxu0 %v9046
        %v10809 = vpop.f32.mrf.mxu0
        %v10810 = vadd.f32 %v9322, %v10809
        %v10811 = vpop.f32.mrf.mxu0
        %v10812 = vadd.f32 %v9326, %v10811
        %v10813 = vpop.f32.mrf.mxu0
        %v10814 = vpop.f32.mrf.mxu0
        %10815 = vdwg.mxu0
        %10816 = vmatprep.subr.bf16.mxu0 %v10194
        %10817 = vmatpush1.bf16.msra.mxu0 %v10193
        %10818 = vmatprep.subr.bf16.mxu0 %v10190
        %10819 = vmatpush1.bf16.msra.mxu0 %v10189
        %10820 = vmatprep.subr.bf16.mxu0 %v10186
        %10821 = vmatpush1.bf16.msra.mxu0 %v10185
        %10822 = vmatprep.subr.bf16.mxu0 %v10182
        %10823 = vmatpush1.bf16.msra.mxu0 %v10181
        %10824 = vmatprep.subr.bf16.mxu0 %v10178
        %10825 = vmatpush1.bf16.msra.mxu0 %v10177
        %10826 = vmatprep.subr.bf16.mxu0 %v10174
        %10827 = vmatpush1.bf16.msra.mxu0 %v10173
        %10828 = vmatprep.subr.bf16.mxu0 %v10170
        %10829 = vmatpush1.bf16.msra.mxu0 %v10169
        %10830 = vmatprep.subr.bf16.mxu0 %v10166
        %10831 = vmatpush1.bf16.msra.mxu0 %v10165
        %10832 = vmatprep.subr.bf16.mxu0 %v10226
        %10833 = vmatpush2.bf16.msra.mxu0 %v10225
        %10834 = vmatprep.subr.bf16.mxu0 %v10222
        %10835 = vmatpush2.bf16.msra.mxu0 %v10221
        %10836 = vmatprep.subr.bf16.mxu0 %v10218
        %10837 = vmatpush2.bf16.msra.mxu0 %v10217
        %10838 = vmatprep.subr.bf16.mxu0 %v10214
        %10839 = vmatpush2.bf16.msra.mxu0 %v10213
        %10840 = vmatprep.subr.bf16.mxu0 %v10210
        %10841 = vmatpush2.bf16.msra.mxu0 %v10209
        %10842 = vmatprep.subr.bf16.mxu0 %v10206
        %10843 = vmatpush2.bf16.msra.mxu0 %v10205
        %10844 = vmatprep.subr.bf16.mxu0 %v10202
        %10845 = vmatpush2.bf16.msra.mxu0 %v10201
        %10846 = vmatprep.subr.bf16.mxu0 %v10198
        %10847 = vmatpush2.bf16.msra.mxu0 %v10197
        %10848 = vmatprep.mubr.bf16.mxu0 %v9049
        %10849 = vmatmul.mubr.bf16.gmra.mxu0 %v9048
        %v10850 = vpop.f32.mrf.mxu0
        %v10851 = vadd.f32 %v10810, %v10850
        %v10852 = vpop.f32.mrf.mxu0
        %v10853 = vadd.f32 %v10812, %v10852
        %v10854 = vpop.f32.mrf.mxu0
        %v10855 = vpop.f32.mrf.mxu0
        %10856 = vdwg.mxu0
        %10857 = vmatprep.subr.bf16.mxu0 %v10258
        %10858 = vmatpush1.bf16.msra.mxu0 %v10257
        %10859 = vmatprep.subr.bf16.mxu0 %v10254
        %10860 = vmatpush1.bf16.msra.mxu0 %v10253
        %10861 = vmatprep.subr.bf16.mxu0 %v10250
        %10862 = vmatpush1.bf16.msra.mxu0 %v10249
        %10863 = vmatprep.subr.bf16.mxu0 %v10246
        %10864 = vmatpush1.bf16.msra.mxu0 %v10245
        %10865 = vmatprep.subr.bf16.mxu0 %v10242
        %10866 = vmatpush1.bf16.msra.mxu0 %v10241
        %10867 = vmatprep.subr.bf16.mxu0 %v10238
        %10868 = vmatpush1.bf16.msra.mxu0 %v10237
        %10869 = vmatprep.subr.bf16.mxu0 %v10234
        %10870 = vmatpush1.bf16.msra.mxu0 %v10233
        %10871 = vmatprep.subr.bf16.mxu0 %v10230
        %10872 = vmatpush1.bf16.msra.mxu0 %v10229
        %10873 = vmatprep.subr.bf16.mxu0 %v10290
        %10874 = vmatpush2.bf16.msra.mxu0 %v10289
        %10875 = vmatprep.subr.bf16.mxu0 %v10286
        %10876 = vmatpush2.bf16.msra.mxu0 %v10285
        %10877 = vmatprep.subr.bf16.mxu0 %v10282
        %10878 = vmatpush2.bf16.msra.mxu0 %v10281
        %10879 = vmatprep.subr.bf16.mxu0 %v10278
        %10880 = vmatpush2.bf16.msra.mxu0 %v10277
        %10881 = vmatprep.subr.bf16.mxu0 %v10274
        %10882 = vmatpush2.bf16.msra.mxu0 %v10273
        %10883 = vmatprep.subr.bf16.mxu0 %v10270
        %10884 = vmatpush2.bf16.msra.mxu0 %v10269
        %10885 = vmatprep.subr.bf16.mxu0 %v10266
        %10886 = vmatpush2.bf16.msra.mxu0 %v10265
        %10887 = vmatprep.subr.bf16.mxu0 %v10262
        %10888 = vmatpush2.bf16.msra.mxu0 %v10261
        %10889 = vmatprep.mubr.bf16.mxu0 %v9051
        %10890 = vmatmul.mubr.bf16.gmra.mxu0 %v9050
        %v10891 = vpop.f32.mrf.mxu0
        %v10892 = vadd.f32 %v10851, %v10891
        %v10893 = vpop.f32.mrf.mxu0
        %v10894 = vadd.f32 %v10853, %v10893
        %v10895 = vpop.f32.mrf.mxu0
        %v10896 = vpop.f32.mrf.mxu0
        %10897 = vdwg.mxu0
        %10898 = vmatprep.subr.bf16.mxu0 %v10322
        %10899 = vmatpush1.bf16.msra.mxu0 %v10321
        %10900 = vmatprep.subr.bf16.mxu0 %v10318
        %10901 = vmatpush1.bf16.msra.mxu0 %v10317
        %10902 = vmatprep.subr.bf16.mxu0 %v10314
        %10903 = vmatpush1.bf16.msra.mxu0 %v10313
        %10904 = vmatprep.subr.bf16.mxu0 %v10310
        %10905 = vmatpush1.bf16.msra.mxu0 %v10309
        %10906 = vmatprep.subr.bf16.mxu0 %v10306
        %10907 = vmatpush1.bf16.msra.mxu0 %v10305
        %10908 = vmatprep.subr.bf16.mxu0 %v10302
        %10909 = vmatpush1.bf16.msra.mxu0 %v10301
        %10910 = vmatprep.subr.bf16.mxu0 %v10298
        %10911 = vmatpush1.bf16.msra.mxu0 %v10297
        %10912 = vmatprep.subr.bf16.mxu0 %v10294
        %10913 = vmatpush1.bf16.msra.mxu0 %v10293
        %10914 = vmatprep.subr.bf16.mxu0 %v10354
        %10915 = vmatpush2.bf16.msra.mxu0 %v10353
        %10916 = vmatprep.subr.bf16.mxu0 %v10350
        %10917 = vmatpush2.bf16.msra.mxu0 %v10349
        %10918 = vmatprep.subr.bf16.mxu0 %v10346
        %10919 = vmatpush2.bf16.msra.mxu0 %v10345
        %10920 = vmatprep.subr.bf16.mxu0 %v10342
        %10921 = vmatpush2.bf16.msra.mxu0 %v10341
        %10922 = vmatprep.subr.bf16.mxu0 %v10338
        %10923 = vmatpush2.bf16.msra.mxu0 %v10337
        %10924 = vmatprep.subr.bf16.mxu0 %v10334
        %10925 = vmatpush2.bf16.msra.mxu0 %v10333
        %10926 = vmatprep.subr.bf16.mxu0 %v10330
        %10927 = vmatpush2.bf16.msra.mxu0 %v10329
        %10928 = vmatprep.subr.bf16.mxu0 %v10326
        %10929 = vmatpush2.bf16.msra.mxu0 %v10325
        %10930 = vmatprep.mubr.bf16.mxu0 %v9053
        %10931 = vmatmul.mubr.bf16.gmra.mxu0 %v9052
        %v10932 = vpop.f32.mrf.mxu0
        %v10933 = vadd.f32 %v10892, %v10932
        %v10934 = vpop.f32.mrf.mxu0
        %v10935 = vadd.f32 %v10894, %v10934
        %v10936 = vpop.f32.mrf.mxu0
        %v10937 = vpop.f32.mrf.mxu0
        %10938 = vdwg.mxu0
        %v10939 = vxor.u32 %v10769, 2147483648
        %v10940 = vxor.u32 %v10771, 2147483648
        %v10941 = vxor.u32 %v10933, 2147483648
        %v10942 = vxor.u32 %v10935, 2147483648
        %v10943 = vmul.f32 %v10939, 1.442695
        %v10944 = vpow.pop %v10943
        %v10945 = vmul.f32 %v10940, 1.442695
        %v10946 = vpow.pop %v10945
        %v10947 = vmul.f32 %v10941, 1.442695
        %v10948 = vpow.pop %v10947
        %v10949 = vmul.f32 %v10942, 1.442695
        %v10950 = vpow.pop %v10949
        %v10951 = vadd.f32 %v10944, 1.0
        %v10952 = vadd.f32 %v10946, 1.0
        %v10953 = vadd.f32 %v10948, 1.0
        %v10954 = vadd.f32 %v10950, 1.0
        %v10955 = vrcp.pop %v10951
        %v10956 = vmul.f32 1.0, %v10955
        %v10957 = vrcp.pop %v10952
        %v10958 = vmul.f32 1.0, %v10957
        %v10959 = vrcp.pop %v10953
        %v10960 = vmul.f32 1.0, %v10959
        %v10961 = vrcp.pop %v10954
        %v10962 = vmul.f32 1.0, %v10961
        %v10963 = vld [vmem:[#allocation14 + $0x10] sm:$0xf]
        %v10964 = vld [vmem:[#allocation15 + $0x10] sm:$0xf]
        %v10965 = vrot.slane %v10956, 4
        %v10966 = vadd.f32 %v10956, %v10965
        %v10967 = vrot.slane %v10966, 2
        %v10968 = vadd.f32 %v10966, %v10967
        %v10969 = vrot.slane %v10968, 1
        %v10970 = vadd.f32 %v10968, %v10969
        %v10971 = vrot.slane %v10958, 4
        %v10972 = vadd.f32 %v10958, %v10971
        %v10973 = vrot.slane %v10972, 2
        %v10974 = vadd.f32 %v10972, %v10973
        %v10975 = vrot.slane %v10974, 1
        %v10976 = vadd.f32 %v10974, %v10975
        %v10977 = vrot.slane %v10960, 4
        %v10978 = vadd.f32 %v10960, %v10977
        %v10979 = vrot.slane %v10978, 2
        %v10980 = vadd.f32 %v10978, %v10979
        %v10981 = vrot.slane %v10980, 1
        %v10982 = vadd.f32 %v10980, %v10981
        %v10983 = vrot.slane %v10962, 4
        %v10984 = vadd.f32 %v10962, %v10983
        %v10985 = vrot.slane %v10984, 2
        %v10986 = vadd.f32 %v10984, %v10985
        %v10987 = vrot.slane %v10986, 1
        %v10988 = vadd.f32 %v10986, %v10987
        %v10989 = vmul.f32 %v10970, %v4804
        %v10990 = vmul.f32 %v10976, %v4804
        %v10991 = vmul.f32 %v10982, %v4804
        %v10992 = vmul.f32 %v10988, %v4804
        %v10993 = vsub.f32 %v10956, %v10989
        %v10994 = vsub.f32 %v10958, %v10990
        %v10995 = vsub.f32 %v10960, %v10991
        %v10996 = vsub.f32 %v10962, %v10992
        %v10997 = vmul.f32 %v10993, %v10993
        %v10998 = vmul.f32 %v10994, %v10994
        %v10999 = vmul.f32 %v10995, %v10995
        %v11000 = vmul.f32 %v10996, %v10996
        %v11001 = vrot.slane %v10997, 4
        %v11002 = vadd.f32 %v10997, %v11001
        %v11003 = vrot.slane %v11002, 2
        %v11004 = vadd.f32 %v11002, %v11003
        %v11005 = vrot.slane %v11004, 1
        %v11006 = vadd.f32 %v11004, %v11005
        %v11007 = vrot.slane %v10998, 4
        %v11008 = vadd.f32 %v10998, %v11007
        %v11009 = vrot.slane %v11008, 2
        %v11010 = vadd.f32 %v11008, %v11009
        %v11011 = vrot.slane %v11010, 1
        %v11012 = vadd.f32 %v11010, %v11011
        %v11013 = vrot.slane %v10999, 4
        %v11014 = vadd.f32 %v10999, %v11013
        %v11015 = vrot.slane %v11014, 2
        %v11016 = vadd.f32 %v11014, %v11015
        %v11017 = vrot.slane %v11016, 1
        %v11018 = vadd.f32 %v11016, %v11017
        %v11019 = vrot.slane %v11000, 4
        %v11020 = vadd.f32 %v11000, %v11019
        %v11021 = vrot.slane %v11020, 2
        %v11022 = vadd.f32 %v11020, %v11021
        %v11023 = vrot.slane %v11022, 1
        %v11024 = vadd.f32 %v11022, %v11023
        %v11025 = vmul.f32 %v11006, %v4804
        %v11026 = vmul.f32 %v11012, %v4804
        %v11027 = vmul.f32 %v11018, %v4804
        %v11028 = vmul.f32 %v11024, %v4804
        %v11029 = vadd.f32 %v11025, 1e-05
        %v11030 = vadd.f32 %v11026, 1e-05
        %v11031 = vadd.f32 %v11027, 1e-05
        %v11032 = vadd.f32 %v11028, 1e-05
        %v11033 = vrsqrt.pop %v11029
        %v11034 = vrsqrt.pop %v11030
        %v11035 = vrsqrt.pop %v11031
        %v11036 = vrsqrt.pop %v11032
        %v11037 = vmul.f32 %v10993, %v11033
        %v11038 = vmul.f32 %v10994, %v11034
        %v11039 = vmul.f32 %v10995, %v11035
        %v11040 = vmul.f32 %v10996, %v11036
        %v11042 = vlaneseq
        %v11043 = vshrl.u32 %v11042, 7
        %v11044 = vsub.s32 0, %v11043
        %v11045 = vrot.slane %v10963, %v11044
        %v11046 = vlaneseq
        %v11047 = vshrl.u32 %v11046, 7
        %v11048 = vsub.s32 1, %v11047
        %v11049 = vrot.slane %v10963, %v11048
        %v11050 = vlaneseq
        %v11051 = vshrl.u32 %v11050, 7
        %v11052 = vsub.s32 2, %v11051
        %v11053 = vrot.slane %v10963, %v11052
        %v11054 = vlaneseq
        %v11055 = vshrl.u32 %v11054, 7
        %v11056 = vsub.s32 3, %v11055
        %v11057 = vrot.slane %v10963, %v11056
        %v11062 = vmul.f32 %v11037, %v11045
        %v11063 = vmul.f32 %v11038, %v11049
        %v11064 = vmul.f32 %v11039, %v11053
        %v11065 = vmul.f32 %v11040, %v11057
        %v11067 = vlaneseq
        %v11068 = vshrl.u32 %v11067, 7
        %v11069 = vsub.s32 0, %v11068
        %v11070 = vrot.slane %v10964, %v11069
        %v11071 = vlaneseq
        %v11072 = vshrl.u32 %v11071, 7
        %v11073 = vsub.s32 1, %v11072
        %v11074 = vrot.slane %v10964, %v11073
        %v11075 = vlaneseq
        %v11076 = vshrl.u32 %v11075, 7
        %v11077 = vsub.s32 2, %v11076
        %v11078 = vrot.slane %v10964, %v11077
        %v11079 = vlaneseq
        %v11080 = vshrl.u32 %v11079, 7
        %v11081 = vsub.s32 3, %v11080
        %v11082 = vrot.slane %v10964, %v11081
        %v11087 = vadd.f32 %v11062, %v11070
        %v11088 = vadd.f32 %v11063, %v11074
        %v11089 = vadd.f32 %v11064, %v11078
        %v11090 = vadd.f32 %v11065, %v11082
        %v11091 = vld [vmem:[#allocation12 + $0x14] sm:$0xf]
        %v11092 = vpack.c.bf16 %v11087, %v11087
        %v11093 = vpack.c.bf16 %v11088, %v11088
        %v11094 = vpack.c.bf16 %v11089, %v11089
        %v11095 = vpack.c.bf16 %v11090, %v11090
        %v11096 = vld [vmem:[#allocation5] sm:$0xff]
        %v11097 = vld [vmem:[#allocation5 + $0x8] sm:$0xff]
        %v11098 = vld [vmem:[#allocation5 + $0x10] sm:$0xff]
        %v11099 = vld [vmem:[#allocation5 + $0x18] sm:$0xff]
        %v11100 = vld [vmem:[#allocation5 + $0x20] sm:$0xff]
        %v11101 = vld [vmem:[#allocation5 + $0x28] sm:$0xff]
        %v11102 = vld [vmem:[#allocation5 + $0x30] sm:$0xff]
        %v11103 = vld [vmem:[#allocation5 + $0x38] sm:$0xff]
        %v11104 = vld [vmem:[#allocation5 + $0x40] sm:$0xff]
        %v11105 = vld [vmem:[#allocation5 + $0x48] sm:$0xff]
        %v11106 = vld [vmem:[#allocation5 + $0x50] sm:$0xff]
        %v11107 = vld [vmem:[#allocation5 + $0x58] sm:$0xff]
        %v11108 = vld [vmem:[#allocation5 + $0x60] sm:$0xff]
        %v11109 = vld [vmem:[#allocation5 + $0x68] sm:$0xff]
        %v11110 = vld [vmem:[#allocation5 + $0x70] sm:$0xff]
        %v11111 = vld [vmem:[#allocation5 + $0x78] sm:$0xff]
        %v11112 = vld [vmem:[#allocation5 + $0x80] sm:$0xff]
        %v11113 = vld [vmem:[#allocation5 + $0x88] sm:$0xff]
        %v11114 = vld [vmem:[#allocation5 + $0x90] sm:$0xff]
        %v11115 = vld [vmem:[#allocation5 + $0x98] sm:$0xff]
        %v11116 = vld [vmem:[#allocation5 + $0xa0] sm:$0xff]
        %v11117 = vld [vmem:[#allocation5 + $0xa8] sm:$0xff]
        %v11118 = vld [vmem:[#allocation5 + $0xb0] sm:$0xff]
        %v11119 = vld [vmem:[#allocation5 + $0xb8] sm:$0xff]
        %v11120 = vld [vmem:[#allocation5 + $0xc0] sm:$0xff]
        %v11121 = vld [vmem:[#allocation5 + $0xc8] sm:$0xff]
        %v11122 = vld [vmem:[#allocation5 + $0xd0] sm:$0xff]
        %v11123 = vld [vmem:[#allocation5 + $0xd8] sm:$0xff]
        %v11124 = vld [vmem:[#allocation5 + $0xe0] sm:$0xff]
        %v11125 = vld [vmem:[#allocation5 + $0xe8] sm:$0xff]
        %v11126 = vld [vmem:[#allocation5 + $0xf0] sm:$0xff]
        %v11127 = vld [vmem:[#allocation5 + $0xf8] sm:$0xff]
        %v11128 = vld [vmem:[#allocation5 + $0x100] sm:$0xff]
        %v11129 = vld [vmem:[#allocation5 + $0x108] sm:$0xff]
        %v11130 = vld [vmem:[#allocation5 + $0x110] sm:$0xff]
        %v11131 = vld [vmem:[#allocation5 + $0x118] sm:$0xff]
        %v11132 = vld [vmem:[#allocation5 + $0x120] sm:$0xff]
        %v11133 = vld [vmem:[#allocation5 + $0x128] sm:$0xff]
        %v11134 = vld [vmem:[#allocation5 + $0x130] sm:$0xff]
        %v11135 = vld [vmem:[#allocation5 + $0x138] sm:$0xff]
        %v11136 = vld [vmem:[#allocation5 + $0x140] sm:$0xff]
        %v11137 = vld [vmem:[#allocation5 + $0x148] sm:$0xff]
        %v11138 = vld [vmem:[#allocation5 + $0x150] sm:$0xff]
        %v11139 = vld [vmem:[#allocation5 + $0x158] sm:$0xff]
        %v11140 = vld [vmem:[#allocation5 + $0x160] sm:$0xff]
        %v11141 = vld [vmem:[#allocation5 + $0x168] sm:$0xff]
        %v11142 = vld [vmem:[#allocation5 + $0x170] sm:$0xff]
        %v11143 = vld [vmem:[#allocation5 + $0x178] sm:$0xff]
        %v11144 = vld [vmem:[#allocation5 + $0x180] sm:$0xff]
        %v11145 = vld [vmem:[#allocation5 + $0x188] sm:$0xff]
        %v11146 = vld [vmem:[#allocation5 + $0x190] sm:$0xff]
        %v11147 = vld [vmem:[#allocation5 + $0x198] sm:$0xff]
        %v11148 = vld [vmem:[#allocation5 + $0x1a0] sm:$0xff]
        %v11149 = vld [vmem:[#allocation5 + $0x1a8] sm:$0xff]
        %v11150 = vld [vmem:[#allocation5 + $0x1b0] sm:$0xff]
        %v11151 = vld [vmem:[#allocation5 + $0x1b8] sm:$0xff]
        %v11152 = vld [vmem:[#allocation5 + $0x1c0] sm:$0xff]
        %v11153 = vld [vmem:[#allocation5 + $0x1c8] sm:$0xff]
        %v11154 = vld [vmem:[#allocation5 + $0x1d0] sm:$0xff]
        %v11155 = vld [vmem:[#allocation5 + $0x1d8] sm:$0xff]
        %v11156 = vld [vmem:[#allocation5 + $0x1e0] sm:$0xff]
        %v11157 = vld [vmem:[#allocation5 + $0x1e8] sm:$0xff]
        %v11158 = vld [vmem:[#allocation5 + $0x1f0] sm:$0xff]
        %v11159 = vld [vmem:[#allocation5 + $0x1f8] sm:$0xff]
        %v11160 = vld [vmem:[#allocation5 + $0x200] sm:$0xff]
        %v11161 = vld [vmem:[#allocation5 + $0x208] sm:$0xff]
        %v11162 = vld [vmem:[#allocation5 + $0x210] sm:$0xff]
        %v11163 = vld [vmem:[#allocation5 + $0x218] sm:$0xff]
        %v11164 = vld [vmem:[#allocation5 + $0x220] sm:$0xff]
        %v11165 = vld [vmem:[#allocation5 + $0x228] sm:$0xff]
        %v11166 = vld [vmem:[#allocation5 + $0x230] sm:$0xff]
        %v11167 = vld [vmem:[#allocation5 + $0x238] sm:$0xff]
        %v11168 = vld [vmem:[#allocation5 + $0x240] sm:$0xff]
        %v11169 = vld [vmem:[#allocation5 + $0x248] sm:$0xff]
        %v11170 = vld [vmem:[#allocation5 + $0x250] sm:$0xff]
        %v11171 = vld [vmem:[#allocation5 + $0x258] sm:$0xff]
        %v11172 = vld [vmem:[#allocation5 + $0x260] sm:$0xff]
        %v11173 = vld [vmem:[#allocation5 + $0x268] sm:$0xff]
        %v11174 = vld [vmem:[#allocation5 + $0x270] sm:$0xff]
        %v11175 = vld [vmem:[#allocation5 + $0x278] sm:$0xff]
        %v11176 = vld [vmem:[#allocation5 + $0x280] sm:$0xff]
        %v11177 = vld [vmem:[#allocation5 + $0x288] sm:$0xff]
        %v11178 = vld [vmem:[#allocation5 + $0x290] sm:$0xff]
        %v11179 = vld [vmem:[#allocation5 + $0x298] sm:$0xff]
        %v11180 = vld [vmem:[#allocation5 + $0x2a0] sm:$0xff]
        %v11181 = vld [vmem:[#allocation5 + $0x2a8] sm:$0xff]
        %v11182 = vld [vmem:[#allocation5 + $0x2b0] sm:$0xff]
        %v11183 = vld [vmem:[#allocation5 + $0x2b8] sm:$0xff]
        %v11184 = vld [vmem:[#allocation5 + $0x2c0] sm:$0xff]
        %v11185 = vld [vmem:[#allocation5 + $0x2c8] sm:$0xff]
        %v11186 = vld [vmem:[#allocation5 + $0x2d0] sm:$0xff]
        %v11187 = vld [vmem:[#allocation5 + $0x2d8] sm:$0xff]
        %v11188 = vld [vmem:[#allocation5 + $0x2e0] sm:$0xff]
        %v11189 = vld [vmem:[#allocation5 + $0x2e8] sm:$0xff]
        %v11190 = vld [vmem:[#allocation5 + $0x2f0] sm:$0xff]
        %v11191 = vld [vmem:[#allocation5 + $0x2f8] sm:$0xff]
        %v11192 = vld [vmem:[#allocation5 + $0x300] sm:$0xff]
        %v11193 = vld [vmem:[#allocation5 + $0x308] sm:$0xff]
        %v11194 = vld [vmem:[#allocation5 + $0x310] sm:$0xff]
        %v11195 = vld [vmem:[#allocation5 + $0x318] sm:$0xff]
        %v11196 = vld [vmem:[#allocation5 + $0x320] sm:$0xff]
        %v11197 = vld [vmem:[#allocation5 + $0x328] sm:$0xff]
        %v11198 = vld [vmem:[#allocation5 + $0x330] sm:$0xff]
        %v11199 = vld [vmem:[#allocation5 + $0x338] sm:$0xff]
        %v11200 = vld [vmem:[#allocation5 + $0x340] sm:$0xff]
        %v11201 = vld [vmem:[#allocation5 + $0x348] sm:$0xff]
        %v11202 = vld [vmem:[#allocation5 + $0x350] sm:$0xff]
        %v11203 = vld [vmem:[#allocation5 + $0x358] sm:$0xff]
        %v11204 = vld [vmem:[#allocation5 + $0x360] sm:$0xff]
        %v11205 = vld [vmem:[#allocation5 + $0x368] sm:$0xff]
        %v11206 = vld [vmem:[#allocation5 + $0x370] sm:$0xff]
        %v11207 = vld [vmem:[#allocation5 + $0x378] sm:$0xff]
        %v11208 = vld [vmem:[#allocation5 + $0x380] sm:$0xff]
        %v11209 = vld [vmem:[#allocation5 + $0x388] sm:$0xff]
        %v11210 = vld [vmem:[#allocation5 + $0x390] sm:$0xff]
        %v11211 = vld [vmem:[#allocation5 + $0x398] sm:$0xff]
        %v11212 = vld [vmem:[#allocation5 + $0x3a0] sm:$0xff]
        %v11213 = vld [vmem:[#allocation5 + $0x3a8] sm:$0xff]
        %v11214 = vld [vmem:[#allocation5 + $0x3b0] sm:$0xff]
        %v11215 = vld [vmem:[#allocation5 + $0x3b8] sm:$0xff]
        %v11216 = vld [vmem:[#allocation5 + $0x3c0] sm:$0xff]
        %v11217 = vld [vmem:[#allocation5 + $0x3c8] sm:$0xff]
        %v11218 = vld [vmem:[#allocation5 + $0x3d0] sm:$0xff]
        %v11219 = vld [vmem:[#allocation5 + $0x3d8] sm:$0xff]
        %v11220 = vld [vmem:[#allocation5 + $0x3e0] sm:$0xff]
        %v11221 = vld [vmem:[#allocation5 + $0x3e8] sm:$0xff]
        %v11222 = vld [vmem:[#allocation5 + $0x3f0] sm:$0xff]
        %v11223 = vld [vmem:[#allocation5 + $0x3f8] sm:$0xff]
        %v11225 = vlaneseq
        %v11226 = vshrl.u32 %v11225, 7
        %v11227 = vsub.s32 0, %v11226
        %v11228 = vrot.slane %v11091, %v11227
        %v11229 = vlaneseq
        %v11230 = vshrl.u32 %v11229, 7
        %v11231 = vsub.s32 1, %v11230
        %v11232 = vrot.slane %v11091, %v11231
        %v11233 = vlaneseq
        %v11234 = vshrl.u32 %v11233, 7
        %v11235 = vsub.s32 2, %v11234
        %v11236 = vrot.slane %v11091, %v11235
        %v11237 = vlaneseq
        %v11238 = vshrl.u32 %v11237, 7
        %v11239 = vsub.s32 3, %v11238
        %v11240 = vrot.slane %v11091, %v11239
        %v11373 = vunpack.c.l.b16 %v11096
        %v11374 = vunpack.c.h.b16 %v11096
        %v11375 = vunpack.c.l.b16 %v11097
        %v11376 = vunpack.c.h.b16 %v11097
        %v11377 = vunpack.c.l.b16 %v11098
        %v11378 = vunpack.c.h.b16 %v11098
        %v11379 = vunpack.c.l.b16 %v11099
        %v11380 = vunpack.c.h.b16 %v11099
        %v11381 = vunpack.c.l.b16 %v11100
        %v11382 = vunpack.c.h.b16 %v11100
        %v11383 = vunpack.c.l.b16 %v11101
        %v11384 = vunpack.c.h.b16 %v11101
        %v11385 = vunpack.c.l.b16 %v11102
        %v11386 = vunpack.c.h.b16 %v11102
        %v11387 = vunpack.c.l.b16 %v11103
        %v11388 = vunpack.c.h.b16 %v11103
        %v11389 = vunpack.c.l.b16 %v11104
        %v11390 = vunpack.c.h.b16 %v11104
        %v11391 = vunpack.c.l.b16 %v11105
        %v11392 = vunpack.c.h.b16 %v11105
        %v11393 = vunpack.c.l.b16 %v11106
        %v11394 = vunpack.c.h.b16 %v11106
        %v11395 = vunpack.c.l.b16 %v11107
        %v11396 = vunpack.c.h.b16 %v11107
        %v11397 = vunpack.c.l.b16 %v11108
        %v11398 = vunpack.c.h.b16 %v11108
        %v11399 = vunpack.c.l.b16 %v11109
        %v11400 = vunpack.c.h.b16 %v11109
        %v11401 = vunpack.c.l.b16 %v11110
        %v11402 = vunpack.c.h.b16 %v11110
        %v11403 = vunpack.c.l.b16 %v11111
        %v11404 = vunpack.c.h.b16 %v11111
        %v11405 = vunpack.c.l.b16 %v11112
        %v11406 = vunpack.c.h.b16 %v11112
        %v11407 = vunpack.c.l.b16 %v11113
        %v11408 = vunpack.c.h.b16 %v11113
        %v11409 = vunpack.c.l.b16 %v11114
        %v11410 = vunpack.c.h.b16 %v11114
        %v11411 = vunpack.c.l.b16 %v11115
        %v11412 = vunpack.c.h.b16 %v11115
        %v11413 = vunpack.c.l.b16 %v11116
        %v11414 = vunpack.c.h.b16 %v11116
        %v11415 = vunpack.c.l.b16 %v11117
        %v11416 = vunpack.c.h.b16 %v11117
        %v11417 = vunpack.c.l.b16 %v11118
        %v11418 = vunpack.c.h.b16 %v11118
        %v11419 = vunpack.c.l.b16 %v11119
        %v11420 = vunpack.c.h.b16 %v11119
        %v11421 = vunpack.c.l.b16 %v11120
        %v11422 = vunpack.c.h.b16 %v11120
        %v11423 = vunpack.c.l.b16 %v11121
        %v11424 = vunpack.c.h.b16 %v11121
        %v11425 = vunpack.c.l.b16 %v11122
        %v11426 = vunpack.c.h.b16 %v11122
        %v11427 = vunpack.c.l.b16 %v11123
        %v11428 = vunpack.c.h.b16 %v11123
        %v11429 = vunpack.c.l.b16 %v11124
        %v11430 = vunpack.c.h.b16 %v11124
        %v11431 = vunpack.c.l.b16 %v11125
        %v11432 = vunpack.c.h.b16 %v11125
        %v11433 = vunpack.c.l.b16 %v11126
        %v11434 = vunpack.c.h.b16 %v11126
        %v11435 = vunpack.c.l.b16 %v11127
        %v11436 = vunpack.c.h.b16 %v11127
        %v11437 = vunpack.c.l.b16 %v11128
        %v11438 = vunpack.c.h.b16 %v11128
        %v11439 = vunpack.c.l.b16 %v11129
        %v11440 = vunpack.c.h.b16 %v11129
        %v11441 = vunpack.c.l.b16 %v11130
        %v11442 = vunpack.c.h.b16 %v11130
        %v11443 = vunpack.c.l.b16 %v11131
        %v11444 = vunpack.c.h.b16 %v11131
        %v11445 = vunpack.c.l.b16 %v11132
        %v11446 = vunpack.c.h.b16 %v11132
        %v11447 = vunpack.c.l.b16 %v11133
        %v11448 = vunpack.c.h.b16 %v11133
        %v11449 = vunpack.c.l.b16 %v11134
        %v11450 = vunpack.c.h.b16 %v11134
        %v11451 = vunpack.c.l.b16 %v11135
        %v11452 = vunpack.c.h.b16 %v11135
        %v11453 = vunpack.c.l.b16 %v11136
        %v11454 = vunpack.c.h.b16 %v11136
        %v11455 = vunpack.c.l.b16 %v11137
        %v11456 = vunpack.c.h.b16 %v11137
        %v11457 = vunpack.c.l.b16 %v11138
        %v11458 = vunpack.c.h.b16 %v11138
        %v11459 = vunpack.c.l.b16 %v11139
        %v11460 = vunpack.c.h.b16 %v11139
        %v11461 = vunpack.c.l.b16 %v11140
        %v11462 = vunpack.c.h.b16 %v11140
        %v11463 = vunpack.c.l.b16 %v11141
        %v11464 = vunpack.c.h.b16 %v11141
        %v11465 = vunpack.c.l.b16 %v11142
        %v11466 = vunpack.c.h.b16 %v11142
        %v11467 = vunpack.c.l.b16 %v11143
        %v11468 = vunpack.c.h.b16 %v11143
        %v11469 = vunpack.c.l.b16 %v11144
        %v11470 = vunpack.c.h.b16 %v11144
        %v11471 = vunpack.c.l.b16 %v11145
        %v11472 = vunpack.c.h.b16 %v11145
        %v11473 = vunpack.c.l.b16 %v11146
        %v11474 = vunpack.c.h.b16 %v11146
        %v11475 = vunpack.c.l.b16 %v11147
        %v11476 = vunpack.c.h.b16 %v11147
        %v11477 = vunpack.c.l.b16 %v11148
        %v11478 = vunpack.c.h.b16 %v11148
        %v11479 = vunpack.c.l.b16 %v11149
        %v11480 = vunpack.c.h.b16 %v11149
        %v11481 = vunpack.c.l.b16 %v11150
        %v11482 = vunpack.c.h.b16 %v11150
        %v11483 = vunpack.c.l.b16 %v11151
        %v11484 = vunpack.c.h.b16 %v11151
        %v11485 = vunpack.c.l.b16 %v11152
        %v11486 = vunpack.c.h.b16 %v11152
        %v11487 = vunpack.c.l.b16 %v11153
        %v11488 = vunpack.c.h.b16 %v11153
        %v11489 = vunpack.c.l.b16 %v11154
        %v11490 = vunpack.c.h.b16 %v11154
        %v11491 = vunpack.c.l.b16 %v11155
        %v11492 = vunpack.c.h.b16 %v11155
        %v11493 = vunpack.c.l.b16 %v11156
        %v11494 = vunpack.c.h.b16 %v11156
        %v11495 = vunpack.c.l.b16 %v11157
        %v11496 = vunpack.c.h.b16 %v11157
        %v11497 = vunpack.c.l.b16 %v11158
        %v11498 = vunpack.c.h.b16 %v11158
        %v11499 = vunpack.c.l.b16 %v11159
        %v11500 = vunpack.c.h.b16 %v11159
        %v11501 = vunpack.c.l.b16 %v11160
        %v11502 = vunpack.c.h.b16 %v11160
        %v11503 = vunpack.c.l.b16 %v11161
        %v11504 = vunpack.c.h.b16 %v11161
        %v11505 = vunpack.c.l.b16 %v11162
        %v11506 = vunpack.c.h.b16 %v11162
        %v11507 = vunpack.c.l.b16 %v11163
        %v11508 = vunpack.c.h.b16 %v11163
        %v11509 = vunpack.c.l.b16 %v11164
        %v11510 = vunpack.c.h.b16 %v11164
        %v11511 = vunpack.c.l.b16 %v11165
        %v11512 = vunpack.c.h.b16 %v11165
        %v11513 = vunpack.c.l.b16 %v11166
        %v11514 = vunpack.c.h.b16 %v11166
        %v11515 = vunpack.c.l.b16 %v11167
        %v11516 = vunpack.c.h.b16 %v11167
        %v11517 = vunpack.c.l.b16 %v11168
        %v11518 = vunpack.c.h.b16 %v11168
        %v11519 = vunpack.c.l.b16 %v11169
        %v11520 = vunpack.c.h.b16 %v11169
        %v11521 = vunpack.c.l.b16 %v11170
        %v11522 = vunpack.c.h.b16 %v11170
        %v11523 = vunpack.c.l.b16 %v11171
        %v11524 = vunpack.c.h.b16 %v11171
        %v11525 = vunpack.c.l.b16 %v11172
        %v11526 = vunpack.c.h.b16 %v11172
        %v11527 = vunpack.c.l.b16 %v11173
        %v11528 = vunpack.c.h.b16 %v11173
        %v11529 = vunpack.c.l.b16 %v11174
        %v11530 = vunpack.c.h.b16 %v11174
        %v11531 = vunpack.c.l.b16 %v11175
        %v11532 = vunpack.c.h.b16 %v11175
        %v11533 = vunpack.c.l.b16 %v11176
        %v11534 = vunpack.c.h.b16 %v11176
        %v11535 = vunpack.c.l.b16 %v11177
        %v11536 = vunpack.c.h.b16 %v11177
        %v11537 = vunpack.c.l.b16 %v11178
        %v11538 = vunpack.c.h.b16 %v11178
        %v11539 = vunpack.c.l.b16 %v11179
        %v11540 = vunpack.c.h.b16 %v11179
        %v11541 = vunpack.c.l.b16 %v11180
        %v11542 = vunpack.c.h.b16 %v11180
        %v11543 = vunpack.c.l.b16 %v11181
        %v11544 = vunpack.c.h.b16 %v11181
        %v11545 = vunpack.c.l.b16 %v11182
        %v11546 = vunpack.c.h.b16 %v11182
        %v11547 = vunpack.c.l.b16 %v11183
        %v11548 = vunpack.c.h.b16 %v11183
        %v11549 = vunpack.c.l.b16 %v11184
        %v11550 = vunpack.c.h.b16 %v11184
        %v11551 = vunpack.c.l.b16 %v11185
        %v11552 = vunpack.c.h.b16 %v11185
        %v11553 = vunpack.c.l.b16 %v11186
        %v11554 = vunpack.c.h.b16 %v11186
        %v11555 = vunpack.c.l.b16 %v11187
        %v11556 = vunpack.c.h.b16 %v11187
        %v11557 = vunpack.c.l.b16 %v11188
        %v11558 = vunpack.c.h.b16 %v11188
        %v11559 = vunpack.c.l.b16 %v11189
        %v11560 = vunpack.c.h.b16 %v11189
        %v11561 = vunpack.c.l.b16 %v11190
        %v11562 = vunpack.c.h.b16 %v11190
        %v11563 = vunpack.c.l.b16 %v11191
        %v11564 = vunpack.c.h.b16 %v11191
        %v11565 = vunpack.c.l.b16 %v11192
        %v11566 = vunpack.c.h.b16 %v11192
        %v11567 = vunpack.c.l.b16 %v11193
        %v11568 = vunpack.c.h.b16 %v11193
        %v11569 = vunpack.c.l.b16 %v11194
        %v11570 = vunpack.c.h.b16 %v11194
        %v11571 = vunpack.c.l.b16 %v11195
        %v11572 = vunpack.c.h.b16 %v11195
        %v11573 = vunpack.c.l.b16 %v11196
        %v11574 = vunpack.c.h.b16 %v11196
        %v11575 = vunpack.c.l.b16 %v11197
        %v11576 = vunpack.c.h.b16 %v11197
        %v11577 = vunpack.c.l.b16 %v11198
        %v11578 = vunpack.c.h.b16 %v11198
        %v11579 = vunpack.c.l.b16 %v11199
        %v11580 = vunpack.c.h.b16 %v11199
        %v11581 = vunpack.c.l.b16 %v11200
        %v11582 = vunpack.c.h.b16 %v11200
        %v11583 = vunpack.c.l.b16 %v11201
        %v11584 = vunpack.c.h.b16 %v11201
        %v11585 = vunpack.c.l.b16 %v11202
        %v11586 = vunpack.c.h.b16 %v11202
        %v11587 = vunpack.c.l.b16 %v11203
        %v11588 = vunpack.c.h.b16 %v11203
        %v11589 = vunpack.c.l.b16 %v11204
        %v11590 = vunpack.c.h.b16 %v11204
        %v11591 = vunpack.c.l.b16 %v11205
        %v11592 = vunpack.c.h.b16 %v11205
        %v11593 = vunpack.c.l.b16 %v11206
        %v11594 = vunpack.c.h.b16 %v11206
        %v11595 = vunpack.c.l.b16 %v11207
        %v11596 = vunpack.c.h.b16 %v11207
        %v11597 = vunpack.c.l.b16 %v11208
        %v11598 = vunpack.c.h.b16 %v11208
        %v11599 = vunpack.c.l.b16 %v11209
        %v11600 = vunpack.c.h.b16 %v11209
        %v11601 = vunpack.c.l.b16 %v11210
        %v11602 = vunpack.c.h.b16 %v11210
        %v11603 = vunpack.c.l.b16 %v11211
        %v11604 = vunpack.c.h.b16 %v11211
        %v11605 = vunpack.c.l.b16 %v11212
        %v11606 = vunpack.c.h.b16 %v11212
        %v11607 = vunpack.c.l.b16 %v11213
        %v11608 = vunpack.c.h.b16 %v11213
        %v11609 = vunpack.c.l.b16 %v11214
        %v11610 = vunpack.c.h.b16 %v11214
        %v11611 = vunpack.c.l.b16 %v11215
        %v11612 = vunpack.c.h.b16 %v11215
        %v11613 = vunpack.c.l.b16 %v11216
        %v11614 = vunpack.c.h.b16 %v11216
        %v11615 = vunpack.c.l.b16 %v11217
        %v11616 = vunpack.c.h.b16 %v11217
        %v11617 = vunpack.c.l.b16 %v11218
        %v11618 = vunpack.c.h.b16 %v11218
        %v11619 = vunpack.c.l.b16 %v11219
        %v11620 = vunpack.c.h.b16 %v11219
        %v11621 = vunpack.c.l.b16 %v11220
        %v11622 = vunpack.c.h.b16 %v11220
        %v11623 = vunpack.c.l.b16 %v11221
        %v11624 = vunpack.c.h.b16 %v11221
        %v11625 = vunpack.c.l.b16 %v11222
        %v11626 = vunpack.c.h.b16 %v11222
        %v11627 = vunpack.c.l.b16 %v11223
        %v11628 = vunpack.c.h.b16 %v11223
        %v11629 = vpack.c.b16 %v11377, %v11373
        %v11630 = vpack.c.b16 %v11378, %v11374
        %v11631 = vpack.c.b16 %v11379, %v11375
        %v11632 = vpack.c.b16 %v11380, %v11376
        %v11633 = vpack.c.b16 %v11385, %v11381
        %v11634 = vpack.c.b16 %v11386, %v11382
        %v11635 = vpack.c.b16 %v11387, %v11383
        %v11636 = vpack.c.b16 %v11388, %v11384
        %v11637 = vpack.c.b16 %v11393, %v11389
        %v11638 = vpack.c.b16 %v11394, %v11390
        %v11639 = vpack.c.b16 %v11395, %v11391
        %v11640 = vpack.c.b16 %v11396, %v11392
        %v11641 = vpack.c.b16 %v11401, %v11397
        %v11642 = vpack.c.b16 %v11402, %v11398
        %v11643 = vpack.c.b16 %v11403, %v11399
        %v11644 = vpack.c.b16 %v11404, %v11400
        %v11645 = vpack.c.b16 %v11409, %v11405
        %v11646 = vpack.c.b16 %v11410, %v11406
        %v11647 = vpack.c.b16 %v11411, %v11407
        %v11648 = vpack.c.b16 %v11412, %v11408
        %v11649 = vpack.c.b16 %v11417, %v11413
        %v11650 = vpack.c.b16 %v11418, %v11414
        %v11651 = vpack.c.b16 %v11419, %v11415
        %v11652 = vpack.c.b16 %v11420, %v11416
        %v11653 = vpack.c.b16 %v11425, %v11421
        %v11654 = vpack.c.b16 %v11426, %v11422
        %v11655 = vpack.c.b16 %v11427, %v11423
        %v11656 = vpack.c.b16 %v11428, %v11424
        %v11657 = vpack.c.b16 %v11433, %v11429
        %v11658 = vpack.c.b16 %v11434, %v11430
        %v11659 = vpack.c.b16 %v11435, %v11431
        %v11660 = vpack.c.b16 %v11436, %v11432
        %v11661 = vpack.c.b16 %v11441, %v11437
        %v11662 = vpack.c.b16 %v11442, %v11438
        %v11663 = vpack.c.b16 %v11443, %v11439
        %v11664 = vpack.c.b16 %v11444, %v11440
        %v11665 = vpack.c.b16 %v11449, %v11445
        %v11666 = vpack.c.b16 %v11450, %v11446
        %v11667 = vpack.c.b16 %v11451, %v11447
        %v11668 = vpack.c.b16 %v11452, %v11448
        %v11669 = vpack.c.b16 %v11457, %v11453
        %v11670 = vpack.c.b16 %v11458, %v11454
        %v11671 = vpack.c.b16 %v11459, %v11455
        %v11672 = vpack.c.b16 %v11460, %v11456
        %v11673 = vpack.c.b16 %v11465, %v11461
        %v11674 = vpack.c.b16 %v11466, %v11462
        %v11675 = vpack.c.b16 %v11467, %v11463
        %v11676 = vpack.c.b16 %v11468, %v11464
        %v11677 = vpack.c.b16 %v11473, %v11469
        %v11678 = vpack.c.b16 %v11474, %v11470
        %v11679 = vpack.c.b16 %v11475, %v11471
        %v11680 = vpack.c.b16 %v11476, %v11472
        %v11681 = vpack.c.b16 %v11481, %v11477
        %v11682 = vpack.c.b16 %v11482, %v11478
        %v11683 = vpack.c.b16 %v11483, %v11479
        %v11684 = vpack.c.b16 %v11484, %v11480
        %v11685 = vpack.c.b16 %v11489, %v11485
        %v11686 = vpack.c.b16 %v11490, %v11486
        %v11687 = vpack.c.b16 %v11491, %v11487
        %v11688 = vpack.c.b16 %v11492, %v11488
        %v11689 = vpack.c.b16 %v11497, %v11493
        %v11690 = vpack.c.b16 %v11498, %v11494
        %v11691 = vpack.c.b16 %v11499, %v11495
        %v11692 = vpack.c.b16 %v11500, %v11496
        %v11693 = vpack.c.b16 %v11505, %v11501
        %v11694 = vpack.c.b16 %v11506, %v11502
        %v11695 = vpack.c.b16 %v11507, %v11503
        %v11696 = vpack.c.b16 %v11508, %v11504
        %v11697 = vpack.c.b16 %v11513, %v11509
        %v11698 = vpack.c.b16 %v11514, %v11510
        %v11699 = vpack.c.b16 %v11515, %v11511
        %v11700 = vpack.c.b16 %v11516, %v11512
        %v11701 = vpack.c.b16 %v11521, %v11517
        %v11702 = vpack.c.b16 %v11522, %v11518
        %v11703 = vpack.c.b16 %v11523, %v11519
        %v11704 = vpack.c.b16 %v11524, %v11520
        %v11705 = vpack.c.b16 %v11529, %v11525
        %v11706 = vpack.c.b16 %v11530, %v11526
        %v11707 = vpack.c.b16 %v11531, %v11527
        %v11708 = vpack.c.b16 %v11532, %v11528
        %v11709 = vpack.c.b16 %v11537, %v11533
        %v11710 = vpack.c.b16 %v11538, %v11534
        %v11711 = vpack.c.b16 %v11539, %v11535
        %v11712 = vpack.c.b16 %v11540, %v11536
        %v11713 = vpack.c.b16 %v11545, %v11541
        %v11714 = vpack.c.b16 %v11546, %v11542
        %v11715 = vpack.c.b16 %v11547, %v11543
        %v11716 = vpack.c.b16 %v11548, %v11544
        %v11717 = vpack.c.b16 %v11553, %v11549
        %v11718 = vpack.c.b16 %v11554, %v11550
        %v11719 = vpack.c.b16 %v11555, %v11551
        %v11720 = vpack.c.b16 %v11556, %v11552
        %v11721 = vpack.c.b16 %v11561, %v11557
        %v11722 = vpack.c.b16 %v11562, %v11558
        %v11723 = vpack.c.b16 %v11563, %v11559
        %v11724 = vpack.c.b16 %v11564, %v11560
        %v11725 = vpack.c.b16 %v11569, %v11565
        %v11726 = vpack.c.b16 %v11570, %v11566
        %v11727 = vpack.c.b16 %v11571, %v11567
        %v11728 = vpack.c.b16 %v11572, %v11568
        %v11729 = vpack.c.b16 %v11577, %v11573
        %v11730 = vpack.c.b16 %v11578, %v11574
        %v11731 = vpack.c.b16 %v11579, %v11575
        %v11732 = vpack.c.b16 %v11580, %v11576
        %v11733 = vpack.c.b16 %v11585, %v11581
        %v11734 = vpack.c.b16 %v11586, %v11582
        %v11735 = vpack.c.b16 %v11587, %v11583
        %v11736 = vpack.c.b16 %v11588, %v11584
        %v11737 = vpack.c.b16 %v11593, %v11589
        %v11738 = vpack.c.b16 %v11594, %v11590
        %v11739 = vpack.c.b16 %v11595, %v11591
        %v11740 = vpack.c.b16 %v11596, %v11592
        %v11741 = vpack.c.b16 %v11601, %v11597
        %v11742 = vpack.c.b16 %v11602, %v11598
        %v11743 = vpack.c.b16 %v11603, %v11599
        %v11744 = vpack.c.b16 %v11604, %v11600
        %v11745 = vpack.c.b16 %v11609, %v11605
        %v11746 = vpack.c.b16 %v11610, %v11606
        %v11747 = vpack.c.b16 %v11611, %v11607
        %v11748 = vpack.c.b16 %v11612, %v11608
        %v11749 = vpack.c.b16 %v11617, %v11613
        %v11750 = vpack.c.b16 %v11618, %v11614
        %v11751 = vpack.c.b16 %v11619, %v11615
        %v11752 = vpack.c.b16 %v11620, %v11616
        %v11753 = vpack.c.b16 %v11625, %v11621
        %v11754 = vpack.c.b16 %v11626, %v11622
        %v11755 = vpack.c.b16 %v11627, %v11623
        %v11756 = vpack.c.b16 %v11628, %v11624
        %11885 = vmatprep.subr.bf16.mxu0 %v11658
        %11886 = vmatpush1.bf16.msra.mxu0 %v11657
        %11887 = vmatprep.subr.bf16.mxu0 %v11654
        %11888 = vmatpush1.bf16.msra.mxu0 %v11653
        %11889 = vmatprep.subr.bf16.mxu0 %v11650
        %11890 = vmatpush1.bf16.msra.mxu0 %v11649
        %11891 = vmatprep.subr.bf16.mxu0 %v11646
        %11892 = vmatpush1.bf16.msra.mxu0 %v11645
        %11893 = vmatprep.subr.bf16.mxu0 %v11642
        %11894 = vmatpush1.bf16.msra.mxu0 %v11641
        %11895 = vmatprep.subr.bf16.mxu0 %v11638
        %11896 = vmatpush1.bf16.msra.mxu0 %v11637
        %11897 = vmatprep.subr.bf16.mxu0 %v11634
        %11898 = vmatpush1.bf16.msra.mxu0 %v11633
        %11899 = vmatprep.subr.bf16.mxu0 %v11630
        %11900 = vmatpush1.bf16.msra.mxu0 %v11629
        %11901 = vmatprep.subr.bf16.mxu0 %v11690
        %11902 = vmatpush2.bf16.msra.mxu0 %v11689
        %11903 = vmatprep.subr.bf16.mxu0 %v11686
        %11904 = vmatpush2.bf16.msra.mxu0 %v11685
        %11905 = vmatprep.subr.bf16.mxu0 %v11682
        %11906 = vmatpush2.bf16.msra.mxu0 %v11681
        %11907 = vmatprep.subr.bf16.mxu0 %v11678
        %11908 = vmatpush2.bf16.msra.mxu0 %v11677
        %11909 = vmatprep.subr.bf16.mxu0 %v11674
        %11910 = vmatpush2.bf16.msra.mxu0 %v11673
        %11911 = vmatprep.subr.bf16.mxu0 %v11670
        %11912 = vmatpush2.bf16.msra.mxu0 %v11669
        %11913 = vmatprep.subr.bf16.mxu0 %v11666
        %11914 = vmatpush2.bf16.msra.mxu0 %v11665
        %11915 = vmatprep.subr.bf16.mxu0 %v11662
        %11916 = vmatpush2.bf16.msra.mxu0 %v11661
        %11917 = vmatprep.mubr.bf16.mxu0 %v11093
        %11918 = vmatmul.mubr.bf16.gmra.mxu0 %v11092
        %v11919 = vpop.f32.mrf.mxu0
        %v11920 = vadd.f32 %v11228, %v11919
        %v11921 = vpop.f32.mrf.mxu0
        %v11922 = vadd.f32 %v11232, %v11921
        %v11923 = vpop.f32.mrf.mxu0
        %v11924 = vpop.f32.mrf.mxu0
        %11925 = vdwg.mxu0
        %11926 = vmatprep.subr.bf16.mxu0 %v11722
        %11927 = vmatpush1.bf16.msra.mxu0 %v11721
        %11928 = vmatprep.subr.bf16.mxu0 %v11718
        %11929 = vmatpush1.bf16.msra.mxu0 %v11717
        %11930 = vmatprep.subr.bf16.mxu0 %v11714
        %11931 = vmatpush1.bf16.msra.mxu0 %v11713
        %11932 = vmatprep.subr.bf16.mxu0 %v11710
        %11933 = vmatpush1.bf16.msra.mxu0 %v11709
        %11934 = vmatprep.subr.bf16.mxu0 %v11706
        %11935 = vmatpush1.bf16.msra.mxu0 %v11705
        %11936 = vmatprep.subr.bf16.mxu0 %v11702
        %11937 = vmatpush1.bf16.msra.mxu0 %v11701
        %11938 = vmatprep.subr.bf16.mxu0 %v11698
        %11939 = vmatpush1.bf16.msra.mxu0 %v11697
        %11940 = vmatprep.subr.bf16.mxu0 %v11694
        %11941 = vmatpush1.bf16.msra.mxu0 %v11693
        %11942 = vmatprep.subr.bf16.mxu0 %v11754
        %11943 = vmatpush2.bf16.msra.mxu0 %v11753
        %11944 = vmatprep.subr.bf16.mxu0 %v11750
        %11945 = vmatpush2.bf16.msra.mxu0 %v11749
        %11946 = vmatprep.subr.bf16.mxu0 %v11746
        %11947 = vmatpush2.bf16.msra.mxu0 %v11745
        %11948 = vmatprep.subr.bf16.mxu0 %v11742
        %11949 = vmatpush2.bf16.msra.mxu0 %v11741
        %11950 = vmatprep.subr.bf16.mxu0 %v11738
        %11951 = vmatpush2.bf16.msra.mxu0 %v11737
        %11952 = vmatprep.subr.bf16.mxu0 %v11734
        %11953 = vmatpush2.bf16.msra.mxu0 %v11733
        %11954 = vmatprep.subr.bf16.mxu0 %v11730
        %11955 = vmatpush2.bf16.msra.mxu0 %v11729
        %11956 = vmatprep.subr.bf16.mxu0 %v11726
        %11957 = vmatpush2.bf16.msra.mxu0 %v11725
        %11958 = vmatprep.mubr.bf16.mxu0 %v11095
        %11959 = vmatmul.mubr.bf16.gmra.mxu0 %v11094
        %v11960 = vpop.f32.mrf.mxu0
        %v11961 = vadd.f32 %v11920, %v11960
        %v11962 = vpop.f32.mrf.mxu0
        %v11963 = vadd.f32 %v11922, %v11962
        %v11964 = vpop.f32.mrf.mxu0
        %v11965 = vpop.f32.mrf.mxu0
        %11966 = vdwg.mxu0
        %11967 = vmatprep.subr.bf16.mxu0 %v11660
        %11968 = vmatpush1.bf16.msra.mxu0 %v11659
        %11969 = vmatprep.subr.bf16.mxu0 %v11656
        %11970 = vmatpush1.bf16.msra.mxu0 %v11655
        %11971 = vmatprep.subr.bf16.mxu0 %v11652
        %11972 = vmatpush1.bf16.msra.mxu0 %v11651
        %11973 = vmatprep.subr.bf16.mxu0 %v11648
        %11974 = vmatpush1.bf16.msra.mxu0 %v11647
        %11975 = vmatprep.subr.bf16.mxu0 %v11644
        %11976 = vmatpush1.bf16.msra.mxu0 %v11643
        %11977 = vmatprep.subr.bf16.mxu0 %v11640
        %11978 = vmatpush1.bf16.msra.mxu0 %v11639
        %11979 = vmatprep.subr.bf16.mxu0 %v11636
        %11980 = vmatpush1.bf16.msra.mxu0 %v11635
        %11981 = vmatprep.subr.bf16.mxu0 %v11632
        %11982 = vmatpush1.bf16.msra.mxu0 %v11631
        %11983 = vmatprep.subr.bf16.mxu0 %v11692
        %11984 = vmatpush2.bf16.msra.mxu0 %v11691
        %11985 = vmatprep.subr.bf16.mxu0 %v11688
        %11986 = vmatpush2.bf16.msra.mxu0 %v11687
        %11987 = vmatprep.subr.bf16.mxu0 %v11684
        %11988 = vmatpush2.bf16.msra.mxu0 %v11683
        %11989 = vmatprep.subr.bf16.mxu0 %v11680
        %11990 = vmatpush2.bf16.msra.mxu0 %v11679
        %11991 = vmatprep.subr.bf16.mxu0 %v11676
        %11992 = vmatpush2.bf16.msra.mxu0 %v11675
        %11993 = vmatprep.subr.bf16.mxu0 %v11672
        %11994 = vmatpush2.bf16.msra.mxu0 %v11671
        %11995 = vmatprep.subr.bf16.mxu0 %v11668
        %11996 = vmatpush2.bf16.msra.mxu0 %v11667
        %11997 = vmatprep.subr.bf16.mxu0 %v11664
        %11998 = vmatpush2.bf16.msra.mxu0 %v11663
        %11999 = vmatprep.mubr.bf16.mxu0 %v11093
        %12000 = vmatmul.mubr.bf16.gmra.mxu0 %v11092
        %v12001 = vpop.f32.mrf.mxu0
        %v12002 = vadd.f32 %v11236, %v12001
        %v12003 = vpop.f32.mrf.mxu0
        %v12004 = vadd.f32 %v11240, %v12003
        %v12005 = vpop.f32.mrf.mxu0
        %v12006 = vpop.f32.mrf.mxu0
        %12007 = vdwg.mxu0
        %12008 = vmatprep.subr.bf16.mxu0 %v11724
        %12009 = vmatpush1.bf16.msra.mxu0 %v11723
        %12010 = vmatprep.subr.bf16.mxu0 %v11720
        %12011 = vmatpush1.bf16.msra.mxu0 %v11719
        %12012 = vmatprep.subr.bf16.mxu0 %v11716
        %12013 = vmatpush1.bf16.msra.mxu0 %v11715
        %12014 = vmatprep.subr.bf16.mxu0 %v11712
        %12015 = vmatpush1.bf16.msra.mxu0 %v11711
        %12016 = vmatprep.subr.bf16.mxu0 %v11708
        %12017 = vmatpush1.bf16.msra.mxu0 %v11707
        %12018 = vmatprep.subr.bf16.mxu0 %v11704
        %12019 = vmatpush1.bf16.msra.mxu0 %v11703
        %12020 = vmatprep.subr.bf16.mxu0 %v11700
        %12021 = vmatpush1.bf16.msra.mxu0 %v11699
        %12022 = vmatprep.subr.bf16.mxu0 %v11696
        %12023 = vmatpush1.bf16.msra.mxu0 %v11695
        %12024 = vmatprep.subr.bf16.mxu0 %v11756
        %12025 = vmatpush2.bf16.msra.mxu0 %v11755
        %12026 = vmatprep.subr.bf16.mxu0 %v11752
        %12027 = vmatpush2.bf16.msra.mxu0 %v11751
        %12028 = vmatprep.subr.bf16.mxu0 %v11748
        %12029 = vmatpush2.bf16.msra.mxu0 %v11747
        %12030 = vmatprep.subr.bf16.mxu0 %v11744
        %12031 = vmatpush2.bf16.msra.mxu0 %v11743
        %12032 = vmatprep.subr.bf16.mxu0 %v11740
        %12033 = vmatpush2.bf16.msra.mxu0 %v11739
        %12034 = vmatprep.subr.bf16.mxu0 %v11736
        %12035 = vmatpush2.bf16.msra.mxu0 %v11735
        %12036 = vmatprep.subr.bf16.mxu0 %v11732
        %12037 = vmatpush2.bf16.msra.mxu0 %v11731
        %12038 = vmatprep.subr.bf16.mxu0 %v11728
        %12039 = vmatpush2.bf16.msra.mxu0 %v11727
        %12040 = vmatprep.mubr.bf16.mxu0 %v11095
        %12041 = vmatmul.mubr.bf16.gmra.mxu0 %v11094
        %v12042 = vpop.f32.mrf.mxu0
        %v12043 = vadd.f32 %v12002, %v12042
        %v12044 = vpop.f32.mrf.mxu0
        %v12045 = vadd.f32 %v12004, %v12044
        %v12046 = vpop.f32.mrf.mxu0
        %v12047 = vpop.f32.mrf.mxu0
        %12048 = vdwg.mxu0
        %v12049 = vxor.u32 %v11961, 2147483648
        %v12050 = vxor.u32 %v11963, 2147483648
        %v12051 = vxor.u32 %v12043, 2147483648
        %v12052 = vxor.u32 %v12045, 2147483648
        %v12053 = vmul.f32 %v12049, 1.442695
        %v12054 = vpow.pop %v12053
        %v12055 = vmul.f32 %v12050, 1.442695
        %v12056 = vpow.pop %v12055
        %v12057 = vmul.f32 %v12051, 1.442695
        %v12058 = vpow.pop %v12057
        %v12059 = vmul.f32 %v12052, 1.442695
        %v12060 = vpow.pop %v12059
        %v12061 = vadd.f32 %v12054, 1.0
        %v12062 = vadd.f32 %v12056, 1.0
        %v12063 = vadd.f32 %v12058, 1.0
        %v12064 = vadd.f32 %v12060, 1.0
        %v12065 = vrcp.pop %v12061
        %v12066 = vmul.f32 1.0, %v12065
        %v12067 = vrcp.pop %v12062
        %v12068 = vmul.f32 1.0, %v12067
        %v12069 = vrcp.pop %v12063
        %v12070 = vmul.f32 1.0, %v12069
        %v12071 = vrcp.pop %v12064
        %v12072 = vmul.f32 1.0, %v12071
        %v12073 = vld [vmem:[#allocation14 + $0x14] sm:$0xf]
        %v12074 = vld [vmem:[#allocation15 + $0x14] sm:$0xf]
        %v12075 = vrot.slane %v12066, 4
        %v12076 = vadd.f32 %v12066, %v12075
        %v12077 = vrot.slane %v12076, 2
        %v12078 = vadd.f32 %v12076, %v12077
        %v12079 = vrot.slane %v12078, 1
        %v12080 = vadd.f32 %v12078, %v12079
        %v12081 = vrot.slane %v12068, 4
        %v12082 = vadd.f32 %v12068, %v12081
        %v12083 = vrot.slane %v12082, 2
        %v12084 = vadd.f32 %v12082, %v12083
        %v12085 = vrot.slane %v12084, 1
        %v12086 = vadd.f32 %v12084, %v12085
        %v12087 = vrot.slane %v12070, 4
        %v12088 = vadd.f32 %v12070, %v12087
        %v12089 = vrot.slane %v12088, 2
        %v12090 = vadd.f32 %v12088, %v12089
        %v12091 = vrot.slane %v12090, 1
        %v12092 = vadd.f32 %v12090, %v12091
        %v12093 = vrot.slane %v12072, 4
        %v12094 = vadd.f32 %v12072, %v12093
        %v12095 = vrot.slane %v12094, 2
        %v12096 = vadd.f32 %v12094, %v12095
        %v12097 = vrot.slane %v12096, 1
        %v12098 = vadd.f32 %v12096, %v12097
        %v12099 = vmul.f32 %v12080, %v4804
        %v12100 = vmul.f32 %v12086, %v4804
        %v12101 = vmul.f32 %v12092, %v4804
        %v12102 = vmul.f32 %v12098, %v4804
        %v12103 = vsub.f32 %v12066, %v12099
        %v12104 = vsub.f32 %v12068, %v12100
        %v12105 = vsub.f32 %v12070, %v12101
        %v12106 = vsub.f32 %v12072, %v12102
        %v12107 = vmul.f32 %v12103, %v12103
        %v12108 = vmul.f32 %v12104, %v12104
        %v12109 = vmul.f32 %v12105, %v12105
        %v12110 = vmul.f32 %v12106, %v12106
        %v12111 = vrot.slane %v12107, 4
        %v12112 = vadd.f32 %v12107, %v12111
        %v12113 = vrot.slane %v12112, 2
        %v12114 = vadd.f32 %v12112, %v12113
        %v12115 = vrot.slane %v12114, 1
        %v12116 = vadd.f32 %v12114, %v12115
        %v12117 = vrot.slane %v12108, 4
        %v12118 = vadd.f32 %v12108, %v12117
        %v12119 = vrot.slane %v12118, 2
        %v12120 = vadd.f32 %v12118, %v12119
        %v12121 = vrot.slane %v12120, 1
        %v12122 = vadd.f32 %v12120, %v12121
        %v12123 = vrot.slane %v12109, 4
        %v12124 = vadd.f32 %v12109, %v12123
        %v12125 = vrot.slane %v12124, 2
        %v12126 = vadd.f32 %v12124, %v12125
        %v12127 = vrot.slane %v12126, 1
        %v12128 = vadd.f32 %v12126, %v12127
        %v12129 = vrot.slane %v12110, 4
        %v12130 = vadd.f32 %v12110, %v12129
        %v12131 = vrot.slane %v12130, 2
        %v12132 = vadd.f32 %v12130, %v12131
        %v12133 = vrot.slane %v12132, 1
        %v12134 = vadd.f32 %v12132, %v12133
        %v12135 = vmul.f32 %v12116, %v4804
        %v12136 = vmul.f32 %v12122, %v4804
        %v12137 = vmul.f32 %v12128, %v4804
        %v12138 = vmul.f32 %v12134, %v4804
        %v12139 = vadd.f32 %v12135, 1e-05
        %v12140 = vadd.f32 %v12136, 1e-05
        %v12141 = vadd.f32 %v12137, 1e-05
        %v12142 = vadd.f32 %v12138, 1e-05
        %v12143 = vrsqrt.pop %v12139
        %v12144 = vrsqrt.pop %v12140
        %v12145 = vrsqrt.pop %v12141
        %v12146 = vrsqrt.pop %v12142
        %v12147 = vmul.f32 %v12103, %v12143
        %v12148 = vmul.f32 %v12104, %v12144
        %v12149 = vmul.f32 %v12105, %v12145
        %v12150 = vmul.f32 %v12106, %v12146
        %v12152 = vlaneseq
        %v12153 = vshrl.u32 %v12152, 7
        %v12154 = vsub.s32 0, %v12153
        %v12155 = vrot.slane %v12073, %v12154
        %v12156 = vlaneseq
        %v12157 = vshrl.u32 %v12156, 7
        %v12158 = vsub.s32 1, %v12157
        %v12159 = vrot.slane %v12073, %v12158
        %v12160 = vlaneseq
        %v12161 = vshrl.u32 %v12160, 7
        %v12162 = vsub.s32 2, %v12161
        %v12163 = vrot.slane %v12073, %v12162
        %v12164 = vlaneseq
        %v12165 = vshrl.u32 %v12164, 7
        %v12166 = vsub.s32 3, %v12165
        %v12167 = vrot.slane %v12073, %v12166
        %v12172 = vmul.f32 %v12147, %v12155
        %v12173 = vmul.f32 %v12148, %v12159
        %v12174 = vmul.f32 %v12149, %v12163
        %v12175 = vmul.f32 %v12150, %v12167
        %v12177 = vlaneseq
        %v12178 = vshrl.u32 %v12177, 7
        %v12179 = vsub.s32 0, %v12178
        %v12180 = vrot.slane %v12074, %v12179
        %v12181 = vlaneseq
        %v12182 = vshrl.u32 %v12181, 7
        %v12183 = vsub.s32 1, %v12182
        %v12184 = vrot.slane %v12074, %v12183
        %v12185 = vlaneseq
        %v12186 = vshrl.u32 %v12185, 7
        %v12187 = vsub.s32 2, %v12186
        %v12188 = vrot.slane %v12074, %v12187
        %v12189 = vlaneseq
        %v12190 = vshrl.u32 %v12189, 7
        %v12191 = vsub.s32 3, %v12190
        %v12192 = vrot.slane %v12074, %v12191
        %v12197 = vadd.f32 %v12172, %v12180
        %v12198 = vadd.f32 %v12173, %v12184
        %v12199 = vadd.f32 %v12174, %v12188
        %v12200 = vadd.f32 %v12175, %v12192
        %v12201 = vld [vmem:[#allocation12 + $0x18] sm:$0x3]
        %v12202 = vpack.c.bf16 %v12197, %v12197
        %v12203 = vpack.c.bf16 %v12198, %v12198
        %v12204 = vpack.c.bf16 %v12199, %v12199
        %v12205 = vpack.c.bf16 %v12200, %v12200
        %v12206 = vld [vmem:[#allocation6] sm:$0xff]
        %v12207 = vld [vmem:[#allocation6 + $0x8] sm:$0xff]
        %v12208 = vld [vmem:[#allocation6 + $0x10] sm:$0xff]
        %v12209 = vld [vmem:[#allocation6 + $0x18] sm:$0xff]
        %v12210 = vld [vmem:[#allocation6 + $0x20] sm:$0xff]
        %v12211 = vld [vmem:[#allocation6 + $0x28] sm:$0xff]
        %v12212 = vld [vmem:[#allocation6 + $0x30] sm:$0xff]
        %v12213 = vld [vmem:[#allocation6 + $0x38] sm:$0xff]
        %v12214 = vld [vmem:[#allocation6 + $0x40] sm:$0xff]
        %v12215 = vld [vmem:[#allocation6 + $0x48] sm:$0xff]
        %v12216 = vld [vmem:[#allocation6 + $0x50] sm:$0xff]
        %v12217 = vld [vmem:[#allocation6 + $0x58] sm:$0xff]
        %v12218 = vld [vmem:[#allocation6 + $0x60] sm:$0xff]
        %v12219 = vld [vmem:[#allocation6 + $0x68] sm:$0xff]
        %v12220 = vld [vmem:[#allocation6 + $0x70] sm:$0xff]
        %v12221 = vld [vmem:[#allocation6 + $0x78] sm:$0xff]
        %v12222 = vld [vmem:[#allocation6 + $0x80] sm:$0xff]
        %v12223 = vld [vmem:[#allocation6 + $0x88] sm:$0xff]
        %v12224 = vld [vmem:[#allocation6 + $0x90] sm:$0xff]
        %v12225 = vld [vmem:[#allocation6 + $0x98] sm:$0xff]
        %v12226 = vld [vmem:[#allocation6 + $0xa0] sm:$0xff]
        %v12227 = vld [vmem:[#allocation6 + $0xa8] sm:$0xff]
        %v12228 = vld [vmem:[#allocation6 + $0xb0] sm:$0xff]
        %v12229 = vld [vmem:[#allocation6 + $0xb8] sm:$0xff]
        %v12230 = vld [vmem:[#allocation6 + $0xc0] sm:$0xff]
        %v12231 = vld [vmem:[#allocation6 + $0xc8] sm:$0xff]
        %v12232 = vld [vmem:[#allocation6 + $0xd0] sm:$0xff]
        %v12233 = vld [vmem:[#allocation6 + $0xd8] sm:$0xff]
        %v12234 = vld [vmem:[#allocation6 + $0xe0] sm:$0xff]
        %v12235 = vld [vmem:[#allocation6 + $0xe8] sm:$0xff]
        %v12236 = vld [vmem:[#allocation6 + $0xf0] sm:$0xff]
        %v12237 = vld [vmem:[#allocation6 + $0xf8] sm:$0xff]
        %v12238 = vld [vmem:[#allocation6 + $0x100] sm:$0xff]
        %v12239 = vld [vmem:[#allocation6 + $0x108] sm:$0xff]
        %v12240 = vld [vmem:[#allocation6 + $0x110] sm:$0xff]
        %v12241 = vld [vmem:[#allocation6 + $0x118] sm:$0xff]
        %v12242 = vld [vmem:[#allocation6 + $0x120] sm:$0xff]
        %v12243 = vld [vmem:[#allocation6 + $0x128] sm:$0xff]
        %v12244 = vld [vmem:[#allocation6 + $0x130] sm:$0xff]
        %v12245 = vld [vmem:[#allocation6 + $0x138] sm:$0xff]
        %v12246 = vld [vmem:[#allocation6 + $0x140] sm:$0xff]
        %v12247 = vld [vmem:[#allocation6 + $0x148] sm:$0xff]
        %v12248 = vld [vmem:[#allocation6 + $0x150] sm:$0xff]
        %v12249 = vld [vmem:[#allocation6 + $0x158] sm:$0xff]
        %v12250 = vld [vmem:[#allocation6 + $0x160] sm:$0xff]
        %v12251 = vld [vmem:[#allocation6 + $0x168] sm:$0xff]
        %v12252 = vld [vmem:[#allocation6 + $0x170] sm:$0xff]
        %v12253 = vld [vmem:[#allocation6 + $0x178] sm:$0xff]
        %v12254 = vld [vmem:[#allocation6 + $0x180] sm:$0xff]
        %v12255 = vld [vmem:[#allocation6 + $0x188] sm:$0xff]
        %v12256 = vld [vmem:[#allocation6 + $0x190] sm:$0xff]
        %v12257 = vld [vmem:[#allocation6 + $0x198] sm:$0xff]
        %v12258 = vld [vmem:[#allocation6 + $0x1a0] sm:$0xff]
        %v12259 = vld [vmem:[#allocation6 + $0x1a8] sm:$0xff]
        %v12260 = vld [vmem:[#allocation6 + $0x1b0] sm:$0xff]
        %v12261 = vld [vmem:[#allocation6 + $0x1b8] sm:$0xff]
        %v12262 = vld [vmem:[#allocation6 + $0x1c0] sm:$0xff]
        %v12263 = vld [vmem:[#allocation6 + $0x1c8] sm:$0xff]
        %v12264 = vld [vmem:[#allocation6 + $0x1d0] sm:$0xff]
        %v12265 = vld [vmem:[#allocation6 + $0x1d8] sm:$0xff]
        %v12266 = vld [vmem:[#allocation6 + $0x1e0] sm:$0xff]
        %v12267 = vld [vmem:[#allocation6 + $0x1e8] sm:$0xff]
        %v12268 = vld [vmem:[#allocation6 + $0x1f0] sm:$0xff]
        %v12269 = vld [vmem:[#allocation6 + $0x1f8] sm:$0xff]
        %v12271 = vlaneseq
        %v12272 = vshrl.u32 %v12271, 7
        %v12273 = vsub.s32 0, %v12272
        %v12274 = vrot.slane %v12201, %v12273
        %v12275 = vlaneseq
        %v12276 = vshrl.u32 %v12275, 7
        %v12277 = vsub.s32 1, %v12276
        %v12278 = vrot.slane %v12201, %v12277
        %v12345 = vunpack.c.l.b16 %v12206
        %v12346 = vunpack.c.h.b16 %v12206
        %v12347 = vunpack.c.l.b16 %v12207
        %v12348 = vunpack.c.h.b16 %v12207
        %v12349 = vunpack.c.l.b16 %v12208
        %v12350 = vunpack.c.h.b16 %v12208
        %v12351 = vunpack.c.l.b16 %v12209
        %v12352 = vunpack.c.h.b16 %v12209
        %v12353 = vunpack.c.l.b16 %v12210
        %v12354 = vunpack.c.h.b16 %v12210
        %v12355 = vunpack.c.l.b16 %v12211
        %v12356 = vunpack.c.h.b16 %v12211
        %v12357 = vunpack.c.l.b16 %v12212
        %v12358 = vunpack.c.h.b16 %v12212
        %v12359 = vunpack.c.l.b16 %v12213
        %v12360 = vunpack.c.h.b16 %v12213
        %v12361 = vunpack.c.l.b16 %v12214
        %v12362 = vunpack.c.h.b16 %v12214
        %v12363 = vunpack.c.l.b16 %v12215
        %v12364 = vunpack.c.h.b16 %v12215
        %v12365 = vunpack.c.l.b16 %v12216
        %v12366 = vunpack.c.h.b16 %v12216
        %v12367 = vunpack.c.l.b16 %v12217
        %v12368 = vunpack.c.h.b16 %v12217
        %v12369 = vunpack.c.l.b16 %v12218
        %v12370 = vunpack.c.h.b16 %v12218
        %v12371 = vunpack.c.l.b16 %v12219
        %v12372 = vunpack.c.h.b16 %v12219
        %v12373 = vunpack.c.l.b16 %v12220
        %v12374 = vunpack.c.h.b16 %v12220
        %v12375 = vunpack.c.l.b16 %v12221
        %v12376 = vunpack.c.h.b16 %v12221
        %v12377 = vunpack.c.l.b16 %v12222
        %v12378 = vunpack.c.h.b16 %v12222
        %v12379 = vunpack.c.l.b16 %v12223
        %v12380 = vunpack.c.h.b16 %v12223
        %v12381 = vunpack.c.l.b16 %v12224
        %v12382 = vunpack.c.h.b16 %v12224
        %v12383 = vunpack.c.l.b16 %v12225
        %v12384 = vunpack.c.h.b16 %v12225
        %v12385 = vunpack.c.l.b16 %v12226
        %v12386 = vunpack.c.h.b16 %v12226
        %v12387 = vunpack.c.l.b16 %v12227
        %v12388 = vunpack.c.h.b16 %v12227
        %v12389 = vunpack.c.l.b16 %v12228
        %v12390 = vunpack.c.h.b16 %v12228
        %v12391 = vunpack.c.l.b16 %v12229
        %v12392 = vunpack.c.h.b16 %v12229
        %v12393 = vunpack.c.l.b16 %v12230
        %v12394 = vunpack.c.h.b16 %v12230
        %v12395 = vunpack.c.l.b16 %v12231
        %v12396 = vunpack.c.h.b16 %v12231
        %v12397 = vunpack.c.l.b16 %v12232
        %v12398 = vunpack.c.h.b16 %v12232
        %v12399 = vunpack.c.l.b16 %v12233
        %v12400 = vunpack.c.h.b16 %v12233
        %v12401 = vunpack.c.l.b16 %v12234
        %v12402 = vunpack.c.h.b16 %v12234
        %v12403 = vunpack.c.l.b16 %v12235
        %v12404 = vunpack.c.h.b16 %v12235
        %v12405 = vunpack.c.l.b16 %v12236
        %v12406 = vunpack.c.h.b16 %v12236
        %v12407 = vunpack.c.l.b16 %v12237
        %v12408 = vunpack.c.h.b16 %v12237
        %v12409 = vunpack.c.l.b16 %v12238
        %v12410 = vunpack.c.h.b16 %v12238
        %v12411 = vunpack.c.l.b16 %v12239
        %v12412 = vunpack.c.h.b16 %v12239
        %v12413 = vunpack.c.l.b16 %v12240
        %v12414 = vunpack.c.h.b16 %v12240
        %v12415 = vunpack.c.l.b16 %v12241
        %v12416 = vunpack.c.h.b16 %v12241
        %v12417 = vunpack.c.l.b16 %v12242
        %v12418 = vunpack.c.h.b16 %v12242
        %v12419 = vunpack.c.l.b16 %v12243
        %v12420 = vunpack.c.h.b16 %v12243
        %v12421 = vunpack.c.l.b16 %v12244
        %v12422 = vunpack.c.h.b16 %v12244
        %v12423 = vunpack.c.l.b16 %v12245
        %v12424 = vunpack.c.h.b16 %v12245
        %v12425 = vunpack.c.l.b16 %v12246
        %v12426 = vunpack.c.h.b16 %v12246
        %v12427 = vunpack.c.l.b16 %v12247
        %v12428 = vunpack.c.h.b16 %v12247
        %v12429 = vunpack.c.l.b16 %v12248
        %v12430 = vunpack.c.h.b16 %v12248
        %v12431 = vunpack.c.l.b16 %v12249
        %v12432 = vunpack.c.h.b16 %v12249
        %v12433 = vunpack.c.l.b16 %v12250
        %v12434 = vunpack.c.h.b16 %v12250
        %v12435 = vunpack.c.l.b16 %v12251
        %v12436 = vunpack.c.h.b16 %v12251
        %v12437 = vunpack.c.l.b16 %v12252
        %v12438 = vunpack.c.h.b16 %v12252
        %v12439 = vunpack.c.l.b16 %v12253
        %v12440 = vunpack.c.h.b16 %v12253
        %v12441 = vunpack.c.l.b16 %v12254
        %v12442 = vunpack.c.h.b16 %v12254
        %v12443 = vunpack.c.l.b16 %v12255
        %v12444 = vunpack.c.h.b16 %v12255
        %v12445 = vunpack.c.l.b16 %v12256
        %v12446 = vunpack.c.h.b16 %v12256
        %v12447 = vunpack.c.l.b16 %v12257
        %v12448 = vunpack.c.h.b16 %v12257
        %v12449 = vunpack.c.l.b16 %v12258
        %v12450 = vunpack.c.h.b16 %v12258
        %v12451 = vunpack.c.l.b16 %v12259
        %v12452 = vunpack.c.h.b16 %v12259
        %v12453 = vunpack.c.l.b16 %v12260
        %v12454 = vunpack.c.h.b16 %v12260
        %v12455 = vunpack.c.l.b16 %v12261
        %v12456 = vunpack.c.h.b16 %v12261
        %v12457 = vunpack.c.l.b16 %v12262
        %v12458 = vunpack.c.h.b16 %v12262
        %v12459 = vunpack.c.l.b16 %v12263
        %v12460 = vunpack.c.h.b16 %v12263
        %v12461 = vunpack.c.l.b16 %v12264
        %v12462 = vunpack.c.h.b16 %v12264
        %v12463 = vunpack.c.l.b16 %v12265
        %v12464 = vunpack.c.h.b16 %v12265
        %v12465 = vunpack.c.l.b16 %v12266
        %v12466 = vunpack.c.h.b16 %v12266
        %v12467 = vunpack.c.l.b16 %v12267
        %v12468 = vunpack.c.h.b16 %v12267
        %v12469 = vunpack.c.l.b16 %v12268
        %v12470 = vunpack.c.h.b16 %v12268
        %v12471 = vunpack.c.l.b16 %v12269
        %v12472 = vunpack.c.h.b16 %v12269
        %v12473 = vpack.c.b16 %v12347, %v12345
        %v12474 = vpack.c.b16 %v12348, %v12346
        %v12475 = vpack.c.b16 %v12351, %v12349
        %v12476 = vpack.c.b16 %v12352, %v12350
        %v12477 = vpack.c.b16 %v12355, %v12353
        %v12478 = vpack.c.b16 %v12356, %v12354
        %v12479 = vpack.c.b16 %v12359, %v12357
        %v12480 = vpack.c.b16 %v12360, %v12358
        %v12481 = vpack.c.b16 %v12363, %v12361
        %v12482 = vpack.c.b16 %v12364, %v12362
        %v12483 = vpack.c.b16 %v12367, %v12365
        %v12484 = vpack.c.b16 %v12368, %v12366
        %v12485 = vpack.c.b16 %v12371, %v12369
        %v12486 = vpack.c.b16 %v12372, %v12370
        %v12487 = vpack.c.b16 %v12375, %v12373
        %v12488 = vpack.c.b16 %v12376, %v12374
        %v12489 = vpack.c.b16 %v12379, %v12377
        %v12490 = vpack.c.b16 %v12380, %v12378
        %v12491 = vpack.c.b16 %v12383, %v12381
        %v12492 = vpack.c.b16 %v12384, %v12382
        %v12493 = vpack.c.b16 %v12387, %v12385
        %v12494 = vpack.c.b16 %v12388, %v12386
        %v12495 = vpack.c.b16 %v12391, %v12389
        %v12496 = vpack.c.b16 %v12392, %v12390
        %v12497 = vpack.c.b16 %v12395, %v12393
        %v12498 = vpack.c.b16 %v12396, %v12394
        %v12499 = vpack.c.b16 %v12399, %v12397
        %v12500 = vpack.c.b16 %v12400, %v12398
        %v12501 = vpack.c.b16 %v12403, %v12401
        %v12502 = vpack.c.b16 %v12404, %v12402
        %v12503 = vpack.c.b16 %v12407, %v12405
        %v12504 = vpack.c.b16 %v12408, %v12406
        %v12505 = vpack.c.b16 %v12411, %v12409
        %v12506 = vpack.c.b16 %v12412, %v12410
        %v12507 = vpack.c.b16 %v12415, %v12413
        %v12508 = vpack.c.b16 %v12416, %v12414
        %v12509 = vpack.c.b16 %v12419, %v12417
        %v12510 = vpack.c.b16 %v12420, %v12418
        %v12511 = vpack.c.b16 %v12423, %v12421
        %v12512 = vpack.c.b16 %v12424, %v12422
        %v12513 = vpack.c.b16 %v12427, %v12425
        %v12514 = vpack.c.b16 %v12428, %v12426
        %v12515 = vpack.c.b16 %v12431, %v12429
        %v12516 = vpack.c.b16 %v12432, %v12430
        %v12517 = vpack.c.b16 %v12435, %v12433
        %v12518 = vpack.c.b16 %v12436, %v12434
        %v12519 = vpack.c.b16 %v12439, %v12437
        %v12520 = vpack.c.b16 %v12440, %v12438
        %v12521 = vpack.c.b16 %v12443, %v12441
        %v12522 = vpack.c.b16 %v12444, %v12442
        %v12523 = vpack.c.b16 %v12447, %v12445
        %v12524 = vpack.c.b16 %v12448, %v12446
        %v12525 = vpack.c.b16 %v12451, %v12449
        %v12526 = vpack.c.b16 %v12452, %v12450
        %v12527 = vpack.c.b16 %v12455, %v12453
        %v12528 = vpack.c.b16 %v12456, %v12454
        %v12529 = vpack.c.b16 %v12459, %v12457
        %v12530 = vpack.c.b16 %v12460, %v12458
        %v12531 = vpack.c.b16 %v12463, %v12461
        %v12532 = vpack.c.b16 %v12464, %v12462
        %v12533 = vpack.c.b16 %v12467, %v12465
        %v12534 = vpack.c.b16 %v12468, %v12466
        %v12535 = vpack.c.b16 %v12471, %v12469
        %v12536 = vpack.c.b16 %v12472, %v12470
        %12601 = vmatprep.subr.bf16.mxu0 %v12488
        %12602 = vmatpush1.bf16.msra.mxu0 %v12487
        %12603 = vmatprep.subr.bf16.mxu0 %v12486
        %12604 = vmatpush1.bf16.msra.mxu0 %v12485
        %12605 = vmatprep.subr.bf16.mxu0 %v12484
        %12606 = vmatpush1.bf16.msra.mxu0 %v12483
        %12607 = vmatprep.subr.bf16.mxu0 %v12482
        %12608 = vmatpush1.bf16.msra.mxu0 %v12481
        %12609 = vmatprep.subr.bf16.mxu0 %v12480
        %12610 = vmatpush1.bf16.msra.mxu0 %v12479
        %12611 = vmatprep.subr.bf16.mxu0 %v12478
        %12612 = vmatpush1.bf16.msra.mxu0 %v12477
        %12613 = vmatprep.subr.bf16.mxu0 %v12476
        %12614 = vmatpush1.bf16.msra.mxu0 %v12475
        %12615 = vmatprep.subr.bf16.mxu0 %v12474
        %12616 = vmatpush1.bf16.msra.mxu0 %v12473
        %12617 = vmatprep.subr.bf16.mxu0 %v12504
        %12618 = vmatpush2.bf16.msra.mxu0 %v12503
        %12619 = vmatprep.subr.bf16.mxu0 %v12502
        %12620 = vmatpush2.bf16.msra.mxu0 %v12501
        %12621 = vmatprep.subr.bf16.mxu0 %v12500
        %12622 = vmatpush2.bf16.msra.mxu0 %v12499
        %12623 = vmatprep.subr.bf16.mxu0 %v12498
        %12624 = vmatpush2.bf16.msra.mxu0 %v12497
        %12625 = vmatprep.subr.bf16.mxu0 %v12496
        %12626 = vmatpush2.bf16.msra.mxu0 %v12495
        %12627 = vmatprep.subr.bf16.mxu0 %v12494
        %12628 = vmatpush2.bf16.msra.mxu0 %v12493
        %12629 = vmatprep.subr.bf16.mxu0 %v12492
        %12630 = vmatpush2.bf16.msra.mxu0 %v12491
        %12631 = vmatprep.subr.bf16.mxu0 %v12490
        %12632 = vmatpush2.bf16.msra.mxu0 %v12489
        %12633 = vmatprep.mubr.bf16.mxu0 %v12203
        %12634 = vmatmul.mubr.bf16.gmra.mxu0 %v12202
        %v12635 = vpop.f32.mrf.mxu0
        %v12636 = vadd.f32 %v12274, %v12635
        %v12637 = vpop.f32.mrf.mxu0
        %v12638 = vadd.f32 %v12278, %v12637
        %v12639 = vpop.f32.mrf.mxu0
        %v12640 = vpop.f32.mrf.mxu0
        %12641 = vdwg.mxu0
        %12642 = vmatprep.subr.bf16.mxu0 %v12520
        %12643 = vmatpush1.bf16.msra.mxu0 %v12519
        %12644 = vmatprep.subr.bf16.mxu0 %v12518
        %12645 = vmatpush1.bf16.msra.mxu0 %v12517
        %12646 = vmatprep.subr.bf16.mxu0 %v12516
        %12647 = vmatpush1.bf16.msra.mxu0 %v12515
        %12648 = vmatprep.subr.bf16.mxu0 %v12514
        %12649 = vmatpush1.bf16.msra.mxu0 %v12513
        %12650 = vmatprep.subr.bf16.mxu0 %v12512
        %12651 = vmatpush1.bf16.msra.mxu0 %v12511
        %12652 = vmatprep.subr.bf16.mxu0 %v12510
        %12653 = vmatpush1.bf16.msra.mxu0 %v12509
        %12654 = vmatprep.subr.bf16.mxu0 %v12508
        %12655 = vmatpush1.bf16.msra.mxu0 %v12507
        %12656 = vmatprep.subr.bf16.mxu0 %v12506
        %12657 = vmatpush1.bf16.msra.mxu0 %v12505
        %12658 = vmatprep.subr.bf16.mxu0 %v12536
        %12659 = vmatpush2.bf16.msra.mxu0 %v12535
        %12660 = vmatprep.subr.bf16.mxu0 %v12534
        %12661 = vmatpush2.bf16.msra.mxu0 %v12533
        %12662 = vmatprep.subr.bf16.mxu0 %v12532
        %12663 = vmatpush2.bf16.msra.mxu0 %v12531
        %12664 = vmatprep.subr.bf16.mxu0 %v12530
        %12665 = vmatpush2.bf16.msra.mxu0 %v12529
        %12666 = vmatprep.subr.bf16.mxu0 %v12528
        %12667 = vmatpush2.bf16.msra.mxu0 %v12527
        %12668 = vmatprep.subr.bf16.mxu0 %v12526
        %12669 = vmatpush2.bf16.msra.mxu0 %v12525
        %12670 = vmatprep.subr.bf16.mxu0 %v12524
        %12671 = vmatpush2.bf16.msra.mxu0 %v12523
        %12672 = vmatprep.subr.bf16.mxu0 %v12522
        %12673 = vmatpush2.bf16.msra.mxu0 %v12521
        %12674 = vmatprep.mubr.bf16.mxu0 %v12205
        %12675 = vmatmul.mubr.bf16.gmra.mxu0 %v12204
        %v12676 = vpop.f32.mrf.mxu0
        %v12677 = vadd.f32 %v12636, %v12676
        %v12678 = vpop.f32.mrf.mxu0
        %v12679 = vadd.f32 %v12638, %v12678
        %v12680 = vpop.f32.mrf.mxu0
        %v12681 = vpop.f32.mrf.mxu0
        %12682 = vdwg.mxu0
        %v12683 = vxor.u32 %v12677, 2147483648
        %v12684 = vxor.u32 %v12679, 2147483648
        %v12685 = vmul.f32 %v12683, 1.442695
        %v12686 = vpow.pop %v12685
        %v12687 = vmul.f32 %v12684, 1.442695
        %v12688 = vpow.pop %v12687
        %v12689 = vadd.f32 %v12686, 1.0
        %v12690 = vadd.f32 %v12688, 1.0
        %v12691 = vrcp.pop %v12689
        %v12692 = vmul.f32 1.0, %v12691
        %v12693 = vrcp.pop %v12690
        %v12694 = vmul.f32 1.0, %v12693
        %v12695 = vld [vmem:[#allocation14 + $0x18] sm:$0x3]
        %v12696 = vld [vmem:[#allocation15 + $0x18] sm:$0x3]
        %v12697 = vrot.slane %v12692, 4
        %v12698 = vadd.f32 %v12692, %v12697
        %v12699 = vrot.slane %v12698, 2
        %v12700 = vadd.f32 %v12698, %v12699
        %v12701 = vrot.slane %v12700, 1
        %v12702 = vadd.f32 %v12700, %v12701
        %v12703 = vrot.slane %v12694, 4
        %v12704 = vadd.f32 %v12694, %v12703
        %v12705 = vrot.slane %v12704, 2
        %v12706 = vadd.f32 %v12704, %v12705
        %v12707 = vrot.slane %v12706, 1
        %v12708 = vadd.f32 %v12706, %v12707
        %v12709 = vmul.f32 %v12702, %v4804
        %v12710 = vmul.f32 %v12708, %v4804
        %v12711 = vsub.f32 %v12692, %v12709
        %v12712 = vsub.f32 %v12694, %v12710
        %v12713 = vmul.f32 %v12711, %v12711
        %v12714 = vmul.f32 %v12712, %v12712
        %v12715 = vrot.slane %v12713, 4
        %v12716 = vadd.f32 %v12713, %v12715
        %v12717 = vrot.slane %v12716, 2
        %v12718 = vadd.f32 %v12716, %v12717
        %v12719 = vrot.slane %v12718, 1
        %v12720 = vadd.f32 %v12718, %v12719
        %v12721 = vrot.slane %v12714, 4
        %v12722 = vadd.f32 %v12714, %v12721
        %v12723 = vrot.slane %v12722, 2
        %v12724 = vadd.f32 %v12722, %v12723
        %v12725 = vrot.slane %v12724, 1
        %v12726 = vadd.f32 %v12724, %v12725
        %v12727 = vmul.f32 %v12720, %v4804
        %v12728 = vmul.f32 %v12726, %v4804
        %v12729 = vadd.f32 %v12727, 1e-05
        %v12730 = vadd.f32 %v12728, 1e-05
        %v12731 = vrsqrt.pop %v12729
        %v12732 = vrsqrt.pop %v12730
        %v12733 = vmul.f32 %v12711, %v12731
        %v12734 = vmul.f32 %v12712, %v12732
        %v12736 = vlaneseq
        %v12737 = vshrl.u32 %v12736, 7
        %v12738 = vsub.s32 0, %v12737
        %v12739 = vrot.slane %v12695, %v12738
        %v12740 = vlaneseq
        %v12741 = vshrl.u32 %v12740, 7
        %v12742 = vsub.s32 1, %v12741
        %v12743 = vrot.slane %v12695, %v12742
        %v12746 = vmul.f32 %v12733, %v12739
        %v12747 = vmul.f32 %v12734, %v12743
        %v12749 = vlaneseq
        %v12750 = vshrl.u32 %v12749, 7
        %v12751 = vsub.s32 0, %v12750
        %v12752 = vrot.slane %v12696, %v12751
        %v12753 = vlaneseq
        %v12754 = vshrl.u32 %v12753, 7
        %v12755 = vsub.s32 1, %v12754
        %v12756 = vrot.slane %v12696, %v12755
        %v12759 = vadd.f32 %v12746, %v12752
        %v12760 = vadd.f32 %v12747, %v12756
        %v12761 = vld [vmem:[#allocation12 + $0x1a] sm:$0x3]
        %v12762 = vpack.c.bf16 %v12759, %v12759
        %v12763 = vpack.c.bf16 %v12760, %v12760
        %v12764 = vld [vmem:[#allocation7] sm:$0xff]
        %v12765 = vld [vmem:[#allocation7 + $0x8] sm:$0xff]
        %v12766 = vld [vmem:[#allocation7 + $0x10] sm:$0xff]
        %v12767 = vld [vmem:[#allocation7 + $0x18] sm:$0xff]
        %v12768 = vld [vmem:[#allocation7 + $0x20] sm:$0xff]
        %v12769 = vld [vmem:[#allocation7 + $0x28] sm:$0xff]
        %v12770 = vld [vmem:[#allocation7 + $0x30] sm:$0xff]
        %v12771 = vld [vmem:[#allocation7 + $0x38] sm:$0xff]
        %v12772 = vld [vmem:[#allocation7 + $0x40] sm:$0xff]
        %v12773 = vld [vmem:[#allocation7 + $0x48] sm:$0xff]
        %v12774 = vld [vmem:[#allocation7 + $0x50] sm:$0xff]
        %v12775 = vld [vmem:[#allocation7 + $0x58] sm:$0xff]
        %v12776 = vld [vmem:[#allocation7 + $0x60] sm:$0xff]
        %v12777 = vld [vmem:[#allocation7 + $0x68] sm:$0xff]
        %v12778 = vld [vmem:[#allocation7 + $0x70] sm:$0xff]
        %v12779 = vld [vmem:[#allocation7 + $0x78] sm:$0xff]
        %v12780 = vld [vmem:[#allocation7 + $0x80] sm:$0xff]
        %v12781 = vld [vmem:[#allocation7 + $0x88] sm:$0xff]
        %v12782 = vld [vmem:[#allocation7 + $0x90] sm:$0xff]
        %v12783 = vld [vmem:[#allocation7 + $0x98] sm:$0xff]
        %v12784 = vld [vmem:[#allocation7 + $0xa0] sm:$0xff]
        %v12785 = vld [vmem:[#allocation7 + $0xa8] sm:$0xff]
        %v12786 = vld [vmem:[#allocation7 + $0xb0] sm:$0xff]
        %v12787 = vld [vmem:[#allocation7 + $0xb8] sm:$0xff]
        %v12788 = vld [vmem:[#allocation7 + $0xc0] sm:$0xff]
        %v12789 = vld [vmem:[#allocation7 + $0xc8] sm:$0xff]
        %v12790 = vld [vmem:[#allocation7 + $0xd0] sm:$0xff]
        %v12791 = vld [vmem:[#allocation7 + $0xd8] sm:$0xff]
        %v12792 = vld [vmem:[#allocation7 + $0xe0] sm:$0xff]
        %v12793 = vld [vmem:[#allocation7 + $0xe8] sm:$0xff]
        %v12794 = vld [vmem:[#allocation7 + $0xf0] sm:$0xff]
        %v12795 = vld [vmem:[#allocation7 + $0xf8] sm:$0xff]
        %v12797 = vlaneseq
        %v12798 = vshrl.u32 %v12797, 7
        %v12799 = vsub.s32 0, %v12798
        %v12800 = vrot.slane %v12761, %v12799
        %v12801 = vlaneseq
        %v12802 = vshrl.u32 %v12801, 7
        %v12803 = vsub.s32 1, %v12802
        %v12804 = vrot.slane %v12761, %v12803
        %v12839 = vunpack.c.l.b16 %v12764
        %v12840 = vunpack.c.h.b16 %v12764
        %v12841 = vunpack.c.l.b16 %v12765
        %v12842 = vunpack.c.h.b16 %v12765
        %v12843 = vunpack.c.l.b16 %v12766
        %v12844 = vunpack.c.h.b16 %v12766
        %v12845 = vunpack.c.l.b16 %v12767
        %v12846 = vunpack.c.h.b16 %v12767
        %v12847 = vunpack.c.l.b16 %v12768
        %v12848 = vunpack.c.h.b16 %v12768
        %v12849 = vunpack.c.l.b16 %v12769
        %v12850 = vunpack.c.h.b16 %v12769
        %v12851 = vunpack.c.l.b16 %v12770
        %v12852 = vunpack.c.h.b16 %v12770
        %v12853 = vunpack.c.l.b16 %v12771
        %v12854 = vunpack.c.h.b16 %v12771
        %v12855 = vunpack.c.l.b16 %v12772
        %v12856 = vunpack.c.h.b16 %v12772
        %v12857 = vunpack.c.l.b16 %v12773
        %v12858 = vunpack.c.h.b16 %v12773
        %v12859 = vunpack.c.l.b16 %v12774
        %v12860 = vunpack.c.h.b16 %v12774
        %v12861 = vunpack.c.l.b16 %v12775
        %v12862 = vunpack.c.h.b16 %v12775
        %v12863 = vunpack.c.l.b16 %v12776
        %v12864 = vunpack.c.h.b16 %v12776
        %v12865 = vunpack.c.l.b16 %v12777
        %v12866 = vunpack.c.h.b16 %v12777
        %v12867 = vunpack.c.l.b16 %v12778
        %v12868 = vunpack.c.h.b16 %v12778
        %v12869 = vunpack.c.l.b16 %v12779
        %v12870 = vunpack.c.h.b16 %v12779
        %v12871 = vunpack.c.l.b16 %v12780
        %v12872 = vunpack.c.h.b16 %v12780
        %v12873 = vunpack.c.l.b16 %v12781
        %v12874 = vunpack.c.h.b16 %v12781
        %v12875 = vunpack.c.l.b16 %v12782
        %v12876 = vunpack.c.h.b16 %v12782
        %v12877 = vunpack.c.l.b16 %v12783
        %v12878 = vunpack.c.h.b16 %v12783
        %v12879 = vunpack.c.l.b16 %v12784
        %v12880 = vunpack.c.h.b16 %v12784
        %v12881 = vunpack.c.l.b16 %v12785
        %v12882 = vunpack.c.h.b16 %v12785
        %v12883 = vunpack.c.l.b16 %v12786
        %v12884 = vunpack.c.h.b16 %v12786
        %v12885 = vunpack.c.l.b16 %v12787
        %v12886 = vunpack.c.h.b16 %v12787
        %v12887 = vunpack.c.l.b16 %v12788
        %v12888 = vunpack.c.h.b16 %v12788
        %v12889 = vunpack.c.l.b16 %v12789
        %v12890 = vunpack.c.h.b16 %v12789
        %v12891 = vunpack.c.l.b16 %v12790
        %v12892 = vunpack.c.h.b16 %v12790
        %v12893 = vunpack.c.l.b16 %v12791
        %v12894 = vunpack.c.h.b16 %v12791
        %v12895 = vunpack.c.l.b16 %v12792
        %v12896 = vunpack.c.h.b16 %v12792
        %v12897 = vunpack.c.l.b16 %v12793
        %v12898 = vunpack.c.h.b16 %v12793
        %v12899 = vunpack.c.l.b16 %v12794
        %v12900 = vunpack.c.h.b16 %v12794
        %v12901 = vunpack.c.l.b16 %v12795
        %v12902 = vunpack.c.h.b16 %v12795
        %v12903 = vpack.c.b16 %v12841, %v12839
        %v12904 = vpack.c.b16 %v12842, %v12840
        %v12905 = vpack.c.b16 %v12845, %v12843
        %v12906 = vpack.c.b16 %v12846, %v12844
        %v12907 = vpack.c.b16 %v12849, %v12847
        %v12908 = vpack.c.b16 %v12850, %v12848
        %v12909 = vpack.c.b16 %v12853, %v12851
        %v12910 = vpack.c.b16 %v12854, %v12852
        %v12911 = vpack.c.b16 %v12857, %v12855
        %v12912 = vpack.c.b16 %v12858, %v12856
        %v12913 = vpack.c.b16 %v12861, %v12859
        %v12914 = vpack.c.b16 %v12862, %v12860
        %v12915 = vpack.c.b16 %v12865, %v12863
        %v12916 = vpack.c.b16 %v12866, %v12864
        %v12917 = vpack.c.b16 %v12869, %v12867
        %v12918 = vpack.c.b16 %v12870, %v12868
        %v12919 = vpack.c.b16 %v12873, %v12871
        %v12920 = vpack.c.b16 %v12874, %v12872
        %v12921 = vpack.c.b16 %v12877, %v12875
        %v12922 = vpack.c.b16 %v12878, %v12876
        %v12923 = vpack.c.b16 %v12881, %v12879
        %v12924 = vpack.c.b16 %v12882, %v12880
        %v12925 = vpack.c.b16 %v12885, %v12883
        %v12926 = vpack.c.b16 %v12886, %v12884
        %v12927 = vpack.c.b16 %v12889, %v12887
        %v12928 = vpack.c.b16 %v12890, %v12888
        %v12929 = vpack.c.b16 %v12893, %v12891
        %v12930 = vpack.c.b16 %v12894, %v12892
        %v12931 = vpack.c.b16 %v12897, %v12895
        %v12932 = vpack.c.b16 %v12898, %v12896
        %v12933 = vpack.c.b16 %v12901, %v12899
        %v12934 = vpack.c.b16 %v12902, %v12900
        %12967 = vmatprep.subr.bf16.mxu0 %v12918
        %12968 = vmatpush1.bf16.msra.mxu0 %v12917
        %12969 = vmatprep.subr.bf16.mxu0 %v12916
        %12970 = vmatpush1.bf16.msra.mxu0 %v12915
        %12971 = vmatprep.subr.bf16.mxu0 %v12914
        %12972 = vmatpush1.bf16.msra.mxu0 %v12913
        %12973 = vmatprep.subr.bf16.mxu0 %v12912
        %12974 = vmatpush1.bf16.msra.mxu0 %v12911
        %12975 = vmatprep.subr.bf16.mxu0 %v12910
        %12976 = vmatpush1.bf16.msra.mxu0 %v12909
        %12977 = vmatprep.subr.bf16.mxu0 %v12908
        %12978 = vmatpush1.bf16.msra.mxu0 %v12907
        %12979 = vmatprep.subr.bf16.mxu0 %v12906
        %12980 = vmatpush1.bf16.msra.mxu0 %v12905
        %12981 = vmatprep.subr.bf16.mxu0 %v12904
        %12982 = vmatpush1.bf16.msra.mxu0 %v12903
        %12983 = vmatprep.subr.bf16.mxu0 %v12934
        %12984 = vmatpush2.bf16.msra.mxu0 %v12933
        %12985 = vmatprep.subr.bf16.mxu0 %v12932
        %12986 = vmatpush2.bf16.msra.mxu0 %v12931
        %12987 = vmatprep.subr.bf16.mxu0 %v12930
        %12988 = vmatpush2.bf16.msra.mxu0 %v12929
        %12989 = vmatprep.subr.bf16.mxu0 %v12928
        %12990 = vmatpush2.bf16.msra.mxu0 %v12927
        %12991 = vmatprep.subr.bf16.mxu0 %v12926
        %12992 = vmatpush2.bf16.msra.mxu0 %v12925
        %12993 = vmatprep.subr.bf16.mxu0 %v12924
        %12994 = vmatpush2.bf16.msra.mxu0 %v12923
        %12995 = vmatprep.subr.bf16.mxu0 %v12922
        %12996 = vmatpush2.bf16.msra.mxu0 %v12921
        %12997 = vmatprep.subr.bf16.mxu0 %v12920
        %12998 = vmatpush2.bf16.msra.mxu0 %v12919
        %12999 = vmatprep.mubr.bf16.mxu0 %v12763
        %13000 = vmatmul.mubr.bf16.gmra.mxu0 %v12762
        %v13001 = vpop.f32.mrf.mxu0
        %v13002 = vadd.f32 %v12800, %v13001
        %v13003 = vpop.f32.mrf.mxu0
        %v13004 = vadd.f32 %v12804, %v13003
        %v13005 = vpop.f32.mrf.mxu0
        %v13006 = vpop.f32.mrf.mxu0
        %13007 = vdwg.mxu0
        %v13008 = vmax.f32 %v13002, %v13004
        %13009 = vmax.xlane.f32.xlu0 %v13008
        %v13010 = vpop.xlane.xlu0 %13009
        %v13011 = vsub.f32 %v13002, %v13010
        %v13012 = vsub.f32 %v13004, %v13010
        %v13013 = vmul.f32 %v13011, 1.442695
        %v13014 = vpow.pop %v13013
        %v13015 = vmul.f32 %v13012, 1.442695
        %v13016 = vpow.pop %v13015
        %v13017 = vadd.f32 %v13014, %v13016
        %13018 = vadd.xlane.f32.xlu0 %v13017
        %v13019 = vpop.xlane.xlu0 %13018
        %v13020 = vlog2.pop %v13019
        %v13021 = vmul.f32 %v13020, 0.6931472
        %v13022 = vsub.f32 %v13011, %v13021
        %v13023 = vsub.f32 %v13012, %v13021
        %13024 = vst [vmem:[%s257] sm:$0xff] %v13022
        %13025 = vst [vmem:[%s257 + $0x8] sm:$0xff] %v13023
        %s13026 = sand.u32 %s126, 1
        %s13027 = scalar_lea.sflag [#allocation11], %s13026
        %s13028 = sand.u32 %s126, 1
        %s13029 = smul.addr %s13028, 16
        %s13030 = scalar_lea.vmem [#allocation17], %s13029
        // Predicated region
        $region81: #{tpu_custom_call.1} parent=35 // pred_check
          %p13031 = pneg %p136
        $region82: #{tpu_custom_call.1} parent=35 // pred_check_branch
          %13033 = sbr.rel (%p13031) target = $region84
        $region83: #{tpu_custom_call.1} parent=35 // pred_region
          %s13035 = ssub.s32 256, 256
          %13036 = vsyncadd %s13027, %s13035
          %s13037 = smul.addr %s29, 2
          %s13038 = smul.addr %s13037, 128
          %s13039 = scalar_lea.hbm %s10, %s13038
          %s13041 = sshll.u32 %s13030, 4
          %s13042 = int_to_ptr.vmem [resolvable:$true] %s13041
          %13044 = dma.vmem_to_hbm [thread:$0]  %s13042, 256, %s13039, %s13027
        $region84: #{tpu_custom_call.1} parent=35 // pred_fallthru
          _
      $region36: #{tpu_custom_call.1} parent=5 // pred_fallthru
        _
      %p13045 = scmp.le.s32.totalorder 2, %s24
      // Predicated region
      $region85: #{tpu_custom_call.1} parent=5 // pred_check
        %p13046 = pneg %p13045
      $region86: #{tpu_custom_call.1} parent=5 // pred_check_branch
        %13048 = sbr.rel (%p13046) target = $region88
      $region87: #{tpu_custom_call.1} parent=5 // pred_region
        %s13049 = ssub.s32 %s24, 2
        // Predicated region
        $region89: #{tpu_custom_call.1} parent=87 // pred_check
          %p13050 = pneg %p142
        $region90: #{tpu_custom_call.1} parent=87 // pred_check_branch
          %13052 = sbr.rel (%p13050) target = $region92
        $region91: #{tpu_custom_call.1} parent=87 // pred_region
          %s13053 = sand.u32 %s127, 1
          %s13054 = scalar_lea.sflag [#allocation11], %s13053
          %s13055 = sand.u32 %s127, 1
          %s13056 = smul.addr %s13055, 16
          %s13057 = scalar_lea.vmem [#allocation17], %s13056
          %13058 = dma.done %s13054, 256
        $region92: #{tpu_custom_call.1} parent=87 // pred_fallthru
          _
      $region88: #{tpu_custom_call.1} parent=5 // pred_fallthru
        _
    $region6: #{tpu_custom_call.1} parent=1 // loop_footer
      %s28 = sadd.s32 1, %s24
    $region7: #{tpu_custom_call.1} parent=1 // loop_footer_branch
      %23 = sbr.rel target = $region3
    $region8: #{tpu_custom_call.1} parent=1 // loop_exit
      _
    %13059 = vsyncpa [#allocation10], 1
    %s13060 = scalar_lea.sflag [#allocation10], 1
    %13061 = vsyncpa %s13060, 1
    %13062 = vsyncpa [#allocation13], 1
    %13063 = vsyncpa [#allocation16], 1
    %13064 = vsyncpa [#allocation11], 1
    %s13065 = scalar_lea.sflag [#allocation11], 1
    %13066 = vsyncpa %s13065, 1
  %13067 = vsyncmov [#allocation8]
  %s13068 = vpop.sfrf %13067
  %p13069 = scmp.eq.s32.totalorder %s13068, 0
  %p13070 = pneg %p13069
  %13072 = shalt.err (%p13070)
  %s13073 = scalar_lea.sflag [#allocation8], 1
  %13074 = vsyncmov %s13073
  %s13075 = vpop.sfrf %13074
  %p13076 = scmp.eq.s32.totalorder %s13075, 0
  %p13077 = pneg %p13076
  %13079 = shalt.err (%p13077)
  %s13080 = scalar_lea.sflag [#allocation8], 2
  %13081 = vsyncmov %s13080
  %s13082 = vpop.sfrf %13081
  %p13083 = scmp.eq.s32.totalorder %s13082, 0
  %p13084 = pneg %p13083
  %13086 = shalt.err (%p13084)
  %s13087 = scalar_lea.sflag [#allocation8], 3
  %13088 = vsyncmov %s13087
  %s13089 = vpop.sfrf %13088
  %p13090 = scmp.eq.s32.totalorder %s13089, 0
  %p13091 = pneg %p13090
  %13093 = shalt.err (%p13091)
  %s13094 = scalar_lea.sflag [#allocation8], 4
  %13095 = vsyncmov %s13094
  %s13096 = vpop.sfrf %13095
  %p13097 = scmp.eq.s32.totalorder %s13096, 0
  %p13098 = pneg %p13097
  %13100 = shalt.err (%p13098)
  %s13101 = scalar_lea.sflag [#allocation8], 5
  %13102 = vsyncmov %s13101
  %s13103 = vpop.sfrf %13102
  %p13104 = scmp.eq.s32.totalorder %s13103, 0
  %p13105 = pneg %p13104
  %13107 = shalt.err (%p13105)

</llo_original>
